<compile_context>
chip_gen: v5e
topology: v5e:2x2
jax: 0.10.0
libtpu: 0.0.40
codegen_flags: <defaults>
</compile_context>

<pallas_src>
import math

import jax
import jax.numpy as jnp
from jax.experimental import pallas as pl
from jax.experimental.pallas import tpu as pltpu


# ---------------- config (small shapes consistent with the module) ----------
B = 2          # batch
FEATURES = 8   # features
OUTCOMES = 4   # outcomes
D_M = 16       # d_m
D_L = 10       # d_l
HID = 10       # MAF hidden_features
N_LAYERS = 3   # MAF num_layers
N_BLOCKS = 5   # MAF num_blocks_per_layer

_LANES = 128
_LOG_1E5 = math.log(1e5)


def _softplus(x):
    # numerically stable softplus, usable inside Pallas kernels (VPU + EUP)
    return jnp.maximum(x, 0.0) + jnp.log1p(jnp.exp(-jnp.abs(x)))


def _beta_mean(lp_a, lp_b):
    """Mean of Beta(1 + 1e5*exp(lp_a), 1 + 1e5*exp(lp_b)) computed in log space."""
    la = lp_a + _LOG_1E5
    lb = lp_b + _LOG_1E5
    log2 = math.log(2.0)
    m = jnp.maximum(jnp.maximum(la, lb), log2)
    log_den = m + jnp.log(jnp.exp(la - m) + jnp.exp(lb - m) + jnp.exp(log2 - m))
    log_num = _softplus(la)                                  # log(1 + exp(la))
    return jnp.exp(log_num - log_den)


# ---------------- packed parameter slab layouts (static, module-level) -------
def _mk_layout(entries, align):
    off, r, width = {}, 0, 0
    for name, (rr, cc) in entries:
        r = ((r + align - 1) // align) * align
        off[name] = (r, rr, cc)
        r += rr
        width = max(width, cc)
    return off, r, width


# f32 slab: biases and parameters used elementwise / as attention inputs
_P_ENTRIES = [
    ("xm_w0", (1, 10)), ("xm_b0", (1, 10)), ("xm_b1", (1, 10)),
    ("xm_b2", (1, 10)), ("xm_b3", (1, D_M)),
    ("x_attn", (FEATURES, 2 * D_M)), ("y_attn", (OUTCOMES, D_M)),
    ("scaling", (OUTCOMES, FEATURES)),
    ("ff_b0", (1, D_M)), ("ff_b1", (1, D_M)),
    ("e1_b0", (1, 10)), ("e1_b1", (1, D_L)),
    ("e2_b0", (1, 10)), ("e2_b1", (1, D_L)),
]
_P_OFF, _P_ROWS, _P_W = _mk_layout(_P_ENTRIES, align=8)

# bf16 slab: forward-path MXU weight matrices
_W_ENTRIES = [
    ("xm_w1", (10, 10)), ("xm_w2", (10, 10)), ("xm_w3", (10, D_M)),
    ("xa_wq", (2 * D_M, 2 * D_M)), ("xa_wk", (D_M, 2 * D_M)), ("xa_wv", (2 * D_M, 2 * D_M)),
    ("at_wq", (D_M, D_M)), ("at_wk", (D_M, D_M)), ("at_wv", (D_M, D_M)),
    ("ff_w0", (D_M, D_M)), ("ff_w1", (D_M, D_M)),
    ("e1_w0", (D_M, 10)), ("e1_w1", (10, D_L)),
    ("e2_w0", (D_M, 10)), ("e2_w1", (10, D_L)),
]
_W_OFF, _W_ROWS, _W_W = _mk_layout(_W_ENTRIES, align=16)

# f32 slab: the single block-diagonally merged flow chain (4 flows in one)
_F_ENTRIES = []
for _l in range(N_LAYERS):
    _F_ENTRIES.append((f"win{_l}", (4 * D_L, 4 * HID)))
    _F_ENTRIES.append((f"bin{_l}", (1, 4 * HID)))
    for _k in range(N_BLOCKS):
        _F_ENTRIES.append((f"w1_{_l}_{_k}", (4 * HID, 4 * HID)))
        _F_ENTRIES.append((f"b1_{_l}_{_k}", (1, 4 * HID)))
        _F_ENTRIES.append((f"w2_{_l}_{_k}", (4 * HID, 4 * HID)))
        _F_ENTRIES.append((f"b2_{_l}_{_k}", (1, 4 * HID)))
    _F_ENTRIES.append((f"wout{_l}", (4 * HID, 8 * D_L)))
    _F_ENTRIES.append((f"bout{_l}", (1, 8 * D_L)))
_F_OFF, _F_ROWS, _F_W = _mk_layout(_F_ENTRIES, align=8)


# ------------------------------ fused kernel ---------------------------------
def fused_kernel(xv_ref, xcol_ref, p_ref, w_ref, f_ref, out_ref):
    f32, bf16 = jnp.float32, jnp.bfloat16
    Bb, _, F = xv_ref.shape
    O, Dm, Dl = OUTCOMES, D_M, D_L

    def P(name):
        r, rr, cc = _P_OFF[name]
        return p_ref[r:r + rr, 0:cc]

    def W(name):
        r, rr, cc = _W_OFF[name]
        return w_ref[r:r + rr, 0:cc]

    def FW(name):
        r, rr, cc = _F_OFF[name]
        return f_ref[r:r + rr, 0:cc]

    def wdot(a, name):                       # bf16 MXU matmul against packed weight
        return jnp.dot(a.astype(bf16), W(name), preferred_element_type=f32)

    def mm(a, b):                            # bf16 activation x activation matmul
        return jnp.dot(a.astype(bf16), b.astype(bf16), preferred_element_type=f32)

    def fdot(a, name):                       # f32 flow-chain matmul
        return jnp.dot(a, FW(name), preferred_element_type=f32)

    xv3 = xv_ref[...]                                        # (Bb, 1, F)
    x_mask3 = (xv3 != -1.0).astype(f32)                      # (Bb, 1, F); 1.0 == valid

    # ---- xmap: shared per-feature scalar MLP 1 -> 10 -> 10 -> 10 -> d_m -----
    # TODO(synk): `mapping` submodule source not provided; implemented as a
    # shared per-feature MLP with softplus activations.
    h = _softplus(xcol_ref[...] * P("xm_w0") + P("xm_b0"))   # (Bb*F, 10)
    h = _softplus(wdot(h, "xm_w1") + P("xm_b1"))
    h = _softplus(wdot(h, "xm_w2") + P("xm_b2"))
    xm = wdot(h, "xm_w3") + P("xm_b3")                        # (Bb*F, Dm)

    x_attn = P("x_attn")                                      # (F, 2Dm)
    y_attn = P("y_attn")                                      # (O, Dm)
    xatt_lo, xatt_hi = x_attn[:, :Dm], x_attn[:, Dm:]

    # batch-independent projections (1/sqrt(d_m) pre-folded into wq at prep)
    qp1 = wdot(x_attn, "xa_wq")                               # (F, 2Dm)
    vp1 = wdot(x_attn, "xa_wv")                               # (F, 2Dm)
    qp2 = wdot(y_attn, "at_wq")                               # (O, Dm)
    sp_scaling = _softplus(P("scaling"))                      # (O, F)

    # ---- attention 1: q = x_attn, k = xshift, v = x_attn (batched keys) -----
    # TODO(synk): `attention` submodule source not provided; implemented as
    # single-head projected dot-product attention with key masking.
    xatt_lo_t = jnp.concatenate([xatt_lo] * Bb, axis=0)       # (Bb*F, Dm)
    xatt_hi_t = jnp.concatenate([xatt_hi] * Bb, axis=0)
    xshift = xatt_lo_t + xm * xatt_hi_t                       # (Bb*F, Dm)
    kp1 = wdot(xshift, "xa_wk")                               # (Bb*F, 2Dm)
    s1_all = jax.lax.dot_general(qp1.astype(bf16), kp1.astype(bf16),
                                 (((1,), (1,)), ((), ())),
                                 preferred_element_type=f32)  # (F, Bb*F)

    def masked_softmax(s, mask_row):
        # NOTE: if every key of a row is masked, this degrades to uniform
        # attention over invalid keys (same behaviour as the original code).
        s = jnp.where(mask_row > 0.5, s, -1e30)
        s = s - jnp.max(s, axis=-1, keepdims=True)
        e = jnp.exp(s)
        return e * pl.reciprocal(jnp.sum(e, axis=-1, keepdims=True), approx=True)

    attn1 = [masked_softmax(s1_all[:, b * F:(b + 1) * F], x_mask3[b])
             for b in range(Bb)]
    attn1_all = jnp.concatenate(attn1, axis=0)                # (Bb*F, F) -> attn_x
    x_X = mm(attn1_all, vp1)                                  # (Bb*F, 2Dm)

    # ---- residual combine + ffn (batched over b) -----------------------------
    hb = x_X[:, :Dm] + xm * x_X[:, Dm:]
    hb = _softplus(wdot(hb, "ff_w0") + P("ff_b0"))
    hb = wdot(hb, "ff_w1") + P("ff_b1")                        # (Bb*F, Dm)

    # ---- attention 2: q = y_attn, k = v = h ----------------------------------
    kp2 = wdot(hb, "at_wk")                                    # (Bb*F, Dm)
    vp2 = wdot(hb, "at_wv")                                    # (Bb*F, Dm)
    s2_all = jax.lax.dot_general(qp2.astype(bf16), kp2.astype(bf16),
                                 (((1,), (1,)), ((), ())),
                                 preferred_element_type=f32)   # (O, Bb*F)

    attn2, z_list = [], []
    for b in range(Bb):
        mask_b = x_mask3[b]                                    # (1, F)
        a2 = masked_softmax(s2_all[:, b * F:(b + 1) * F], mask_b)   # (O, F)
        attn2.append(a2)
        zb = mm(a2, vp2[b * F:(b + 1) * F, :])                 # (O, Dm)
        mult = jnp.sum(sp_scaling * mask_b, axis=-1, keepdims=True)  # (O, 1)
        z_list.append(zb * mult + y_attn)
    attn2_all = jnp.concatenate(attn2, axis=0)                 # (Bb*O, F) -> attn
    z_all = jnp.concatenate(z_list, axis=0)                    # (Bb*O, Dm)

    # ---- encoder1 -> latent for the "full" flows (batched) -------------------
    t1 = _softplus(wdot(z_all, "e1_w0") + P("e1_b0"))
    latent = wdot(t1, "e1_w1") + P("e1_b1")                    # (Bb*O, Dl)

    # ---- values_ = xm + y_attn -> encoder2 -> latent for the "uni" flows -----
    vals_parts = []
    for b in range(Bb):
        xm_b = xm[b * F:(b + 1) * F, :]
        for o in range(O):
            vals_parts.append(xm_b + y_attn[o:o + 1, :])
    vals = jnp.concatenate(vals_parts, axis=0)                 # (Bb*O*F, Dm)
    t2 = _softplus(wdot(vals, "e2_w0") + P("e2_b0"))
    lat_uni = wdot(t2, "e2_w1") + P("e2_b1")                   # (Bb*O*F, Dl)

    # ---- all four MAF flows as ONE block-diagonal 40-wide chain (f32) --------
    # TODO(synk): nflows MaskedAutoregressiveFlow internals re-implemented from
    # the standard MAF recipe (3 layers x 5 masked residual blocks, softplus,
    # reverse permutations, standard-normal base); weights are synthetic.
    Nr, nf = Bb * O * F, Bb * O
    full_pad = jnp.concatenate([latent, jnp.zeros((Nr - nf, Dl), f32)], axis=0)
    S = jnp.concatenate([full_pad, full_pad, lat_uni, lat_uni], axis=1)   # (Nr, 4Dl)
    ls_acc = jnp.zeros((Nr, 4 * Dl), f32)
    for l in range(N_LAYERS):
        hh = fdot(S, f"win{l}") + FW(f"bin{l}")
        for k in range(N_BLOCKS):
            t = fdot(_softplus(hh), f"w1_{l}_{k}") + FW(f"b1_{l}_{k}")
            t = fdot(_softplus(t), f"w2_{l}_{k}") + FW(f"b2_{l}_{k}")
            hh = hh + t
        p = fdot(_softplus(hh), f"wout{l}") + FW(f"bout{l}")   # (Nr, 8Dl)
        shift = p[:, :4 * Dl]
        scale = _softplus(p[:, 4 * Dl:]) + 1e-3
        S = scale * S + shift
        ls_acc = ls_acc + jnp.log(scale)

    c = 0.5 * Dl * math.log(2.0 * math.pi)
    sq = S * S

    def block_logp(i):
        lo = i * Dl
        return (-0.5 * jnp.sum(sq[:, lo:lo + Dl], axis=-1, keepdims=True) - c
                + jnp.sum(ls_acc[:, lo:lo + Dl], axis=-1, keepdims=True))

    lp_af = block_logp(0)[:nf]      # full-flow log-probs live in rows 0..nf-1
    lp_bf = block_logp(1)[:nf]
    lp_au = block_logp(2)           # (Nr, 1)
    lp_bu = block_logp(3)

    sp = _beta_mean(lp_af, lp_bf)                               # (nf, 1)
    pr = _beta_mean(lp_au, lp_bu)                               # (Nr, 1)
    # Beta params exactly as the torch module (1 + 1e5*exp(logp)); exponent is
    # clamped just below f32 overflow so beta_params stays finite where the
    # original would emit inf.
    bpa = 1.0 + 1e5 * jnp.exp(jnp.minimum(lp_af, 77.0))
    bpb = 1.0 + 1e5 * jnp.exp(jnp.minimum(lp_bf, 77.0))

    # ---- single lane-dense packed output slab: one (O*F, 128) store per b ----
    RPB = O * F
    for b in range(Bb):
        colA = jnp.concatenate(
            [attn1_all[b * F:(b + 1) * F, :],                  # attn_x  (F, F)
             attn2_all[b * O:(b + 1) * O, :],                  # attn    (O, F)
             jnp.zeros((RPB - F - O, F), f32)], axis=0)        # (RPB, F)

        def padrows(x):
            return jnp.concatenate([x, jnp.zeros((RPB - O, 1), f32)], axis=0)

        slab = jnp.concatenate(
            [colA,
             pr[b * RPB:(b + 1) * RPB],                        # probs        lane F
             padrows(sp[b * O:(b + 1) * O]),                   # single_prob  lane F+1
             padrows(bpa[b * O:(b + 1) * O]),                  # beta alpha   lane F+2
             padrows(bpb[b * O:(b + 1) * O]),                  # beta beta    lane F+3
             jnp.zeros((RPB, _LANES - F - 4), f32)], axis=1)   # (RPB, 128)
        out_ref[b] = slab


# ------------------------------ MADE masks ------------------------------------
def made_masks(d, h):
    deg_in = jnp.arange(1, d + 1)
    deg_h = (jnp.arange(h) % max(1, d - 1)) + 1
    m_in = (deg_h[None, :] >= deg_in[:, None]).astype(jnp.float32)   # (d, h)
    m_hh = (deg_h[None, :] >= deg_h[:, None]).astype(jnp.float32)    # (h, h)
    deg_out = jnp.concatenate([deg_in, deg_in])                      # (2d,)
    m_out = (deg_out[None, :] > deg_h[:, None]).astype(jnp.float32)  # (h, 2d)
    return m_in, m_hh, m_out


# ------------------------------ parameters ------------------------------------
def init_params(key):
    keys = jax.random.split(key, 512)
    ctr = [0]

    def nk():
        k = keys[ctr[0]]
        ctr[0] += 1
        return k

    def lin(din, dout):
        w = jax.random.normal(nk(), (din, dout), jnp.float32) / math.sqrt(din)
        b = jnp.zeros((1, dout), jnp.float32)
        return w, b

    def attn_w(dq, dk, dv, dmm):
        return dict(
            wq=jax.random.normal(nk(), (dq, dmm), jnp.float32) / math.sqrt(dq),
            wk=jax.random.normal(nk(), (dk, dmm), jnp.float32) / math.sqrt(dk),
            wv=jax.random.normal(nk(), (dv, dmm), jnp.float32) / math.sqrt(dv),
        )

    def made_layer():
        return dict(
            w_in=jax.random.normal(nk(), (D_L, HID), jnp.float32) / math.sqrt(D_L),
            b_in=jnp.zeros((1, HID), jnp.float32),
            w1s=jax.random.normal(nk(), (N_BLOCKS, HID, HID), jnp.float32) / math.sqrt(HID),
            b1s=jnp.zeros((N_BLOCKS, 1, HID), jnp.float32),
            w2s=jax.random.normal(nk(), (N_BLOCKS, HID, HID), jnp.float32) / math.sqrt(HID),
            b2s=jnp.zeros((N_BLOCKS, 1, HID), jnp.float32),
            w_out=jax.random.normal(nk(), (HID, 2 * D_L), jnp.float32) / math.sqrt(HID),
            b_out=jnp.zeros((1, 2 * D_L), jnp.float32),
        )

    return dict(
        N=jax.random.randint(nk(), (8, 2), 1, 100, jnp.int32),     # nn.Parameter, no grad
        x_attn=jax.random.normal(nk(), (1, FEATURES, 2 * D_M), jnp.float32),
        y_attn=jax.random.normal(nk(), (1, OUTCOMES, D_M), jnp.float32),
        scaling=jax.random.normal(nk(), (1, OUTCOMES, FEATURES), jnp.float32),
        xmap=[lin(1, 10), lin(10, 10), lin(10, 10), lin(10, D_M)],
        xattn=attn_w(2 * D_M, D_M, 2 * D_M, 2 * D_M),
        attn=attn_w(D_M, D_M, D_M, D_M),
        ffn=[lin(D_M, D_M), lin(D_M, D_M)],
        enc1=[lin(D_M, 10), lin(10, D_L)],
        enc2=[lin(D_M, 10), lin(10, D_L)],
        flow_alpha_full=[made_layer() for _ in range(N_LAYERS)],
        flow_beta_full=[made_layer() for _ in range(N_LAYERS)],
        flow_alpha_uni=[made_layer() for _ in range(N_LAYERS)],
        flow_beta_uni=[made_layer() for _ in range(N_LAYERS)],
    )


def prepare_params(params):
    """One-time folding (MADE masks, reverse permutations, 1/sqrt(d) scales,
    alpha/beta/full/uni block-diagonal flow merge) + packing into 3 slabs."""
    m_in, m_hh, m_out = made_masks(D_L, HID)

    def fold_layer(layer, flip):
        w_in = layer['w_in'] * m_in
        w1 = layer['w1s'] * m_hh[None]
        w2 = layer['w2s'] * m_hh[None]
        w_out = layer['w_out'] * m_out
        b_out = layer['b_out']
        if flip:
            # Fold the ReversePermutation into the weights: reverse input rows,
            # and reverse the shift / raw-scale output columns within blocks.
            w_in = w_in[::-1, :]
            w_out = jnp.concatenate([w_out[:, :D_L][:, ::-1],
                                     w_out[:, D_L:][:, ::-1]], axis=1)
            b_out = jnp.concatenate([b_out[:, :D_L][:, ::-1],
                                     b_out[:, D_L:][:, ::-1]], axis=1)
        return dict(w_in=w_in, b_in=layer['b_in'], w1=w1, b1=layer['b1s'],
                    w2=w2, b2=layer['b2s'], w_out=w_out, b_out=b_out)

    def block_diag(mats):
        r, c = mats[0].shape
        out = jnp.zeros((len(mats) * r, len(mats) * c), jnp.float32)
        for i, m in enumerate(mats):
            out = out.at[i * r:(i + 1) * r, i * c:(i + 1) * c].set(m)
        return out

    # merge the 4 flows [alpha_full, beta_full, alpha_uni, beta_uni] into one chain
    flows = [params['flow_alpha_full'], params['flow_beta_full'],
             params['flow_alpha_uni'], params['flow_beta_uni']]
    fvals = {}
    for l in range(N_LAYERS):
        flip = (l % 2 == 0)   # layers 0 and 2 see a reversed input (canonical order)
        fl = [fold_layer(fw[l], flip) for fw in flows]
        fvals[f"win{l}"] = block_diag([f['w_in'] for f in fl])
        fvals[f"bin{l}"] = jnp.concatenate([f['b_in'] for f in fl], axis=1)
        for k in range(N_BLOCKS):
            fvals[f"w1_{l}_{k}"] = block_diag([f['w1'][k] for f in fl])
            fvals[f"b1_{l}_{k}"] = jnp.concatenate([f['b1'][k] for f in fl], axis=1)
            fvals[f"w2_{l}_{k}"] = block_diag([f['w2'][k] for f in fl])
            fvals[f"b2_{l}_{k}"] = jnp.concatenate([f['b2'][k] for f in fl], axis=1)
        # output columns reordered to [shift x4 blocks | raw-scale x4 blocks]
        wout = jnp.zeros((4 * HID, 8 * D_L), jnp.float32)
        bout_shift, bout_raw = [], []
        for i, f in enumerate(fl):
            wout = wout.at[i * HID:(i + 1) * HID,
                           i * D_L:(i + 1) * D_L].set(f['w_out'][:, :D_L])
            wout = wout.at[i * HID:(i + 1) * HID,
                           4 * D_L + i * D_L:4 * D_L + (i + 1) * D_L].set(f['w_out'][:, D_L:])
            bout_shift.append(f['b_out'][:, :D_L])
            bout_raw.append(f['b_out'][:, D_L:])
        fvals[f"wout{l}"] = wout
        fvals[f"bout{l}"] = jnp.concatenate(bout_shift + bout_raw, axis=1)

    (w0, b0), (w1_, b1_), (w2_, b2_), (w3_, b3_) = params['xmap']
    pvals = {
        "xm_w0": w0, "xm_b0": b0, "xm_b1": b1_, "xm_b2": b2_, "xm_b3": b3_,
        "x_attn": params['x_attn'][0], "y_attn": params['y_attn'][0],
        "scaling": params['scaling'][0],
        "ff_b0": params['ffn'][0][1], "ff_b1": params['ffn'][1][1],
        "e1_b0": params['enc1'][0][1], "e1_b1": params['enc1'][1][1],
        "e2_b0": params['enc2'][0][1], "e2_b1": params['enc2'][1][1],
    }
    wvals = {
        "xm_w1": w1_, "xm_w2": w2_, "xm_w3": w3_,
        "xa_wq": params['xattn']['wq'] / math.sqrt(2 * D_M),   # fold 1/sqrt(d) into wq
        "xa_wk": params['xattn']['wk'], "xa_wv": params['xattn']['wv'],
        "at_wq": params['attn']['wq'] / math.sqrt(D_M),
        "at_wk": params['attn']['wk'], "at_wv": params['attn']['wv'],
        "ff_w0": params['ffn'][0][0], "ff_w1": params['ffn'][1][0],
        "e1_w0": params['enc1'][0][0], "e1_w1": params['enc1'][1][0],
        "e2_w0": params['enc2'][0][0], "e2_w1": params['enc2'][1][0],
    }

    def pack(off, rows, width, vals, dtype):
        slab = jnp.zeros((rows, width), jnp.float32)
        for name, (r, rr, cc) in off.items():
            slab = slab.at[r:r + rr, 0:cc].set(vals[name].astype(jnp.float32))
        return slab.astype(dtype)

    return dict(
        N=params['N'],
        pslab=pack(_P_OFF, _P_ROWS, _P_W, pvals, jnp.float32),
        wslab=pack(_W_OFF, _W_ROWS, _W_W, wvals, jnp.bfloat16),
        fslab=pack(_F_OFF, _F_ROWS, _F_W, fvals, jnp.float32),
    )


# ------------------------------ forward (yv=None path) ------------------------
def _num_tensorcores():
    """2 only on v7x (2 TensorCores/chip). On 1-TC chips (v5e/v6e) a 2-wide
    grid would just serialize the dependent flow chain twice, so keep 1."""
    try:
        kind = jax.devices()[0].device_kind.lower()
    except Exception:
        return 1
    return 2 if ("v7" in kind or "7x" in kind or "tpu7" in kind) else 1


def forward(prep, xv, num_cores=1):
    Bt, Fdim = xv.shape
    nc = num_cores if (num_cores and Bt % num_cores == 0) else 1
    bper = Bt // nc
    rpb = OUTCOMES * FEATURES

    xv3 = xv.reshape(Bt, 1, Fdim)               # layout-friendly per-core blocking
    xcol = xv.reshape(Bt * Fdim, 1)             # xmap scalar input, built outside

    out = pl.pallas_call(
        fused_kernel,
        out_shape=jax.ShapeDtypeStruct((Bt, rpb, _LANES), jnp.float32),
        grid=(nc,),
        in_specs=[
            pl.BlockSpec((bper, 1, Fdim), lambda c: (c, 0, 0)),
            pl.BlockSpec((bper * Fdim, 1), lambda c: (c, 0)),
            pl.BlockSpec(prep["pslab"].shape, lambda c: (0, 0)),
            pl.BlockSpec(prep["wslab"].shape, lambda c: (0, 0)),
            pl.BlockSpec(prep["fslab"].shape, lambda c: (0, 0)),
        ],
        out_specs=pl.BlockSpec((bper, rpb, _LANES), lambda c: (c, 0, 0)),
        compiler_params=pltpu.CompilerParams(dimension_semantics=("parallel",)),
    )(xv3, xcol, prep["pslab"], prep["wslab"], prep["fslab"])

    F_, O = FEATURES, OUTCOMES
    attn_x = out[:, :F_, :F_]                                  # (B, F, F)
    attn = out[:, F_:F_ + O, :F_]                              # (B, O, F)
    probs = out[:, :, F_].reshape(Bt, O, F_)                   # (B, O, F)
    single_prob = out[:, :O, F_ + 1]                           # (B, O)
    beta_params = jnp.stack([out[:, :O, F_ + 2], out[:, :O, F_ + 3]], axis=-1)
    N_rep = jnp.tile(prep["N"][None], (Bt, 1, 1))              # (B, 8, 2) int32

    # TODO(synk): training branch (yv is not None: UCE loss, KLD, regularisers,
    # AdaBelief optimizer / scheduler) is not part of inference and not implemented.
    return single_prob, probs, N_rep, (attn, attn_x, beta_params)


if __name__ == "__main__":
    key = jax.random.PRNGKey(0)
    pkey, xkey = jax.random.split(key)
    params = init_params(pkey)
    prep = prepare_params(params)    # one-time mask/permutation/scale folding + packing

    xv = jax.random.normal(xkey, (B, FEATURES), jnp.float32)
    # mark a couple of entries as missing (== -1) to exercise the mask path
    xv = xv.at[0, 3].set(-1.0).at[1, 6].set(-1.0)

    nc = _num_tensorcores()
    fwd = jax.jit(lambda p, x: forward(p, x, num_cores=nc))
    single_prob, probs, N_rep, (attn, attn_x, beta_params) = fwd(prep, xv)
    jax.block_until_ready((single_prob, probs, N_rep, attn, attn_x, beta_params))

    assert single_prob.shape == (B, OUTCOMES)
    assert probs.shape == (B, OUTCOMES, FEATURES)
    assert N_rep.shape == (B, 8, 2)
    assert attn.shape == (B, OUTCOMES, FEATURES)
    assert attn_x.shape == (B, FEATURES, FEATURES)
    assert beta_params.shape == (B, OUTCOMES, 2)
    assert bool(jnp.all(jnp.isfinite(single_prob))) and bool(jnp.all(jnp.isfinite(probs)))
    assert bool(jnp.all(jnp.isfinite(beta_params)))
    print("KERNEL_OK")
</pallas_src>

<mosaic_0001>
module attributes {stable_mosaic.version = 11 : i64} {
  func.func @fused_kernel(%arg0: i32, %arg1: memref<2x1x8xf32, #tpu.memory_space<vmem>>, %arg2: memref<16x1xf32, #tpu.memory_space<vmem>>, %arg3: memref<105x32xf32, #tpu.memory_space<vmem>>, %arg4: memref<266x32xbf16, #tpu.memory_space<vmem>>, %arg5: memref<1721x80xf32, #tpu.memory_space<vmem>>, %arg6: memref<2x32x128xf32, #tpu.memory_space<vmem>>) attributes {dimension_semantics = [#tpu.dimension_semantics<parallel>], iteration_bounds = array<i64: 1>, scalar_prefetch = 0 : i64, scratch_operands = 0 : i64, tpu.core_type = #tpu.core_type<tc>, window_params = [{transform_indices = @transform_0, window_bounds = array<i64: 2, 1, 8>}, {transform_indices = @transform_1, window_bounds = array<i64: 16, 1>}, {pipeline_mode = #tpu.pipeline_mode<synchronous>, transform_indices = @transform_2, window_bounds = array<i64: 105, 32>}, {pipeline_mode = #tpu.pipeline_mode<synchronous>, transform_indices = @transform_3, window_bounds = array<i64: 266, 32>}, {pipeline_mode = #tpu.pipeline_mode<synchronous>, transform_indices = @transform_4, window_bounds = array<i64: 1721, 80>}, {transform_indices = @transform_5, window_bounds = array<i64: 2, 32, 128>}]} {
    %c0 = arith.constant 0 : index
    %c0_0 = arith.constant 0 : index
    %c0_1 = arith.constant 0 : index
    %0 = vector.load %arg1[%c0, %c0_0, %c0_1] : memref<2x1x8xf32, #tpu.memory_space<vmem>>, vector<2x1x8xf32>
    %cst = arith.constant -1.000000e+00 : f32
    %1 = vector.broadcast %cst : f32 to vector<2x1x8xf32>
    %2 = arith.cmpf one, %0, %1 : vector<2x1x8xf32>
    %3 = arith.extui %2 : vector<2x1x8xi1> to vector<2x1x8xi32>
    %4 = arith.sitofp %3 : vector<2x1x8xi32> to vector<2x1x8xf32>
    %c0_2 = arith.constant 0 : index
    %c0_3 = arith.constant 0 : index
    %5 = vector.load %arg2[%c0_2, %c0_3] : memref<16x1xf32, #tpu.memory_space<vmem>>, vector<16x1xf32>
    %c0_4 = arith.constant 0 : index
    %c0_5 = arith.constant 0 : index
    %6 = vector.load %arg3[%c0_4, %c0_5] : memref<105x32xf32, #tpu.memory_space<vmem>>, vector<1x10xf32>
    %7 = vector.broadcast %5 : vector<16x1xf32> to vector<16x10xf32>
    %8 = vector.broadcast %6 : vector<1x10xf32> to vector<16x10xf32>
    %9 = arith.mulf %7, %8 : vector<16x10xf32>
    %c8 = arith.constant 8 : index
    %c0_6 = arith.constant 0 : index
    %10 = vector.load %arg3[%c8, %c0_6] : memref<105x32xf32, #tpu.memory_space<vmem>>, vector<1x10xf32>
    %11 = vector.broadcast %10 : vector<1x10xf32> to vector<16x10xf32>
    %12 = arith.addf %9, %11 : vector<16x10xf32>
    %cst_7 = arith.constant 0.000000e+00 : f32
    %13 = vector.broadcast %cst_7 : f32 to vector<16x10xf32>
    %14 = arith.maximumf %12, %13 : vector<16x10xf32>
    %15 = math.absf %12 : vector<16x10xf32>
    %cst_8 = arith.constant 0.000000e+00 : f32
    %16 = vector.broadcast %cst_8 : f32 to vector<16x10xf32>
    %17 = arith.subf %16, %15 : vector<16x10xf32>
    %18 = math.exp %17 : vector<16x10xf32>
    %19 = math.log1p %18 : vector<16x10xf32>
    %20 = arith.addf %14, %19 : vector<16x10xf32>
    %21 = arith.truncf %20 : vector<16x10xf32> to vector<16x10xbf16>
    %c0_9 = arith.constant 0 : index
    %c0_10 = arith.constant 0 : index
    %22 = vector.load %arg4[%c0_9, %c0_10] : memref<266x32xbf16, #tpu.memory_space<vmem>>, vector<10x10xbf16>
    %cst_11 = arith.constant dense<0.000000e+00> : vector<16x10xf32>
    %23 = tpu.matmul %21, %22, %cst_11 {dimension_numbers = #tpu.dot_dimension_numbers<[1], [0], [0], [1], [0, 0, 1, 1], [], []>} : vector<16x10xbf16>, vector<10x10xbf16>, vector<16x10xf32> -> vector<16x10xf32>
    %c16 = arith.constant 16 : index
    %c0_12 = arith.constant 0 : index
    %24 = vector.load %arg3[%c16, %c0_12] : memref<105x32xf32, #tpu.memory_space<vmem>>, vector<1x10xf32>
    %25 = vector.broadcast %24 : vector<1x10xf32> to vector<16x10xf32>
    %26 = arith.addf %23, %25 : vector<16x10xf32>
    %cst_13 = arith.constant 0.000000e+00 : f32
    %27 = vector.broadcast %cst_13 : f32 to vector<16x10xf32>
    %28 = arith.maximumf %26, %27 : vector<16x10xf32>
    %29 = math.absf %26 : vector<16x10xf32>
    %cst_14 = arith.constant 0.000000e+00 : f32
    %30 = vector.broadcast %cst_14 : f32 to vector<16x10xf32>
    %31 = arith.subf %30, %29 : vector<16x10xf32>
    %32 = math.exp %31 : vector<16x10xf32>
    %33 = math.log1p %32 : vector<16x10xf32>
    %34 = arith.addf %28, %33 : vector<16x10xf32>
    %35 = arith.truncf %34 : vector<16x10xf32> to vector<16x10xbf16>
    %c16_15 = arith.constant 16 : index
    %c0_16 = arith.constant 0 : index
    %36 = vector.load %arg4[%c16_15, %c0_16] : memref<266x32xbf16, #tpu.memory_space<vmem>>, vector<10x10xbf16>
    %cst_17 = arith.constant dense<0.000000e+00> : vector<16x10xf32>
    %37 = tpu.matmul %35, %36, %cst_17 {dimension_numbers = #tpu.dot_dimension_numbers<[1], [0], [0], [1], [0, 0, 1, 1], [], []>} : vector<16x10xbf16>, vector<10x10xbf16>, vector<16x10xf32> -> vector<16x10xf32>
    %c24 = arith.constant 24 : index
    %c0_18 = arith.constant 0 : index
    %38 = vector.load %arg3[%c24, %c0_18] : memref<105x32xf32, #tpu.memory_space<vmem>>, vector<1x10xf32>
    %39 = vector.broadcast %38 : vector<1x10xf32> to vector<16x10xf32>
    %40 = arith.addf %37, %39 : vector<16x10xf32>
    %cst_19 = arith.constant 0.000000e+00 : f32
    %41 = vector.broadcast %cst_19 : f32 to vector<16x10xf32>
    %42 = arith.maximumf %40, %41 : vector<16x10xf32>
    %43 = math.absf %40 : vector<16x10xf32>
    %cst_20 = arith.constant 0.000000e+00 : f32
    %44 = vector.broadcast %cst_20 : f32 to vector<16x10xf32>
    %45 = arith.subf %44, %43 : vector<16x10xf32>
    %46 = math.exp %45 : vector<16x10xf32>
    %47 = math.log1p %46 : vector<16x10xf32>
    %48 = arith.addf %42, %47 : vector<16x10xf32>
    %49 = arith.truncf %48 : vector<16x10xf32> to vector<16x10xbf16>
    %c32 = arith.constant 32 : index
    %c0_21 = arith.constant 0 : index
    %50 = vector.load %arg4[%c32, %c0_21] : memref<266x32xbf16, #tpu.memory_space<vmem>>, vector<10x16xbf16>
    %cst_22 = arith.constant dense<0.000000e+00> : vector<16x16xf32>
    %51 = tpu.matmul %49, %50, %cst_22 {dimension_numbers = #tpu.dot_dimension_numbers<[1], [0], [0], [1], [0, 0, 1, 1], [], []>} : vector<16x10xbf16>, vector<10x16xbf16>, vector<16x16xf32> -> vector<16x16xf32>
    %c32_23 = arith.constant 32 : index
    %c0_24 = arith.constant 0 : index
    %52 = vector.load %arg3[%c32_23, %c0_24] : memref<105x32xf32, #tpu.memory_space<vmem>>, vector<1x16xf32>
    %53 = vector.broadcast %52 : vector<1x16xf32> to vector<16x16xf32>
    %54 = arith.addf %51, %53 : vector<16x16xf32>
    %c40 = arith.constant 40 : index
    %c0_25 = arith.constant 0 : index
    %55 = vector.load %arg3[%c40, %c0_25] : memref<105x32xf32, #tpu.memory_space<vmem>>, vector<8x32xf32>
    %c48 = arith.constant 48 : index
    %c0_26 = arith.constant 0 : index
    %56 = vector.load %arg3[%c48, %c0_26] : memref<105x32xf32, #tpu.memory_space<vmem>>, vector<4x16xf32>
    %57 = vector.extract_strided_slice %55 {offsets = [0, 0], sizes = [8, 16], strides = [1, 1]} : vector<8x32xf32> to vector<8x16xf32>
    %58 = vector.extract_strided_slice %55 {offsets = [0, 16], sizes = [8, 16], strides = [1, 1]} : vector<8x32xf32> to vector<8x16xf32>
    %59 = arith.truncf %55 : vector<8x32xf32> to vector<8x32xbf16>
    %c48_27 = arith.constant 48 : index
    %c0_28 = arith.constant 0 : index
    %60 = vector.load %arg4[%c48_27, %c0_28] : memref<266x32xbf16, #tpu.memory_space<vmem>>, vector<32x32xbf16>
    %cst_29 = arith.constant dense<0.000000e+00> : vector<8x32xf32>
    %61 = tpu.matmul %59, %60, %cst_29 {dimension_numbers = #tpu.dot_dimension_numbers<[1], [0], [0], [1], [0, 0, 1, 1], [], []>} : vector<8x32xbf16>, vector<32x32xbf16>, vector<8x32xf32> -> vector<8x32xf32>
    %62 = arith.truncf %55 : vector<8x32xf32> to vector<8x32xbf16>
    %c96 = arith.constant 96 : index
    %c0_30 = arith.constant 0 : index
    %63 = vector.load %arg4[%c96, %c0_30] : memref<266x32xbf16, #tpu.memory_space<vmem>>, vector<32x32xbf16>
    %cst_31 = arith.constant dense<0.000000e+00> : vector<8x32xf32>
    %64 = tpu.matmul %62, %63, %cst_31 {dimension_numbers = #tpu.dot_dimension_numbers<[1], [0], [0], [1], [0, 0, 1, 1], [], []>} : vector<8x32xbf16>, vector<32x32xbf16>, vector<8x32xf32> -> vector<8x32xf32>
    %65 = arith.truncf %56 : vector<4x16xf32> to vector<4x16xbf16>
    %c128 = arith.constant 128 : index
    %c0_32 = arith.constant 0 : index
    %66 = vector.load %arg4[%c128, %c0_32] : memref<266x32xbf16, #tpu.memory_space<vmem>>, vector<16x16xbf16>
    %cst_33 = arith.constant dense<0.000000e+00> : vector<4x16xf32>
    %67 = tpu.matmul %65, %66, %cst_33 {dimension_numbers = #tpu.dot_dimension_numbers<[1], [0], [0], [1], [0, 0, 1, 1], [], []>} : vector<4x16xbf16>, vector<16x16xbf16>, vector<4x16xf32> -> vector<4x16xf32>
    %c56 = arith.constant 56 : index
    %c0_34 = arith.constant 0 : index
    %68 = vector.load %arg3[%c56, %c0_34] : memref<105x32xf32, #tpu.memory_space<vmem>>, vector<4x8xf32>
    %cst_35 = arith.constant 0.000000e+00 : f32
    %69 = vector.broadcast %cst_35 : f32 to vector<4x8xf32>
    %70 = arith.maximumf %68, %69 : vector<4x8xf32>
    %71 = math.absf %68 : vector<4x8xf32>
    %cst_36 = arith.constant 0.000000e+00 : f32
    %72 = vector.broadcast %cst_36 : f32 to vector<4x8xf32>
    %73 = arith.subf %72, %71 : vector<4x8xf32>
    %74 = math.exp %73 : vector<4x8xf32>
    %75 = math.log1p %74 : vector<4x8xf32>
    %76 = arith.addf %70, %75 : vector<4x8xf32>
    %77 = tpu.concatenate %57, %57 in 0 : vector<8x16xf32>, vector<8x16xf32> -> vector<16x16xf32>
    %78 = tpu.concatenate %58, %58 in 0 : vector<8x16xf32>, vector<8x16xf32> -> vector<16x16xf32>
    %79 = arith.mulf %54, %78 : vector<16x16xf32>
    %80 = arith.addf %77, %79 : vector<16x16xf32>
    %81 = arith.truncf %80 : vector<16x16xf32> to vector<16x16xbf16>
    %c80 = arith.constant 80 : index
    %c0_37 = arith.constant 0 : index
    %82 = vector.load %arg4[%c80, %c0_37] : memref<266x32xbf16, #tpu.memory_space<vmem>>, vector<16x32xbf16>
    %cst_38 = arith.constant dense<0.000000e+00> : vector<16x32xf32>
    %83 = tpu.matmul %81, %82, %cst_38 {dimension_numbers = #tpu.dot_dimension_numbers<[1], [0], [0], [1], [0, 0, 1, 1], [], []>} : vector<16x16xbf16>, vector<16x32xbf16>, vector<16x32xf32> -> vector<16x32xf32>
    %84 = arith.truncf %61 : vector<8x32xf32> to vector<8x32xbf16>
    %85 = arith.truncf %83 : vector<16x32xf32> to vector<16x32xbf16>
    %cst_39 = arith.constant dense<0.000000e+00> : vector<8x16xf32>
    %86 = tpu.matmul %84, %85, %cst_39 {dimension_numbers = #tpu.dot_dimension_numbers<[1], [1], [0], [0], [0, 0, 1, 0], [], []>} : vector<8x32xbf16>, vector<16x32xbf16>, vector<8x16xf32> -> vector<8x16xf32>
    %87 = vector.extract_strided_slice %86 {offsets = [0, 0], sizes = [8, 8], strides = [1, 1]} : vector<8x16xf32> to vector<8x8xf32>
    %88 = vector.extract_strided_slice %4 {offsets = [0, 0, 0], sizes = [1, 1, 8], strides = [1, 1, 1]} : vector<2x1x8xf32> to vector<1x1x8xf32>
    %89 = vector.shape_cast %88 : vector<1x1x8xf32> to vector<1x8xf32>
    %cst_40 = arith.constant 5.000000e-01 : f32
    %90 = vector.broadcast %cst_40 : f32 to vector<1x8xf32>
    %91 = arith.cmpf ogt, %89, %90 : vector<1x8xf32>
    %cst_41 = arith.constant -1.000000e+30 : f32
    %92 = vector.shape_cast %91 : vector<1x8xi1> to vector<1x8xi1>
    %93 = vector.broadcast %92 : vector<1x8xi1> to vector<8x8xi1>
    %94 = vector.broadcast %cst_41 : f32 to vector<8x8xf32>
    %95 = arith.select %93, %87, %94 : vector<8x8xi1>, vector<8x8xf32>
    %cst_42 = arith.constant dense<0xFF800000> : vector<8xf32>
    %96 = vector.multi_reduction <maximumf>, %95, %cst_42 [1] : vector<8x8xf32> to vector<8xf32>
    %97 = vector.shape_cast %96 : vector<8xf32> to vector<8x1xf32>
    %98 = vector.broadcast %97 : vector<8x1xf32> to vector<8x8xf32>
    %99 = arith.subf %95, %98 : vector<8x8xf32>
    %100 = math.exp %99 : vector<8x8xf32>
    %cst_43 = arith.constant dense<0.000000e+00> : vector<8xf32>
    %101 = vector.multi_reduction <add>, %100, %cst_43 [1] : vector<8x8xf32> to vector<8xf32>
    %102 = vector.shape_cast %101 : vector<8xf32> to vector<8x1xf32>
    %103 = tpu.reciprocal %102 {approx = true} : vector<8x1xf32> -> vector<8x1xf32>
    %104 = vector.broadcast %103 : vector<8x1xf32> to vector<8x8xf32>
    %105 = arith.mulf %100, %104 : vector<8x8xf32>
    %106 = vector.extract_strided_slice %86 {offsets = [0, 8], sizes = [8, 8], strides = [1, 1]} : vector<8x16xf32> to vector<8x8xf32>
    %107 = vector.extract_strided_slice %4 {offsets = [1, 0, 0], sizes = [1, 1, 8], strides = [1, 1, 1]} : vector<2x1x8xf32> to vector<1x1x8xf32>
    %108 = vector.shape_cast %107 : vector<1x1x8xf32> to vector<1x8xf32>
    %cst_44 = arith.constant 5.000000e-01 : f32
    %109 = vector.broadcast %cst_44 : f32 to vector<1x8xf32>
    %110 = arith.cmpf ogt, %108, %109 : vector<1x8xf32>
    %cst_45 = arith.constant -1.000000e+30 : f32
    %111 = vector.shape_cast %110 : vector<1x8xi1> to vector<1x8xi1>
    %112 = vector.broadcast %111 : vector<1x8xi1> to vector<8x8xi1>
    %113 = vector.broadcast %cst_45 : f32 to vector<8x8xf32>
    %114 = arith.select %112, %106, %113 : vector<8x8xi1>, vector<8x8xf32>
    %cst_46 = arith.constant dense<0xFF800000> : vector<8xf32>
    %115 = vector.multi_reduction <maximumf>, %114, %cst_46 [1] : vector<8x8xf32> to vector<8xf32>
    %116 = vector.shape_cast %115 : vector<8xf32> to vector<8x1xf32>
    %117 = vector.broadcast %116 : vector<8x1xf32> to vector<8x8xf32>
    %118 = arith.subf %114, %117 : vector<8x8xf32>
    %119 = math.exp %118 : vector<8x8xf32>
    %cst_47 = arith.constant dense<0.000000e+00> : vector<8xf32>
    %120 = vector.multi_reduction <add>, %119, %cst_47 [1] : vector<8x8xf32> to vector<8xf32>
    %121 = vector.shape_cast %120 : vector<8xf32> to vector<8x1xf32>
    %122 = tpu.reciprocal %121 {approx = true} : vector<8x1xf32> -> vector<8x1xf32>
    %123 = vector.broadcast %122 : vector<8x1xf32> to vector<8x8xf32>
    %124 = arith.mulf %119, %123 : vector<8x8xf32>
    %125 = tpu.concatenate %105, %124 in 0 : vector<8x8xf32>, vector<8x8xf32> -> vector<16x8xf32>
    %126 = arith.truncf %125 : vector<16x8xf32> to vector<16x8xbf16>
    %127 = arith.truncf %64 : vector<8x32xf32> to vector<8x32xbf16>
    %cst_48 = arith.constant dense<0.000000e+00> : vector<16x32xf32>
    %128 = tpu.matmul %126, %127, %cst_48 {dimension_numbers = #tpu.dot_dimension_numbers<[1], [0], [0], [1], [0, 0, 1, 1], [], []>} : vector<16x8xbf16>, vector<8x32xbf16>, vector<16x32xf32> -> vector<16x32xf32>
    %129 = vector.extract_strided_slice %128 {offsets = [0, 0], sizes = [16, 16], strides = [1, 1]} : vector<16x32xf32> to vector<16x16xf32>
    %130 = vector.extract_strided_slice %128 {offsets = [0, 16], sizes = [16, 16], strides = [1, 1]} : vector<16x32xf32> to vector<16x16xf32>
    %131 = arith.mulf %54, %130 : vector<16x16xf32>
    %132 = arith.addf %129, %131 : vector<16x16xf32>
    %133 = arith.truncf %132 : vector<16x16xf32> to vector<16x16xbf16>
    %c176 = arith.constant 176 : index
    %c0_49 = arith.constant 0 : index
    %134 = vector.load %arg4[%c176, %c0_49] : memref<266x32xbf16, #tpu.memory_space<vmem>>, vector<16x16xbf16>
    %cst_50 = arith.constant dense<0.000000e+00> : vector<16x16xf32>
    %135 = tpu.matmul %133, %134, %cst_50 {dimension_numbers = #tpu.dot_dimension_numbers<[1], [0], [0], [1], [0, 0, 1, 1], [], []>} : vector<16x16xbf16>, vector<16x16xbf16>, vector<16x16xf32> -> vector<16x16xf32>
    %c64 = arith.constant 64 : index
    %c0_51 = arith.constant 0 : index
    %136 = vector.load %arg3[%c64, %c0_51] : memref<105x32xf32, #tpu.memory_space<vmem>>, vector<1x16xf32>
    %137 = vector.broadcast %136 : vector<1x16xf32> to vector<16x16xf32>
    %138 = arith.addf %135, %137 : vector<16x16xf32>
    %cst_52 = arith.constant 0.000000e+00 : f32
    %139 = vector.broadcast %cst_52 : f32 to vector<16x16xf32>
    %140 = arith.maximumf %138, %139 : vector<16x16xf32>
    %141 = math.absf %138 : vector<16x16xf32>
    %cst_53 = arith.constant 0.000000e+00 : f32
    %142 = vector.broadcast %cst_53 : f32 to vector<16x16xf32>
    %143 = arith.subf %142, %141 : vector<16x16xf32>
    %144 = math.exp %143 : vector<16x16xf32>
    %145 = math.log1p %144 : vector<16x16xf32>
    %146 = arith.addf %140, %145 : vector<16x16xf32>
    %147 = arith.truncf %146 : vector<16x16xf32> to vector<16x16xbf16>
    %c192 = arith.constant 192 : index
    %c0_54 = arith.constant 0 : index
    %148 = vector.load %arg4[%c192, %c0_54] : memref<266x32xbf16, #tpu.memory_space<vmem>>, vector<16x16xbf16>
    %cst_55 = arith.constant dense<0.000000e+00> : vector<16x16xf32>
    %149 = tpu.matmul %147, %148, %cst_55 {dimension_numbers = #tpu.dot_dimension_numbers<[1], [0], [0], [1], [0, 0, 1, 1], [], []>} : vector<16x16xbf16>, vector<16x16xbf16>, vector<16x16xf32> -> vector<16x16xf32>
    %c72 = arith.constant 72 : index
    %c0_56 = arith.constant 0 : index
    %150 = vector.load %arg3[%c72, %c0_56] : memref<105x32xf32, #tpu.memory_space<vmem>>, vector<1x16xf32>
    %151 = vector.broadcast %150 : vector<1x16xf32> to vector<16x16xf32>
    %152 = arith.addf %149, %151 : vector<16x16xf32>
    %153 = arith.truncf %152 : vector<16x16xf32> to vector<16x16xbf16>
    %c144 = arith.constant 144 : index
    %c0_57 = arith.constant 0 : index
    %154 = vector.load %arg4[%c144, %c0_57] : memref<266x32xbf16, #tpu.memory_space<vmem>>, vector<16x16xbf16>
    %cst_58 = arith.constant dense<0.000000e+00> : vector<16x16xf32>
    %155 = tpu.matmul %153, %154, %cst_58 {dimension_numbers = #tpu.dot_dimension_numbers<[1], [0], [0], [1], [0, 0, 1, 1], [], []>} : vector<16x16xbf16>, vector<16x16xbf16>, vector<16x16xf32> -> vector<16x16xf32>
    %156 = arith.truncf %152 : vector<16x16xf32> to vector<16x16xbf16>
    %c160 = arith.constant 160 : index
    %c0_59 = arith.constant 0 : index
    %157 = vector.load %arg4[%c160, %c0_59] : memref<266x32xbf16, #tpu.memory_space<vmem>>, vector<16x16xbf16>
    %cst_60 = arith.constant dense<0.000000e+00> : vector<16x16xf32>
    %158 = tpu.matmul %156, %157, %cst_60 {dimension_numbers = #tpu.dot_dimension_numbers<[1], [0], [0], [1], [0, 0, 1, 1], [], []>} : vector<16x16xbf16>, vector<16x16xbf16>, vector<16x16xf32> -> vector<16x16xf32>
    %159 = arith.truncf %67 : vector<4x16xf32> to vector<4x16xbf16>
    %160 = arith.truncf %155 : vector<16x16xf32> to vector<16x16xbf16>
    %cst_61 = arith.constant dense<0.000000e+00> : vector<4x16xf32>
    %161 = tpu.matmul %159, %160, %cst_61 {dimension_numbers = #tpu.dot_dimension_numbers<[1], [1], [0], [0], [0, 0, 1, 0], [], []>} : vector<4x16xbf16>, vector<16x16xbf16>, vector<4x16xf32> -> vector<4x16xf32>
    %162 = vector.extract_strided_slice %4 {offsets = [0, 0, 0], sizes = [1, 1, 8], strides = [1, 1, 1]} : vector<2x1x8xf32> to vector<1x1x8xf32>
    %163 = vector.shape_cast %162 : vector<1x1x8xf32> to vector<1x8xf32>
    %164 = vector.extract_strided_slice %161 {offsets = [0, 0], sizes = [4, 8], strides = [1, 1]} : vector<4x16xf32> to vector<4x8xf32>
    %cst_62 = arith.constant 5.000000e-01 : f32
    %165 = vector.broadcast %cst_62 : f32 to vector<1x8xf32>
    %166 = arith.cmpf ogt, %163, %165 : vector<1x8xf32>
    %cst_63 = arith.constant -1.000000e+30 : f32
    %167 = vector.shape_cast %166 : vector<1x8xi1> to vector<1x8xi1>
    %168 = vector.broadcast %167 : vector<1x8xi1> to vector<4x8xi1>
    %169 = vector.broadcast %cst_63 : f32 to vector<4x8xf32>
    %170 = arith.select %168, %164, %169 : vector<4x8xi1>, vector<4x8xf32>
    %cst_64 = arith.constant dense<0xFF800000> : vector<4xf32>
    %171 = vector.multi_reduction <maximumf>, %170, %cst_64 [1] : vector<4x8xf32> to vector<4xf32>
    %172 = vector.shape_cast %171 : vector<4xf32> to vector<4x1xf32>
    %173 = vector.broadcast %172 : vector<4x1xf32> to vector<4x8xf32>
    %174 = arith.subf %170, %173 : vector<4x8xf32>
    %175 = math.exp %174 : vector<4x8xf32>
    %cst_65 = arith.constant dense<0.000000e+00> : vector<4xf32>
    %176 = vector.multi_reduction <add>, %175, %cst_65 [1] : vector<4x8xf32> to vector<4xf32>
    %177 = vector.shape_cast %176 : vector<4xf32> to vector<4x1xf32>
    %178 = tpu.reciprocal %177 {approx = true} : vector<4x1xf32> -> vector<4x1xf32>
    %179 = vector.broadcast %178 : vector<4x1xf32> to vector<4x8xf32>
    %180 = arith.mulf %175, %179 : vector<4x8xf32>
    %181 = vector.extract_strided_slice %158 {offsets = [0, 0], sizes = [8, 16], strides = [1, 1]} : vector<16x16xf32> to vector<8x16xf32>
    %182 = arith.truncf %180 : vector<4x8xf32> to vector<4x8xbf16>
    %183 = arith.truncf %181 : vector<8x16xf32> to vector<8x16xbf16>
    %cst_66 = arith.constant dense<0.000000e+00> : vector<4x16xf32>
    %184 = tpu.matmul %182, %183, %cst_66 {dimension_numbers = #tpu.dot_dimension_numbers<[1], [0], [0], [1], [0, 0, 1, 1], [], []>} : vector<4x8xbf16>, vector<8x16xbf16>, vector<4x16xf32> -> vector<4x16xf32>
    %185 = vector.broadcast %163 : vector<1x8xf32> to vector<4x8xf32>
    %186 = arith.mulf %76, %185 : vector<4x8xf32>
    %cst_67 = arith.constant dense<0.000000e+00> : vector<4xf32>
    %187 = vector.multi_reduction <add>, %186, %cst_67 [1] : vector<4x8xf32> to vector<4xf32>
    %188 = vector.shape_cast %187 : vector<4xf32> to vector<4x1xf32>
    %189 = vector.broadcast %188 : vector<4x1xf32> to vector<4x16xf32>
    %190 = arith.mulf %184, %189 : vector<4x16xf32>
    %191 = arith.addf %190, %56 : vector<4x16xf32>
    %192 = vector.extract_strided_slice %4 {offsets = [1, 0, 0], sizes = [1, 1, 8], strides = [1, 1, 1]} : vector<2x1x8xf32> to vector<1x1x8xf32>
    %193 = vector.shape_cast %192 : vector<1x1x8xf32> to vector<1x8xf32>
    %194 = vector.extract_strided_slice %161 {offsets = [0, 8], sizes = [4, 8], strides = [1, 1]} : vector<4x16xf32> to vector<4x8xf32>
    %cst_68 = arith.constant 5.000000e-01 : f32
    %195 = vector.broadcast %cst_68 : f32 to vector<1x8xf32>
    %196 = arith.cmpf ogt, %193, %195 : vector<1x8xf32>
    %cst_69 = arith.constant -1.000000e+30 : f32
    %197 = vector.shape_cast %196 : vector<1x8xi1> to vector<1x8xi1>
    %198 = vector.broadcast %197 : vector<1x8xi1> to vector<4x8xi1>
    %199 = vector.broadcast %cst_69 : f32 to vector<4x8xf32>
    %200 = arith.select %198, %194, %199 : vector<4x8xi1>, vector<4x8xf32>
    %cst_70 = arith.constant dense<0xFF800000> : vector<4xf32>
    %201 = vector.multi_reduction <maximumf>, %200, %cst_70 [1] : vector<4x8xf32> to vector<4xf32>
    %202 = vector.shape_cast %201 : vector<4xf32> to vector<4x1xf32>
    %203 = vector.broadcast %202 : vector<4x1xf32> to vector<4x8xf32>
    %204 = arith.subf %200, %203 : vector<4x8xf32>
    %205 = math.exp %204 : vector<4x8xf32>
    %cst_71 = arith.constant dense<0.000000e+00> : vector<4xf32>
    %206 = vector.multi_reduction <add>, %205, %cst_71 [1] : vector<4x8xf32> to vector<4xf32>
    %207 = vector.shape_cast %206 : vector<4xf32> to vector<4x1xf32>
    %208 = tpu.reciprocal %207 {approx = true} : vector<4x1xf32> -> vector<4x1xf32>
    %209 = vector.broadcast %208 : vector<4x1xf32> to vector<4x8xf32>
    %210 = arith.mulf %205, %209 : vector<4x8xf32>
    %211 = vector.extract_strided_slice %158 {offsets = [8, 0], sizes = [8, 16], strides = [1, 1]} : vector<16x16xf32> to vector<8x16xf32>
    %212 = arith.truncf %210 : vector<4x8xf32> to vector<4x8xbf16>
    %213 = arith.truncf %211 : vector<8x16xf32> to vector<8x16xbf16>
    %cst_72 = arith.constant dense<0.000000e+00> : vector<4x16xf32>
    %214 = tpu.matmul %212, %213, %cst_72 {dimension_numbers = #tpu.dot_dimension_numbers<[1], [0], [0], [1], [0, 0, 1, 1], [], []>} : vector<4x8xbf16>, vector<8x16xbf16>, vector<4x16xf32> -> vector<4x16xf32>
    %215 = vector.broadcast %193 : vector<1x8xf32> to vector<4x8xf32>
    %216 = arith.mulf %76, %215 : vector<4x8xf32>
    %cst_73 = arith.constant dense<0.000000e+00> : vector<4xf32>
    %217 = vector.multi_reduction <add>, %216, %cst_73 [1] : vector<4x8xf32> to vector<4xf32>
    %218 = vector.shape_cast %217 : vector<4xf32> to vector<4x1xf32>
    %219 = vector.broadcast %218 : vector<4x1xf32> to vector<4x16xf32>
    %220 = arith.mulf %214, %219 : vector<4x16xf32>
    %221 = arith.addf %220, %56 : vector<4x16xf32>
    %222 = tpu.concatenate %180, %210 in 0 : vector<4x8xf32>, vector<4x8xf32> -> vector<8x8xf32>
    %223 = tpu.concatenate %191, %221 in 0 : vector<4x16xf32>, vector<4x16xf32> -> vector<8x16xf32>
    %224 = arith.truncf %223 : vector<8x16xf32> to vector<8x16xbf16>
    %c208 = arith.constant 208 : index
    %c0_74 = arith.constant 0 : index
    %225 = vector.load %arg4[%c208, %c0_74] : memref<266x32xbf16, #tpu.memory_space<vmem>>, vector<16x10xbf16>
    %cst_75 = arith.constant dense<0.000000e+00> : vector<8x10xf32>
    %226 = tpu.matmul %224, %225, %cst_75 {dimension_numbers = #tpu.dot_dimension_numbers<[1], [0], [0], [1], [0, 0, 1, 1], [], []>} : vector<8x16xbf16>, vector<16x10xbf16>, vector<8x10xf32> -> vector<8x10xf32>
    %c80_76 = arith.constant 80 : index
    %c0_77 = arith.constant 0 : index
    %227 = vector.load %arg3[%c80_76, %c0_77] : memref<105x32xf32, #tpu.memory_space<vmem>>, vector<1x10xf32>
    %228 = vector.broadcast %227 : vector<1x10xf32> to vector<8x10xf32>
    %229 = arith.addf %226, %228 : vector<8x10xf32>
    %cst_78 = arith.constant 0.000000e+00 : f32
    %230 = vector.broadcast %cst_78 : f32 to vector<8x10xf32>
    %231 = arith.maximumf %229, %230 : vector<8x10xf32>
    %232 = math.absf %229 : vector<8x10xf32>
    %cst_79 = arith.constant 0.000000e+00 : f32
    %233 = vector.broadcast %cst_79 : f32 to vector<8x10xf32>
    %234 = arith.subf %233, %232 : vector<8x10xf32>
    %235 = math.exp %234 : vector<8x10xf32>
    %236 = math.log1p %235 : vector<8x10xf32>
    %237 = arith.addf %231, %236 : vector<8x10xf32>
    %238 = arith.truncf %237 : vector<8x10xf32> to vector<8x10xbf16>
    %c224 = arith.constant 224 : index
    %c0_80 = arith.constant 0 : index
    %239 = vector.load %arg4[%c224, %c0_80] : memref<266x32xbf16, #tpu.memory_space<vmem>>, vector<10x10xbf16>
    %cst_81 = arith.constant dense<0.000000e+00> : vector<8x10xf32>
    %240 = tpu.matmul %238, %239, %cst_81 {dimension_numbers = #tpu.dot_dimension_numbers<[1], [0], [0], [1], [0, 0, 1, 1], [], []>} : vector<8x10xbf16>, vector<10x10xbf16>, vector<8x10xf32> -> vector<8x10xf32>
    %c88 = arith.constant 88 : index
    %c0_82 = arith.constant 0 : index
    %241 = vector.load %arg3[%c88, %c0_82] : memref<105x32xf32, #tpu.memory_space<vmem>>, vector<1x10xf32>
    %242 = vector.broadcast %241 : vector<1x10xf32> to vector<8x10xf32>
    %243 = arith.addf %240, %242 : vector<8x10xf32>
    %244 = vector.extract_strided_slice %54 {offsets = [0, 0], sizes = [8, 16], strides = [1, 1]} : vector<16x16xf32> to vector<8x16xf32>
    %245 = vector.extract_strided_slice %56 {offsets = [0, 0], sizes = [1, 16], strides = [1, 1]} : vector<4x16xf32> to vector<1x16xf32>
    %246 = vector.broadcast %245 : vector<1x16xf32> to vector<8x16xf32>
    %247 = arith.addf %244, %246 : vector<8x16xf32>
    %248 = vector.extract_strided_slice %56 {offsets = [1, 0], sizes = [1, 16], strides = [1, 1]} : vector<4x16xf32> to vector<1x16xf32>
    %249 = vector.broadcast %248 : vector<1x16xf32> to vector<8x16xf32>
    %250 = arith.addf %244, %249 : vector<8x16xf32>
    %251 = vector.extract_strided_slice %56 {offsets = [2, 0], sizes = [1, 16], strides = [1, 1]} : vector<4x16xf32> to vector<1x16xf32>
    %252 = vector.broadcast %251 : vector<1x16xf32> to vector<8x16xf32>
    %253 = arith.addf %244, %252 : vector<8x16xf32>
    %254 = vector.extract_strided_slice %56 {offsets = [3, 0], sizes = [1, 16], strides = [1, 1]} : vector<4x16xf32> to vector<1x16xf32>
    %255 = vector.broadcast %254 : vector<1x16xf32> to vector<8x16xf32>
    %256 = arith.addf %244, %255 : vector<8x16xf32>
    %257 = vector.extract_strided_slice %54 {offsets = [8, 0], sizes = [8, 16], strides = [1, 1]} : vector<16x16xf32> to vector<8x16xf32>
    %258 = vector.extract_strided_slice %56 {offsets = [0, 0], sizes = [1, 16], strides = [1, 1]} : vector<4x16xf32> to vector<1x16xf32>
    %259 = vector.broadcast %258 : vector<1x16xf32> to vector<8x16xf32>
    %260 = arith.addf %257, %259 : vector<8x16xf32>
    %261 = vector.extract_strided_slice %56 {offsets = [1, 0], sizes = [1, 16], strides = [1, 1]} : vector<4x16xf32> to vector<1x16xf32>
    %262 = vector.broadcast %261 : vector<1x16xf32> to vector<8x16xf32>
    %263 = arith.addf %257, %262 : vector<8x16xf32>
    %264 = vector.extract_strided_slice %56 {offsets = [2, 0], sizes = [1, 16], strides = [1, 1]} : vector<4x16xf32> to vector<1x16xf32>
    %265 = vector.broadcast %264 : vector<1x16xf32> to vector<8x16xf32>
    %266 = arith.addf %257, %265 : vector<8x16xf32>
    %267 = vector.extract_strided_slice %56 {offsets = [3, 0], sizes = [1, 16], strides = [1, 1]} : vector<4x16xf32> to vector<1x16xf32>
    %268 = vector.broadcast %267 : vector<1x16xf32> to vector<8x16xf32>
    %269 = arith.addf %257, %268 : vector<8x16xf32>
    %270 = tpu.concatenate %247, %250, %253, %256, %260, %263, %266, %269 in 0 : vector<8x16xf32>, vector<8x16xf32>, vector<8x16xf32>, vector<8x16xf32>, vector<8x16xf32>, vector<8x16xf32>, vector<8x16xf32>, vector<8x16xf32> -> vector<64x16xf32>
    %271 = arith.truncf %270 : vector<64x16xf32> to vector<64x16xbf16>
    %c240 = arith.constant 240 : index
    %c0_83 = arith.constant 0 : index
    %272 = vector.load %arg4[%c240, %c0_83] : memref<266x32xbf16, #tpu.memory_space<vmem>>, vector<16x10xbf16>
    %cst_84 = arith.constant dense<0.000000e+00> : vector<64x10xf32>
    %273 = tpu.matmul %271, %272, %cst_84 {dimension_numbers = #tpu.dot_dimension_numbers<[1], [0], [0], [1], [0, 0, 1, 1], [], []>} : vector<64x16xbf16>, vector<16x10xbf16>, vector<64x10xf32> -> vector<64x10xf32>
    %c96_85 = arith.constant 96 : index
    %c0_86 = arith.constant 0 : index
    %274 = vector.load %arg3[%c96_85, %c0_86] : memref<105x32xf32, #tpu.memory_space<vmem>>, vector<1x10xf32>
    %275 = vector.broadcast %274 : vector<1x10xf32> to vector<64x10xf32>
    %276 = arith.addf %273, %275 : vector<64x10xf32>
    %cst_87 = arith.constant 0.000000e+00 : f32
    %277 = vector.broadcast %cst_87 : f32 to vector<64x10xf32>
    %278 = arith.maximumf %276, %277 : vector<64x10xf32>
    %279 = math.absf %276 : vector<64x10xf32>
    %cst_88 = arith.constant 0.000000e+00 : f32
    %280 = vector.broadcast %cst_88 : f32 to vector<64x10xf32>
    %281 = arith.subf %280, %279 : vector<64x10xf32>
    %282 = math.exp %281 : vector<64x10xf32>
    %283 = math.log1p %282 : vector<64x10xf32>
    %284 = arith.addf %278, %283 : vector<64x10xf32>
    %285 = arith.truncf %284 : vector<64x10xf32> to vector<64x10xbf16>
    %c256 = arith.constant 256 : index
    %c0_89 = arith.constant 0 : index
    %286 = vector.load %arg4[%c256, %c0_89] : memref<266x32xbf16, #tpu.memory_space<vmem>>, vector<10x10xbf16>
    %cst_90 = arith.constant dense<0.000000e+00> : vector<64x10xf32>
    %287 = tpu.matmul %285, %286, %cst_90 {dimension_numbers = #tpu.dot_dimension_numbers<[1], [0], [0], [1], [0, 0, 1, 1], [], []>} : vector<64x10xbf16>, vector<10x10xbf16>, vector<64x10xf32> -> vector<64x10xf32>
    %c104 = arith.constant 104 : index
    %c0_91 = arith.constant 0 : index
    %288 = vector.load %arg3[%c104, %c0_91] : memref<105x32xf32, #tpu.memory_space<vmem>>, vector<1x10xf32>
    %289 = vector.broadcast %288 : vector<1x10xf32> to vector<64x10xf32>
    %290 = arith.addf %287, %289 : vector<64x10xf32>
    %cst_92 = arith.constant 0.000000e+00 : f32
    %291 = vector.broadcast %cst_92 : f32 to vector<56x10xf32>
    %292 = tpu.concatenate %243, %291 in 0 : vector<8x10xf32>, vector<56x10xf32> -> vector<64x10xf32>
    %293 = tpu.concatenate %292, %292, %290, %290 in 1 : vector<64x10xf32>, vector<64x10xf32>, vector<64x10xf32>, vector<64x10xf32> -> vector<64x40xf32>
    %cst_93 = arith.constant 0.000000e+00 : f32
    %294 = vector.broadcast %cst_93 : f32 to vector<64x40xf32>
    %c0_94 = arith.constant 0 : index
    %c0_95 = arith.constant 0 : index
    %295 = vector.load %arg5[%c0_94, %c0_95] : memref<1721x80xf32, #tpu.memory_space<vmem>>, vector<40x40xf32>
    %cst_96 = arith.constant dense<0.000000e+00> : vector<64x40xf32>
    %296 = tpu.matmul %293, %295, %cst_96 {dimension_numbers = #tpu.dot_dimension_numbers<[1], [0], [0], [1], [0, 0, 1, 1], [], []>} : vector<64x40xf32>, vector<40x40xf32>, vector<64x40xf32> -> vector<64x40xf32>
    %c40_97 = arith.constant 40 : index
    %c0_98 = arith.constant 0 : index
    %297 = vector.load %arg5[%c40_97, %c0_98] : memref<1721x80xf32, #tpu.memory_space<vmem>>, vector<1x40xf32>
    %298 = vector.broadcast %297 : vector<1x40xf32> to vector<64x40xf32>
    %299 = arith.addf %296, %298 : vector<64x40xf32>
    %cst_99 = arith.constant 0.000000e+00 : f32
    %300 = vector.broadcast %cst_99 : f32 to vector<64x40xf32>
    %301 = arith.maximumf %299, %300 : vector<64x40xf32>
    %302 = math.absf %299 : vector<64x40xf32>
    %cst_100 = arith.constant 0.000000e+00 : f32
    %303 = vector.broadcast %cst_100 : f32 to vector<64x40xf32>
    %304 = arith.subf %303, %302 : vector<64x40xf32>
    %305 = math.exp %304 : vector<64x40xf32>
    %306 = math.log1p %305 : vector<64x40xf32>
    %307 = arith.addf %301, %306 : vector<64x40xf32>
    %c48_101 = arith.constant 48 : index
    %c0_102 = arith.constant 0 : index
    %308 = vector.load %arg5[%c48_101, %c0_102] : memref<1721x80xf32, #tpu.memory_space<vmem>>, vector<40x40xf32>
    %cst_103 = arith.constant dense<0.000000e+00> : vector<64x40xf32>
    %309 = tpu.matmul %307, %308, %cst_103 {dimension_numbers = #tpu.dot_dimension_numbers<[1], [0], [0], [1], [0, 0, 1, 1], [], []>} : vector<64x40xf32>, vector<40x40xf32>, vector<64x40xf32> -> vector<64x40xf32>
    %c88_104 = arith.constant 88 : index
    %c0_105 = arith.constant 0 : index
    %310 = vector.load %arg5[%c88_104, %c0_105] : memref<1721x80xf32, #tpu.memory_space<vmem>>, vector<1x40xf32>
    %311 = vector.broadcast %310 : vector<1x40xf32> to vector<64x40xf32>
    %312 = arith.addf %309, %311 : vector<64x40xf32>
    %cst_106 = arith.constant 0.000000e+00 : f32
    %313 = vector.broadcast %cst_106 : f32 to vector<64x40xf32>
    %314 = arith.maximumf %312, %313 : vector<64x40xf32>
    %315 = math.absf %312 : vector<64x40xf32>
    %cst_107 = arith.constant 0.000000e+00 : f32
    %316 = vector.broadcast %cst_107 : f32 to vector<64x40xf32>
    %317 = arith.subf %316, %315 : vector<64x40xf32>
    %318 = math.exp %317 : vector<64x40xf32>
    %319 = math.log1p %318 : vector<64x40xf32>
    %320 = arith.addf %314, %319 : vector<64x40xf32>
    %c96_108 = arith.constant 96 : index
    %c0_109 = arith.constant 0 : index
    %321 = vector.load %arg5[%c96_108, %c0_109] : memref<1721x80xf32, #tpu.memory_space<vmem>>, vector<40x40xf32>
    %cst_110 = arith.constant dense<0.000000e+00> : vector<64x40xf32>
    %322 = tpu.matmul %320, %321, %cst_110 {dimension_numbers = #tpu.dot_dimension_numbers<[1], [0], [0], [1], [0, 0, 1, 1], [], []>} : vector<64x40xf32>, vector<40x40xf32>, vector<64x40xf32> -> vector<64x40xf32>
    %c136 = arith.constant 136 : index
    %c0_111 = arith.constant 0 : index
    %323 = vector.load %arg5[%c136, %c0_111] : memref<1721x80xf32, #tpu.memory_space<vmem>>, vector<1x40xf32>
    %324 = vector.broadcast %323 : vector<1x40xf32> to vector<64x40xf32>
    %325 = arith.addf %322, %324 : vector<64x40xf32>
    %326 = arith.addf %299, %325 : vector<64x40xf32>
    %cst_112 = arith.constant 0.000000e+00 : f32
    %327 = vector.broadcast %cst_112 : f32 to vector<64x40xf32>
    %328 = arith.maximumf %326, %327 : vector<64x40xf32>
    %329 = math.absf %326 : vector<64x40xf32>
    %cst_113 = arith.constant 0.000000e+00 : f32
    %330 = vector.broadcast %cst_113 : f32 to vector<64x40xf32>
    %331 = arith.subf %330, %329 : vector<64x40xf32>
    %332 = math.exp %331 : vector<64x40xf32>
    %333 = math.log1p %332 : vector<64x40xf32>
    %334 = arith.addf %328, %333 : vector<64x40xf32>
    %c144_114 = arith.constant 144 : index
    %c0_115 = arith.constant 0 : index
    %335 = vector.load %arg5[%c144_114, %c0_115] : memref<1721x80xf32, #tpu.memory_space<vmem>>, vector<40x40xf32>
    %cst_116 = arith.constant dense<0.000000e+00> : vector<64x40xf32>
    %336 = tpu.matmul %334, %335, %cst_116 {dimension_numbers = #tpu.dot_dimension_numbers<[1], [0], [0], [1], [0, 0, 1, 1], [], []>} : vector<64x40xf32>, vector<40x40xf32>, vector<64x40xf32> -> vector<64x40xf32>
    %c184 = arith.constant 184 : index
    %c0_117 = arith.constant 0 : index
    %337 = vector.load %arg5[%c184, %c0_117] : memref<1721x80xf32, #tpu.memory_space<vmem>>, vector<1x40xf32>
    %338 = vector.broadcast %337 : vector<1x40xf32> to vector<64x40xf32>
    %339 = arith.addf %336, %338 : vector<64x40xf32>
    %cst_118 = arith.constant 0.000000e+00 : f32
    %340 = vector.broadcast %cst_118 : f32 to vector<64x40xf32>
    %341 = arith.maximumf %339, %340 : vector<64x40xf32>
    %342 = math.absf %339 : vector<64x40xf32>
    %cst_119 = arith.constant 0.000000e+00 : f32
    %343 = vector.broadcast %cst_119 : f32 to vector<64x40xf32>
    %344 = arith.subf %343, %342 : vector<64x40xf32>
    %345 = math.exp %344 : vector<64x40xf32>
    %346 = math.log1p %345 : vector<64x40xf32>
    %347 = arith.addf %341, %346 : vector<64x40xf32>
    %c192_120 = arith.constant 192 : index
    %c0_121 = arith.constant 0 : index
    %348 = vector.load %arg5[%c192_120, %c0_121] : memref<1721x80xf32, #tpu.memory_space<vmem>>, vector<40x40xf32>
    %cst_122 = arith.constant dense<0.000000e+00> : vector<64x40xf32>
    %349 = tpu.matmul %347, %348, %cst_122 {dimension_numbers = #tpu.dot_dimension_numbers<[1], [0], [0], [1], [0, 0, 1, 1], [], []>} : vector<64x40xf32>, vector<40x40xf32>, vector<64x40xf32> -> vector<64x40xf32>
    %c232 = arith.constant 232 : index
    %c0_123 = arith.constant 0 : index
    %350 = vector.load %arg5[%c232, %c0_123] : memref<1721x80xf32, #tpu.memory_space<vmem>>, vector<1x40xf32>
    %351 = vector.broadcast %350 : vector<1x40xf32> to vector<64x40xf32>
    %352 = arith.addf %349, %351 : vector<64x40xf32>
    %353 = arith.addf %326, %352 : vector<64x40xf32>
    %cst_124 = arith.constant 0.000000e+00 : f32
    %354 = vector.broadcast %cst_124 : f32 to vector<64x40xf32>
    %355 = arith.maximumf %353, %354 : vector<64x40xf32>
    %356 = math.absf %353 : vector<64x40xf32>
    %cst_125 = arith.constant 0.000000e+00 : f32
    %357 = vector.broadcast %cst_125 : f32 to vector<64x40xf32>
    %358 = arith.subf %357, %356 : vector<64x40xf32>
    %359 = math.exp %358 : vector<64x40xf32>
    %360 = math.log1p %359 : vector<64x40xf32>
    %361 = arith.addf %355, %360 : vector<64x40xf32>
    %c240_126 = arith.constant 240 : index
    %c0_127 = arith.constant 0 : index
    %362 = vector.load %arg5[%c240_126, %c0_127] : memref<1721x80xf32, #tpu.memory_space<vmem>>, vector<40x40xf32>
    %cst_128 = arith.constant dense<0.000000e+00> : vector<64x40xf32>
    %363 = tpu.matmul %361, %362, %cst_128 {dimension_numbers = #tpu.dot_dimension_numbers<[1], [0], [0], [1], [0, 0, 1, 1], [], []>} : vector<64x40xf32>, vector<40x40xf32>, vector<64x40xf32> -> vector<64x40xf32>
    %c280 = arith.constant 280 : index
    %c0_129 = arith.constant 0 : index
    %364 = vector.load %arg5[%c280, %c0_129] : memref<1721x80xf32, #tpu.memory_space<vmem>>, vector<1x40xf32>
    %365 = vector.broadcast %364 : vector<1x40xf32> to vector<64x40xf32>
    %366 = arith.addf %363, %365 : vector<64x40xf32>
    %cst_130 = arith.constant 0.000000e+00 : f32
    %367 = vector.broadcast %cst_130 : f32 to vector<64x40xf32>
    %368 = arith.maximumf %366, %367 : vector<64x40xf32>
    %369 = math.absf %366 : vector<64x40xf32>
    %cst_131 = arith.constant 0.000000e+00 : f32
    %370 = vector.broadcast %cst_131 : f32 to vector<64x40xf32>
    %371 = arith.subf %370, %369 : vector<64x40xf32>
    %372 = math.exp %371 : vector<64x40xf32>
    %373 = math.log1p %372 : vector<64x40xf32>
    %374 = arith.addf %368, %373 : vector<64x40xf32>
    %c288 = arith.constant 288 : index
    %c0_132 = arith.constant 0 : index
    %375 = vector.load %arg5[%c288, %c0_132] : memref<1721x80xf32, #tpu.memory_space<vmem>>, vector<40x40xf32>
    %cst_133 = arith.constant dense<0.000000e+00> : vector<64x40xf32>
    %376 = tpu.matmul %374, %375, %cst_133 {dimension_numbers = #tpu.dot_dimension_numbers<[1], [0], [0], [1], [0, 0, 1, 1], [], []>} : vector<64x40xf32>, vector<40x40xf32>, vector<64x40xf32> -> vector<64x40xf32>
    %c328 = arith.constant 328 : index
    %c0_134 = arith.constant 0 : index
    %377 = vector.load %arg5[%c328, %c0_134] : memref<1721x80xf32, #tpu.memory_space<vmem>>, vector<1x40xf32>
    %378 = vector.broadcast %377 : vector<1x40xf32> to vector<64x40xf32>
    %379 = arith.addf %376, %378 : vector<64x40xf32>
    %380 = arith.addf %353, %379 : vector<64x40xf32>
    %cst_135 = arith.constant 0.000000e+00 : f32
    %381 = vector.broadcast %cst_135 : f32 to vector<64x40xf32>
    %382 = arith.maximumf %380, %381 : vector<64x40xf32>
    %383 = math.absf %380 : vector<64x40xf32>
    %cst_136 = arith.constant 0.000000e+00 : f32
    %384 = vector.broadcast %cst_136 : f32 to vector<64x40xf32>
    %385 = arith.subf %384, %383 : vector<64x40xf32>
    %386 = math.exp %385 : vector<64x40xf32>
    %387 = math.log1p %386 : vector<64x40xf32>
    %388 = arith.addf %382, %387 : vector<64x40xf32>
    %c336 = arith.constant 336 : index
    %c0_137 = arith.constant 0 : index
    %389 = vector.load %arg5[%c336, %c0_137] : memref<1721x80xf32, #tpu.memory_space<vmem>>, vector<40x40xf32>
    %cst_138 = arith.constant dense<0.000000e+00> : vector<64x40xf32>
    %390 = tpu.matmul %388, %389, %cst_138 {dimension_numbers = #tpu.dot_dimension_numbers<[1], [0], [0], [1], [0, 0, 1, 1], [], []>} : vector<64x40xf32>, vector<40x40xf32>, vector<64x40xf32> -> vector<64x40xf32>
    %c376 = arith.constant 376 : index
    %c0_139 = arith.constant 0 : index
    %391 = vector.load %arg5[%c376, %c0_139] : memref<1721x80xf32, #tpu.memory_space<vmem>>, vector<1x40xf32>
    %392 = vector.broadcast %391 : vector<1x40xf32> to vector<64x40xf32>
    %393 = arith.addf %390, %392 : vector<64x40xf32>
    %cst_140 = arith.constant 0.000000e+00 : f32
    %394 = vector.broadcast %cst_140 : f32 to vector<64x40xf32>
    %395 = arith.maximumf %393, %394 : vector<64x40xf32>
    %396 = math.absf %393 : vector<64x40xf32>
    %cst_141 = arith.constant 0.000000e+00 : f32
    %397 = vector.broadcast %cst_141 : f32 to vector<64x40xf32>
    %398 = arith.subf %397, %396 : vector<64x40xf32>
    %399 = math.exp %398 : vector<64x40xf32>
    %400 = math.log1p %399 : vector<64x40xf32>
    %401 = arith.addf %395, %400 : vector<64x40xf32>
    %c384 = arith.constant 384 : index
    %c0_142 = arith.constant 0 : index
    %402 = vector.load %arg5[%c384, %c0_142] : memref<1721x80xf32, #tpu.memory_space<vmem>>, vector<40x40xf32>
    %cst_143 = arith.constant dense<0.000000e+00> : vector<64x40xf32>
    %403 = tpu.matmul %401, %402, %cst_143 {dimension_numbers = #tpu.dot_dimension_numbers<[1], [0], [0], [1], [0, 0, 1, 1], [], []>} : vector<64x40xf32>, vector<40x40xf32>, vector<64x40xf32> -> vector<64x40xf32>
    %c424 = arith.constant 424 : index
    %c0_144 = arith.constant 0 : index
    %404 = vector.load %arg5[%c424, %c0_144] : memref<1721x80xf32, #tpu.memory_space<vmem>>, vector<1x40xf32>
    %405 = vector.broadcast %404 : vector<1x40xf32> to vector<64x40xf32>
    %406 = arith.addf %403, %405 : vector<64x40xf32>
    %407 = arith.addf %380, %406 : vector<64x40xf32>
    %cst_145 = arith.constant 0.000000e+00 : f32
    %408 = vector.broadcast %cst_145 : f32 to vector<64x40xf32>
    %409 = arith.maximumf %407, %408 : vector<64x40xf32>
    %410 = math.absf %407 : vector<64x40xf32>
    %cst_146 = arith.constant 0.000000e+00 : f32
    %411 = vector.broadcast %cst_146 : f32 to vector<64x40xf32>
    %412 = arith.subf %411, %410 : vector<64x40xf32>
    %413 = math.exp %412 : vector<64x40xf32>
    %414 = math.log1p %413 : vector<64x40xf32>
    %415 = arith.addf %409, %414 : vector<64x40xf32>
    %c432 = arith.constant 432 : index
    %c0_147 = arith.constant 0 : index
    %416 = vector.load %arg5[%c432, %c0_147] : memref<1721x80xf32, #tpu.memory_space<vmem>>, vector<40x40xf32>
    %cst_148 = arith.constant dense<0.000000e+00> : vector<64x40xf32>
    %417 = tpu.matmul %415, %416, %cst_148 {dimension_numbers = #tpu.dot_dimension_numbers<[1], [0], [0], [1], [0, 0, 1, 1], [], []>} : vector<64x40xf32>, vector<40x40xf32>, vector<64x40xf32> -> vector<64x40xf32>
    %c472 = arith.constant 472 : index
    %c0_149 = arith.constant 0 : index
    %418 = vector.load %arg5[%c472, %c0_149] : memref<1721x80xf32, #tpu.memory_space<vmem>>, vector<1x40xf32>
    %419 = vector.broadcast %418 : vector<1x40xf32> to vector<64x40xf32>
    %420 = arith.addf %417, %419 : vector<64x40xf32>
    %cst_150 = arith.constant 0.000000e+00 : f32
    %421 = vector.broadcast %cst_150 : f32 to vector<64x40xf32>
    %422 = arith.maximumf %420, %421 : vector<64x40xf32>
    %423 = math.absf %420 : vector<64x40xf32>
    %cst_151 = arith.constant 0.000000e+00 : f32
    %424 = vector.broadcast %cst_151 : f32 to vector<64x40xf32>
    %425 = arith.subf %424, %423 : vector<64x40xf32>
    %426 = math.exp %425 : vector<64x40xf32>
    %427 = math.log1p %426 : vector<64x40xf32>
    %428 = arith.addf %422, %427 : vector<64x40xf32>
    %c480 = arith.constant 480 : index
    %c0_152 = arith.constant 0 : index
    %429 = vector.load %arg5[%c480, %c0_152] : memref<1721x80xf32, #tpu.memory_space<vmem>>, vector<40x40xf32>
    %cst_153 = arith.constant dense<0.000000e+00> : vector<64x40xf32>
    %430 = tpu.matmul %428, %429, %cst_153 {dimension_numbers = #tpu.dot_dimension_numbers<[1], [0], [0], [1], [0, 0, 1, 1], [], []>} : vector<64x40xf32>, vector<40x40xf32>, vector<64x40xf32> -> vector<64x40xf32>
    %c520 = arith.constant 520 : index
    %c0_154 = arith.constant 0 : index
    %431 = vector.load %arg5[%c520, %c0_154] : memref<1721x80xf32, #tpu.memory_space<vmem>>, vector<1x40xf32>
    %432 = vector.broadcast %431 : vector<1x40xf32> to vector<64x40xf32>
    %433 = arith.addf %430, %432 : vector<64x40xf32>
    %434 = arith.addf %407, %433 : vector<64x40xf32>
    %cst_155 = arith.constant 0.000000e+00 : f32
    %435 = vector.broadcast %cst_155 : f32 to vector<64x40xf32>
    %436 = arith.maximumf %434, %435 : vector<64x40xf32>
    %437 = math.absf %434 : vector<64x40xf32>
    %cst_156 = arith.constant 0.000000e+00 : f32
    %438 = vector.broadcast %cst_156 : f32 to vector<64x40xf32>
    %439 = arith.subf %438, %437 : vector<64x40xf32>
    %440 = math.exp %439 : vector<64x40xf32>
    %441 = math.log1p %440 : vector<64x40xf32>
    %442 = arith.addf %436, %441 : vector<64x40xf32>
    %c528 = arith.constant 528 : index
    %c0_157 = arith.constant 0 : index
    %443 = vector.load %arg5[%c528, %c0_157] : memref<1721x80xf32, #tpu.memory_space<vmem>>, vector<40x80xf32>
    %cst_158 = arith.constant dense<0.000000e+00> : vector<64x80xf32>
    %444 = tpu.matmul %442, %443, %cst_158 {dimension_numbers = #tpu.dot_dimension_numbers<[1], [0], [0], [1], [0, 0, 1, 1], [], []>} : vector<64x40xf32>, vector<40x80xf32>, vector<64x80xf32> -> vector<64x80xf32>
    %c568 = arith.constant 568 : index
    %c0_159 = arith.constant 0 : index
    %445 = vector.load %arg5[%c568, %c0_159] : memref<1721x80xf32, #tpu.memory_space<vmem>>, vector<1x80xf32>
    %446 = vector.broadcast %445 : vector<1x80xf32> to vector<64x80xf32>
    %447 = arith.addf %444, %446 : vector<64x80xf32>
    %448 = vector.extract_strided_slice %447 {offsets = [0, 0], sizes = [64, 40], strides = [1, 1]} : vector<64x80xf32> to vector<64x40xf32>
    %449 = vector.extract_strided_slice %447 {offsets = [0, 40], sizes = [64, 40], strides = [1, 1]} : vector<64x80xf32> to vector<64x40xf32>
    %cst_160 = arith.constant 0.000000e+00 : f32
    %450 = vector.broadcast %cst_160 : f32 to vector<64x40xf32>
    %451 = arith.maximumf %449, %450 : vector<64x40xf32>
    %452 = math.absf %449 : vector<64x40xf32>
    %cst_161 = arith.constant 0.000000e+00 : f32
    %453 = vector.broadcast %cst_161 : f32 to vector<64x40xf32>
    %454 = arith.subf %453, %452 : vector<64x40xf32>
    %455 = math.exp %454 : vector<64x40xf32>
    %456 = math.log1p %455 : vector<64x40xf32>
    %457 = arith.addf %451, %456 : vector<64x40xf32>
    %cst_162 = arith.constant 1.000000e-03 : f32
    %458 = vector.broadcast %cst_162 : f32 to vector<64x40xf32>
    %459 = arith.addf %457, %458 : vector<64x40xf32>
    %460 = arith.mulf %459, %293 : vector<64x40xf32>
    %461 = arith.addf %460, %448 : vector<64x40xf32>
    %462 = math.log %459 : vector<64x40xf32>
    %463 = arith.addf %294, %462 : vector<64x40xf32>
    %c576 = arith.constant 576 : index
    %c0_163 = arith.constant 0 : index
    %464 = vector.load %arg5[%c576, %c0_163] : memref<1721x80xf32, #tpu.memory_space<vmem>>, vector<40x40xf32>
    %cst_164 = arith.constant dense<0.000000e+00> : vector<64x40xf32>
    %465 = tpu.matmul %461, %464, %cst_164 {dimension_numbers = #tpu.dot_dimension_numbers<[1], [0], [0], [1], [0, 0, 1, 1], [], []>} : vector<64x40xf32>, vector<40x40xf32>, vector<64x40xf32> -> vector<64x40xf32>
    %c616 = arith.constant 616 : index
    %c0_165 = arith.constant 0 : index
    %466 = vector.load %arg5[%c616, %c0_165] : memref<1721x80xf32, #tpu.memory_space<vmem>>, vector<1x40xf32>
    %467 = vector.broadcast %466 : vector<1x40xf32> to vector<64x40xf32>
    %468 = arith.addf %465, %467 : vector<64x40xf32>
    %cst_166 = arith.constant 0.000000e+00 : f32
    %469 = vector.broadcast %cst_166 : f32 to vector<64x40xf32>
    %470 = arith.maximumf %468, %469 : vector<64x40xf32>
    %471 = math.absf %468 : vector<64x40xf32>
    %cst_167 = arith.constant 0.000000e+00 : f32
    %472 = vector.broadcast %cst_167 : f32 to vector<64x40xf32>
    %473 = arith.subf %472, %471 : vector<64x40xf32>
    %474 = math.exp %473 : vector<64x40xf32>
    %475 = math.log1p %474 : vector<64x40xf32>
    %476 = arith.addf %470, %475 : vector<64x40xf32>
    %c624 = arith.constant 624 : index
    %c0_168 = arith.constant 0 : index
    %477 = vector.load %arg5[%c624, %c0_168] : memref<1721x80xf32, #tpu.memory_space<vmem>>, vector<40x40xf32>
    %cst_169 = arith.constant dense<0.000000e+00> : vector<64x40xf32>
    %478 = tpu.matmul %476, %477, %cst_169 {dimension_numbers = #tpu.dot_dimension_numbers<[1], [0], [0], [1], [0, 0, 1, 1], [], []>} : vector<64x40xf32>, vector<40x40xf32>, vector<64x40xf32> -> vector<64x40xf32>
    %c664 = arith.constant 664 : index
    %c0_170 = arith.constant 0 : index
    %479 = vector.load %arg5[%c664, %c0_170] : memref<1721x80xf32, #tpu.memory_space<vmem>>, vector<1x40xf32>
    %480 = vector.broadcast %479 : vector<1x40xf32> to vector<64x40xf32>
    %481 = arith.addf %478, %480 : vector<64x40xf32>
    %cst_171 = arith.constant 0.000000e+00 : f32
    %482 = vector.broadcast %cst_171 : f32 to vector<64x40xf32>
    %483 = arith.maximumf %481, %482 : vector<64x40xf32>
    %484 = math.absf %481 : vector<64x40xf32>
    %cst_172 = arith.constant 0.000000e+00 : f32
    %485 = vector.broadcast %cst_172 : f32 to vector<64x40xf32>
    %486 = arith.subf %485, %484 : vector<64x40xf32>
    %487 = math.exp %486 : vector<64x40xf32>
    %488 = math.log1p %487 : vector<64x40xf32>
    %489 = arith.addf %483, %488 : vector<64x40xf32>
    %c672 = arith.constant 672 : index
    %c0_173 = arith.constant 0 : index
    %490 = vector.load %arg5[%c672, %c0_173] : memref<1721x80xf32, #tpu.memory_space<vmem>>, vector<40x40xf32>
    %cst_174 = arith.constant dense<0.000000e+00> : vector<64x40xf32>
    %491 = tpu.matmul %489, %490, %cst_174 {dimension_numbers = #tpu.dot_dimension_numbers<[1], [0], [0], [1], [0, 0, 1, 1], [], []>} : vector<64x40xf32>, vector<40x40xf32>, vector<64x40xf32> -> vector<64x40xf32>
    %c712 = arith.constant 712 : index
    %c0_175 = arith.constant 0 : index
    %492 = vector.load %arg5[%c712, %c0_175] : memref<1721x80xf32, #tpu.memory_space<vmem>>, vector<1x40xf32>
    %493 = vector.broadcast %492 : vector<1x40xf32> to vector<64x40xf32>
    %494 = arith.addf %491, %493 : vector<64x40xf32>
    %495 = arith.addf %468, %494 : vector<64x40xf32>
    %cst_176 = arith.constant 0.000000e+00 : f32
    %496 = vector.broadcast %cst_176 : f32 to vector<64x40xf32>
    %497 = arith.maximumf %495, %496 : vector<64x40xf32>
    %498 = math.absf %495 : vector<64x40xf32>
    %cst_177 = arith.constant 0.000000e+00 : f32
    %499 = vector.broadcast %cst_177 : f32 to vector<64x40xf32>
    %500 = arith.subf %499, %498 : vector<64x40xf32>
    %501 = math.exp %500 : vector<64x40xf32>
    %502 = math.log1p %501 : vector<64x40xf32>
    %503 = arith.addf %497, %502 : vector<64x40xf32>
    %c720 = arith.constant 720 : index
    %c0_178 = arith.constant 0 : index
    %504 = vector.load %arg5[%c720, %c0_178] : memref<1721x80xf32, #tpu.memory_space<vmem>>, vector<40x40xf32>
    %cst_179 = arith.constant dense<0.000000e+00> : vector<64x40xf32>
    %505 = tpu.matmul %503, %504, %cst_179 {dimension_numbers = #tpu.dot_dimension_numbers<[1], [0], [0], [1], [0, 0, 1, 1], [], []>} : vector<64x40xf32>, vector<40x40xf32>, vector<64x40xf32> -> vector<64x40xf32>
    %c760 = arith.constant 760 : index
    %c0_180 = arith.constant 0 : index
    %506 = vector.load %arg5[%c760, %c0_180] : memref<1721x80xf32, #tpu.memory_space<vmem>>, vector<1x40xf32>
    %507 = vector.broadcast %506 : vector<1x40xf32> to vector<64x40xf32>
    %508 = arith.addf %505, %507 : vector<64x40xf32>
    %cst_181 = arith.constant 0.000000e+00 : f32
    %509 = vector.broadcast %cst_181 : f32 to vector<64x40xf32>
    %510 = arith.maximumf %508, %509 : vector<64x40xf32>
    %511 = math.absf %508 : vector<64x40xf32>
    %cst_182 = arith.constant 0.000000e+00 : f32
    %512 = vector.broadcast %cst_182 : f32 to vector<64x40xf32>
    %513 = arith.subf %512, %511 : vector<64x40xf32>
    %514 = math.exp %513 : vector<64x40xf32>
    %515 = math.log1p %514 : vector<64x40xf32>
    %516 = arith.addf %510, %515 : vector<64x40xf32>
    %c768 = arith.constant 768 : index
    %c0_183 = arith.constant 0 : index
    %517 = vector.load %arg5[%c768, %c0_183] : memref<1721x80xf32, #tpu.memory_space<vmem>>, vector<40x40xf32>
    %cst_184 = arith.constant dense<0.000000e+00> : vector<64x40xf32>
    %518 = tpu.matmul %516, %517, %cst_184 {dimension_numbers = #tpu.dot_dimension_numbers<[1], [0], [0], [1], [0, 0, 1, 1], [], []>} : vector<64x40xf32>, vector<40x40xf32>, vector<64x40xf32> -> vector<64x40xf32>
    %c808 = arith.constant 808 : index
    %c0_185 = arith.constant 0 : index
    %519 = vector.load %arg5[%c808, %c0_185] : memref<1721x80xf32, #tpu.memory_space<vmem>>, vector<1x40xf32>
    %520 = vector.broadcast %519 : vector<1x40xf32> to vector<64x40xf32>
    %521 = arith.addf %518, %520 : vector<64x40xf32>
    %522 = arith.addf %495, %521 : vector<64x40xf32>
    %cst_186 = arith.constant 0.000000e+00 : f32
    %523 = vector.broadcast %cst_186 : f32 to vector<64x40xf32>
    %524 = arith.maximumf %522, %523 : vector<64x40xf32>
    %525 = math.absf %522 : vector<64x40xf32>
    %cst_187 = arith.constant 0.000000e+00 : f32
    %526 = vector.broadcast %cst_187 : f32 to vector<64x40xf32>
    %527 = arith.subf %526, %525 : vector<64x40xf32>
    %528 = math.exp %527 : vector<64x40xf32>
    %529 = math.log1p %528 : vector<64x40xf32>
    %530 = arith.addf %524, %529 : vector<64x40xf32>
    %c816 = arith.constant 816 : index
    %c0_188 = arith.constant 0 : index
    %531 = vector.load %arg5[%c816, %c0_188] : memref<1721x80xf32, #tpu.memory_space<vmem>>, vector<40x40xf32>
    %cst_189 = arith.constant dense<0.000000e+00> : vector<64x40xf32>
    %532 = tpu.matmul %530, %531, %cst_189 {dimension_numbers = #tpu.dot_dimension_numbers<[1], [0], [0], [1], [0, 0, 1, 1], [], []>} : vector<64x40xf32>, vector<40x40xf32>, vector<64x40xf32> -> vector<64x40xf32>
    %c856 = arith.constant 856 : index
    %c0_190 = arith.constant 0 : index
    %533 = vector.load %arg5[%c856, %c0_190] : memref<1721x80xf32, #tpu.memory_space<vmem>>, vector<1x40xf32>
    %534 = vector.broadcast %533 : vector<1x40xf32> to vector<64x40xf32>
    %535 = arith.addf %532, %534 : vector<64x40xf32>
    %cst_191 = arith.constant 0.000000e+00 : f32
    %536 = vector.broadcast %cst_191 : f32 to vector<64x40xf32>
    %537 = arith.maximumf %535, %536 : vector<64x40xf32>
    %538 = math.absf %535 : vector<64x40xf32>
    %cst_192 = arith.constant 0.000000e+00 : f32
    %539 = vector.broadcast %cst_192 : f32 to vector<64x40xf32>
    %540 = arith.subf %539, %538 : vector<64x40xf32>
    %541 = math.exp %540 : vector<64x40xf32>
    %542 = math.log1p %541 : vector<64x40xf32>
    %543 = arith.addf %537, %542 : vector<64x40xf32>
    %c864 = arith.constant 864 : index
    %c0_193 = arith.constant 0 : index
    %544 = vector.load %arg5[%c864, %c0_193] : memref<1721x80xf32, #tpu.memory_space<vmem>>, vector<40x40xf32>
    %cst_194 = arith.constant dense<0.000000e+00> : vector<64x40xf32>
    %545 = tpu.matmul %543, %544, %cst_194 {dimension_numbers = #tpu.dot_dimension_numbers<[1], [0], [0], [1], [0, 0, 1, 1], [], []>} : vector<64x40xf32>, vector<40x40xf32>, vector<64x40xf32> -> vector<64x40xf32>
    %c904 = arith.constant 904 : index
    %c0_195 = arith.constant 0 : index
    %546 = vector.load %arg5[%c904, %c0_195] : memref<1721x80xf32, #tpu.memory_space<vmem>>, vector<1x40xf32>
    %547 = vector.broadcast %546 : vector<1x40xf32> to vector<64x40xf32>
    %548 = arith.addf %545, %547 : vector<64x40xf32>
    %549 = arith.addf %522, %548 : vector<64x40xf32>
    %cst_196 = arith.constant 0.000000e+00 : f32
    %550 = vector.broadcast %cst_196 : f32 to vector<64x40xf32>
    %551 = arith.maximumf %549, %550 : vector<64x40xf32>
    %552 = math.absf %549 : vector<64x40xf32>
    %cst_197 = arith.constant 0.000000e+00 : f32
    %553 = vector.broadcast %cst_197 : f32 to vector<64x40xf32>
    %554 = arith.subf %553, %552 : vector<64x40xf32>
    %555 = math.exp %554 : vector<64x40xf32>
    %556 = math.log1p %555 : vector<64x40xf32>
    %557 = arith.addf %551, %556 : vector<64x40xf32>
    %c912 = arith.constant 912 : index
    %c0_198 = arith.constant 0 : index
    %558 = vector.load %arg5[%c912, %c0_198] : memref<1721x80xf32, #tpu.memory_space<vmem>>, vector<40x40xf32>
    %cst_199 = arith.constant dense<0.000000e+00> : vector<64x40xf32>
    %559 = tpu.matmul %557, %558, %cst_199 {dimension_numbers = #tpu.dot_dimension_numbers<[1], [0], [0], [1], [0, 0, 1, 1], [], []>} : vector<64x40xf32>, vector<40x40xf32>, vector<64x40xf32> -> vector<64x40xf32>
    %c952 = arith.constant 952 : index
    %c0_200 = arith.constant 0 : index
    %560 = vector.load %arg5[%c952, %c0_200] : memref<1721x80xf32, #tpu.memory_space<vmem>>, vector<1x40xf32>
    %561 = vector.broadcast %560 : vector<1x40xf32> to vector<64x40xf32>
    %562 = arith.addf %559, %561 : vector<64x40xf32>
    %cst_201 = arith.constant 0.000000e+00 : f32
    %563 = vector.broadcast %cst_201 : f32 to vector<64x40xf32>
    %564 = arith.maximumf %562, %563 : vector<64x40xf32>
    %565 = math.absf %562 : vector<64x40xf32>
    %cst_202 = arith.constant 0.000000e+00 : f32
    %566 = vector.broadcast %cst_202 : f32 to vector<64x40xf32>
    %567 = arith.subf %566, %565 : vector<64x40xf32>
    %568 = math.exp %567 : vector<64x40xf32>
    %569 = math.log1p %568 : vector<64x40xf32>
    %570 = arith.addf %564, %569 : vector<64x40xf32>
    %c960 = arith.constant 960 : index
    %c0_203 = arith.constant 0 : index
    %571 = vector.load %arg5[%c960, %c0_203] : memref<1721x80xf32, #tpu.memory_space<vmem>>, vector<40x40xf32>
    %cst_204 = arith.constant dense<0.000000e+00> : vector<64x40xf32>
    %572 = tpu.matmul %570, %571, %cst_204 {dimension_numbers = #tpu.dot_dimension_numbers<[1], [0], [0], [1], [0, 0, 1, 1], [], []>} : vector<64x40xf32>, vector<40x40xf32>, vector<64x40xf32> -> vector<64x40xf32>
    %c1000 = arith.constant 1000 : index
    %c0_205 = arith.constant 0 : index
    %573 = vector.load %arg5[%c1000, %c0_205] : memref<1721x80xf32, #tpu.memory_space<vmem>>, vector<1x40xf32>
    %574 = vector.broadcast %573 : vector<1x40xf32> to vector<64x40xf32>
    %575 = arith.addf %572, %574 : vector<64x40xf32>
    %576 = arith.addf %549, %575 : vector<64x40xf32>
    %cst_206 = arith.constant 0.000000e+00 : f32
    %577 = vector.broadcast %cst_206 : f32 to vector<64x40xf32>
    %578 = arith.maximumf %576, %577 : vector<64x40xf32>
    %579 = math.absf %576 : vector<64x40xf32>
    %cst_207 = arith.constant 0.000000e+00 : f32
    %580 = vector.broadcast %cst_207 : f32 to vector<64x40xf32>
    %581 = arith.subf %580, %579 : vector<64x40xf32>
    %582 = math.exp %581 : vector<64x40xf32>
    %583 = math.log1p %582 : vector<64x40xf32>
    %584 = arith.addf %578, %583 : vector<64x40xf32>
    %c1008 = arith.constant 1008 : index
    %c0_208 = arith.constant 0 : index
    %585 = vector.load %arg5[%c1008, %c0_208] : memref<1721x80xf32, #tpu.memory_space<vmem>>, vector<40x40xf32>
    %cst_209 = arith.constant dense<0.000000e+00> : vector<64x40xf32>
    %586 = tpu.matmul %584, %585, %cst_209 {dimension_numbers = #tpu.dot_dimension_numbers<[1], [0], [0], [1], [0, 0, 1, 1], [], []>} : vector<64x40xf32>, vector<40x40xf32>, vector<64x40xf32> -> vector<64x40xf32>
    %c1048 = arith.constant 1048 : index
    %c0_210 = arith.constant 0 : index
    %587 = vector.load %arg5[%c1048, %c0_210] : memref<1721x80xf32, #tpu.memory_space<vmem>>, vector<1x40xf32>
    %588 = vector.broadcast %587 : vector<1x40xf32> to vector<64x40xf32>
    %589 = arith.addf %586, %588 : vector<64x40xf32>
    %cst_211 = arith.constant 0.000000e+00 : f32
    %590 = vector.broadcast %cst_211 : f32 to vector<64x40xf32>
    %591 = arith.maximumf %589, %590 : vector<64x40xf32>
    %592 = math.absf %589 : vector<64x40xf32>
    %cst_212 = arith.constant 0.000000e+00 : f32
    %593 = vector.broadcast %cst_212 : f32 to vector<64x40xf32>
    %594 = arith.subf %593, %592 : vector<64x40xf32>
    %595 = math.exp %594 : vector<64x40xf32>
    %596 = math.log1p %595 : vector<64x40xf32>
    %597 = arith.addf %591, %596 : vector<64x40xf32>
    %c1056 = arith.constant 1056 : index
    %c0_213 = arith.constant 0 : index
    %598 = vector.load %arg5[%c1056, %c0_213] : memref<1721x80xf32, #tpu.memory_space<vmem>>, vector<40x40xf32>
    %cst_214 = arith.constant dense<0.000000e+00> : vector<64x40xf32>
    %599 = tpu.matmul %597, %598, %cst_214 {dimension_numbers = #tpu.dot_dimension_numbers<[1], [0], [0], [1], [0, 0, 1, 1], [], []>} : vector<64x40xf32>, vector<40x40xf32>, vector<64x40xf32> -> vector<64x40xf32>
    %c1096 = arith.constant 1096 : index
    %c0_215 = arith.constant 0 : index
    %600 = vector.load %arg5[%c1096, %c0_215] : memref<1721x80xf32, #tpu.memory_space<vmem>>, vector<1x40xf32>
    %601 = vector.broadcast %600 : vector<1x40xf32> to vector<64x40xf32>
    %602 = arith.addf %599, %601 : vector<64x40xf32>
    %603 = arith.addf %576, %602 : vector<64x40xf32>
    %cst_216 = arith.constant 0.000000e+00 : f32
    %604 = vector.broadcast %cst_216 : f32 to vector<64x40xf32>
    %605 = arith.maximumf %603, %604 : vector<64x40xf32>
    %606 = math.absf %603 : vector<64x40xf32>
    %cst_217 = arith.constant 0.000000e+00 : f32
    %607 = vector.broadcast %cst_217 : f32 to vector<64x40xf32>
    %608 = arith.subf %607, %606 : vector<64x40xf32>
    %609 = math.exp %608 : vector<64x40xf32>
    %610 = math.log1p %609 : vector<64x40xf32>
    %611 = arith.addf %605, %610 : vector<64x40xf32>
    %c1104 = arith.constant 1104 : index
    %c0_218 = arith.constant 0 : index
    %612 = vector.load %arg5[%c1104, %c0_218] : memref<1721x80xf32, #tpu.memory_space<vmem>>, vector<40x80xf32>
    %cst_219 = arith.constant dense<0.000000e+00> : vector<64x80xf32>
    %613 = tpu.matmul %611, %612, %cst_219 {dimension_numbers = #tpu.dot_dimension_numbers<[1], [0], [0], [1], [0, 0, 1, 1], [], []>} : vector<64x40xf32>, vector<40x80xf32>, vector<64x80xf32> -> vector<64x80xf32>
    %c1144 = arith.constant 1144 : index
    %c0_220 = arith.constant 0 : index
    %614 = vector.load %arg5[%c1144, %c0_220] : memref<1721x80xf32, #tpu.memory_space<vmem>>, vector<1x80xf32>
    %615 = vector.broadcast %614 : vector<1x80xf32> to vector<64x80xf32>
    %616 = arith.addf %613, %615 : vector<64x80xf32>
    %617 = vector.extract_strided_slice %616 {offsets = [0, 0], sizes = [64, 40], strides = [1, 1]} : vector<64x80xf32> to vector<64x40xf32>
    %618 = vector.extract_strided_slice %616 {offsets = [0, 40], sizes = [64, 40], strides = [1, 1]} : vector<64x80xf32> to vector<64x40xf32>
    %cst_221 = arith.constant 0.000000e+00 : f32
    %619 = vector.broadcast %cst_221 : f32 to vector<64x40xf32>
    %620 = arith.maximumf %618, %619 : vector<64x40xf32>
    %621 = math.absf %618 : vector<64x40xf32>
    %cst_222 = arith.constant 0.000000e+00 : f32
    %622 = vector.broadcast %cst_222 : f32 to vector<64x40xf32>
    %623 = arith.subf %622, %621 : vector<64x40xf32>
    %624 = math.exp %623 : vector<64x40xf32>
    %625 = math.log1p %624 : vector<64x40xf32>
    %626 = arith.addf %620, %625 : vector<64x40xf32>
    %cst_223 = arith.constant 1.000000e-03 : f32
    %627 = vector.broadcast %cst_223 : f32 to vector<64x40xf32>
    %628 = arith.addf %626, %627 : vector<64x40xf32>
    %629 = arith.mulf %628, %461 : vector<64x40xf32>
    %630 = arith.addf %629, %617 : vector<64x40xf32>
    %631 = math.log %628 : vector<64x40xf32>
    %632 = arith.addf %463, %631 : vector<64x40xf32>
    %c1152 = arith.constant 1152 : index
    %c0_224 = arith.constant 0 : index
    %633 = vector.load %arg5[%c1152, %c0_224] : memref<1721x80xf32, #tpu.memory_space<vmem>>, vector<40x40xf32>
    %cst_225 = arith.constant dense<0.000000e+00> : vector<64x40xf32>
    %634 = tpu.matmul %630, %633, %cst_225 {dimension_numbers = #tpu.dot_dimension_numbers<[1], [0], [0], [1], [0, 0, 1, 1], [], []>} : vector<64x40xf32>, vector<40x40xf32>, vector<64x40xf32> -> vector<64x40xf32>
    %c1192 = arith.constant 1192 : index
    %c0_226 = arith.constant 0 : index
    %635 = vector.load %arg5[%c1192, %c0_226] : memref<1721x80xf32, #tpu.memory_space<vmem>>, vector<1x40xf32>
    %636 = vector.broadcast %635 : vector<1x40xf32> to vector<64x40xf32>
    %637 = arith.addf %634, %636 : vector<64x40xf32>
    %cst_227 = arith.constant 0.000000e+00 : f32
    %638 = vector.broadcast %cst_227 : f32 to vector<64x40xf32>
    %639 = arith.maximumf %637, %638 : vector<64x40xf32>
    %640 = math.absf %637 : vector<64x40xf32>
    %cst_228 = arith.constant 0.000000e+00 : f32
    %641 = vector.broadcast %cst_228 : f32 to vector<64x40xf32>
    %642 = arith.subf %641, %640 : vector<64x40xf32>
    %643 = math.exp %642 : vector<64x40xf32>
    %644 = math.log1p %643 : vector<64x40xf32>
    %645 = arith.addf %639, %644 : vector<64x40xf32>
    %c1200 = arith.constant 1200 : index
    %c0_229 = arith.constant 0 : index
    %646 = vector.load %arg5[%c1200, %c0_229] : memref<1721x80xf32, #tpu.memory_space<vmem>>, vector<40x40xf32>
    %cst_230 = arith.constant dense<0.000000e+00> : vector<64x40xf32>
    %647 = tpu.matmul %645, %646, %cst_230 {dimension_numbers = #tpu.dot_dimension_numbers<[1], [0], [0], [1], [0, 0, 1, 1], [], []>} : vector<64x40xf32>, vector<40x40xf32>, vector<64x40xf32> -> vector<64x40xf32>
    %c1240 = arith.constant 1240 : index
    %c0_231 = arith.constant 0 : index
    %648 = vector.load %arg5[%c1240, %c0_231] : memref<1721x80xf32, #tpu.memory_space<vmem>>, vector<1x40xf32>
    %649 = vector.broadcast %648 : vector<1x40xf32> to vector<64x40xf32>
    %650 = arith.addf %647, %649 : vector<64x40xf32>
    %cst_232 = arith.constant 0.000000e+00 : f32
    %651 = vector.broadcast %cst_232 : f32 to vector<64x40xf32>
    %652 = arith.maximumf %650, %651 : vector<64x40xf32>
    %653 = math.absf %650 : vector<64x40xf32>
    %cst_233 = arith.constant 0.000000e+00 : f32
    %654 = vector.broadcast %cst_233 : f32 to vector<64x40xf32>
    %655 = arith.subf %654, %653 : vector<64x40xf32>
    %656 = math.exp %655 : vector<64x40xf32>
    %657 = math.log1p %656 : vector<64x40xf32>
    %658 = arith.addf %652, %657 : vector<64x40xf32>
    %c1248 = arith.constant 1248 : index
    %c0_234 = arith.constant 0 : index
    %659 = vector.load %arg5[%c1248, %c0_234] : memref<1721x80xf32, #tpu.memory_space<vmem>>, vector<40x40xf32>
    %cst_235 = arith.constant dense<0.000000e+00> : vector<64x40xf32>
    %660 = tpu.matmul %658, %659, %cst_235 {dimension_numbers = #tpu.dot_dimension_numbers<[1], [0], [0], [1], [0, 0, 1, 1], [], []>} : vector<64x40xf32>, vector<40x40xf32>, vector<64x40xf32> -> vector<64x40xf32>
    %c1288 = arith.constant 1288 : index
    %c0_236 = arith.constant 0 : index
    %661 = vector.load %arg5[%c1288, %c0_236] : memref<1721x80xf32, #tpu.memory_space<vmem>>, vector<1x40xf32>
    %662 = vector.broadcast %661 : vector<1x40xf32> to vector<64x40xf32>
    %663 = arith.addf %660, %662 : vector<64x40xf32>
    %664 = arith.addf %637, %663 : vector<64x40xf32>
    %cst_237 = arith.constant 0.000000e+00 : f32
    %665 = vector.broadcast %cst_237 : f32 to vector<64x40xf32>
    %666 = arith.maximumf %664, %665 : vector<64x40xf32>
    %667 = math.absf %664 : vector<64x40xf32>
    %cst_238 = arith.constant 0.000000e+00 : f32
    %668 = vector.broadcast %cst_238 : f32 to vector<64x40xf32>
    %669 = arith.subf %668, %667 : vector<64x40xf32>
    %670 = math.exp %669 : vector<64x40xf32>
    %671 = math.log1p %670 : vector<64x40xf32>
    %672 = arith.addf %666, %671 : vector<64x40xf32>
    %c1296 = arith.constant 1296 : index
    %c0_239 = arith.constant 0 : index
    %673 = vector.load %arg5[%c1296, %c0_239] : memref<1721x80xf32, #tpu.memory_space<vmem>>, vector<40x40xf32>
    %cst_240 = arith.constant dense<0.000000e+00> : vector<64x40xf32>
    %674 = tpu.matmul %672, %673, %cst_240 {dimension_numbers = #tpu.dot_dimension_numbers<[1], [0], [0], [1], [0, 0, 1, 1], [], []>} : vector<64x40xf32>, vector<40x40xf32>, vector<64x40xf32> -> vector<64x40xf32>
    %c1336 = arith.constant 1336 : index
    %c0_241 = arith.constant 0 : index
    %675 = vector.load %arg5[%c1336, %c0_241] : memref<1721x80xf32, #tpu.memory_space<vmem>>, vector<1x40xf32>
    %676 = vector.broadcast %675 : vector<1x40xf32> to vector<64x40xf32>
    %677 = arith.addf %674, %676 : vector<64x40xf32>
    %cst_242 = arith.constant 0.000000e+00 : f32
    %678 = vector.broadcast %cst_242 : f32 to vector<64x40xf32>
    %679 = arith.maximumf %677, %678 : vector<64x40xf32>
    %680 = math.absf %677 : vector<64x40xf32>
    %cst_243 = arith.constant 0.000000e+00 : f32
    %681 = vector.broadcast %cst_243 : f32 to vector<64x40xf32>
    %682 = arith.subf %681, %680 : vector<64x40xf32>
    %683 = math.exp %682 : vector<64x40xf32>
    %684 = math.log1p %683 : vector<64x40xf32>
    %685 = arith.addf %679, %684 : vector<64x40xf32>
    %c1344 = arith.constant 1344 : index
    %c0_244 = arith.constant 0 : index
    %686 = vector.load %arg5[%c1344, %c0_244] : memref<1721x80xf32, #tpu.memory_space<vmem>>, vector<40x40xf32>
    %cst_245 = arith.constant dense<0.000000e+00> : vector<64x40xf32>
    %687 = tpu.matmul %685, %686, %cst_245 {dimension_numbers = #tpu.dot_dimension_numbers<[1], [0], [0], [1], [0, 0, 1, 1], [], []>} : vector<64x40xf32>, vector<40x40xf32>, vector<64x40xf32> -> vector<64x40xf32>
    %c1384 = arith.constant 1384 : index
    %c0_246 = arith.constant 0 : index
    %688 = vector.load %arg5[%c1384, %c0_246] : memref<1721x80xf32, #tpu.memory_space<vmem>>, vector<1x40xf32>
    %689 = vector.broadcast %688 : vector<1x40xf32> to vector<64x40xf32>
    %690 = arith.addf %687, %689 : vector<64x40xf32>
    %691 = arith.addf %664, %690 : vector<64x40xf32>
    %cst_247 = arith.constant 0.000000e+00 : f32
    %692 = vector.broadcast %cst_247 : f32 to vector<64x40xf32>
    %693 = arith.maximumf %691, %692 : vector<64x40xf32>
    %694 = math.absf %691 : vector<64x40xf32>
    %cst_248 = arith.constant 0.000000e+00 : f32
    %695 = vector.broadcast %cst_248 : f32 to vector<64x40xf32>
    %696 = arith.subf %695, %694 : vector<64x40xf32>
    %697 = math.exp %696 : vector<64x40xf32>
    %698 = math.log1p %697 : vector<64x40xf32>
    %699 = arith.addf %693, %698 : vector<64x40xf32>
    %c1392 = arith.constant 1392 : index
    %c0_249 = arith.constant 0 : index
    %700 = vector.load %arg5[%c1392, %c0_249] : memref<1721x80xf32, #tpu.memory_space<vmem>>, vector<40x40xf32>
    %cst_250 = arith.constant dense<0.000000e+00> : vector<64x40xf32>
    %701 = tpu.matmul %699, %700, %cst_250 {dimension_numbers = #tpu.dot_dimension_numbers<[1], [0], [0], [1], [0, 0, 1, 1], [], []>} : vector<64x40xf32>, vector<40x40xf32>, vector<64x40xf32> -> vector<64x40xf32>
    %c1432 = arith.constant 1432 : index
    %c0_251 = arith.constant 0 : index
    %702 = vector.load %arg5[%c1432, %c0_251] : memref<1721x80xf32, #tpu.memory_space<vmem>>, vector<1x40xf32>
    %703 = vector.broadcast %702 : vector<1x40xf32> to vector<64x40xf32>
    %704 = arith.addf %701, %703 : vector<64x40xf32>
    %cst_252 = arith.constant 0.000000e+00 : f32
    %705 = vector.broadcast %cst_252 : f32 to vector<64x40xf32>
    %706 = arith.maximumf %704, %705 : vector<64x40xf32>
    %707 = math.absf %704 : vector<64x40xf32>
    %cst_253 = arith.constant 0.000000e+00 : f32
    %708 = vector.broadcast %cst_253 : f32 to vector<64x40xf32>
    %709 = arith.subf %708, %707 : vector<64x40xf32>
    %710 = math.exp %709 : vector<64x40xf32>
    %711 = math.log1p %710 : vector<64x40xf32>
    %712 = arith.addf %706, %711 : vector<64x40xf32>
    %c1440 = arith.constant 1440 : index
    %c0_254 = arith.constant 0 : index
    %713 = vector.load %arg5[%c1440, %c0_254] : memref<1721x80xf32, #tpu.memory_space<vmem>>, vector<40x40xf32>
    %cst_255 = arith.constant dense<0.000000e+00> : vector<64x40xf32>
    %714 = tpu.matmul %712, %713, %cst_255 {dimension_numbers = #tpu.dot_dimension_numbers<[1], [0], [0], [1], [0, 0, 1, 1], [], []>} : vector<64x40xf32>, vector<40x40xf32>, vector<64x40xf32> -> vector<64x40xf32>
    %c1480 = arith.constant 1480 : index
    %c0_256 = arith.constant 0 : index
    %715 = vector.load %arg5[%c1480, %c0_256] : memref<1721x80xf32, #tpu.memory_space<vmem>>, vector<1x40xf32>
    %716 = vector.broadcast %715 : vector<1x40xf32> to vector<64x40xf32>
    %717 = arith.addf %714, %716 : vector<64x40xf32>
    %718 = arith.addf %691, %717 : vector<64x40xf32>
    %cst_257 = arith.constant 0.000000e+00 : f32
    %719 = vector.broadcast %cst_257 : f32 to vector<64x40xf32>
    %720 = arith.maximumf %718, %719 : vector<64x40xf32>
    %721 = math.absf %718 : vector<64x40xf32>
    %cst_258 = arith.constant 0.000000e+00 : f32
    %722 = vector.broadcast %cst_258 : f32 to vector<64x40xf32>
    %723 = arith.subf %722, %721 : vector<64x40xf32>
    %724 = math.exp %723 : vector<64x40xf32>
    %725 = math.log1p %724 : vector<64x40xf32>
    %726 = arith.addf %720, %725 : vector<64x40xf32>
    %c1488 = arith.constant 1488 : index
    %c0_259 = arith.constant 0 : index
    %727 = vector.load %arg5[%c1488, %c0_259] : memref<1721x80xf32, #tpu.memory_space<vmem>>, vector<40x40xf32>
    %cst_260 = arith.constant dense<0.000000e+00> : vector<64x40xf32>
    %728 = tpu.matmul %726, %727, %cst_260 {dimension_numbers = #tpu.dot_dimension_numbers<[1], [0], [0], [1], [0, 0, 1, 1], [], []>} : vector<64x40xf32>, vector<40x40xf32>, vector<64x40xf32> -> vector<64x40xf32>
    %c1528 = arith.constant 1528 : index
    %c0_261 = arith.constant 0 : index
    %729 = vector.load %arg5[%c1528, %c0_261] : memref<1721x80xf32, #tpu.memory_space<vmem>>, vector<1x40xf32>
    %730 = vector.broadcast %729 : vector<1x40xf32> to vector<64x40xf32>
    %731 = arith.addf %728, %730 : vector<64x40xf32>
    %cst_262 = arith.constant 0.000000e+00 : f32
    %732 = vector.broadcast %cst_262 : f32 to vector<64x40xf32>
    %733 = arith.maximumf %731, %732 : vector<64x40xf32>
    %734 = math.absf %731 : vector<64x40xf32>
    %cst_263 = arith.constant 0.000000e+00 : f32
    %735 = vector.broadcast %cst_263 : f32 to vector<64x40xf32>
    %736 = arith.subf %735, %734 : vector<64x40xf32>
    %737 = math.exp %736 : vector<64x40xf32>
    %738 = math.log1p %737 : vector<64x40xf32>
    %739 = arith.addf %733, %738 : vector<64x40xf32>
    %c1536 = arith.constant 1536 : index
    %c0_264 = arith.constant 0 : index
    %740 = vector.load %arg5[%c1536, %c0_264] : memref<1721x80xf32, #tpu.memory_space<vmem>>, vector<40x40xf32>
    %cst_265 = arith.constant dense<0.000000e+00> : vector<64x40xf32>
    %741 = tpu.matmul %739, %740, %cst_265 {dimension_numbers = #tpu.dot_dimension_numbers<[1], [0], [0], [1], [0, 0, 1, 1], [], []>} : vector<64x40xf32>, vector<40x40xf32>, vector<64x40xf32> -> vector<64x40xf32>
    %c1576 = arith.constant 1576 : index
    %c0_266 = arith.constant 0 : index
    %742 = vector.load %arg5[%c1576, %c0_266] : memref<1721x80xf32, #tpu.memory_space<vmem>>, vector<1x40xf32>
    %743 = vector.broadcast %742 : vector<1x40xf32> to vector<64x40xf32>
    %744 = arith.addf %741, %743 : vector<64x40xf32>
    %745 = arith.addf %718, %744 : vector<64x40xf32>
    %cst_267 = arith.constant 0.000000e+00 : f32
    %746 = vector.broadcast %cst_267 : f32 to vector<64x40xf32>
    %747 = arith.maximumf %745, %746 : vector<64x40xf32>
    %748 = math.absf %745 : vector<64x40xf32>
    %cst_268 = arith.constant 0.000000e+00 : f32
    %749 = vector.broadcast %cst_268 : f32 to vector<64x40xf32>
    %750 = arith.subf %749, %748 : vector<64x40xf32>
    %751 = math.exp %750 : vector<64x40xf32>
    %752 = math.log1p %751 : vector<64x40xf32>
    %753 = arith.addf %747, %752 : vector<64x40xf32>
    %c1584 = arith.constant 1584 : index
    %c0_269 = arith.constant 0 : index
    %754 = vector.load %arg5[%c1584, %c0_269] : memref<1721x80xf32, #tpu.memory_space<vmem>>, vector<40x40xf32>
    %cst_270 = arith.constant dense<0.000000e+00> : vector<64x40xf32>
    %755 = tpu.matmul %753, %754, %cst_270 {dimension_numbers = #tpu.dot_dimension_numbers<[1], [0], [0], [1], [0, 0, 1, 1], [], []>} : vector<64x40xf32>, vector<40x40xf32>, vector<64x40xf32> -> vector<64x40xf32>
    %c1624 = arith.constant 1624 : index
    %c0_271 = arith.constant 0 : index
    %756 = vector.load %arg5[%c1624, %c0_271] : memref<1721x80xf32, #tpu.memory_space<vmem>>, vector<1x40xf32>
    %757 = vector.broadcast %756 : vector<1x40xf32> to vector<64x40xf32>
    %758 = arith.addf %755, %757 : vector<64x40xf32>
    %cst_272 = arith.constant 0.000000e+00 : f32
    %759 = vector.broadcast %cst_272 : f32 to vector<64x40xf32>
    %760 = arith.maximumf %758, %759 : vector<64x40xf32>
    %761 = math.absf %758 : vector<64x40xf32>
    %cst_273 = arith.constant 0.000000e+00 : f32
    %762 = vector.broadcast %cst_273 : f32 to vector<64x40xf32>
    %763 = arith.subf %762, %761 : vector<64x40xf32>
    %764 = math.exp %763 : vector<64x40xf32>
    %765 = math.log1p %764 : vector<64x40xf32>
    %766 = arith.addf %760, %765 : vector<64x40xf32>
    %c1632 = arith.constant 1632 : index
    %c0_274 = arith.constant 0 : index
    %767 = vector.load %arg5[%c1632, %c0_274] : memref<1721x80xf32, #tpu.memory_space<vmem>>, vector<40x40xf32>
    %cst_275 = arith.constant dense<0.000000e+00> : vector<64x40xf32>
    %768 = tpu.matmul %766, %767, %cst_275 {dimension_numbers = #tpu.dot_dimension_numbers<[1], [0], [0], [1], [0, 0, 1, 1], [], []>} : vector<64x40xf32>, vector<40x40xf32>, vector<64x40xf32> -> vector<64x40xf32>
    %c1672 = arith.constant 1672 : index
    %c0_276 = arith.constant 0 : index
    %769 = vector.load %arg5[%c1672, %c0_276] : memref<1721x80xf32, #tpu.memory_space<vmem>>, vector<1x40xf32>
    %770 = vector.broadcast %769 : vector<1x40xf32> to vector<64x40xf32>
    %771 = arith.addf %768, %770 : vector<64x40xf32>
    %772 = arith.addf %745, %771 : vector<64x40xf32>
    %cst_277 = arith.constant 0.000000e+00 : f32
    %773 = vector.broadcast %cst_277 : f32 to vector<64x40xf32>
    %774 = arith.maximumf %772, %773 : vector<64x40xf32>
    %775 = math.absf %772 : vector<64x40xf32>
    %cst_278 = arith.constant 0.000000e+00 : f32
    %776 = vector.broadcast %cst_278 : f32 to vector<64x40xf32>
    %777 = arith.subf %776, %775 : vector<64x40xf32>
    %778 = math.exp %777 : vector<64x40xf32>
    %779 = math.log1p %778 : vector<64x40xf32>
    %780 = arith.addf %774, %779 : vector<64x40xf32>
    %c1680 = arith.constant 1680 : index
    %c0_279 = arith.constant 0 : index
    %781 = vector.load %arg5[%c1680, %c0_279] : memref<1721x80xf32, #tpu.memory_space<vmem>>, vector<40x80xf32>
    %cst_280 = arith.constant dense<0.000000e+00> : vector<64x80xf32>
    %782 = tpu.matmul %780, %781, %cst_280 {dimension_numbers = #tpu.dot_dimension_numbers<[1], [0], [0], [1], [0, 0, 1, 1], [], []>} : vector<64x40xf32>, vector<40x80xf32>, vector<64x80xf32> -> vector<64x80xf32>
    %c1720 = arith.constant 1720 : index
    %c0_281 = arith.constant 0 : index
    %783 = vector.load %arg5[%c1720, %c0_281] : memref<1721x80xf32, #tpu.memory_space<vmem>>, vector<1x80xf32>
    %784 = vector.broadcast %783 : vector<1x80xf32> to vector<64x80xf32>
    %785 = arith.addf %782, %784 : vector<64x80xf32>
    %786 = vector.extract_strided_slice %785 {offsets = [0, 0], sizes = [64, 40], strides = [1, 1]} : vector<64x80xf32> to vector<64x40xf32>
    %787 = vector.extract_strided_slice %785 {offsets = [0, 40], sizes = [64, 40], strides = [1, 1]} : vector<64x80xf32> to vector<64x40xf32>
    %cst_282 = arith.constant 0.000000e+00 : f32
    %788 = vector.broadcast %cst_282 : f32 to vector<64x40xf32>
    %789 = arith.maximumf %787, %788 : vector<64x40xf32>
    %790 = math.absf %787 : vector<64x40xf32>
    %cst_283 = arith.constant 0.000000e+00 : f32
    %791 = vector.broadcast %cst_283 : f32 to vector<64x40xf32>
    %792 = arith.subf %791, %790 : vector<64x40xf32>
    %793 = math.exp %792 : vector<64x40xf32>
    %794 = math.log1p %793 : vector<64x40xf32>
    %795 = arith.addf %789, %794 : vector<64x40xf32>
    %cst_284 = arith.constant 1.000000e-03 : f32
    %796 = vector.broadcast %cst_284 : f32 to vector<64x40xf32>
    %797 = arith.addf %795, %796 : vector<64x40xf32>
    %798 = arith.mulf %797, %630 : vector<64x40xf32>
    %799 = arith.addf %798, %786 : vector<64x40xf32>
    %800 = math.log %797 : vector<64x40xf32>
    %801 = arith.addf %632, %800 : vector<64x40xf32>
    %802 = arith.mulf %799, %799 : vector<64x40xf32>
    %803 = vector.extract_strided_slice %802 {offsets = [0, 0], sizes = [64, 10], strides = [1, 1]} : vector<64x40xf32> to vector<64x10xf32>
    %cst_285 = arith.constant dense<0.000000e+00> : vector<64xf32>
    %804 = vector.multi_reduction <add>, %803, %cst_285 [1] : vector<64x10xf32> to vector<64xf32>
    %805 = vector.shape_cast %804 : vector<64xf32> to vector<64x1xf32>
    %cst_286 = arith.constant -5.000000e-01 : f32
    %806 = vector.broadcast %cst_286 : f32 to vector<64x1xf32>
    %807 = arith.mulf %806, %805 : vector<64x1xf32>
    %cst_287 = arith.constant 9.18938541 : f32
    %808 = vector.broadcast %cst_287 : f32 to vector<64x1xf32>
    %809 = arith.subf %807, %808 : vector<64x1xf32>
    %810 = vector.extract_strided_slice %801 {offsets = [0, 0], sizes = [64, 10], strides = [1, 1]} : vector<64x40xf32> to vector<64x10xf32>
    %cst_288 = arith.constant dense<0.000000e+00> : vector<64xf32>
    %811 = vector.multi_reduction <add>, %810, %cst_288 [1] : vector<64x10xf32> to vector<64xf32>
    %812 = vector.shape_cast %811 : vector<64xf32> to vector<64x1xf32>
    %813 = arith.addf %809, %812 : vector<64x1xf32>
    %814 = vector.extract_strided_slice %813 {offsets = [0, 0], sizes = [8, 1], strides = [1, 1]} : vector<64x1xf32> to vector<8x1xf32>
    %815 = vector.extract_strided_slice %802 {offsets = [0, 10], sizes = [64, 10], strides = [1, 1]} : vector<64x40xf32> to vector<64x10xf32>
    %cst_289 = arith.constant dense<0.000000e+00> : vector<64xf32>
    %816 = vector.multi_reduction <add>, %815, %cst_289 [1] : vector<64x10xf32> to vector<64xf32>
    %817 = vector.shape_cast %816 : vector<64xf32> to vector<64x1xf32>
    %cst_290 = arith.constant -5.000000e-01 : f32
    %818 = vector.broadcast %cst_290 : f32 to vector<64x1xf32>
    %819 = arith.mulf %818, %817 : vector<64x1xf32>
    %cst_291 = arith.constant 9.18938541 : f32
    %820 = vector.broadcast %cst_291 : f32 to vector<64x1xf32>
    %821 = arith.subf %819, %820 : vector<64x1xf32>
    %822 = vector.extract_strided_slice %801 {offsets = [0, 10], sizes = [64, 10], strides = [1, 1]} : vector<64x40xf32> to vector<64x10xf32>
    %cst_292 = arith.constant dense<0.000000e+00> : vector<64xf32>
    %823 = vector.multi_reduction <add>, %822, %cst_292 [1] : vector<64x10xf32> to vector<64xf32>
    %824 = vector.shape_cast %823 : vector<64xf32> to vector<64x1xf32>
    %825 = arith.addf %821, %824 : vector<64x1xf32>
    %826 = vector.extract_strided_slice %825 {offsets = [0, 0], sizes = [8, 1], strides = [1, 1]} : vector<64x1xf32> to vector<8x1xf32>
    %827 = vector.extract_strided_slice %802 {offsets = [0, 20], sizes = [64, 10], strides = [1, 1]} : vector<64x40xf32> to vector<64x10xf32>
    %cst_293 = arith.constant dense<0.000000e+00> : vector<64xf32>
    %828 = vector.multi_reduction <add>, %827, %cst_293 [1] : vector<64x10xf32> to vector<64xf32>
    %829 = vector.shape_cast %828 : vector<64xf32> to vector<64x1xf32>
    %cst_294 = arith.constant -5.000000e-01 : f32
    %830 = vector.broadcast %cst_294 : f32 to vector<64x1xf32>
    %831 = arith.mulf %830, %829 : vector<64x1xf32>
    %cst_295 = arith.constant 9.18938541 : f32
    %832 = vector.broadcast %cst_295 : f32 to vector<64x1xf32>
    %833 = arith.subf %831, %832 : vector<64x1xf32>
    %834 = vector.extract_strided_slice %801 {offsets = [0, 20], sizes = [64, 10], strides = [1, 1]} : vector<64x40xf32> to vector<64x10xf32>
    %cst_296 = arith.constant dense<0.000000e+00> : vector<64xf32>
    %835 = vector.multi_reduction <add>, %834, %cst_296 [1] : vector<64x10xf32> to vector<64xf32>
    %836 = vector.shape_cast %835 : vector<64xf32> to vector<64x1xf32>
    %837 = arith.addf %833, %836 : vector<64x1xf32>
    %838 = vector.extract_strided_slice %802 {offsets = [0, 30], sizes = [64, 10], strides = [1, 1]} : vector<64x40xf32> to vector<64x10xf32>
    %cst_297 = arith.constant dense<0.000000e+00> : vector<64xf32>
    %839 = vector.multi_reduction <add>, %838, %cst_297 [1] : vector<64x10xf32> to vector<64xf32>
    %840 = vector.shape_cast %839 : vector<64xf32> to vector<64x1xf32>
    %cst_298 = arith.constant -5.000000e-01 : f32
    %841 = vector.broadcast %cst_298 : f32 to vector<64x1xf32>
    %842 = arith.mulf %841, %840 : vector<64x1xf32>
    %cst_299 = arith.constant 9.18938541 : f32
    %843 = vector.broadcast %cst_299 : f32 to vector<64x1xf32>
    %844 = arith.subf %842, %843 : vector<64x1xf32>
    %845 = vector.extract_strided_slice %801 {offsets = [0, 30], sizes = [64, 10], strides = [1, 1]} : vector<64x40xf32> to vector<64x10xf32>
    %cst_300 = arith.constant dense<0.000000e+00> : vector<64xf32>
    %846 = vector.multi_reduction <add>, %845, %cst_300 [1] : vector<64x10xf32> to vector<64xf32>
    %847 = vector.shape_cast %846 : vector<64xf32> to vector<64x1xf32>
    %848 = arith.addf %844, %847 : vector<64x1xf32>
    %cst_301 = arith.constant 11.5129251 : f32
    %849 = vector.broadcast %cst_301 : f32 to vector<8x1xf32>
    %850 = arith.addf %814, %849 : vector<8x1xf32>
    %cst_302 = arith.constant 11.5129251 : f32
    %851 = vector.broadcast %cst_302 : f32 to vector<8x1xf32>
    %852 = arith.addf %826, %851 : vector<8x1xf32>
    %853 = arith.maximumf %850, %852 : vector<8x1xf32>
    %cst_303 = arith.constant 0.693147182 : f32
    %854 = vector.broadcast %cst_303 : f32 to vector<8x1xf32>
    %855 = arith.maximumf %853, %854 : vector<8x1xf32>
    %856 = arith.subf %850, %855 : vector<8x1xf32>
    %857 = math.exp %856 : vector<8x1xf32>
    %858 = arith.subf %852, %855 : vector<8x1xf32>
    %859 = math.exp %858 : vector<8x1xf32>
    %860 = arith.addf %857, %859 : vector<8x1xf32>
    %cst_304 = arith.constant 0.693147182 : f32
    %861 = vector.broadcast %cst_304 : f32 to vector<8x1xf32>
    %862 = arith.subf %861, %855 : vector<8x1xf32>
    %863 = math.exp %862 : vector<8x1xf32>
    %864 = arith.addf %860, %863 : vector<8x1xf32>
    %865 = math.log %864 : vector<8x1xf32>
    %866 = arith.addf %855, %865 : vector<8x1xf32>
    %cst_305 = arith.constant 0.000000e+00 : f32
    %867 = vector.broadcast %cst_305 : f32 to vector<8x1xf32>
    %868 = arith.maximumf %850, %867 : vector<8x1xf32>
    %869 = math.absf %850 : vector<8x1xf32>
    %cst_306 = arith.constant 0.000000e+00 : f32
    %870 = vector.broadcast %cst_306 : f32 to vector<8x1xf32>
    %871 = arith.subf %870, %869 : vector<8x1xf32>
    %872 = math.exp %871 : vector<8x1xf32>
    %873 = math.log1p %872 : vector<8x1xf32>
    %874 = arith.addf %868, %873 : vector<8x1xf32>
    %875 = arith.subf %874, %866 : vector<8x1xf32>
    %876 = math.exp %875 : vector<8x1xf32>
    %cst_307 = arith.constant 11.5129251 : f32
    %877 = vector.broadcast %cst_307 : f32 to vector<64x1xf32>
    %878 = arith.addf %837, %877 : vector<64x1xf32>
    %cst_308 = arith.constant 11.5129251 : f32
    %879 = vector.broadcast %cst_308 : f32 to vector<64x1xf32>
    %880 = arith.addf %848, %879 : vector<64x1xf32>
    %881 = arith.maximumf %878, %880 : vector<64x1xf32>
    %cst_309 = arith.constant 0.693147182 : f32
    %882 = vector.broadcast %cst_309 : f32 to vector<64x1xf32>
    %883 = arith.maximumf %881, %882 : vector<64x1xf32>
    %884 = arith.subf %878, %883 : vector<64x1xf32>
    %885 = math.exp %884 : vector<64x1xf32>
    %886 = arith.subf %880, %883 : vector<64x1xf32>
    %887 = math.exp %886 : vector<64x1xf32>
    %888 = arith.addf %885, %887 : vector<64x1xf32>
    %cst_310 = arith.constant 0.693147182 : f32
    %889 = vector.broadcast %cst_310 : f32 to vector<64x1xf32>
    %890 = arith.subf %889, %883 : vector<64x1xf32>
    %891 = math.exp %890 : vector<64x1xf32>
    %892 = arith.addf %888, %891 : vector<64x1xf32>
    %893 = math.log %892 : vector<64x1xf32>
    %894 = arith.addf %883, %893 : vector<64x1xf32>
    %cst_311 = arith.constant 0.000000e+00 : f32
    %895 = vector.broadcast %cst_311 : f32 to vector<64x1xf32>
    %896 = arith.maximumf %878, %895 : vector<64x1xf32>
    %897 = math.absf %878 : vector<64x1xf32>
    %cst_312 = arith.constant 0.000000e+00 : f32
    %898 = vector.broadcast %cst_312 : f32 to vector<64x1xf32>
    %899 = arith.subf %898, %897 : vector<64x1xf32>
    %900 = math.exp %899 : vector<64x1xf32>
    %901 = math.log1p %900 : vector<64x1xf32>
    %902 = arith.addf %896, %901 : vector<64x1xf32>
    %903 = arith.subf %902, %894 : vector<64x1xf32>
    %904 = math.exp %903 : vector<64x1xf32>
    %cst_313 = arith.constant 7.700000e+01 : f32
    %905 = vector.broadcast %cst_313 : f32 to vector<8x1xf32>
    %906 = arith.minimumf %814, %905 : vector<8x1xf32>
    %907 = math.exp %906 : vector<8x1xf32>
    %cst_314 = arith.constant 1.000000e+05 : f32
    %908 = vector.broadcast %cst_314 : f32 to vector<8x1xf32>
    %909 = arith.mulf %908, %907 : vector<8x1xf32>
    %cst_315 = arith.constant 1.000000e+00 : f32
    %910 = vector.broadcast %cst_315 : f32 to vector<8x1xf32>
    %911 = arith.addf %910, %909 : vector<8x1xf32>
    %cst_316 = arith.constant 7.700000e+01 : f32
    %912 = vector.broadcast %cst_316 : f32 to vector<8x1xf32>
    %913 = arith.minimumf %826, %912 : vector<8x1xf32>
    %914 = math.exp %913 : vector<8x1xf32>
    %cst_317 = arith.constant 1.000000e+05 : f32
    %915 = vector.broadcast %cst_317 : f32 to vector<8x1xf32>
    %916 = arith.mulf %915, %914 : vector<8x1xf32>
    %cst_318 = arith.constant 1.000000e+00 : f32
    %917 = vector.broadcast %cst_318 : f32 to vector<8x1xf32>
    %918 = arith.addf %917, %916 : vector<8x1xf32>
    %919 = vector.extract_strided_slice %125 {offsets = [0, 0], sizes = [8, 8], strides = [1, 1]} : vector<16x8xf32> to vector<8x8xf32>
    %920 = vector.extract_strided_slice %222 {offsets = [0, 0], sizes = [4, 8], strides = [1, 1]} : vector<8x8xf32> to vector<4x8xf32>
    %cst_319 = arith.constant 0.000000e+00 : f32
    %921 = vector.broadcast %cst_319 : f32 to vector<20x8xf32>
    %922 = tpu.concatenate %919, %920, %921 in 0 : vector<8x8xf32>, vector<4x8xf32>, vector<20x8xf32> -> vector<32x8xf32>
    %923 = vector.extract_strided_slice %904 {offsets = [0, 0], sizes = [32, 1], strides = [1, 1]} : vector<64x1xf32> to vector<32x1xf32>
    %924 = vector.extract_strided_slice %876 {offsets = [0, 0], sizes = [4, 1], strides = [1, 1]} : vector<8x1xf32> to vector<4x1xf32>
    %cst_320 = arith.constant 0.000000e+00 : f32
    %925 = vector.broadcast %cst_320 : f32 to vector<28x1xf32>
    %926 = tpu.concatenate %924, %925 in 0 : vector<4x1xf32>, vector<28x1xf32> -> vector<32x1xf32>
    %927 = vector.extract_strided_slice %911 {offsets = [0, 0], sizes = [4, 1], strides = [1, 1]} : vector<8x1xf32> to vector<4x1xf32>
    %cst_321 = arith.constant 0.000000e+00 : f32
    %928 = vector.broadcast %cst_321 : f32 to vector<28x1xf32>
    %929 = tpu.concatenate %927, %928 in 0 : vector<4x1xf32>, vector<28x1xf32> -> vector<32x1xf32>
    %930 = vector.extract_strided_slice %918 {offsets = [0, 0], sizes = [4, 1], strides = [1, 1]} : vector<8x1xf32> to vector<4x1xf32>
    %cst_322 = arith.constant 0.000000e+00 : f32
    %931 = vector.broadcast %cst_322 : f32 to vector<28x1xf32>
    %932 = tpu.concatenate %930, %931 in 0 : vector<4x1xf32>, vector<28x1xf32> -> vector<32x1xf32>
    %cst_323 = arith.constant 0.000000e+00 : f32
    %933 = vector.broadcast %cst_323 : f32 to vector<32x116xf32>
    %934 = tpu.concatenate %922, %923, %926, %929, %932, %933 in 1 : vector<32x8xf32>, vector<32x1xf32>, vector<32x1xf32>, vector<32x1xf32>, vector<32x1xf32>, vector<32x116xf32> -> vector<32x128xf32>
    %c0_324 = arith.constant 0 : index
    %c0_325 = arith.constant 0 : index
    %c0_326 = arith.constant 0 : index
    %935 = vector.load %arg6[%c0_324, %c0_325, %c0_326] : memref<2x32x128xf32, #tpu.memory_space<vmem>>, vector<1x32x128xf32>
    %936 = vector.shape_cast %935 : vector<1x32x128xf32> to vector<32x128xf32>
    %937 = vector.shape_cast %934 : vector<32x128xf32> to vector<1x32x128xf32>
    tpu.vector_store %arg6[%c0_324, %c0_325, %c0_326], %937 {strides = array<i32>} : memref<2x32x128xf32, #tpu.memory_space<vmem>>, vector<1x32x128xf32>,
    %938 = vector.extract_strided_slice %125 {offsets = [8, 0], sizes = [8, 8], strides = [1, 1]} : vector<16x8xf32> to vector<8x8xf32>
    %939 = vector.extract_strided_slice %222 {offsets = [4, 0], sizes = [4, 8], strides = [1, 1]} : vector<8x8xf32> to vector<4x8xf32>
    %cst_327 = arith.constant 0.000000e+00 : f32
    %940 = vector.broadcast %cst_327 : f32 to vector<20x8xf32>
    %941 = tpu.concatenate %938, %939, %940 in 0 : vector<8x8xf32>, vector<4x8xf32>, vector<20x8xf32> -> vector<32x8xf32>
    %942 = vector.extract_strided_slice %904 {offsets = [32, 0], sizes = [32, 1], strides = [1, 1]} : vector<64x1xf32> to vector<32x1xf32>
    %943 = vector.extract_strided_slice %876 {offsets = [4, 0], sizes = [4, 1], strides = [1, 1]} : vector<8x1xf32> to vector<4x1xf32>
    %cst_328 = arith.constant 0.000000e+00 : f32
    %944 = vector.broadcast %cst_328 : f32 to vector<28x1xf32>
    %945 = tpu.concatenate %943, %944 in 0 : vector<4x1xf32>, vector<28x1xf32> -> vector<32x1xf32>
    %946 = vector.extract_strided_slice %911 {offsets = [4, 0], sizes = [4, 1], strides = [1, 1]} : vector<8x1xf32> to vector<4x1xf32>
    %cst_329 = arith.constant 0.000000e+00 : f32
    %947 = vector.broadcast %cst_329 : f32 to vector<28x1xf32>
    %948 = tpu.concatenate %946, %947 in 0 : vector<4x1xf32>, vector<28x1xf32> -> vector<32x1xf32>
    %949 = vector.extract_strided_slice %918 {offsets = [4, 0], sizes = [4, 1], strides = [1, 1]} : vector<8x1xf32> to vector<4x1xf32>
    %cst_330 = arith.constant 0.000000e+00 : f32
    %950 = vector.broadcast %cst_330 : f32 to vector<28x1xf32>
    %951 = tpu.concatenate %949, %950 in 0 : vector<4x1xf32>, vector<28x1xf32> -> vector<32x1xf32>
    %cst_331 = arith.constant 0.000000e+00 : f32
    %952 = vector.broadcast %cst_331 : f32 to vector<32x116xf32>
    %953 = tpu.concatenate %941, %942, %945, %948, %951, %952 in 1 : vector<32x8xf32>, vector<32x1xf32>, vector<32x1xf32>, vector<32x1xf32>, vector<32x1xf32>, vector<32x116xf32> -> vector<32x128xf32>
    %c1 = arith.constant 1 : index
    %c0_332 = arith.constant 0 : index
    %c0_333 = arith.constant 0 : index
    %954 = vector.load %arg6[%c1, %c0_332, %c0_333] : memref<2x32x128xf32, #tpu.memory_space<vmem>>, vector<1x32x128xf32>
    %955 = vector.shape_cast %954 : vector<1x32x128xf32> to vector<32x128xf32>
    %956 = vector.shape_cast %953 : vector<32x128xf32> to vector<1x32x128xf32>
    tpu.vector_store %arg6[%c1, %c0_332, %c0_333], %956 {strides = array<i32>} : memref<2x32x128xf32, #tpu.memory_space<vmem>>, vector<1x32x128xf32>,
    return
  }
  func.func @transform_0(%arg0: i32) -> (i32, i32, i32) {
    %c0_i32 = arith.constant 0 : i32
    %c0_i32_0 = arith.constant 0 : i32
    %c0_i32_1 = arith.constant 0 : i32
    return %arg0, %c0_i32, %c0_i32_0 : i32, i32, i32
  }
  func.func @transform_1(%arg0: i32) -> (i32, i32) {
    %c0_i32 = arith.constant 0 : i32
    %c0_i32_0 = arith.constant 0 : i32
    return %arg0, %c0_i32 : i32, i32
  }
  func.func @transform_2(%arg0: i32) -> (i32, i32) {
    %c0_i32 = arith.constant 0 : i32
    %c0_i32_0 = arith.constant 0 : i32
    %c0_i32_1 = arith.constant 0 : i32
    return %c0_i32, %c0_i32_0 : i32, i32
  }
  func.func @transform_3(%arg0: i32) -> (i32, i32) {
    %c0_i32 = arith.constant 0 : i32
    %c0_i32_0 = arith.constant 0 : i32
    %c0_i32_1 = arith.constant 0 : i32
    return %c0_i32, %c0_i32_0 : i32, i32
  }
  func.func @transform_4(%arg0: i32) -> (i32, i32) {
    %c0_i32 = arith.constant 0 : i32
    %c0_i32_0 = arith.constant 0 : i32
    %c0_i32_1 = arith.constant 0 : i32
    return %c0_i32, %c0_i32_0 : i32, i32
  }
  func.func @transform_5(%arg0: i32) -> (i32, i32, i32) {
    %c0_i32 = arith.constant 0 : i32
    %c0_i32_0 = arith.constant 0 : i32
    %c0_i32_1 = arith.constant 0 : i32
    return %arg0, %c0_i32, %c0_i32_0 : i32, i32, i32
  }
}

</mosaic_0001>

<llo_original>
// kernel: squeeze.2
$region0: #{squeeze.2}
  %s0 = inlined_call_operand.vmem [shape: f32[2,32], index: 0, kind: input, shape index: {}]
  %s1 = inlined_call_operand.hbm [shape: f32[2,4,8], index: 1, kind: output, shape index: {}]
  $region1: #{squeeze.2} parent=0
    #allocation0 [shape = 'u8[4096]{0}', space=vmem, size = 0x1000, scoped, tag = 'operand span for operand 1']
    #allocation1 [shape = 's32[1]{0}', space=sflag, size = 0x4, scoped, tag = 'scoped memory for squeeze.2']
    #allocation2 [shape = 'u8[8192]{0}', space=vmem, size = 0x2000, scoped, tag = 'scoped mem for output reshape']
    #allocation3 [shape = 'u8[4096]{0}', space=vmem, size = 0x1000, scoped, tag = 'scoped mem for input reshape']
    %2 = vsyncpa [#allocation1], 0
    %s4 = ssub.s32 4, 1
    %v5 = vld [vmem:[%s0] sm:%s4]
    %6 = vst [vmem:[#allocation3] sm:%s4] %v5
    %v7 = vld [vmem:[#allocation3] sm:$0x3]
    %vm8 = vcmask 64512
    %9 = vst.msk [vmem:[#allocation2] ss:$8 sm:$0x3] %vm8, %v7
    %v10 = vld [vmem:[#allocation3] sm:$0x3]
    %11 = vrot.lane.b32.xlu0 %v10, 120
    %v12 = vpop.permute.xlu0 %11
    %vm13 = vcmask 64512
    %s14 = scalar_lea.vmem [#allocation2], 1
    %15 = vst.msk [vmem:[%s14] ss:$8 sm:$0x3] %vm13, %v12
    %v16 = vld [vmem:[#allocation3] sm:$0x3]
    %17 = vrot.lane.b32.xlu0 %v16, 112
    %v18 = vpop.permute.xlu0 %17
    %vm19 = vcmask 64512
    %s20 = scalar_lea.vmem [#allocation2], 2
    %21 = vst.msk [vmem:[%s20] ss:$8 sm:$0x3] %vm19, %v18
    %v22 = vld [vmem:[#allocation3] sm:$0x3]
    %23 = vrot.lane.b32.xlu0 %v22, 104
    %v24 = vpop.permute.xlu0 %23
    %vm25 = vcmask 64512
    %s26 = scalar_lea.vmem [#allocation2], 3
    %27 = vst.msk [vmem:[%s26] ss:$8 sm:$0x3] %vm25, %v24
    %s29 = ssub.s32 16, 1
    %v30 = vld [vmem:[#allocation2] sm:%s29]
    %s32 = ssub.s32 16, 1
    %33 = vst [vmem:[#allocation0] sm:%s32] %v30
    %s34 = scalar_lea.vmem [#allocation2], 8
    %v35 = vld [vmem:[%s34] sm:%s29]
    %s37 = ssub.s32 16, 1
    %s38 = scalar_lea.vmem [#allocation0], 4
    %39 = vst [vmem:[%s38] sm:%s37] %v35
    %41 = vsyncadd [#allocation1], 0
    %s43 = sshll.u32 [#allocation0], 4
    %s44 = int_to_ptr.vmem [resolvable:$true] %s43
    %s45 = sshll.u32 %s1, 4
    %s46 = int_to_ptr.hbm [resolvable:$true] %s45
    %48 = dma.vmem_to_hbm [thread:$0]  %s44, 128, %s46, [#allocation1]
    %50 = dma.done [#allocation1], 128
    %51 = vsyncpa [#allocation1], 1

// kernel: _lambda_.1
$region0: #{_lambda_.1}
  #allocation0 [shape = 'u32[]', space=smem, size = 0x4, offset = 0x4, fixed_abs, tag = 'smem constant byte address 0x4 - core index']
  #allocation1 [shape = 'u32[72,128]{1,0:T(1,128)}', space=vmem, size = 0x9000, scoped, tag = 'internal scratch']
  %s0 = inlined_call_operand.vmem [shape: f32[2,1,8], index: 0, kind: input, shape index: {}]
  %s1 = inlined_call_operand.vmem [shape: f32[16,1], index: 1, kind: input, shape index: {}]
  %s2 = inlined_call_operand.vmem [shape: f32[105,32], index: 2, kind: input, shape index: {}]
  %s3 = inlined_call_operand.vmem [shape: bf16[266,32], index: 3, kind: input, shape index: {}]
  %s4 = inlined_call_operand.vmem [shape: f32[1721,80], index: 4, kind: input, shape index: {}]
  %s5 = inlined_call_operand.vmem [shape: f32[2,32,128], index: 5, kind: output, shape index: {}]
  %s6 = sld [smem:[#allocation0]]
  $region30: #{_lambda_.1} parent=0
    _
  %s8 = ssub.s32 1, %s6
  %s9 = scalar_select 0, %s8, %s6
  // Predicated region
  $region2: #{_lambda_.1} parent=0 // pred_check
    _
  $region3: #{_lambda_.1} parent=0 // pred_check_branch
    %11 = sbr.rel (0) target = $region5
  $region4: #{_lambda_.1} parent=0 // pred_region
    _
  $region5: #{_lambda_.1} parent=0 // pred_fallthru
    _
  // Predicated region
  $region6: #{_lambda_.1} parent=0 // pred_check
    _
  $region7: #{_lambda_.1} parent=0 // pred_check_branch
    %13 = sbr.rel (0) target = $region9
  $region8: #{_lambda_.1} parent=0 // pred_region
    _
  $region9: #{_lambda_.1} parent=0 // pred_fallthru
    _
  // Predicated region
  $region10: #{_lambda_.1} parent=0 // pred_check
    _
  $region11: #{_lambda_.1} parent=0 // pred_check_branch
    %15 = sbr.rel (0) target = $region13
  $region12: #{_lambda_.1} parent=0 // pred_region
    _
  $region13: #{_lambda_.1} parent=0 // pred_fallthru
    _
  // Predicated region
  $region14: #{_lambda_.1} parent=0 // pred_check
    _
  $region15: #{_lambda_.1} parent=0 // pred_check_branch
    %17 = sbr.rel (0) target = $region17
  $region16: #{_lambda_.1} parent=0 // pred_region
    _
  $region17: #{_lambda_.1} parent=0 // pred_fallthru
    _
  // Predicated region
  $region18: #{_lambda_.1} parent=0 // pred_check
    _
  $region19: #{_lambda_.1} parent=0 // pred_check_branch
    %19 = sbr.rel (0) target = $region21
  $region20: #{_lambda_.1} parent=0 // pred_region
    _
  $region21: #{_lambda_.1} parent=0 // pred_fallthru
    _
  %v21 = vld [vmem:[%s0] sm:$0x1]
  %v22 = vld [vmem:[%s0 + $0x1] sm:$0x1]
  %vm23 = vcmp.ne.f32.partialorder %v21, -1.0
  %vm24 = vcmp.ne.f32.partialorder %v22, -1.0
  %v25 = vsel %vm23, 1, 0
  %v26 = vsel %vm24, 1, 0
  %v27 = vcvt.s32.f32 %v25
  %v28 = vcvt.s32.f32 %v26
  %v29 = vld [vmem:[%s1] sm:$0xff]
  %v30 = vld [vmem:[%s1 + $0x8] sm:$0xff]
  %v31 = vld [vmem:[%s2] sm:$0x1]
  %33 = vset.pattern.permute.xlu0 0
  %34 = vperm.xlu0 %33, %v29
  %v35 = vpop.permute.xlu0 %34
  %38 = vset.pattern.permute.xlu0 0
  %39 = vperm.xlu0 %38, %v30
  %v40 = vpop.permute.xlu0 %39
  %v42 = vperm.slane %v31, 0
  %v43 = vmul.f32 %v35, %v42
  %v44 = vmul.f32 %v40, %v42
  %v45 = vld [vmem:[%s2 + $0x8] sm:$0x1]
  %v46 = vperm.slane %v45, 0
  %v47 = vadd.f32 %v43, %v46
  %v48 = vadd.f32 %v44, %v46
  %v49 = vmax.f32 %v47, 0.0
  %v50 = vmax.f32 %v48, 0.0
  %v51 = vand.u32 2147483647, %v47
  %v52 = vand.u32 2147483647, %v48
  %v53 = vsub.f32 0.0, %v51
  %v54 = vsub.f32 0.0, %v52
  %v55 = vmul.f32 %v53, 1.442695
  %v56 = vpow.pop %v55
  %v57 = vmul.f32 %v54, 1.442695
  %v58 = vpow.pop %v57
  %v59 = vadd.f32 %v56, 1.0
  %v60 = vlog2.pop %v59
  %v61 = vmul.f32 %v60, 0.6931472
  %v62 = vmul.f32 -0.5, %v56
  %v63 = vadd.f32 %v62, 1.0
  %v64 = vmul.f32 %v63, %v56
  %v65 = vand.u32 2147483647, %v56
  %vm66 = vcmp.lt.f32.partialorder %v65, 0.0004427343
  %v67 = vsel %vm66, %v64, %v61
  %v68 = vadd.f32 %v58, 1.0
  %v69 = vlog2.pop %v68
  %v70 = vmul.f32 %v69, 0.6931472
  %v71 = vmul.f32 -0.5, %v58
  %v72 = vadd.f32 %v71, 1.0
  %v73 = vmul.f32 %v72, %v58
  %v74 = vand.u32 2147483647, %v58
  %vm75 = vcmp.lt.f32.partialorder %v74, 0.0004427343
  %v76 = vsel %vm75, %v73, %v70
  %v77 = vadd.f32 %v49, %v67
  %v78 = vadd.f32 %v50, %v76
  %v79 = vpack.c.bf16 %v78, %v77
  %v80 = vld [vmem:[%s3] sm:$0xf]
  %v81 = vld [vmem:[%s3 + $0x4] sm:$0x1]
  %v82 = vld [vmem:[%s2 + $0x10] sm:$0x1]
  %v83 = vperm.slane %v82, 0
  %v86 = vunpack.c.l.b16 %v80
  %v87 = vunpack.c.l.b16 %v81
  %v88 = vpack.c.b16 %v87, %v86
  %vm89 = vcmask 80896
  %v91 = vsel %vm89, %v79, 0
  %vm93 = vcmask 1044480
  %v95 = vsel %vm93, %v88, 0
  %97 = vmatpush.bf16.msra.mxu0 0
  %98 = vmatpush.bf16.msra.mxu0 0
  %99 = vmatpush.bf16.msra.mxu0 0
  %100 = vmatpush.bf16.msra.mxu0 0
  %101 = vmatpush.bf16.msra.mxu0 0
  %102 = vmatpush.bf16.msra.mxu0 0
  %103 = vmatpush.bf16.msra.mxu0 0
  %104 = vmatpush.bf16.msra.mxu0 %v95
  %105 = vmatmul.bf16.gmra.mxu0 %v91
  %v106 = vpop.f32.mrf.mxu0
  %v107 = vadd.f32 %v83, %v106
  %v108 = vpop.f32.mrf.mxu0
  %v109 = vadd.f32 %v83, %v108
  %110 = vdwg.mxu0
  %v111 = vmax.f32 %v107, 0.0
  %v112 = vmax.f32 %v109, 0.0
  %v113 = vand.u32 2147483647, %v107
  %v114 = vand.u32 2147483647, %v109
  %v115 = vsub.f32 0.0, %v113
  %v116 = vsub.f32 0.0, %v114
  %v117 = vmul.f32 %v115, 1.442695
  %v118 = vpow.pop %v117
  %v119 = vmul.f32 %v116, 1.442695
  %v120 = vpow.pop %v119
  %v121 = vadd.f32 %v118, 1.0
  %v122 = vlog2.pop %v121
  %v123 = vmul.f32 %v122, 0.6931472
  %v124 = vmul.f32 -0.5, %v118
  %v125 = vadd.f32 %v124, 1.0
  %v126 = vmul.f32 %v125, %v118
  %v127 = vand.u32 2147483647, %v118
  %vm128 = vcmp.lt.f32.partialorder %v127, 0.0004427343
  %v129 = vsel %vm128, %v126, %v123
  %v130 = vadd.f32 %v120, 1.0
  %v131 = vlog2.pop %v130
  %v132 = vmul.f32 %v131, 0.6931472
  %v133 = vmul.f32 -0.5, %v120
  %v134 = vadd.f32 %v133, 1.0
  %v135 = vmul.f32 %v134, %v120
  %v136 = vand.u32 2147483647, %v120
  %vm137 = vcmp.lt.f32.partialorder %v136, 0.0004427343
  %v138 = vsel %vm137, %v135, %v132
  %v139 = vadd.f32 %v111, %v129
  %v140 = vadd.f32 %v112, %v138
  %v141 = vpack.c.bf16 %v140, %v139
  %v142 = vld [vmem:[%s3 + $0x8] sm:$0xf]
  %v143 = vld [vmem:[%s3 + $0xc] sm:$0x1]
  %v144 = vld [vmem:[%s2 + $0x18] sm:$0x1]
  %v145 = vperm.slane %v144, 0
  %v148 = vunpack.c.l.b16 %v142
  %v149 = vunpack.c.l.b16 %v143
  %v150 = vpack.c.b16 %v149, %v148
  %v152 = vsel %vm89, %v141, 0
  %v155 = vsel %vm93, %v150, 0
  %157 = vmatpush.bf16.msra.mxu0 0
  %158 = vmatpush.bf16.msra.mxu0 0
  %159 = vmatpush.bf16.msra.mxu0 0
  %160 = vmatpush.bf16.msra.mxu0 0
  %161 = vmatpush.bf16.msra.mxu0 0
  %162 = vmatpush.bf16.msra.mxu0 0
  %163 = vmatpush.bf16.msra.mxu0 0
  %164 = vmatpush.bf16.msra.mxu0 %v155
  %165 = vmatmul.bf16.gmra.mxu0 %v152
  %v166 = vpop.f32.mrf.mxu0
  %v167 = vadd.f32 %v145, %v166
  %v168 = vpop.f32.mrf.mxu0
  %v169 = vadd.f32 %v145, %v168
  %170 = vdwg.mxu0
  %v171 = vmax.f32 %v167, 0.0
  %v172 = vmax.f32 %v169, 0.0
  %v173 = vand.u32 2147483647, %v167
  %v174 = vand.u32 2147483647, %v169
  %v175 = vsub.f32 0.0, %v173
  %v176 = vsub.f32 0.0, %v174
  %v177 = vmul.f32 %v175, 1.442695
  %v178 = vpow.pop %v177
  %v179 = vmul.f32 %v176, 1.442695
  %v180 = vpow.pop %v179
  %v181 = vadd.f32 %v178, 1.0
  %v182 = vlog2.pop %v181
  %v183 = vmul.f32 %v182, 0.6931472
  %v184 = vmul.f32 -0.5, %v178
  %v185 = vadd.f32 %v184, 1.0
  %v186 = vmul.f32 %v185, %v178
  %v187 = vand.u32 2147483647, %v178
  %vm188 = vcmp.lt.f32.partialorder %v187, 0.0004427343
  %v189 = vsel %vm188, %v186, %v183
  %v190 = vadd.f32 %v180, 1.0
  %v191 = vlog2.pop %v190
  %v192 = vmul.f32 %v191, 0.6931472
  %v193 = vmul.f32 -0.5, %v180
  %v194 = vadd.f32 %v193, 1.0
  %v195 = vmul.f32 %v194, %v180
  %v196 = vand.u32 2147483647, %v180
  %vm197 = vcmp.lt.f32.partialorder %v196, 0.0004427343
  %v198 = vsel %vm197, %v195, %v192
  %v199 = vadd.f32 %v171, %v189
  %v200 = vadd.f32 %v172, %v198
  %v201 = vpack.c.bf16 %v200, %v199
  %v202 = vld [vmem:[%s3 + $0x10] sm:$0xf]
  %v203 = vld [vmem:[%s3 + $0x14] sm:$0x1]
  %v204 = vld [vmem:[%s2 + $0x20] sm:$0x1]
  %v205 = vperm.slane %v204, 0
  %v208 = vunpack.c.l.b16 %v202
  %v209 = vunpack.c.l.b16 %v203
  %v210 = vpack.c.b16 %v209, %v208
  %v212 = vsel %vm89, %v201, 0
  %v215 = vsel %vm93, %v210, 0
  %217 = vmatpush.bf16.msra.mxu0 0
  %218 = vmatpush.bf16.msra.mxu0 0
  %219 = vmatpush.bf16.msra.mxu0 0
  %220 = vmatpush.bf16.msra.mxu0 0
  %221 = vmatpush.bf16.msra.mxu0 0
  %222 = vmatpush.bf16.msra.mxu0 0
  %223 = vmatpush.bf16.msra.mxu0 0
  %224 = vmatpush.bf16.msra.mxu0 %v215
  %225 = vmatmul.bf16.gmra.mxu0 %v212
  %v226 = vpop.f32.mrf.mxu0
  %v227 = vadd.f32 %v205, %v226
  %v228 = vpop.f32.mrf.mxu0
  %v229 = vadd.f32 %v205, %v228
  %230 = vdwg.mxu0
  %v231 = vld [vmem:[%s2 + $0x28] sm:$0xff]
  %v232 = vld [vmem:[%s2 + $0x30] sm:$0xf]
  %v233 = vpack.c.bf16 %v231, %v231
  %v234 = vld [vmem:[%s3 + $0x18] sm:$0xf]
  %v235 = vld [vmem:[%s3 + $0x1c] sm:$0xf]
  %v236 = vld [vmem:[%s3 + $0x20] sm:$0xf]
  %v237 = vld [vmem:[%s3 + $0x24] sm:$0xf]
  %v242 = vunpack.c.l.b16 %v234
  %v243 = vunpack.c.l.b16 %v235
  %v244 = vunpack.c.l.b16 %v236
  %v245 = vunpack.c.l.b16 %v237
  %v246 = vpack.c.b16 %v243, %v242
  %v247 = vpack.c.b16 %v245, %v244
  %vm250 = vcmask 261120
  %v252 = vsel %vm250, %v233, 0
  %254 = vmatpush.bf16.msra.mxu0 0
  %255 = vmatpush.bf16.msra.mxu0 0
  %256 = vmatpush.bf16.msra.mxu0 0
  %257 = vmatpush.bf16.msra.mxu0 0
  %258 = vmatpush.bf16.msra.mxu0 0
  %259 = vmatpush.bf16.msra.mxu0 0
  %260 = vmatpush.bf16.msra.mxu0 %v247
  %261 = vmatpush.bf16.msra.mxu0 %v246
  %262 = vmatmul.bf16.gmra.mxu0 %v252
  %v263 = vpop.f32.mrf.mxu0
  %v264 = vadd.f32 0.0, %v263
  %v265 = vpop.f32.mrf.mxu0
  %266 = vdwg.mxu0
  %v267 = vld [vmem:[%s3 + $0x30] sm:$0xf]
  %v268 = vld [vmem:[%s3 + $0x34] sm:$0xf]
  %v269 = vld [vmem:[%s3 + $0x38] sm:$0xf]
  %v270 = vld [vmem:[%s3 + $0x3c] sm:$0xf]
  %v275 = vunpack.c.l.b16 %v267
  %v276 = vunpack.c.l.b16 %v268
  %v277 = vunpack.c.l.b16 %v269
  %v278 = vunpack.c.l.b16 %v270
  %v279 = vpack.c.b16 %v276, %v275
  %v280 = vpack.c.b16 %v278, %v277
  %283 = vmatpush.bf16.msra.mxu0 0
  %284 = vmatpush.bf16.msra.mxu0 0
  %285 = vmatpush.bf16.msra.mxu0 0
  %286 = vmatpush.bf16.msra.mxu0 0
  %287 = vmatpush.bf16.msra.mxu0 0
  %288 = vmatpush.bf16.msra.mxu0 0
  %289 = vmatpush.bf16.msra.mxu0 %v280
  %290 = vmatpush.bf16.msra.mxu0 %v279
  %291 = vmatmul.bf16.gmra.mxu0 %v252
  %v292 = vpop.f32.mrf.mxu0
  %v293 = vadd.f32 0.0, %v292
  %v294 = vpop.f32.mrf.mxu0
  %295 = vdwg.mxu0
  %v296 = vpack.c.bf16 %v232, %v232
  %v297 = vld [vmem:[%s3 + $0x40] sm:$0xf]
  %v298 = vld [vmem:[%s3 + $0x44] sm:$0xf]
  %v301 = vunpack.c.l.b16 %v297
  %v302 = vunpack.c.l.b16 %v298
  %v303 = vpack.c.b16 %v302, %v301
  %vm305 = vcmask 130048
  %v307 = vsel %vm305, %v296, 0
  %309 = vmatpush.bf16.msra.mxu0 0
  %310 = vmatpush.bf16.msra.mxu0 0
  %311 = vmatpush.bf16.msra.mxu0 0
  %312 = vmatpush.bf16.msra.mxu0 0
  %313 = vmatpush.bf16.msra.mxu0 0
  %314 = vmatpush.bf16.msra.mxu0 0
  %315 = vmatpush.bf16.msra.mxu0 0
  %316 = vmatpush.bf16.msra.mxu0 %v303
  %317 = vmatmul.bf16.gmra.mxu0 %v307
  %v318 = vpop.f32.mrf.mxu0
  %v319 = vadd.f32 0.0, %v318
  %v320 = vpop.f32.mrf.mxu0
  %321 = vdwg.mxu0
  %v322 = vld [vmem:[%s2 + $0x38] sm:$0xf]
  %v323 = vmax.f32 %v322, 0.0
  %v324 = vand.u32 2147483647, %v322
  %v325 = vsub.f32 0.0, %v324
  %v326 = vmul.f32 %v325, 1.442695
  %v327 = vpow.pop %v326
  %v328 = vadd.f32 %v327, 1.0
  %v329 = vlog2.pop %v328
  %v330 = vmul.f32 %v329, 0.6931472
  %v331 = vmul.f32 -0.5, %v327
  %v332 = vadd.f32 %v331, 1.0
  %v333 = vmul.f32 %v332, %v327
  %v334 = vand.u32 2147483647, %v327
  %vm335 = vcmp.lt.f32.partialorder %v334, 0.0004427343
  %v336 = vsel %vm335, %v333, %v330
  %v337 = vadd.f32 %v323, %v336
  %339 = vrot.lane.b32.xlu0 %v231, 112
  %v340 = vpop.permute.xlu0 %339
  %v342 = vmul.f32 %v227, %v340
  %v343 = vmul.f32 %v229, %v340
  %v344 = vadd.f32 %v231, %v342
  %v345 = vadd.f32 %v231, %v343
  %v346 = vpack.c.bf16 %v345, %v344
  %v347 = vld [vmem:[%s3 + $0x28] sm:$0xf]
  %v348 = vld [vmem:[%s3 + $0x2c] sm:$0xf]
  %v351 = vunpack.c.l.b16 %v347
  %v352 = vunpack.c.l.b16 %v348
  %v353 = vpack.c.b16 %v352, %v351
  %v356 = vsel %vm305, %v346, 0
  %358 = vmatpush.bf16.msra.mxu0 0
  %359 = vmatpush.bf16.msra.mxu0 0
  %360 = vmatpush.bf16.msra.mxu0 0
  %361 = vmatpush.bf16.msra.mxu0 0
  %362 = vmatpush.bf16.msra.mxu0 0
  %363 = vmatpush.bf16.msra.mxu0 0
  %364 = vmatpush.bf16.msra.mxu0 0
  %365 = vmatpush.bf16.msra.mxu0 %v353
  %366 = vmatmul.bf16.gmra.mxu0 %v356
  %v367 = vpop.f32.mrf.mxu0
  %v368 = vadd.f32 0.0, %v367
  %v369 = vpop.f32.mrf.mxu0
  %v370 = vadd.f32 0.0, %v369
  %371 = vdwg.mxu0
  %v372 = vpack.c.bf16 %v264, %v264
  %v373 = vpack.c.bf16 %v370, %v368
  %v375 = vsel %vm250, %v372, 0
  %v378 = vsel %vm250, %v373, 0
  %380 = vmatpush.bf16.xpose.msra.mxu0 0
  %381 = vmatpush.bf16.xpose.msra.mxu0 0
  %382 = vmatpush.bf16.xpose.msra.mxu0 0
  %383 = vmatpush.bf16.xpose.msra.mxu0 0
  %384 = vmatpush.bf16.xpose.msra.mxu0 0
  %385 = vmatpush.bf16.xpose.msra.mxu0 0
  %386 = vmatpush.bf16.xpose.msra.mxu0 0
  %387 = vmatpush.bf16.xpose.msra.mxu0 %v378
  %388 = vmatmul.bf16.gmra.mxu0 %v375
  %v389 = vpop.f32.mrf.mxu0
  %v390 = vadd.f32 0.0, %v389
  %v391 = vpop.f32.mrf.mxu0
  %392 = vdwg.mxu0
  %vm393 = vcmp.gt.f32.partialorder %v27, 0.5
  %v394 = vsel %vm393, 1, 0
  %v395 = vperm.slane %v394, 0
  %vm396 = vcmp.eq.s32.totalorder %v395, 1
  %v397 = vsel %vm396, %v390, -1e+30
  %vm398 = vcmask 64512
  %v399 = vsel %vm398, %v397, -inf
  %400 = vmax.xlane.f32.xlu0 %v399
  %v401 = vpop.xlane.xlu0 %400
  %v402 = vsub.f32 %v397, %v401
  %v403 = vmul.f32 %v402, 1.442695
  %v404 = vpow.pop %v403
  %v405 = vsel %vm398, %v404, 0.0
  %406 = vadd.xlane.f32.xlu0 %v405
  %v407 = vpop.xlane.xlu0 %406
  %v408 = vrcp.pop %v407
  %v409 = vmul.f32 %v404, %v408
  %vm410 = vcmp.gt.f32.partialorder %v28, 0.5
  %v411 = vsel %vm410, 1, 0
  %v412 = vperm.slane %v411, 0
  %vm413 = vcmp.eq.s32.totalorder %v412, 1
  %415 = vrot.lane.b32.xlu0 %v390, 120
  %v416 = vpop.permute.xlu0 %415
  %v418 = vsel %vm413, %v416, -1e+30
  %v419 = vsel %vm398, %v418, -inf
  %420 = vmax.xlane.f32.xlu0 %v419
  %v421 = vpop.xlane.xlu0 %420
  %v422 = vsub.f32 %v418, %v421
  %v423 = vmul.f32 %v422, 1.442695
  %v424 = vpow.pop %v423
  %v425 = vsel %vm398, %v424, 0.0
  %426 = vadd.xlane.f32.xlu0 %v425
  %v427 = vpop.xlane.xlu0 %426
  %v428 = vrcp.pop %v427
  %v429 = vmul.f32 %v424, %v428
  %v430 = vpack.c.bf16 %v429, %v409
  %v431 = vpack.c.bf16 %v293, %v293
  %v433 = vsel %vm398, %v430, 0
  %vm435 = vcmask 1043456
  %v437 = vsel %vm435, %v431, 0
  %439 = vmatpush.bf16.msra.mxu0 0
  %440 = vmatpush.bf16.msra.mxu0 0
  %441 = vmatpush.bf16.msra.mxu0 0
  %442 = vmatpush.bf16.msra.mxu0 0
  %443 = vmatpush.bf16.msra.mxu0 0
  %444 = vmatpush.bf16.msra.mxu0 0
  %445 = vmatpush.bf16.msra.mxu0 0
  %446 = vmatpush.bf16.msra.mxu0 %v437
  %447 = vmatmul.bf16.gmra.mxu0 %v433
  %v448 = vpop.f32.mrf.mxu0
  %v449 = vadd.f32 0.0, %v448
  %v450 = vpop.f32.mrf.mxu0
  %v451 = vadd.f32 0.0, %v450
  %452 = vdwg.mxu0
  %455 = vrot.lane.b32.xlu0 %v449, 112
  %v456 = vpop.permute.xlu0 %455
  %457 = vrot.lane.b32.xlu0 %v451, 112
  %v458 = vpop.permute.xlu0 %457
  %v461 = vmul.f32 %v227, %v456
  %v462 = vmul.f32 %v229, %v458
  %v463 = vadd.f32 %v449, %v461
  %v464 = vadd.f32 %v451, %v462
  %v465 = vpack.c.bf16 %v464, %v463
  %v466 = vld [vmem:[%s3 + $0x58] sm:$0xf]
  %v467 = vld [vmem:[%s3 + $0x5c] sm:$0xf]
  %v468 = vld [vmem:[%s2 + $0x40] sm:$0x1]
  %v469 = vperm.slane %v468, 0
  %v472 = vunpack.c.l.b16 %v466
  %v473 = vunpack.c.l.b16 %v467
  %v474 = vpack.c.b16 %v473, %v472
  %v477 = vsel %vm305, %v465, 0
  %479 = vmatpush.bf16.msra.mxu0 0
  %480 = vmatpush.bf16.msra.mxu0 0
  %481 = vmatpush.bf16.msra.mxu0 0
  %482 = vmatpush.bf16.msra.mxu0 0
  %483 = vmatpush.bf16.msra.mxu0 0
  %484 = vmatpush.bf16.msra.mxu0 0
  %485 = vmatpush.bf16.msra.mxu0 0
  %486 = vmatpush.bf16.msra.mxu0 %v474
  %487 = vmatmul.bf16.gmra.mxu0 %v477
  %v488 = vpop.f32.mrf.mxu0
  %v489 = vadd.f32 %v469, %v488
  %v490 = vpop.f32.mrf.mxu0
  %v491 = vadd.f32 %v469, %v490
  %492 = vdwg.mxu0
  %v493 = vmax.f32 %v489, 0.0
  %v494 = vmax.f32 %v491, 0.0
  %v495 = vand.u32 2147483647, %v489
  %v496 = vand.u32 2147483647, %v491
  %v497 = vsub.f32 0.0, %v495
  %v498 = vsub.f32 0.0, %v496
  %v499 = vmul.f32 %v497, 1.442695
  %v500 = vpow.pop %v499
  %v501 = vmul.f32 %v498, 1.442695
  %v502 = vpow.pop %v501
  %v503 = vadd.f32 %v500, 1.0
  %v504 = vlog2.pop %v503
  %v505 = vmul.f32 %v504, 0.6931472
  %v506 = vmul.f32 -0.5, %v500
  %v507 = vadd.f32 %v506, 1.0
  %v508 = vmul.f32 %v507, %v500
  %v509 = vand.u32 2147483647, %v500
  %vm510 = vcmp.lt.f32.partialorder %v509, 0.0004427343
  %v511 = vsel %vm510, %v508, %v505
  %v512 = vadd.f32 %v502, 1.0
  %v513 = vlog2.pop %v512
  %v514 = vmul.f32 %v513, 0.6931472
  %v515 = vmul.f32 -0.5, %v502
  %v516 = vadd.f32 %v515, 1.0
  %v517 = vmul.f32 %v516, %v502
  %v518 = vand.u32 2147483647, %v502
  %vm519 = vcmp.lt.f32.partialorder %v518, 0.0004427343
  %v520 = vsel %vm519, %v517, %v514
  %v521 = vadd.f32 %v493, %v511
  %v522 = vadd.f32 %v494, %v520
  %v523 = vpack.c.bf16 %v522, %v521
  %v524 = vld [vmem:[%s3 + $0x60] sm:$0xf]
  %v525 = vld [vmem:[%s3 + $0x64] sm:$0xf]
  %v526 = vld [vmem:[%s2 + $0x48] sm:$0x1]
  %v527 = vperm.slane %v526, 0
  %v530 = vunpack.c.l.b16 %v524
  %v531 = vunpack.c.l.b16 %v525
  %v532 = vpack.c.b16 %v531, %v530
  %v535 = vsel %vm305, %v523, 0
  %537 = vmatpush.bf16.msra.mxu0 0
  %538 = vmatpush.bf16.msra.mxu0 0
  %539 = vmatpush.bf16.msra.mxu0 0
  %540 = vmatpush.bf16.msra.mxu0 0
  %541 = vmatpush.bf16.msra.mxu0 0
  %542 = vmatpush.bf16.msra.mxu0 0
  %543 = vmatpush.bf16.msra.mxu0 0
  %544 = vmatpush.bf16.msra.mxu0 %v532
  %545 = vmatmul.bf16.gmra.mxu0 %v535
  %v546 = vpop.f32.mrf.mxu0
  %v547 = vadd.f32 %v527, %v546
  %v548 = vpop.f32.mrf.mxu0
  %v549 = vadd.f32 %v527, %v548
  %550 = vdwg.mxu0
  %v551 = vpack.c.bf16 %v549, %v547
  %v552 = vld [vmem:[%s3 + $0x48] sm:$0xf]
  %v553 = vld [vmem:[%s3 + $0x4c] sm:$0xf]
  %v556 = vunpack.c.l.b16 %v552
  %v557 = vunpack.c.l.b16 %v553
  %v558 = vpack.c.b16 %v557, %v556
  %v561 = vsel %vm305, %v551, 0
  %563 = vmatpush.bf16.msra.mxu0 0
  %564 = vmatpush.bf16.msra.mxu0 0
  %565 = vmatpush.bf16.msra.mxu0 0
  %566 = vmatpush.bf16.msra.mxu0 0
  %567 = vmatpush.bf16.msra.mxu0 0
  %568 = vmatpush.bf16.msra.mxu0 0
  %569 = vmatpush.bf16.msra.mxu0 0
  %570 = vmatpush.bf16.msra.mxu0 %v558
  %571 = vmatmul.bf16.gmra.mxu0 %v561
  %v572 = vpop.f32.mrf.mxu0
  %v573 = vadd.f32 0.0, %v572
  %v574 = vpop.f32.mrf.mxu0
  %v575 = vadd.f32 0.0, %v574
  %576 = vdwg.mxu0
  %v577 = vld [vmem:[%s3 + $0x50] sm:$0xf]
  %v578 = vld [vmem:[%s3 + $0x54] sm:$0xf]
  %v581 = vunpack.c.l.b16 %v577
  %v582 = vunpack.c.l.b16 %v578
  %v583 = vpack.c.b16 %v582, %v581
  %585 = vmatpush.bf16.msra.mxu0 0
  %586 = vmatpush.bf16.msra.mxu0 0
  %587 = vmatpush.bf16.msra.mxu0 0
  %588 = vmatpush.bf16.msra.mxu0 0
  %589 = vmatpush.bf16.msra.mxu0 0
  %590 = vmatpush.bf16.msra.mxu0 0
  %591 = vmatpush.bf16.msra.mxu0 0
  %592 = vmatpush.bf16.msra.mxu0 %v583
  %593 = vmatmul.bf16.gmra.mxu0 %v561
  %v594 = vpop.f32.mrf.mxu0
  %v595 = vadd.f32 0.0, %v594
  %v596 = vpop.f32.mrf.mxu0
  %v597 = vadd.f32 0.0, %v596
  %598 = vdwg.mxu0
  %v599 = vpack.c.bf16 %v319, %v319
  %v600 = vpack.c.bf16 %v575, %v573
  %v602 = vsel %vm305, %v599, 0
  %v605 = vsel %vm305, %v600, 0
  %607 = vmatpush.bf16.xpose.msra.mxu0 0
  %608 = vmatpush.bf16.xpose.msra.mxu0 0
  %609 = vmatpush.bf16.xpose.msra.mxu0 0
  %610 = vmatpush.bf16.xpose.msra.mxu0 0
  %611 = vmatpush.bf16.xpose.msra.mxu0 0
  %612 = vmatpush.bf16.xpose.msra.mxu0 0
  %613 = vmatpush.bf16.xpose.msra.mxu0 0
  %614 = vmatpush.bf16.xpose.msra.mxu0 %v605
  %615 = vmatmul.bf16.gmra.mxu0 %v602
  %v616 = vpop.f32.mrf.mxu0
  %v617 = vadd.f32 0.0, %v616
  %v618 = vpop.f32.mrf.mxu0
  %619 = vdwg.mxu0
  %v620 = vsel %vm396, %v617, -1e+30
  %vm621 = vcmask 60416
  %v622 = vsel %vm621, %v620, -inf
  %623 = vmax.xlane.f32.xlu0 %v622
  %v624 = vpop.xlane.xlu0 %623
  %v625 = vsub.f32 %v620, %v624
  %v626 = vmul.f32 %v625, 1.442695
  %v627 = vpow.pop %v626
  %v628 = vsel %vm621, %v627, 0.0
  %629 = vadd.xlane.f32.xlu0 %v628
  %v630 = vpop.xlane.xlu0 %629
  %v631 = vrcp.pop %v630
  %v632 = vmul.f32 %v627, %v631
  %v633 = vpack.c.bf16 %v632, %v632
  %v634 = vpack.c.bf16 %v595, %v595
  %v636 = vsel %vm398, %v633, 0
  %v639 = vsel %vm435, %v634, 0
  %641 = vmatpush.bf16.msra.mxu0 0
  %642 = vmatpush.bf16.msra.mxu0 0
  %643 = vmatpush.bf16.msra.mxu0 0
  %644 = vmatpush.bf16.msra.mxu0 0
  %645 = vmatpush.bf16.msra.mxu0 0
  %646 = vmatpush.bf16.msra.mxu0 0
  %647 = vmatpush.bf16.msra.mxu0 0
  %648 = vmatpush.bf16.msra.mxu0 %v639
  %649 = vmatmul.bf16.gmra.mxu0 %v636
  %v650 = vpop.f32.mrf.mxu0
  %v651 = vadd.f32 0.0, %v650
  %v652 = vpop.f32.mrf.mxu0
  %653 = vdwg.mxu0
  %v655 = vperm.slane %v27, 0
  %v657 = vmul.f32 %v337, %v655
  %v658 = vsel %vm621, %v657, 0.0
  %659 = vadd.xlane.f32.xlu0 %v658
  %v660 = vpop.xlane.xlu0 %659
  %v661 = vmul.f32 %v651, %v660
  %v662 = vadd.f32 %v661, %v232
  %664 = vrot.lane.b32.xlu0 %v617, 120
  %v665 = vpop.permute.xlu0 %664
  %v667 = vsel %vm413, %v665, -1e+30
  %v668 = vsel %vm621, %v667, -inf
  %669 = vmax.xlane.f32.xlu0 %v668
  %v670 = vpop.xlane.xlu0 %669
  %v671 = vsub.f32 %v667, %v670
  %v672 = vmul.f32 %v671, 1.442695
  %v673 = vpow.pop %v672
  %v674 = vsel %vm621, %v673, 0.0
  %675 = vadd.xlane.f32.xlu0 %v674
  %v676 = vpop.xlane.xlu0 %675
  %v677 = vrcp.pop %v676
  %v678 = vmul.f32 %v673, %v677
  %v679 = vpack.c.bf16 %v678, %v678
  %v680 = vpack.c.bf16 %v597, %v597
  %v682 = vsel %vm398, %v679, 0
  %v685 = vsel %vm435, %v680, 0
  %687 = vmatpush.bf16.msra.mxu0 0
  %688 = vmatpush.bf16.msra.mxu0 0
  %689 = vmatpush.bf16.msra.mxu0 0
  %690 = vmatpush.bf16.msra.mxu0 0
  %691 = vmatpush.bf16.msra.mxu0 0
  %692 = vmatpush.bf16.msra.mxu0 0
  %693 = vmatpush.bf16.msra.mxu0 0
  %694 = vmatpush.bf16.msra.mxu0 %v685
  %695 = vmatmul.bf16.gmra.mxu0 %v682
  %v696 = vpop.f32.mrf.mxu0
  %v697 = vadd.f32 0.0, %v696
  %v698 = vpop.f32.mrf.mxu0
  %699 = vdwg.mxu0
  %v701 = vperm.slane %v28, 0
  %v703 = vmul.f32 %v337, %v701
  %v704 = vsel %vm621, %v703, 0.0
  %705 = vadd.xlane.f32.xlu0 %v704
  %v706 = vpop.xlane.xlu0 %705
  %v707 = vmul.f32 %v697, %v706
  %v708 = vadd.f32 %v707, %v232
  %v710 = vrot.slane %v678, 4
  %v712 = vsel %vm435, %v632, %v710
  %v714 = vrot.slane %v708, 4
  %v716 = vsel %vm435, %v662, %v714
  %v717 = vpack.c.bf16 %v716, %v716
  %v718 = vld [vmem:[%s3 + $0x68] sm:$0xf]
  %v719 = vld [vmem:[%s3 + $0x6c] sm:$0xf]
  %v720 = vld [vmem:[%s2 + $0x50] sm:$0x1]
  %v721 = vperm.slane %v720, 0
  %v724 = vunpack.c.l.b16 %v718
  %v725 = vunpack.c.l.b16 %v719
  %v726 = vpack.c.b16 %v725, %v724
  %v729 = vsel %vm305, %v717, 0
  %731 = vmatpush.bf16.msra.mxu0 0
  %732 = vmatpush.bf16.msra.mxu0 0
  %733 = vmatpush.bf16.msra.mxu0 0
  %734 = vmatpush.bf16.msra.mxu0 0
  %735 = vmatpush.bf16.msra.mxu0 0
  %736 = vmatpush.bf16.msra.mxu0 0
  %737 = vmatpush.bf16.msra.mxu0 0
  %738 = vmatpush.bf16.msra.mxu0 %v726
  %739 = vmatmul.bf16.gmra.mxu0 %v729
  %v740 = vpop.f32.mrf.mxu0
  %v741 = vadd.f32 %v721, %v740
  %v742 = vpop.f32.mrf.mxu0
  %743 = vdwg.mxu0
  %v744 = vmax.f32 %v741, 0.0
  %v745 = vand.u32 2147483647, %v741
  %v746 = vsub.f32 0.0, %v745
  %v747 = vmul.f32 %v746, 1.442695
  %v748 = vpow.pop %v747
  %v749 = vadd.f32 %v748, 1.0
  %v750 = vlog2.pop %v749
  %v751 = vmul.f32 %v750, 0.6931472
  %v752 = vmul.f32 -0.5, %v748
  %v753 = vadd.f32 %v752, 1.0
  %v754 = vmul.f32 %v753, %v748
  %v755 = vand.u32 2147483647, %v748
  %vm756 = vcmp.lt.f32.partialorder %v755, 0.0004427343
  %v757 = vsel %vm756, %v754, %v751
  %v758 = vadd.f32 %v744, %v757
  %v759 = vpack.c.bf16 %v758, %v758
  %v760 = vld [vmem:[%s3 + $0x70] sm:$0xf]
  %v761 = vld [vmem:[%s3 + $0x74] sm:$0x1]
  %v762 = vld [vmem:[%s2 + $0x58] sm:$0x1]
  %v763 = vperm.slane %v762, 0
  %v766 = vunpack.c.l.b16 %v760
  %v767 = vunpack.c.l.b16 %v761
  %v768 = vpack.c.b16 %v767, %v766
  %v770 = vsel %vm89, %v759, 0
  %v773 = vsel %vm93, %v768, 0
  %775 = vmatpush.bf16.msra.mxu0 0
  %776 = vmatpush.bf16.msra.mxu0 0
  %777 = vmatpush.bf16.msra.mxu0 0
  %778 = vmatpush.bf16.msra.mxu0 0
  %779 = vmatpush.bf16.msra.mxu0 0
  %780 = vmatpush.bf16.msra.mxu0 0
  %781 = vmatpush.bf16.msra.mxu0 0
  %782 = vmatpush.bf16.msra.mxu0 %v773
  %783 = vmatmul.bf16.gmra.mxu0 %v770
  %v784 = vpop.f32.mrf.mxu0
  %v785 = vadd.f32 %v763, %v784
  %v786 = vpop.f32.mrf.mxu0
  %787 = vdwg.mxu0
  %v788 = vperm.slane %v232, 0
  %v789 = vadd.f32 %v227, %v788
  %v790 = vperm.slane %v232, 1
  %v791 = vadd.f32 %v227, %v790
  %v792 = vperm.slane %v232, 2
  %v793 = vadd.f32 %v227, %v792
  %v794 = vperm.slane %v232, 3
  %v795 = vadd.f32 %v227, %v794
  %v796 = vadd.f32 %v229, %v788
  %v797 = vadd.f32 %v229, %v790
  %v798 = vadd.f32 %v229, %v792
  %v799 = vadd.f32 %v229, %v794
  %v800 = vpack.c.bf16 %v791, %v789
  %v801 = vpack.c.bf16 %v795, %v793
  %v802 = vpack.c.bf16 %v797, %v796
  %v803 = vpack.c.bf16 %v799, %v798
  %v804 = vld [vmem:[%s3 + $0x78] sm:$0xf]
  %v805 = vld [vmem:[%s3 + $0x7c] sm:$0xf]
  %v806 = vld [vmem:[%s2 + $0x60] sm:$0x1]
  %v807 = vperm.slane %v806, 0
  %v810 = vunpack.c.l.b16 %v804
  %v811 = vunpack.c.l.b16 %v805
  %v812 = vpack.c.b16 %v811, %v810
  %v815 = vsel %vm305, %v800, 0
  %v818 = vsel %vm305, %v801, 0
  %v821 = vsel %vm305, %v802, 0
  %v824 = vsel %vm305, %v803, 0
  %826 = vmatpush.bf16.msra.mxu0 0
  %827 = vmatpush.bf16.msra.mxu0 0
  %828 = vmatpush.bf16.msra.mxu0 0
  %829 = vmatpush.bf16.msra.mxu0 0
  %830 = vmatpush.bf16.msra.mxu0 0
  %831 = vmatpush.bf16.msra.mxu0 0
  %832 = vmatpush.bf16.msra.mxu0 0
  %833 = vmatpush.bf16.msra.mxu0 %v812
  %834 = vmatmul.bf16.gmra.mxu0 %v815
  %v835 = vpop.f32.mrf.mxu0
  %v836 = vadd.f32 %v807, %v835
  %v837 = vpop.f32.mrf.mxu0
  %v838 = vadd.f32 %v807, %v837
  %839 = vmatmul.bf16.gmra.mxu0 %v818
  %v840 = vpop.f32.mrf.mxu0
  %v841 = vadd.f32 %v807, %v840
  %v842 = vpop.f32.mrf.mxu0
  %v843 = vadd.f32 %v807, %v842
  %844 = vmatmul.bf16.gmra.mxu0 %v821
  %v845 = vpop.f32.mrf.mxu0
  %v846 = vadd.f32 %v807, %v845
  %v847 = vpop.f32.mrf.mxu0
  %v848 = vadd.f32 %v807, %v847
  %849 = vmatmul.bf16.gmra.mxu0 %v824
  %v850 = vpop.f32.mrf.mxu0
  %v851 = vadd.f32 %v807, %v850
  %v852 = vpop.f32.mrf.mxu0
  %v853 = vadd.f32 %v807, %v852
  %854 = vdwg.mxu0
  %v855 = vmax.f32 %v836, 0.0
  %v856 = vmax.f32 %v838, 0.0
  %v857 = vmax.f32 %v841, 0.0
  %v858 = vmax.f32 %v843, 0.0
  %v859 = vmax.f32 %v846, 0.0
  %v860 = vmax.f32 %v848, 0.0
  %v861 = vmax.f32 %v851, 0.0
  %v862 = vmax.f32 %v853, 0.0
  %v863 = vand.u32 2147483647, %v836
  %v864 = vand.u32 2147483647, %v838
  %v865 = vand.u32 2147483647, %v841
  %v866 = vand.u32 2147483647, %v843
  %v867 = vand.u32 2147483647, %v846
  %v868 = vand.u32 2147483647, %v848
  %v869 = vand.u32 2147483647, %v851
  %v870 = vand.u32 2147483647, %v853
  %v871 = vsub.f32 0.0, %v863
  %v872 = vsub.f32 0.0, %v864
  %v873 = vsub.f32 0.0, %v865
  %v874 = vsub.f32 0.0, %v866
  %v875 = vsub.f32 0.0, %v867
  %v876 = vsub.f32 0.0, %v868
  %v877 = vsub.f32 0.0, %v869
  %v878 = vsub.f32 0.0, %v870
  %v879 = vmul.f32 %v871, 1.442695
  %v880 = vpow.pop %v879
  %v881 = vmul.f32 %v872, 1.442695
  %v882 = vpow.pop %v881
  %v883 = vmul.f32 %v873, 1.442695
  %v884 = vpow.pop %v883
  %v885 = vmul.f32 %v874, 1.442695
  %v886 = vpow.pop %v885
  %v887 = vmul.f32 %v875, 1.442695
  %v888 = vpow.pop %v887
  %v889 = vmul.f32 %v876, 1.442695
  %v890 = vpow.pop %v889
  %v891 = vmul.f32 %v877, 1.442695
  %v892 = vpow.pop %v891
  %v893 = vmul.f32 %v878, 1.442695
  %v894 = vpow.pop %v893
  %v895 = vadd.f32 %v880, 1.0
  %v896 = vlog2.pop %v895
  %v897 = vmul.f32 %v896, 0.6931472
  %v898 = vmul.f32 -0.5, %v880
  %v899 = vadd.f32 %v898, 1.0
  %v900 = vmul.f32 %v899, %v880
  %v901 = vand.u32 2147483647, %v880
  %vm902 = vcmp.lt.f32.partialorder %v901, 0.0004427343
  %v903 = vsel %vm902, %v900, %v897
  %v904 = vadd.f32 %v882, 1.0
  %v905 = vlog2.pop %v904
  %v906 = vmul.f32 %v905, 0.6931472
  %v907 = vmul.f32 -0.5, %v882
  %v908 = vadd.f32 %v907, 1.0
  %v909 = vmul.f32 %v908, %v882
  %v910 = vand.u32 2147483647, %v882
  %vm911 = vcmp.lt.f32.partialorder %v910, 0.0004427343
  %v912 = vsel %vm911, %v909, %v906
  %v913 = vadd.f32 %v884, 1.0
  %v914 = vlog2.pop %v913
  %v915 = vmul.f32 %v914, 0.6931472
  %v916 = vmul.f32 -0.5, %v884
  %v917 = vadd.f32 %v916, 1.0
  %v918 = vmul.f32 %v917, %v884
  %v919 = vand.u32 2147483647, %v884
  %vm920 = vcmp.lt.f32.partialorder %v919, 0.0004427343
  %v921 = vsel %vm920, %v918, %v915
  %v922 = vadd.f32 %v886, 1.0
  %v923 = vlog2.pop %v922
  %v924 = vmul.f32 %v923, 0.6931472
  %v925 = vmul.f32 -0.5, %v886
  %v926 = vadd.f32 %v925, 1.0
  %v927 = vmul.f32 %v926, %v886
  %v928 = vand.u32 2147483647, %v886
  %vm929 = vcmp.lt.f32.partialorder %v928, 0.0004427343
  %v930 = vsel %vm929, %v927, %v924
  %v931 = vadd.f32 %v888, 1.0
  %v932 = vlog2.pop %v931
  %v933 = vmul.f32 %v932, 0.6931472
  %v934 = vmul.f32 -0.5, %v888
  %v935 = vadd.f32 %v934, 1.0
  %v936 = vmul.f32 %v935, %v888
  %v937 = vand.u32 2147483647, %v888
  %vm938 = vcmp.lt.f32.partialorder %v937, 0.0004427343
  %v939 = vsel %vm938, %v936, %v933
  %v940 = vadd.f32 %v890, 1.0
  %v941 = vlog2.pop %v940
  %v942 = vmul.f32 %v941, 0.6931472
  %v943 = vmul.f32 -0.5, %v890
  %v944 = vadd.f32 %v943, 1.0
  %v945 = vmul.f32 %v944, %v890
  %v946 = vand.u32 2147483647, %v890
  %vm947 = vcmp.lt.f32.partialorder %v946, 0.0004427343
  %v948 = vsel %vm947, %v945, %v942
  %v949 = vadd.f32 %v892, 1.0
  %v950 = vlog2.pop %v949
  %v951 = vmul.f32 %v950, 0.6931472
  %v952 = vmul.f32 -0.5, %v892
  %v953 = vadd.f32 %v952, 1.0
  %v954 = vmul.f32 %v953, %v892
  %v955 = vand.u32 2147483647, %v892
  %vm956 = vcmp.lt.f32.partialorder %v955, 0.0004427343
  %v957 = vsel %vm956, %v954, %v951
  %v958 = vadd.f32 %v894, 1.0
  %v959 = vlog2.pop %v958
  %v960 = vmul.f32 %v959, 0.6931472
  %v961 = vmul.f32 -0.5, %v894
  %v962 = vadd.f32 %v961, 1.0
  %v963 = vmul.f32 %v962, %v894
  %v964 = vand.u32 2147483647, %v894
  %vm965 = vcmp.lt.f32.partialorder %v964, 0.0004427343
  %v966 = vsel %vm965, %v963, %v960
  %v967 = vadd.f32 %v855, %v903
  %v968 = vadd.f32 %v856, %v912
  %v969 = vadd.f32 %v857, %v921
  %v970 = vadd.f32 %v858, %v930
  %v971 = vadd.f32 %v859, %v939
  %v972 = vadd.f32 %v860, %v948
  %v973 = vadd.f32 %v861, %v957
  %v974 = vadd.f32 %v862, %v966
  %v975 = vpack.c.bf16 %v968, %v967
  %v976 = vpack.c.bf16 %v970, %v969
  %v977 = vpack.c.bf16 %v972, %v971
  %v978 = vpack.c.bf16 %v974, %v973
  %v979 = vld [vmem:[%s3 + $0x80] sm:$0xf]
  %v980 = vld [vmem:[%s3 + $0x84] sm:$0x1]
  %v981 = vld [vmem:[%s2 + $0x68] sm:$0x1]
  %v982 = vperm.slane %v981, 0
  %v985 = vunpack.c.l.b16 %v979
  %v986 = vunpack.c.l.b16 %v980
  %v987 = vpack.c.b16 %v986, %v985
  %v989 = vsel %vm89, %v975, 0
  %v992 = vsel %vm89, %v976, 0
  %v995 = vsel %vm89, %v977, 0
  %v998 = vsel %vm89, %v978, 0
  %v1001 = vsel %vm93, %v987, 0
  %1003 = vmatpush.bf16.msra.mxu0 0
  %1004 = vmatpush.bf16.msra.mxu0 0
  %1005 = vmatpush.bf16.msra.mxu0 0
  %1006 = vmatpush.bf16.msra.mxu0 0
  %1007 = vmatpush.bf16.msra.mxu0 0
  %1008 = vmatpush.bf16.msra.mxu0 0
  %1009 = vmatpush.bf16.msra.mxu0 0
  %1010 = vmatpush.bf16.msra.mxu0 %v1001
  %1011 = vmatmul.bf16.gmra.mxu0 %v989
  %v1012 = vpop.f32.mrf.mxu0
  %v1013 = vadd.f32 %v982, %v1012
  %v1014 = vpop.f32.mrf.mxu0
  %v1015 = vadd.f32 %v982, %v1014
  %1016 = vmatmul.bf16.gmra.mxu0 %v992
  %v1017 = vpop.f32.mrf.mxu0
  %v1018 = vadd.f32 %v982, %v1017
  %v1019 = vpop.f32.mrf.mxu0
  %v1020 = vadd.f32 %v982, %v1019
  %1021 = vmatmul.bf16.gmra.mxu0 %v995
  %v1022 = vpop.f32.mrf.mxu0
  %v1023 = vadd.f32 %v982, %v1022
  %v1024 = vpop.f32.mrf.mxu0
  %v1025 = vadd.f32 %v982, %v1024
  %1026 = vmatmul.bf16.gmra.mxu0 %v998
  %v1027 = vpop.f32.mrf.mxu0
  %v1028 = vadd.f32 %v982, %v1027
  %v1029 = vpop.f32.mrf.mxu0
  %v1030 = vadd.f32 %v982, %v1029
  %1031 = vdwg.mxu0
  %1034 = vrot.lane.b32.xlu0 %v785, 10
  %v1035 = vpop.permute.xlu0 %1034
  %1036 = vrot.lane.b32.xlu0 0.0, 10
  %v1037 = vpop.permute.xlu0 %1036
  %1048 = vrot.lane.b32.xlu0 %v1013, 20
  %v1049 = vpop.permute.xlu0 %1048
  %1050 = vrot.lane.b32.xlu0 %v1015, 20
  %v1051 = vpop.permute.xlu0 %1050
  %1052 = vrot.lane.b32.xlu0 %v1018, 20
  %v1053 = vpop.permute.xlu0 %1052
  %1054 = vrot.lane.b32.xlu0 %v1020, 20
  %v1055 = vpop.permute.xlu0 %1054
  %1056 = vrot.lane.b32.xlu0 %v1023, 20
  %v1057 = vpop.permute.xlu0 %1056
  %1058 = vrot.lane.b32.xlu0 %v1025, 20
  %v1059 = vpop.permute.xlu0 %1058
  %1060 = vrot.lane.b32.xlu0 %v1028, 20
  %v1061 = vpop.permute.xlu0 %1060
  %1062 = vrot.lane.b32.xlu0 %v1030, 20
  %v1063 = vpop.permute.xlu0 %1062
  %1072 = vrot.lane.b32.xlu0 %v1013, 30
  %v1073 = vpop.permute.xlu0 %1072
  %1074 = vrot.lane.b32.xlu0 %v1015, 30
  %v1075 = vpop.permute.xlu0 %1074
  %1076 = vrot.lane.b32.xlu0 %v1018, 30
  %v1077 = vpop.permute.xlu0 %1076
  %1078 = vrot.lane.b32.xlu0 %v1020, 30
  %v1079 = vpop.permute.xlu0 %1078
  %1080 = vrot.lane.b32.xlu0 %v1023, 30
  %v1081 = vpop.permute.xlu0 %1080
  %1082 = vrot.lane.b32.xlu0 %v1025, 30
  %v1083 = vpop.permute.xlu0 %1082
  %1084 = vrot.lane.b32.xlu0 %v1028, 30
  %v1085 = vpop.permute.xlu0 %1084
  %1086 = vrot.lane.b32.xlu0 %v1030, 30
  %v1087 = vpop.permute.xlu0 %1086
  %v1096 = vsel %vm89, %v785, %v1035
  %v1097 = vsel %vm89, 0.0, %v1037
  %vm1098 = vcmask 162816
  %v1099 = vsel %vm1098, %v1096, %v1049
  %v1100 = vsel %vm1098, %v1097, %v1051
  %v1101 = vsel %vm1098, %v1097, %v1053
  %v1102 = vsel %vm1098, %v1097, %v1055
  %v1103 = vsel %vm1098, %v1097, %v1057
  %v1104 = vsel %vm1098, %v1097, %v1059
  %v1105 = vsel %vm1098, %v1097, %v1061
  %v1106 = vsel %vm1098, %v1097, %v1063
  %vm1107 = vcmask 244736
  %v1108 = vsel %vm1107, %v1099, %v1073
  %v1109 = vsel %vm1107, %v1100, %v1075
  %v1110 = vsel %vm1107, %v1101, %v1077
  %v1111 = vsel %vm1107, %v1102, %v1079
  %v1112 = vsel %vm1107, %v1103, %v1081
  %v1113 = vsel %vm1107, %v1104, %v1083
  %v1114 = vsel %vm1107, %v1105, %v1085
  %v1115 = vsel %vm1107, %v1106, %v1087
  %v1116 = vld [vmem:[%s4] sm:$0xff]
  %v1117 = vld [vmem:[%s4 + $0x8] sm:$0xff]
  %v1118 = vld [vmem:[%s4 + $0x10] sm:$0xff]
  %v1119 = vld [vmem:[%s4 + $0x18] sm:$0xff]
  %v1120 = vld [vmem:[%s4 + $0x20] sm:$0xff]
  %v1121 = vld [vmem:[%s4 + $0x28] sm:$0x1]
  %v1122 = vperm.slane %v1121, 0
  %vm1123 = vcmask 326656
  %v1125 = vsel %vm1123, %v1108, 0
  %v1128 = vsel %vm1123, %v1109, 0
  %v1131 = vsel %vm1123, %v1110, 0
  %v1134 = vsel %vm1123, %v1111, 0
  %v1137 = vsel %vm1123, %v1112, 0
  %v1140 = vsel %vm1123, %v1113, 0
  %v1143 = vsel %vm1123, %v1114, 0
  %v1146 = vsel %vm1123, %v1115, 0
  %1148 = vmatpush.msra.mxu0 0.0
  %1149 = vmatpush.msra.mxu0 0.0
  %1150 = vmatpush.msra.mxu0 0.0
  %1151 = vmatpush.msra.mxu0 0.0
  %1152 = vmatpush.msra.mxu0 0.0
  %1153 = vmatpush.msra.mxu0 0.0
  %1154 = vmatpush.msra.mxu0 0.0
  %1155 = vmatpush.msra.mxu0 0.0
  %1156 = vmatpush.msra.mxu0 0.0
  %1157 = vmatpush.msra.mxu0 0.0
  %1158 = vmatpush.msra.mxu0 0.0
  %1159 = vmatpush.msra.mxu0 %v1120
  %1160 = vmatpush.msra.mxu0 %v1119
  %1161 = vmatpush.msra.mxu0 %v1118
  %1162 = vmatpush.msra.mxu0 %v1117
  %1163 = vmatpush.msra.mxu0 %v1116
  %1164 = vmatmul.f32.gmra.mxu0 %v1125
  %v1165 = vpop.f32.mrf.mxu0
  %v1166 = vadd.f32 %v1122, %v1165
  %1167 = vmatmul.f32.gmra.mxu0 %v1128
  %v1168 = vpop.f32.mrf.mxu0
  %v1169 = vadd.f32 %v1122, %v1168
  %1170 = vmatmul.f32.gmra.mxu0 %v1131
  %v1171 = vpop.f32.mrf.mxu0
  %v1172 = vadd.f32 %v1122, %v1171
  %1173 = vmatmul.f32.gmra.mxu0 %v1134
  %v1174 = vpop.f32.mrf.mxu0
  %v1175 = vadd.f32 %v1122, %v1174
  %1176 = vmatmul.f32.gmra.mxu0 %v1137
  %v1177 = vpop.f32.mrf.mxu0
  %v1178 = vadd.f32 %v1122, %v1177
  %1179 = vmatmul.f32.gmra.mxu0 %v1140
  %v1180 = vpop.f32.mrf.mxu0
  %v1181 = vadd.f32 %v1122, %v1180
  %1182 = vmatmul.f32.gmra.mxu0 %v1143
  %v1183 = vpop.f32.mrf.mxu0
  %v1184 = vadd.f32 %v1122, %v1183
  %1185 = vmatmul.f32.gmra.mxu0 %v1146
  %v1186 = vpop.f32.mrf.mxu0
  %v1187 = vadd.f32 %v1122, %v1186
  %1188 = vdwg.mxu0
  %v1189 = vmax.f32 %v1166, 0.0
  %v1190 = vmax.f32 %v1169, 0.0
  %v1191 = vmax.f32 %v1172, 0.0
  %v1192 = vmax.f32 %v1175, 0.0
  %v1193 = vmax.f32 %v1178, 0.0
  %v1194 = vmax.f32 %v1181, 0.0
  %v1195 = vmax.f32 %v1184, 0.0
  %v1196 = vmax.f32 %v1187, 0.0
  %v1197 = vand.u32 2147483647, %v1166
  %v1198 = vand.u32 2147483647, %v1169
  %v1199 = vand.u32 2147483647, %v1172
  %v1200 = vand.u32 2147483647, %v1175
  %v1201 = vand.u32 2147483647, %v1178
  %v1202 = vand.u32 2147483647, %v1181
  %v1203 = vand.u32 2147483647, %v1184
  %v1204 = vand.u32 2147483647, %v1187
  %v1205 = vsub.f32 0.0, %v1197
  %v1206 = vsub.f32 0.0, %v1198
  %v1207 = vsub.f32 0.0, %v1199
  %v1208 = vsub.f32 0.0, %v1200
  %v1209 = vsub.f32 0.0, %v1201
  %v1210 = vsub.f32 0.0, %v1202
  %v1211 = vsub.f32 0.0, %v1203
  %v1212 = vsub.f32 0.0, %v1204
  %v1213 = vmul.f32 %v1205, 1.442695
  %v1214 = vpow.pop %v1213
  %v1215 = vmul.f32 %v1206, 1.442695
  %v1216 = vpow.pop %v1215
  %v1217 = vmul.f32 %v1207, 1.442695
  %v1218 = vpow.pop %v1217
  %v1219 = vmul.f32 %v1208, 1.442695
  %v1220 = vpow.pop %v1219
  %v1221 = vmul.f32 %v1209, 1.442695
  %v1222 = vpow.pop %v1221
  %v1223 = vmul.f32 %v1210, 1.442695
  %v1224 = vpow.pop %v1223
  %v1225 = vmul.f32 %v1211, 1.442695
  %v1226 = vpow.pop %v1225
  %v1227 = vmul.f32 %v1212, 1.442695
  %v1228 = vpow.pop %v1227
  %v1229 = vadd.f32 %v1214, 1.0
  %v1230 = vlog2.pop %v1229
  %v1231 = vmul.f32 %v1230, 0.6931472
  %v1232 = vmul.f32 -0.5, %v1214
  %v1233 = vadd.f32 %v1232, 1.0
  %v1234 = vmul.f32 %v1233, %v1214
  %v1235 = vand.u32 2147483647, %v1214
  %vm1236 = vcmp.lt.f32.partialorder %v1235, 0.0004427343
  %v1237 = vsel %vm1236, %v1234, %v1231
  %v1238 = vadd.f32 %v1216, 1.0
  %v1239 = vlog2.pop %v1238
  %v1240 = vmul.f32 %v1239, 0.6931472
  %v1241 = vmul.f32 -0.5, %v1216
  %v1242 = vadd.f32 %v1241, 1.0
  %v1243 = vmul.f32 %v1242, %v1216
  %v1244 = vand.u32 2147483647, %v1216
  %vm1245 = vcmp.lt.f32.partialorder %v1244, 0.0004427343
  %v1246 = vsel %vm1245, %v1243, %v1240
  %v1247 = vadd.f32 %v1218, 1.0
  %v1248 = vlog2.pop %v1247
  %v1249 = vmul.f32 %v1248, 0.6931472
  %v1250 = vmul.f32 -0.5, %v1218
  %v1251 = vadd.f32 %v1250, 1.0
  %v1252 = vmul.f32 %v1251, %v1218
  %v1253 = vand.u32 2147483647, %v1218
  %vm1254 = vcmp.lt.f32.partialorder %v1253, 0.0004427343
  %v1255 = vsel %vm1254, %v1252, %v1249
  %v1256 = vadd.f32 %v1220, 1.0
  %v1257 = vlog2.pop %v1256
  %v1258 = vmul.f32 %v1257, 0.6931472
  %v1259 = vmul.f32 -0.5, %v1220
  %v1260 = vadd.f32 %v1259, 1.0
  %v1261 = vmul.f32 %v1260, %v1220
  %v1262 = vand.u32 2147483647, %v1220
  %vm1263 = vcmp.lt.f32.partialorder %v1262, 0.0004427343
  %v1264 = vsel %vm1263, %v1261, %v1258
  %v1265 = vadd.f32 %v1222, 1.0
  %v1266 = vlog2.pop %v1265
  %v1267 = vmul.f32 %v1266, 0.6931472
  %v1268 = vmul.f32 -0.5, %v1222
  %v1269 = vadd.f32 %v1268, 1.0
  %v1270 = vmul.f32 %v1269, %v1222
  %v1271 = vand.u32 2147483647, %v1222
  %vm1272 = vcmp.lt.f32.partialorder %v1271, 0.0004427343
  %v1273 = vsel %vm1272, %v1270, %v1267
  %v1274 = vadd.f32 %v1224, 1.0
  %v1275 = vlog2.pop %v1274
  %v1276 = vmul.f32 %v1275, 0.6931472
  %v1277 = vmul.f32 -0.5, %v1224
  %v1278 = vadd.f32 %v1277, 1.0
  %v1279 = vmul.f32 %v1278, %v1224
  %v1280 = vand.u32 2147483647, %v1224
  %vm1281 = vcmp.lt.f32.partialorder %v1280, 0.0004427343
  %v1282 = vsel %vm1281, %v1279, %v1276
  %v1283 = vadd.f32 %v1226, 1.0
  %v1284 = vlog2.pop %v1283
  %v1285 = vmul.f32 %v1284, 0.6931472
  %v1286 = vmul.f32 -0.5, %v1226
  %v1287 = vadd.f32 %v1286, 1.0
  %v1288 = vmul.f32 %v1287, %v1226
  %v1289 = vand.u32 2147483647, %v1226
  %vm1290 = vcmp.lt.f32.partialorder %v1289, 0.0004427343
  %v1291 = vsel %vm1290, %v1288, %v1285
  %v1292 = vadd.f32 %v1228, 1.0
  %v1293 = vlog2.pop %v1292
  %v1294 = vmul.f32 %v1293, 0.6931472
  %v1295 = vmul.f32 -0.5, %v1228
  %v1296 = vadd.f32 %v1295, 1.0
  %v1297 = vmul.f32 %v1296, %v1228
  %v1298 = vand.u32 2147483647, %v1228
  %vm1299 = vcmp.lt.f32.partialorder %v1298, 0.0004427343
  %v1300 = vsel %vm1299, %v1297, %v1294
  %v1301 = vadd.f32 %v1189, %v1237
  %v1302 = vadd.f32 %v1190, %v1246
  %v1303 = vadd.f32 %v1191, %v1255
  %v1304 = vadd.f32 %v1192, %v1264
  %v1305 = vadd.f32 %v1193, %v1273
  %v1306 = vadd.f32 %v1194, %v1282
  %v1307 = vadd.f32 %v1195, %v1291
  %v1308 = vadd.f32 %v1196, %v1300
  %v1309 = vld [vmem:[%s4 + $0x30] sm:$0xff]
  %v1310 = vld [vmem:[%s4 + $0x38] sm:$0xff]
  %v1311 = vld [vmem:[%s4 + $0x40] sm:$0xff]
  %v1312 = vld [vmem:[%s4 + $0x48] sm:$0xff]
  %v1313 = vld [vmem:[%s4 + $0x50] sm:$0xff]
  %v1314 = vld [vmem:[%s4 + $0x58] sm:$0x1]
  %v1315 = vperm.slane %v1314, 0
  %v1317 = vsel %vm1123, %v1301, 0
  %v1320 = vsel %vm1123, %v1302, 0
  %v1323 = vsel %vm1123, %v1303, 0
  %v1326 = vsel %vm1123, %v1304, 0
  %v1329 = vsel %vm1123, %v1305, 0
  %v1332 = vsel %vm1123, %v1306, 0
  %v1335 = vsel %vm1123, %v1307, 0
  %v1338 = vsel %vm1123, %v1308, 0
  %1340 = vmatpush.msra.mxu0 0.0
  %1341 = vmatpush.msra.mxu0 0.0
  %1342 = vmatpush.msra.mxu0 0.0
  %1343 = vmatpush.msra.mxu0 0.0
  %1344 = vmatpush.msra.mxu0 0.0
  %1345 = vmatpush.msra.mxu0 0.0
  %1346 = vmatpush.msra.mxu0 0.0
  %1347 = vmatpush.msra.mxu0 0.0
  %1348 = vmatpush.msra.mxu0 0.0
  %1349 = vmatpush.msra.mxu0 0.0
  %1350 = vmatpush.msra.mxu0 0.0
  %1351 = vmatpush.msra.mxu0 %v1313
  %1352 = vmatpush.msra.mxu0 %v1312
  %1353 = vmatpush.msra.mxu0 %v1311
  %1354 = vmatpush.msra.mxu0 %v1310
  %1355 = vmatpush.msra.mxu0 %v1309
  %1356 = vmatmul.f32.gmra.mxu0 %v1317
  %v1357 = vpop.f32.mrf.mxu0
  %v1358 = vadd.f32 %v1315, %v1357
  %1359 = vmatmul.f32.gmra.mxu0 %v1320
  %v1360 = vpop.f32.mrf.mxu0
  %v1361 = vadd.f32 %v1315, %v1360
  %1362 = vmatmul.f32.gmra.mxu0 %v1323
  %v1363 = vpop.f32.mrf.mxu0
  %v1364 = vadd.f32 %v1315, %v1363
  %1365 = vmatmul.f32.gmra.mxu0 %v1326
  %v1366 = vpop.f32.mrf.mxu0
  %v1367 = vadd.f32 %v1315, %v1366
  %1368 = vmatmul.f32.gmra.mxu0 %v1329
  %v1369 = vpop.f32.mrf.mxu0
  %v1370 = vadd.f32 %v1315, %v1369
  %1371 = vmatmul.f32.gmra.mxu0 %v1332
  %v1372 = vpop.f32.mrf.mxu0
  %v1373 = vadd.f32 %v1315, %v1372
  %1374 = vmatmul.f32.gmra.mxu0 %v1335
  %v1375 = vpop.f32.mrf.mxu0
  %v1376 = vadd.f32 %v1315, %v1375
  %1377 = vmatmul.f32.gmra.mxu0 %v1338
  %v1378 = vpop.f32.mrf.mxu0
  %v1379 = vadd.f32 %v1315, %v1378
  %1380 = vdwg.mxu0
  %v1381 = vmax.f32 %v1358, 0.0
  %v1382 = vmax.f32 %v1361, 0.0
  %v1383 = vmax.f32 %v1364, 0.0
  %v1384 = vmax.f32 %v1367, 0.0
  %v1385 = vmax.f32 %v1370, 0.0
  %v1386 = vmax.f32 %v1373, 0.0
  %v1387 = vmax.f32 %v1376, 0.0
  %v1388 = vmax.f32 %v1379, 0.0
  %v1389 = vand.u32 2147483647, %v1358
  %v1390 = vand.u32 2147483647, %v1361
  %v1391 = vand.u32 2147483647, %v1364
  %v1392 = vand.u32 2147483647, %v1367
  %v1393 = vand.u32 2147483647, %v1370
  %v1394 = vand.u32 2147483647, %v1373
  %v1395 = vand.u32 2147483647, %v1376
  %v1396 = vand.u32 2147483647, %v1379
  %v1397 = vsub.f32 0.0, %v1389
  %v1398 = vsub.f32 0.0, %v1390
  %v1399 = vsub.f32 0.0, %v1391
  %v1400 = vsub.f32 0.0, %v1392
  %v1401 = vsub.f32 0.0, %v1393
  %v1402 = vsub.f32 0.0, %v1394
  %v1403 = vsub.f32 0.0, %v1395
  %v1404 = vsub.f32 0.0, %v1396
  %v1405 = vmul.f32 %v1397, 1.442695
  %v1406 = vpow.pop %v1405
  %v1407 = vmul.f32 %v1398, 1.442695
  %v1408 = vpow.pop %v1407
  %v1409 = vmul.f32 %v1399, 1.442695
  %v1410 = vpow.pop %v1409
  %v1411 = vmul.f32 %v1400, 1.442695
  %v1412 = vpow.pop %v1411
  %v1413 = vmul.f32 %v1401, 1.442695
  %v1414 = vpow.pop %v1413
  %v1415 = vmul.f32 %v1402, 1.442695
  %v1416 = vpow.pop %v1415
  %v1417 = vmul.f32 %v1403, 1.442695
  %v1418 = vpow.pop %v1417
  %v1419 = vmul.f32 %v1404, 1.442695
  %v1420 = vpow.pop %v1419
  %v1421 = vadd.f32 %v1406, 1.0
  %v1422 = vlog2.pop %v1421
  %v1423 = vmul.f32 %v1422, 0.6931472
  %v1424 = vmul.f32 -0.5, %v1406
  %v1425 = vadd.f32 %v1424, 1.0
  %v1426 = vmul.f32 %v1425, %v1406
  %v1427 = vand.u32 2147483647, %v1406
  %vm1428 = vcmp.lt.f32.partialorder %v1427, 0.0004427343
  %v1429 = vsel %vm1428, %v1426, %v1423
  %v1430 = vadd.f32 %v1408, 1.0
  %v1431 = vlog2.pop %v1430
  %v1432 = vmul.f32 %v1431, 0.6931472
  %v1433 = vmul.f32 -0.5, %v1408
  %v1434 = vadd.f32 %v1433, 1.0
  %v1435 = vmul.f32 %v1434, %v1408
  %v1436 = vand.u32 2147483647, %v1408
  %vm1437 = vcmp.lt.f32.partialorder %v1436, 0.0004427343
  %v1438 = vsel %vm1437, %v1435, %v1432
  %v1439 = vadd.f32 %v1410, 1.0
  %v1440 = vlog2.pop %v1439
  %v1441 = vmul.f32 %v1440, 0.6931472
  %v1442 = vmul.f32 -0.5, %v1410
  %v1443 = vadd.f32 %v1442, 1.0
  %v1444 = vmul.f32 %v1443, %v1410
  %v1445 = vand.u32 2147483647, %v1410
  %vm1446 = vcmp.lt.f32.partialorder %v1445, 0.0004427343
  %v1447 = vsel %vm1446, %v1444, %v1441
  %v1448 = vadd.f32 %v1412, 1.0
  %v1449 = vlog2.pop %v1448
  %v1450 = vmul.f32 %v1449, 0.6931472
  %v1451 = vmul.f32 -0.5, %v1412
  %v1452 = vadd.f32 %v1451, 1.0
  %v1453 = vmul.f32 %v1452, %v1412
  %v1454 = vand.u32 2147483647, %v1412
  %vm1455 = vcmp.lt.f32.partialorder %v1454, 0.0004427343
  %v1456 = vsel %vm1455, %v1453, %v1450
  %v1457 = vadd.f32 %v1414, 1.0
  %v1458 = vlog2.pop %v1457
  %v1459 = vmul.f32 %v1458, 0.6931472
  %v1460 = vmul.f32 -0.5, %v1414
  %v1461 = vadd.f32 %v1460, 1.0
  %v1462 = vmul.f32 %v1461, %v1414
  %v1463 = vand.u32 2147483647, %v1414
  %vm1464 = vcmp.lt.f32.partialorder %v1463, 0.0004427343
  %v1465 = vsel %vm1464, %v1462, %v1459
  %v1466 = vadd.f32 %v1416, 1.0
  %v1467 = vlog2.pop %v1466
  %v1468 = vmul.f32 %v1467, 0.6931472
  %v1469 = vmul.f32 -0.5, %v1416
  %v1470 = vadd.f32 %v1469, 1.0
  %v1471 = vmul.f32 %v1470, %v1416
  %v1472 = vand.u32 2147483647, %v1416
  %vm1473 = vcmp.lt.f32.partialorder %v1472, 0.0004427343
  %v1474 = vsel %vm1473, %v1471, %v1468
  %v1475 = vadd.f32 %v1418, 1.0
  %v1476 = vlog2.pop %v1475
  %v1477 = vmul.f32 %v1476, 0.6931472
  %v1478 = vmul.f32 -0.5, %v1418
  %v1479 = vadd.f32 %v1478, 1.0
  %v1480 = vmul.f32 %v1479, %v1418
  %v1481 = vand.u32 2147483647, %v1418
  %vm1482 = vcmp.lt.f32.partialorder %v1481, 0.0004427343
  %v1483 = vsel %vm1482, %v1480, %v1477
  %v1484 = vadd.f32 %v1420, 1.0
  %v1485 = vlog2.pop %v1484
  %v1486 = vmul.f32 %v1485, 0.6931472
  %v1487 = vmul.f32 -0.5, %v1420
  %v1488 = vadd.f32 %v1487, 1.0
  %v1489 = vmul.f32 %v1488, %v1420
  %v1490 = vand.u32 2147483647, %v1420
  %vm1491 = vcmp.lt.f32.partialorder %v1490, 0.0004427343
  %v1492 = vsel %vm1491, %v1489, %v1486
  %v1493 = vadd.f32 %v1381, %v1429
  %v1494 = vadd.f32 %v1382, %v1438
  %v1495 = vadd.f32 %v1383, %v1447
  %v1496 = vadd.f32 %v1384, %v1456
  %v1497 = vadd.f32 %v1385, %v1465
  %v1498 = vadd.f32 %v1386, %v1474
  %v1499 = vadd.f32 %v1387, %v1483
  %v1500 = vadd.f32 %v1388, %v1492
  %v1501 = vld [vmem:[%s4 + $0x60] sm:$0xff]
  %v1502 = vld [vmem:[%s4 + $0x68] sm:$0xff]
  %v1503 = vld [vmem:[%s4 + $0x70] sm:$0xff]
  %v1504 = vld [vmem:[%s4 + $0x78] sm:$0xff]
  %v1505 = vld [vmem:[%s4 + $0x80] sm:$0xff]
  %v1506 = vld [vmem:[%s4 + $0x88] sm:$0x1]
  %v1507 = vperm.slane %v1506, 0
  %v1509 = vsel %vm1123, %v1493, 0
  %v1512 = vsel %vm1123, %v1494, 0
  %v1515 = vsel %vm1123, %v1495, 0
  %v1518 = vsel %vm1123, %v1496, 0
  %v1521 = vsel %vm1123, %v1497, 0
  %v1524 = vsel %vm1123, %v1498, 0
  %v1527 = vsel %vm1123, %v1499, 0
  %v1530 = vsel %vm1123, %v1500, 0
  %1532 = vmatpush.msra.mxu0 0.0
  %1533 = vmatpush.msra.mxu0 0.0
  %1534 = vmatpush.msra.mxu0 0.0
  %1535 = vmatpush.msra.mxu0 0.0
  %1536 = vmatpush.msra.mxu0 0.0
  %1537 = vmatpush.msra.mxu0 0.0
  %1538 = vmatpush.msra.mxu0 0.0
  %1539 = vmatpush.msra.mxu0 0.0
  %1540 = vmatpush.msra.mxu0 0.0
  %1541 = vmatpush.msra.mxu0 0.0
  %1542 = vmatpush.msra.mxu0 0.0
  %1543 = vmatpush.msra.mxu0 %v1505
  %1544 = vmatpush.msra.mxu0 %v1504
  %1545 = vmatpush.msra.mxu0 %v1503
  %1546 = vmatpush.msra.mxu0 %v1502
  %1547 = vmatpush.msra.mxu0 %v1501
  %1548 = vmatmul.f32.gmra.mxu0 %v1509
  %v1549 = vpop.f32.mrf.mxu0
  %v1550 = vadd.f32 %v1507, %v1549
  %1551 = vmatmul.f32.gmra.mxu0 %v1512
  %v1552 = vpop.f32.mrf.mxu0
  %v1553 = vadd.f32 %v1507, %v1552
  %1554 = vmatmul.f32.gmra.mxu0 %v1515
  %v1555 = vpop.f32.mrf.mxu0
  %v1556 = vadd.f32 %v1507, %v1555
  %1557 = vmatmul.f32.gmra.mxu0 %v1518
  %v1558 = vpop.f32.mrf.mxu0
  %v1559 = vadd.f32 %v1507, %v1558
  %1560 = vmatmul.f32.gmra.mxu0 %v1521
  %v1561 = vpop.f32.mrf.mxu0
  %v1562 = vadd.f32 %v1507, %v1561
  %1563 = vmatmul.f32.gmra.mxu0 %v1524
  %v1564 = vpop.f32.mrf.mxu0
  %v1565 = vadd.f32 %v1507, %v1564
  %1566 = vmatmul.f32.gmra.mxu0 %v1527
  %v1567 = vpop.f32.mrf.mxu0
  %v1568 = vadd.f32 %v1507, %v1567
  %1569 = vmatmul.f32.gmra.mxu0 %v1530
  %v1570 = vpop.f32.mrf.mxu0
  %v1571 = vadd.f32 %v1507, %v1570
  %1572 = vdwg.mxu0
  %v1573 = vadd.f32 %v1166, %v1550
  %v1574 = vadd.f32 %v1169, %v1553
  %v1575 = vadd.f32 %v1172, %v1556
  %v1576 = vadd.f32 %v1175, %v1559
  %v1577 = vadd.f32 %v1178, %v1562
  %v1578 = vadd.f32 %v1181, %v1565
  %v1579 = vadd.f32 %v1184, %v1568
  %v1580 = vadd.f32 %v1187, %v1571
  %v1581 = vmax.f32 %v1573, 0.0
  %v1582 = vmax.f32 %v1574, 0.0
  %v1583 = vmax.f32 %v1575, 0.0
  %v1584 = vmax.f32 %v1576, 0.0
  %v1585 = vmax.f32 %v1577, 0.0
  %v1586 = vmax.f32 %v1578, 0.0
  %v1587 = vmax.f32 %v1579, 0.0
  %v1588 = vmax.f32 %v1580, 0.0
  %v1589 = vand.u32 2147483647, %v1573
  %v1590 = vand.u32 2147483647, %v1574
  %v1591 = vand.u32 2147483647, %v1575
  %v1592 = vand.u32 2147483647, %v1576
  %v1593 = vand.u32 2147483647, %v1577
  %v1594 = vand.u32 2147483647, %v1578
  %v1595 = vand.u32 2147483647, %v1579
  %v1596 = vand.u32 2147483647, %v1580
  %v1597 = vsub.f32 0.0, %v1589
  %v1598 = vsub.f32 0.0, %v1590
  %v1599 = vsub.f32 0.0, %v1591
  %v1600 = vsub.f32 0.0, %v1592
  %v1601 = vsub.f32 0.0, %v1593
  %v1602 = vsub.f32 0.0, %v1594
  %v1603 = vsub.f32 0.0, %v1595
  %v1604 = vsub.f32 0.0, %v1596
  %v1605 = vmul.f32 %v1597, 1.442695
  %v1606 = vpow.pop %v1605
  %v1607 = vmul.f32 %v1598, 1.442695
  %v1608 = vpow.pop %v1607
  %v1609 = vmul.f32 %v1599, 1.442695
  %v1610 = vpow.pop %v1609
  %v1611 = vmul.f32 %v1600, 1.442695
  %v1612 = vpow.pop %v1611
  %v1613 = vmul.f32 %v1601, 1.442695
  %v1614 = vpow.pop %v1613
  %v1615 = vmul.f32 %v1602, 1.442695
  %v1616 = vpow.pop %v1615
  %v1617 = vmul.f32 %v1603, 1.442695
  %v1618 = vpow.pop %v1617
  %v1619 = vmul.f32 %v1604, 1.442695
  %v1620 = vpow.pop %v1619
  %v1621 = vadd.f32 %v1606, 1.0
  %v1622 = vlog2.pop %v1621
  %v1623 = vmul.f32 %v1622, 0.6931472
  %v1624 = vmul.f32 -0.5, %v1606
  %v1625 = vadd.f32 %v1624, 1.0
  %v1626 = vmul.f32 %v1625, %v1606
  %v1627 = vand.u32 2147483647, %v1606
  %vm1628 = vcmp.lt.f32.partialorder %v1627, 0.0004427343
  %v1629 = vsel %vm1628, %v1626, %v1623
  %v1630 = vadd.f32 %v1608, 1.0
  %v1631 = vlog2.pop %v1630
  %v1632 = vmul.f32 %v1631, 0.6931472
  %v1633 = vmul.f32 -0.5, %v1608
  %v1634 = vadd.f32 %v1633, 1.0
  %v1635 = vmul.f32 %v1634, %v1608
  %v1636 = vand.u32 2147483647, %v1608
  %vm1637 = vcmp.lt.f32.partialorder %v1636, 0.0004427343
  %v1638 = vsel %vm1637, %v1635, %v1632
  %v1639 = vadd.f32 %v1610, 1.0
  %v1640 = vlog2.pop %v1639
  %v1641 = vmul.f32 %v1640, 0.6931472
  %v1642 = vmul.f32 -0.5, %v1610
  %v1643 = vadd.f32 %v1642, 1.0
  %v1644 = vmul.f32 %v1643, %v1610
  %v1645 = vand.u32 2147483647, %v1610
  %vm1646 = vcmp.lt.f32.partialorder %v1645, 0.0004427343
  %v1647 = vsel %vm1646, %v1644, %v1641
  %v1648 = vadd.f32 %v1612, 1.0
  %v1649 = vlog2.pop %v1648
  %v1650 = vmul.f32 %v1649, 0.6931472
  %v1651 = vmul.f32 -0.5, %v1612
  %v1652 = vadd.f32 %v1651, 1.0
  %v1653 = vmul.f32 %v1652, %v1612
  %v1654 = vand.u32 2147483647, %v1612
  %vm1655 = vcmp.lt.f32.partialorder %v1654, 0.0004427343
  %v1656 = vsel %vm1655, %v1653, %v1650
  %v1657 = vadd.f32 %v1614, 1.0
  %v1658 = vlog2.pop %v1657
  %v1659 = vmul.f32 %v1658, 0.6931472
  %v1660 = vmul.f32 -0.5, %v1614
  %v1661 = vadd.f32 %v1660, 1.0
  %v1662 = vmul.f32 %v1661, %v1614
  %v1663 = vand.u32 2147483647, %v1614
  %vm1664 = vcmp.lt.f32.partialorder %v1663, 0.0004427343
  %v1665 = vsel %vm1664, %v1662, %v1659
  %v1666 = vadd.f32 %v1616, 1.0
  %v1667 = vlog2.pop %v1666
  %v1668 = vmul.f32 %v1667, 0.6931472
  %v1669 = vmul.f32 -0.5, %v1616
  %v1670 = vadd.f32 %v1669, 1.0
  %v1671 = vmul.f32 %v1670, %v1616
  %v1672 = vand.u32 2147483647, %v1616
  %vm1673 = vcmp.lt.f32.partialorder %v1672, 0.0004427343
  %v1674 = vsel %vm1673, %v1671, %v1668
  %v1675 = vadd.f32 %v1618, 1.0
  %v1676 = vlog2.pop %v1675
  %v1677 = vmul.f32 %v1676, 0.6931472
  %v1678 = vmul.f32 -0.5, %v1618
  %v1679 = vadd.f32 %v1678, 1.0
  %v1680 = vmul.f32 %v1679, %v1618
  %v1681 = vand.u32 2147483647, %v1618
  %vm1682 = vcmp.lt.f32.partialorder %v1681, 0.0004427343
  %v1683 = vsel %vm1682, %v1680, %v1677
  %v1684 = vadd.f32 %v1620, 1.0
  %v1685 = vlog2.pop %v1684
  %v1686 = vmul.f32 %v1685, 0.6931472
  %v1687 = vmul.f32 -0.5, %v1620
  %v1688 = vadd.f32 %v1687, 1.0
  %v1689 = vmul.f32 %v1688, %v1620
  %v1690 = vand.u32 2147483647, %v1620
  %vm1691 = vcmp.lt.f32.partialorder %v1690, 0.0004427343
  %v1692 = vsel %vm1691, %v1689, %v1686
  %v1693 = vadd.f32 %v1581, %v1629
  %v1694 = vadd.f32 %v1582, %v1638
  %v1695 = vadd.f32 %v1583, %v1647
  %v1696 = vadd.f32 %v1584, %v1656
  %v1697 = vadd.f32 %v1585, %v1665
  %v1698 = vadd.f32 %v1586, %v1674
  %v1699 = vadd.f32 %v1587, %v1683
  %v1700 = vadd.f32 %v1588, %v1692
  %v1701 = vld [vmem:[%s4 + $0x90] sm:$0xff]
  %v1702 = vld [vmem:[%s4 + $0x98] sm:$0xff]
  %v1703 = vld [vmem:[%s4 + $0xa0] sm:$0xff]
  %v1704 = vld [vmem:[%s4 + $0xa8] sm:$0xff]
  %v1705 = vld [vmem:[%s4 + $0xb0] sm:$0xff]
  %v1706 = vld [vmem:[%s4 + $0xb8] sm:$0x1]
  %v1707 = vperm.slane %v1706, 0
  %v1709 = vsel %vm1123, %v1693, 0
  %v1712 = vsel %vm1123, %v1694, 0
  %v1715 = vsel %vm1123, %v1695, 0
  %v1718 = vsel %vm1123, %v1696, 0
  %v1721 = vsel %vm1123, %v1697, 0
  %v1724 = vsel %vm1123, %v1698, 0
  %v1727 = vsel %vm1123, %v1699, 0
  %v1730 = vsel %vm1123, %v1700, 0
  %1732 = vmatpush.msra.mxu0 0.0
  %1733 = vmatpush.msra.mxu0 0.0
  %1734 = vmatpush.msra.mxu0 0.0
  %1735 = vmatpush.msra.mxu0 0.0
  %1736 = vmatpush.msra.mxu0 0.0
  %1737 = vmatpush.msra.mxu0 0.0
  %1738 = vmatpush.msra.mxu0 0.0
  %1739 = vmatpush.msra.mxu0 0.0
  %1740 = vmatpush.msra.mxu0 0.0
  %1741 = vmatpush.msra.mxu0 0.0
  %1742 = vmatpush.msra.mxu0 0.0
  %1743 = vmatpush.msra.mxu0 %v1705
  %1744 = vmatpush.msra.mxu0 %v1704
  %1745 = vmatpush.msra.mxu0 %v1703
  %1746 = vmatpush.msra.mxu0 %v1702
  %1747 = vmatpush.msra.mxu0 %v1701
  %1748 = vmatmul.f32.gmra.mxu0 %v1709
  %v1749 = vpop.f32.mrf.mxu0
  %v1750 = vadd.f32 %v1707, %v1749
  %1751 = vmatmul.f32.gmra.mxu0 %v1712
  %v1752 = vpop.f32.mrf.mxu0
  %v1753 = vadd.f32 %v1707, %v1752
  %1754 = vmatmul.f32.gmra.mxu0 %v1715
  %v1755 = vpop.f32.mrf.mxu0
  %v1756 = vadd.f32 %v1707, %v1755
  %1757 = vmatmul.f32.gmra.mxu0 %v1718
  %v1758 = vpop.f32.mrf.mxu0
  %v1759 = vadd.f32 %v1707, %v1758
  %1760 = vmatmul.f32.gmra.mxu0 %v1721
  %v1761 = vpop.f32.mrf.mxu0
  %v1762 = vadd.f32 %v1707, %v1761
  %1763 = vmatmul.f32.gmra.mxu0 %v1724
  %v1764 = vpop.f32.mrf.mxu0
  %v1765 = vadd.f32 %v1707, %v1764
  %1766 = vmatmul.f32.gmra.mxu0 %v1727
  %v1767 = vpop.f32.mrf.mxu0
  %v1768 = vadd.f32 %v1707, %v1767
  %1769 = vmatmul.f32.gmra.mxu0 %v1730
  %v1770 = vpop.f32.mrf.mxu0
  %v1771 = vadd.f32 %v1707, %v1770
  %1772 = vdwg.mxu0
  %v1773 = vmax.f32 %v1750, 0.0
  %v1774 = vmax.f32 %v1753, 0.0
  %v1775 = vmax.f32 %v1756, 0.0
  %v1776 = vmax.f32 %v1759, 0.0
  %v1777 = vmax.f32 %v1762, 0.0
  %v1778 = vmax.f32 %v1765, 0.0
  %v1779 = vmax.f32 %v1768, 0.0
  %v1780 = vmax.f32 %v1771, 0.0
  %v1781 = vand.u32 2147483647, %v1750
  %v1782 = vand.u32 2147483647, %v1753
  %v1783 = vand.u32 2147483647, %v1756
  %v1784 = vand.u32 2147483647, %v1759
  %v1785 = vand.u32 2147483647, %v1762
  %v1786 = vand.u32 2147483647, %v1765
  %v1787 = vand.u32 2147483647, %v1768
  %v1788 = vand.u32 2147483647, %v1771
  %v1789 = vsub.f32 0.0, %v1781
  %v1790 = vsub.f32 0.0, %v1782
  %v1791 = vsub.f32 0.0, %v1783
  %v1792 = vsub.f32 0.0, %v1784
  %v1793 = vsub.f32 0.0, %v1785
  %v1794 = vsub.f32 0.0, %v1786
  %v1795 = vsub.f32 0.0, %v1787
  %v1796 = vsub.f32 0.0, %v1788
  %v1797 = vmul.f32 %v1789, 1.442695
  %v1798 = vpow.pop %v1797
  %v1799 = vmul.f32 %v1790, 1.442695
  %v1800 = vpow.pop %v1799
  %v1801 = vmul.f32 %v1791, 1.442695
  %v1802 = vpow.pop %v1801
  %v1803 = vmul.f32 %v1792, 1.442695
  %v1804 = vpow.pop %v1803
  %v1805 = vmul.f32 %v1793, 1.442695
  %v1806 = vpow.pop %v1805
  %v1807 = vmul.f32 %v1794, 1.442695
  %v1808 = vpow.pop %v1807
  %v1809 = vmul.f32 %v1795, 1.442695
  %v1810 = vpow.pop %v1809
  %v1811 = vmul.f32 %v1796, 1.442695
  %v1812 = vpow.pop %v1811
  %v1813 = vadd.f32 %v1798, 1.0
  %v1814 = vlog2.pop %v1813
  %v1815 = vmul.f32 %v1814, 0.6931472
  %v1816 = vmul.f32 -0.5, %v1798
  %v1817 = vadd.f32 %v1816, 1.0
  %v1818 = vmul.f32 %v1817, %v1798
  %v1819 = vand.u32 2147483647, %v1798
  %vm1820 = vcmp.lt.f32.partialorder %v1819, 0.0004427343
  %v1821 = vsel %vm1820, %v1818, %v1815
  %v1822 = vadd.f32 %v1800, 1.0
  %v1823 = vlog2.pop %v1822
  %v1824 = vmul.f32 %v1823, 0.6931472
  %v1825 = vmul.f32 -0.5, %v1800
  %v1826 = vadd.f32 %v1825, 1.0
  %v1827 = vmul.f32 %v1826, %v1800
  %v1828 = vand.u32 2147483647, %v1800
  %vm1829 = vcmp.lt.f32.partialorder %v1828, 0.0004427343
  %v1830 = vsel %vm1829, %v1827, %v1824
  %v1831 = vadd.f32 %v1802, 1.0
  %v1832 = vlog2.pop %v1831
  %v1833 = vmul.f32 %v1832, 0.6931472
  %v1834 = vmul.f32 -0.5, %v1802
  %v1835 = vadd.f32 %v1834, 1.0
  %v1836 = vmul.f32 %v1835, %v1802
  %v1837 = vand.u32 2147483647, %v1802
  %vm1838 = vcmp.lt.f32.partialorder %v1837, 0.0004427343
  %v1839 = vsel %vm1838, %v1836, %v1833
  %v1840 = vadd.f32 %v1804, 1.0
  %v1841 = vlog2.pop %v1840
  %v1842 = vmul.f32 %v1841, 0.6931472
  %v1843 = vmul.f32 -0.5, %v1804
  %v1844 = vadd.f32 %v1843, 1.0
  %v1845 = vmul.f32 %v1844, %v1804
  %v1846 = vand.u32 2147483647, %v1804
  %vm1847 = vcmp.lt.f32.partialorder %v1846, 0.0004427343
  %v1848 = vsel %vm1847, %v1845, %v1842
  %v1849 = vadd.f32 %v1806, 1.0
  %v1850 = vlog2.pop %v1849
  %v1851 = vmul.f32 %v1850, 0.6931472
  %v1852 = vmul.f32 -0.5, %v1806
  %v1853 = vadd.f32 %v1852, 1.0
  %v1854 = vmul.f32 %v1853, %v1806
  %v1855 = vand.u32 2147483647, %v1806
  %vm1856 = vcmp.lt.f32.partialorder %v1855, 0.0004427343
  %v1857 = vsel %vm1856, %v1854, %v1851
  %v1858 = vadd.f32 %v1808, 1.0
  %v1859 = vlog2.pop %v1858
  %v1860 = vmul.f32 %v1859, 0.6931472
  %v1861 = vmul.f32 -0.5, %v1808
  %v1862 = vadd.f32 %v1861, 1.0
  %v1863 = vmul.f32 %v1862, %v1808
  %v1864 = vand.u32 2147483647, %v1808
  %vm1865 = vcmp.lt.f32.partialorder %v1864, 0.0004427343
  %v1866 = vsel %vm1865, %v1863, %v1860
  %v1867 = vadd.f32 %v1810, 1.0
  %v1868 = vlog2.pop %v1867
  %v1869 = vmul.f32 %v1868, 0.6931472
  %v1870 = vmul.f32 -0.5, %v1810
  %v1871 = vadd.f32 %v1870, 1.0
  %v1872 = vmul.f32 %v1871, %v1810
  %v1873 = vand.u32 2147483647, %v1810
  %vm1874 = vcmp.lt.f32.partialorder %v1873, 0.0004427343
  %v1875 = vsel %vm1874, %v1872, %v1869
  %v1876 = vadd.f32 %v1812, 1.0
  %v1877 = vlog2.pop %v1876
  %v1878 = vmul.f32 %v1877, 0.6931472
  %v1879 = vmul.f32 -0.5, %v1812
  %v1880 = vadd.f32 %v1879, 1.0
  %v1881 = vmul.f32 %v1880, %v1812
  %v1882 = vand.u32 2147483647, %v1812
  %vm1883 = vcmp.lt.f32.partialorder %v1882, 0.0004427343
  %v1884 = vsel %vm1883, %v1881, %v1878
  %v1885 = vadd.f32 %v1773, %v1821
  %v1886 = vadd.f32 %v1774, %v1830
  %v1887 = vadd.f32 %v1775, %v1839
  %v1888 = vadd.f32 %v1776, %v1848
  %v1889 = vadd.f32 %v1777, %v1857
  %v1890 = vadd.f32 %v1778, %v1866
  %v1891 = vadd.f32 %v1779, %v1875
  %v1892 = vadd.f32 %v1780, %v1884
  %v1893 = vld [vmem:[%s4 + $0xc0] sm:$0xff]
  %v1894 = vld [vmem:[%s4 + $0xc8] sm:$0xff]
  %v1895 = vld [vmem:[%s4 + $0xd0] sm:$0xff]
  %v1896 = vld [vmem:[%s4 + $0xd8] sm:$0xff]
  %v1897 = vld [vmem:[%s4 + $0xe0] sm:$0xff]
  %v1898 = vld [vmem:[%s4 + $0xe8] sm:$0x1]
  %v1899 = vperm.slane %v1898, 0
  %v1901 = vsel %vm1123, %v1885, 0
  %v1904 = vsel %vm1123, %v1886, 0
  %v1907 = vsel %vm1123, %v1887, 0
  %v1910 = vsel %vm1123, %v1888, 0
  %v1913 = vsel %vm1123, %v1889, 0
  %v1916 = vsel %vm1123, %v1890, 0
  %v1919 = vsel %vm1123, %v1891, 0
  %v1922 = vsel %vm1123, %v1892, 0
  %1924 = vmatpush.msra.mxu0 0.0
  %1925 = vmatpush.msra.mxu0 0.0
  %1926 = vmatpush.msra.mxu0 0.0
  %1927 = vmatpush.msra.mxu0 0.0
  %1928 = vmatpush.msra.mxu0 0.0
  %1929 = vmatpush.msra.mxu0 0.0
  %1930 = vmatpush.msra.mxu0 0.0
  %1931 = vmatpush.msra.mxu0 0.0
  %1932 = vmatpush.msra.mxu0 0.0
  %1933 = vmatpush.msra.mxu0 0.0
  %1934 = vmatpush.msra.mxu0 0.0
  %1935 = vmatpush.msra.mxu0 %v1897
  %1936 = vmatpush.msra.mxu0 %v1896
  %1937 = vmatpush.msra.mxu0 %v1895
  %1938 = vmatpush.msra.mxu0 %v1894
  %1939 = vmatpush.msra.mxu0 %v1893
  %1940 = vmatmul.f32.gmra.mxu0 %v1901
  %v1941 = vpop.f32.mrf.mxu0
  %v1942 = vadd.f32 %v1899, %v1941
  %1943 = vmatmul.f32.gmra.mxu0 %v1904
  %v1944 = vpop.f32.mrf.mxu0
  %v1945 = vadd.f32 %v1899, %v1944
  %1946 = vmatmul.f32.gmra.mxu0 %v1907
  %v1947 = vpop.f32.mrf.mxu0
  %v1948 = vadd.f32 %v1899, %v1947
  %1949 = vmatmul.f32.gmra.mxu0 %v1910
  %v1950 = vpop.f32.mrf.mxu0
  %v1951 = vadd.f32 %v1899, %v1950
  %1952 = vmatmul.f32.gmra.mxu0 %v1913
  %v1953 = vpop.f32.mrf.mxu0
  %v1954 = vadd.f32 %v1899, %v1953
  %1955 = vmatmul.f32.gmra.mxu0 %v1916
  %v1956 = vpop.f32.mrf.mxu0
  %v1957 = vadd.f32 %v1899, %v1956
  %1958 = vmatmul.f32.gmra.mxu0 %v1919
  %v1959 = vpop.f32.mrf.mxu0
  %v1960 = vadd.f32 %v1899, %v1959
  %1961 = vmatmul.f32.gmra.mxu0 %v1922
  %v1962 = vpop.f32.mrf.mxu0
  %v1963 = vadd.f32 %v1899, %v1962
  %1964 = vdwg.mxu0
  %v1965 = vadd.f32 %v1573, %v1942
  %v1966 = vadd.f32 %v1574, %v1945
  %v1967 = vadd.f32 %v1575, %v1948
  %v1968 = vadd.f32 %v1576, %v1951
  %v1969 = vadd.f32 %v1577, %v1954
  %v1970 = vadd.f32 %v1578, %v1957
  %v1971 = vadd.f32 %v1579, %v1960
  %v1972 = vadd.f32 %v1580, %v1963
  %v1973 = vmax.f32 %v1965, 0.0
  %v1974 = vmax.f32 %v1966, 0.0
  %v1975 = vmax.f32 %v1967, 0.0
  %v1976 = vmax.f32 %v1968, 0.0
  %v1977 = vmax.f32 %v1969, 0.0
  %v1978 = vmax.f32 %v1970, 0.0
  %v1979 = vmax.f32 %v1971, 0.0
  %v1980 = vmax.f32 %v1972, 0.0
  %v1981 = vand.u32 2147483647, %v1965
  %v1982 = vand.u32 2147483647, %v1966
  %v1983 = vand.u32 2147483647, %v1967
  %v1984 = vand.u32 2147483647, %v1968
  %v1985 = vand.u32 2147483647, %v1969
  %v1986 = vand.u32 2147483647, %v1970
  %v1987 = vand.u32 2147483647, %v1971
  %v1988 = vand.u32 2147483647, %v1972
  %v1989 = vsub.f32 0.0, %v1981
  %v1990 = vsub.f32 0.0, %v1982
  %v1991 = vsub.f32 0.0, %v1983
  %v1992 = vsub.f32 0.0, %v1984
  %v1993 = vsub.f32 0.0, %v1985
  %v1994 = vsub.f32 0.0, %v1986
  %v1995 = vsub.f32 0.0, %v1987
  %v1996 = vsub.f32 0.0, %v1988
  %v1997 = vmul.f32 %v1989, 1.442695
  %v1998 = vpow.pop %v1997
  %v1999 = vmul.f32 %v1990, 1.442695
  %v2000 = vpow.pop %v1999
  %v2001 = vmul.f32 %v1991, 1.442695
  %v2002 = vpow.pop %v2001
  %v2003 = vmul.f32 %v1992, 1.442695
  %v2004 = vpow.pop %v2003
  %v2005 = vmul.f32 %v1993, 1.442695
  %v2006 = vpow.pop %v2005
  %v2007 = vmul.f32 %v1994, 1.442695
  %v2008 = vpow.pop %v2007
  %v2009 = vmul.f32 %v1995, 1.442695
  %v2010 = vpow.pop %v2009
  %v2011 = vmul.f32 %v1996, 1.442695
  %v2012 = vpow.pop %v2011
  %v2013 = vadd.f32 %v1998, 1.0
  %v2014 = vlog2.pop %v2013
  %v2015 = vmul.f32 %v2014, 0.6931472
  %v2016 = vmul.f32 -0.5, %v1998
  %v2017 = vadd.f32 %v2016, 1.0
  %v2018 = vmul.f32 %v2017, %v1998
  %v2019 = vand.u32 2147483647, %v1998
  %vm2020 = vcmp.lt.f32.partialorder %v2019, 0.0004427343
  %v2021 = vsel %vm2020, %v2018, %v2015
  %v2022 = vadd.f32 %v2000, 1.0
  %v2023 = vlog2.pop %v2022
  %v2024 = vmul.f32 %v2023, 0.6931472
  %v2025 = vmul.f32 -0.5, %v2000
  %v2026 = vadd.f32 %v2025, 1.0
  %v2027 = vmul.f32 %v2026, %v2000
  %v2028 = vand.u32 2147483647, %v2000
  %vm2029 = vcmp.lt.f32.partialorder %v2028, 0.0004427343
  %v2030 = vsel %vm2029, %v2027, %v2024
  %v2031 = vadd.f32 %v2002, 1.0
  %v2032 = vlog2.pop %v2031
  %v2033 = vmul.f32 %v2032, 0.6931472
  %v2034 = vmul.f32 -0.5, %v2002
  %v2035 = vadd.f32 %v2034, 1.0
  %v2036 = vmul.f32 %v2035, %v2002
  %v2037 = vand.u32 2147483647, %v2002
  %vm2038 = vcmp.lt.f32.partialorder %v2037, 0.0004427343
  %v2039 = vsel %vm2038, %v2036, %v2033
  %v2040 = vadd.f32 %v2004, 1.0
  %v2041 = vlog2.pop %v2040
  %v2042 = vmul.f32 %v2041, 0.6931472
  %v2043 = vmul.f32 -0.5, %v2004
  %v2044 = vadd.f32 %v2043, 1.0
  %v2045 = vmul.f32 %v2044, %v2004
  %v2046 = vand.u32 2147483647, %v2004
  %vm2047 = vcmp.lt.f32.partialorder %v2046, 0.0004427343
  %v2048 = vsel %vm2047, %v2045, %v2042
  %v2049 = vadd.f32 %v2006, 1.0
  %v2050 = vlog2.pop %v2049
  %v2051 = vmul.f32 %v2050, 0.6931472
  %v2052 = vmul.f32 -0.5, %v2006
  %v2053 = vadd.f32 %v2052, 1.0
  %v2054 = vmul.f32 %v2053, %v2006
  %v2055 = vand.u32 2147483647, %v2006
  %vm2056 = vcmp.lt.f32.partialorder %v2055, 0.0004427343
  %v2057 = vsel %vm2056, %v2054, %v2051
  %v2058 = vadd.f32 %v2008, 1.0
  %v2059 = vlog2.pop %v2058
  %v2060 = vmul.f32 %v2059, 0.6931472
  %v2061 = vmul.f32 -0.5, %v2008
  %v2062 = vadd.f32 %v2061, 1.0
  %v2063 = vmul.f32 %v2062, %v2008
  %v2064 = vand.u32 2147483647, %v2008
  %vm2065 = vcmp.lt.f32.partialorder %v2064, 0.0004427343
  %v2066 = vsel %vm2065, %v2063, %v2060
  %v2067 = vadd.f32 %v2010, 1.0
  %v2068 = vlog2.pop %v2067
  %v2069 = vmul.f32 %v2068, 0.6931472
  %v2070 = vmul.f32 -0.5, %v2010
  %v2071 = vadd.f32 %v2070, 1.0
  %v2072 = vmul.f32 %v2071, %v2010
  %v2073 = vand.u32 2147483647, %v2010
  %vm2074 = vcmp.lt.f32.partialorder %v2073, 0.0004427343
  %v2075 = vsel %vm2074, %v2072, %v2069
  %v2076 = vadd.f32 %v2012, 1.0
  %v2077 = vlog2.pop %v2076
  %v2078 = vmul.f32 %v2077, 0.6931472
  %v2079 = vmul.f32 -0.5, %v2012
  %v2080 = vadd.f32 %v2079, 1.0
  %v2081 = vmul.f32 %v2080, %v2012
  %v2082 = vand.u32 2147483647, %v2012
  %vm2083 = vcmp.lt.f32.partialorder %v2082, 0.0004427343
  %v2084 = vsel %vm2083, %v2081, %v2078
  %v2085 = vadd.f32 %v1973, %v2021
  %v2086 = vadd.f32 %v1974, %v2030
  %v2087 = vadd.f32 %v1975, %v2039
  %v2088 = vadd.f32 %v1976, %v2048
  %v2089 = vadd.f32 %v1977, %v2057
  %v2090 = vadd.f32 %v1978, %v2066
  %v2091 = vadd.f32 %v1979, %v2075
  %v2092 = vadd.f32 %v1980, %v2084
  %v2093 = vld [vmem:[%s4 + $0xf0] sm:$0xff]
  %v2094 = vld [vmem:[%s4 + $0xf8] sm:$0xff]
  %v2095 = vld [vmem:[%s4 + $0x100] sm:$0xff]
  %v2096 = vld [vmem:[%s4 + $0x108] sm:$0xff]
  %v2097 = vld [vmem:[%s4 + $0x110] sm:$0xff]
  %v2098 = vld [vmem:[%s4 + $0x118] sm:$0x1]
  %v2099 = vperm.slane %v2098, 0
  %v2101 = vsel %vm1123, %v2085, 0
  %v2104 = vsel %vm1123, %v2086, 0
  %v2107 = vsel %vm1123, %v2087, 0
  %v2110 = vsel %vm1123, %v2088, 0
  %v2113 = vsel %vm1123, %v2089, 0
  %v2116 = vsel %vm1123, %v2090, 0
  %v2119 = vsel %vm1123, %v2091, 0
  %v2122 = vsel %vm1123, %v2092, 0
  %2124 = vmatpush.msra.mxu0 0.0
  %2125 = vmatpush.msra.mxu0 0.0
  %2126 = vmatpush.msra.mxu0 0.0
  %2127 = vmatpush.msra.mxu0 0.0
  %2128 = vmatpush.msra.mxu0 0.0
  %2129 = vmatpush.msra.mxu0 0.0
  %2130 = vmatpush.msra.mxu0 0.0
  %2131 = vmatpush.msra.mxu0 0.0
  %2132 = vmatpush.msra.mxu0 0.0
  %2133 = vmatpush.msra.mxu0 0.0
  %2134 = vmatpush.msra.mxu0 0.0
  %2135 = vmatpush.msra.mxu0 %v2097
  %2136 = vmatpush.msra.mxu0 %v2096
  %2137 = vmatpush.msra.mxu0 %v2095
  %2138 = vmatpush.msra.mxu0 %v2094
  %2139 = vmatpush.msra.mxu0 %v2093
  %2140 = vmatmul.f32.gmra.mxu0 %v2101
  %v2141 = vpop.f32.mrf.mxu0
  %v2142 = vadd.f32 %v2099, %v2141
  %2143 = vmatmul.f32.gmra.mxu0 %v2104
  %v2144 = vpop.f32.mrf.mxu0
  %v2145 = vadd.f32 %v2099, %v2144
  %2146 = vmatmul.f32.gmra.mxu0 %v2107
  %v2147 = vpop.f32.mrf.mxu0
  %v2148 = vadd.f32 %v2099, %v2147
  %2149 = vmatmul.f32.gmra.mxu0 %v2110
  %v2150 = vpop.f32.mrf.mxu0
  %v2151 = vadd.f32 %v2099, %v2150
  %2152 = vmatmul.f32.gmra.mxu0 %v2113
  %v2153 = vpop.f32.mrf.mxu0
  %v2154 = vadd.f32 %v2099, %v2153
  %2155 = vmatmul.f32.gmra.mxu0 %v2116
  %v2156 = vpop.f32.mrf.mxu0
  %v2157 = vadd.f32 %v2099, %v2156
  %2158 = vmatmul.f32.gmra.mxu0 %v2119
  %v2159 = vpop.f32.mrf.mxu0
  %v2160 = vadd.f32 %v2099, %v2159
  %2161 = vmatmul.f32.gmra.mxu0 %v2122
  %v2162 = vpop.f32.mrf.mxu0
  %v2163 = vadd.f32 %v2099, %v2162
  %2164 = vdwg.mxu0
  %v2165 = vmax.f32 %v2142, 0.0
  %v2166 = vmax.f32 %v2145, 0.0
  %v2167 = vmax.f32 %v2148, 0.0
  %v2168 = vmax.f32 %v2151, 0.0
  %v2169 = vmax.f32 %v2154, 0.0
  %v2170 = vmax.f32 %v2157, 0.0
  %v2171 = vmax.f32 %v2160, 0.0
  %v2172 = vmax.f32 %v2163, 0.0
  %v2173 = vand.u32 2147483647, %v2142
  %v2174 = vand.u32 2147483647, %v2145
  %v2175 = vand.u32 2147483647, %v2148
  %v2176 = vand.u32 2147483647, %v2151
  %v2177 = vand.u32 2147483647, %v2154
  %v2178 = vand.u32 2147483647, %v2157
  %v2179 = vand.u32 2147483647, %v2160
  %v2180 = vand.u32 2147483647, %v2163
  %v2181 = vsub.f32 0.0, %v2173
  %v2182 = vsub.f32 0.0, %v2174
  %v2183 = vsub.f32 0.0, %v2175
  %v2184 = vsub.f32 0.0, %v2176
  %v2185 = vsub.f32 0.0, %v2177
  %v2186 = vsub.f32 0.0, %v2178
  %v2187 = vsub.f32 0.0, %v2179
  %v2188 = vsub.f32 0.0, %v2180
  %v2189 = vmul.f32 %v2181, 1.442695
  %v2190 = vpow.pop %v2189
  %v2191 = vmul.f32 %v2182, 1.442695
  %v2192 = vpow.pop %v2191
  %v2193 = vmul.f32 %v2183, 1.442695
  %v2194 = vpow.pop %v2193
  %v2195 = vmul.f32 %v2184, 1.442695
  %v2196 = vpow.pop %v2195
  %v2197 = vmul.f32 %v2185, 1.442695
  %v2198 = vpow.pop %v2197
  %v2199 = vmul.f32 %v2186, 1.442695
  %v2200 = vpow.pop %v2199
  %v2201 = vmul.f32 %v2187, 1.442695
  %v2202 = vpow.pop %v2201
  %v2203 = vmul.f32 %v2188, 1.442695
  %v2204 = vpow.pop %v2203
  %v2205 = vadd.f32 %v2190, 1.0
  %v2206 = vlog2.pop %v2205
  %v2207 = vmul.f32 %v2206, 0.6931472
  %v2208 = vmul.f32 -0.5, %v2190
  %v2209 = vadd.f32 %v2208, 1.0
  %v2210 = vmul.f32 %v2209, %v2190
  %v2211 = vand.u32 2147483647, %v2190
  %vm2212 = vcmp.lt.f32.partialorder %v2211, 0.0004427343
  %v2213 = vsel %vm2212, %v2210, %v2207
  %v2214 = vadd.f32 %v2192, 1.0
  %v2215 = vlog2.pop %v2214
  %v2216 = vmul.f32 %v2215, 0.6931472
  %v2217 = vmul.f32 -0.5, %v2192
  %v2218 = vadd.f32 %v2217, 1.0
  %v2219 = vmul.f32 %v2218, %v2192
  %v2220 = vand.u32 2147483647, %v2192
  %vm2221 = vcmp.lt.f32.partialorder %v2220, 0.0004427343
  %v2222 = vsel %vm2221, %v2219, %v2216
  %v2223 = vadd.f32 %v2194, 1.0
  %v2224 = vlog2.pop %v2223
  %v2225 = vmul.f32 %v2224, 0.6931472
  %v2226 = vmul.f32 -0.5, %v2194
  %v2227 = vadd.f32 %v2226, 1.0
  %v2228 = vmul.f32 %v2227, %v2194
  %v2229 = vand.u32 2147483647, %v2194
  %vm2230 = vcmp.lt.f32.partialorder %v2229, 0.0004427343
  %v2231 = vsel %vm2230, %v2228, %v2225
  %v2232 = vadd.f32 %v2196, 1.0
  %v2233 = vlog2.pop %v2232
  %v2234 = vmul.f32 %v2233, 0.6931472
  %v2235 = vmul.f32 -0.5, %v2196
  %v2236 = vadd.f32 %v2235, 1.0
  %v2237 = vmul.f32 %v2236, %v2196
  %v2238 = vand.u32 2147483647, %v2196
  %vm2239 = vcmp.lt.f32.partialorder %v2238, 0.0004427343
  %v2240 = vsel %vm2239, %v2237, %v2234
  %v2241 = vadd.f32 %v2198, 1.0
  %v2242 = vlog2.pop %v2241
  %v2243 = vmul.f32 %v2242, 0.6931472
  %v2244 = vmul.f32 -0.5, %v2198
  %v2245 = vadd.f32 %v2244, 1.0
  %v2246 = vmul.f32 %v2245, %v2198
  %v2247 = vand.u32 2147483647, %v2198
  %vm2248 = vcmp.lt.f32.partialorder %v2247, 0.0004427343
  %v2249 = vsel %vm2248, %v2246, %v2243
  %v2250 = vadd.f32 %v2200, 1.0
  %v2251 = vlog2.pop %v2250
  %v2252 = vmul.f32 %v2251, 0.6931472
  %v2253 = vmul.f32 -0.5, %v2200
  %v2254 = vadd.f32 %v2253, 1.0
  %v2255 = vmul.f32 %v2254, %v2200
  %v2256 = vand.u32 2147483647, %v2200
  %vm2257 = vcmp.lt.f32.partialorder %v2256, 0.0004427343
  %v2258 = vsel %vm2257, %v2255, %v2252
  %v2259 = vadd.f32 %v2202, 1.0
  %v2260 = vlog2.pop %v2259
  %v2261 = vmul.f32 %v2260, 0.6931472
  %v2262 = vmul.f32 -0.5, %v2202
  %v2263 = vadd.f32 %v2262, 1.0
  %v2264 = vmul.f32 %v2263, %v2202
  %v2265 = vand.u32 2147483647, %v2202
  %vm2266 = vcmp.lt.f32.partialorder %v2265, 0.0004427343
  %v2267 = vsel %vm2266, %v2264, %v2261
  %v2268 = vadd.f32 %v2204, 1.0
  %v2269 = vlog2.pop %v2268
  %v2270 = vmul.f32 %v2269, 0.6931472
  %v2271 = vmul.f32 -0.5, %v2204
  %v2272 = vadd.f32 %v2271, 1.0
  %v2273 = vmul.f32 %v2272, %v2204
  %v2274 = vand.u32 2147483647, %v2204
  %vm2275 = vcmp.lt.f32.partialorder %v2274, 0.0004427343
  %v2276 = vsel %vm2275, %v2273, %v2270
  %v2277 = vadd.f32 %v2165, %v2213
  %v2278 = vadd.f32 %v2166, %v2222
  %v2279 = vadd.f32 %v2167, %v2231
  %v2280 = vadd.f32 %v2168, %v2240
  %v2281 = vadd.f32 %v2169, %v2249
  %v2282 = vadd.f32 %v2170, %v2258
  %v2283 = vadd.f32 %v2171, %v2267
  %v2284 = vadd.f32 %v2172, %v2276
  %v2285 = vld [vmem:[%s4 + $0x120] sm:$0xff]
  %v2286 = vld [vmem:[%s4 + $0x128] sm:$0xff]
  %v2287 = vld [vmem:[%s4 + $0x130] sm:$0xff]
  %v2288 = vld [vmem:[%s4 + $0x138] sm:$0xff]
  %v2289 = vld [vmem:[%s4 + $0x140] sm:$0xff]
  %v2290 = vld [vmem:[%s4 + $0x148] sm:$0x1]
  %v2291 = vperm.slane %v2290, 0
  %v2293 = vsel %vm1123, %v2277, 0
  %v2296 = vsel %vm1123, %v2278, 0
  %v2299 = vsel %vm1123, %v2279, 0
  %v2302 = vsel %vm1123, %v2280, 0
  %v2305 = vsel %vm1123, %v2281, 0
  %v2308 = vsel %vm1123, %v2282, 0
  %v2311 = vsel %vm1123, %v2283, 0
  %v2314 = vsel %vm1123, %v2284, 0
  %2316 = vmatpush.msra.mxu0 0.0
  %2317 = vmatpush.msra.mxu0 0.0
  %2318 = vmatpush.msra.mxu0 0.0
  %2319 = vmatpush.msra.mxu0 0.0
  %2320 = vmatpush.msra.mxu0 0.0
  %2321 = vmatpush.msra.mxu0 0.0
  %2322 = vmatpush.msra.mxu0 0.0
  %2323 = vmatpush.msra.mxu0 0.0
  %2324 = vmatpush.msra.mxu0 0.0
  %2325 = vmatpush.msra.mxu0 0.0
  %2326 = vmatpush.msra.mxu0 0.0
  %2327 = vmatpush.msra.mxu0 %v2289
  %2328 = vmatpush.msra.mxu0 %v2288
  %2329 = vmatpush.msra.mxu0 %v2287
  %2330 = vmatpush.msra.mxu0 %v2286
  %2331 = vmatpush.msra.mxu0 %v2285
  %2332 = vmatmul.f32.gmra.mxu0 %v2293
  %v2333 = vpop.f32.mrf.mxu0
  %v2334 = vadd.f32 %v2291, %v2333
  %2335 = vmatmul.f32.gmra.mxu0 %v2296
  %v2336 = vpop.f32.mrf.mxu0
  %v2337 = vadd.f32 %v2291, %v2336
  %2338 = vmatmul.f32.gmra.mxu0 %v2299
  %v2339 = vpop.f32.mrf.mxu0
  %v2340 = vadd.f32 %v2291, %v2339
  %2341 = vmatmul.f32.gmra.mxu0 %v2302
  %v2342 = vpop.f32.mrf.mxu0
  %v2343 = vadd.f32 %v2291, %v2342
  %2344 = vmatmul.f32.gmra.mxu0 %v2305
  %v2345 = vpop.f32.mrf.mxu0
  %v2346 = vadd.f32 %v2291, %v2345
  %2347 = vmatmul.f32.gmra.mxu0 %v2308
  %v2348 = vpop.f32.mrf.mxu0
  %v2349 = vadd.f32 %v2291, %v2348
  %2350 = vmatmul.f32.gmra.mxu0 %v2311
  %v2351 = vpop.f32.mrf.mxu0
  %v2352 = vadd.f32 %v2291, %v2351
  %2353 = vmatmul.f32.gmra.mxu0 %v2314
  %v2354 = vpop.f32.mrf.mxu0
  %v2355 = vadd.f32 %v2291, %v2354
  %2356 = vdwg.mxu0
  %v2357 = vadd.f32 %v1965, %v2334
  %v2358 = vadd.f32 %v1966, %v2337
  %v2359 = vadd.f32 %v1967, %v2340
  %v2360 = vadd.f32 %v1968, %v2343
  %v2361 = vadd.f32 %v1969, %v2346
  %v2362 = vadd.f32 %v1970, %v2349
  %v2363 = vadd.f32 %v1971, %v2352
  %v2364 = vadd.f32 %v1972, %v2355
  %v2365 = vmax.f32 %v2357, 0.0
  %v2366 = vmax.f32 %v2358, 0.0
  %v2367 = vmax.f32 %v2359, 0.0
  %v2368 = vmax.f32 %v2360, 0.0
  %v2369 = vmax.f32 %v2361, 0.0
  %v2370 = vmax.f32 %v2362, 0.0
  %v2371 = vmax.f32 %v2363, 0.0
  %v2372 = vmax.f32 %v2364, 0.0
  %v2373 = vand.u32 2147483647, %v2357
  %v2374 = vand.u32 2147483647, %v2358
  %v2375 = vand.u32 2147483647, %v2359
  %v2376 = vand.u32 2147483647, %v2360
  %v2377 = vand.u32 2147483647, %v2361
  %v2378 = vand.u32 2147483647, %v2362
  %v2379 = vand.u32 2147483647, %v2363
  %v2380 = vand.u32 2147483647, %v2364
  %v2381 = vsub.f32 0.0, %v2373
  %v2382 = vsub.f32 0.0, %v2374
  %v2383 = vsub.f32 0.0, %v2375
  %v2384 = vsub.f32 0.0, %v2376
  %v2385 = vsub.f32 0.0, %v2377
  %v2386 = vsub.f32 0.0, %v2378
  %v2387 = vsub.f32 0.0, %v2379
  %v2388 = vsub.f32 0.0, %v2380
  %v2389 = vmul.f32 %v2381, 1.442695
  %v2390 = vpow.pop %v2389
  %v2391 = vmul.f32 %v2382, 1.442695
  %v2392 = vpow.pop %v2391
  %v2393 = vmul.f32 %v2383, 1.442695
  %v2394 = vpow.pop %v2393
  %v2395 = vmul.f32 %v2384, 1.442695
  %v2396 = vpow.pop %v2395
  %v2397 = vmul.f32 %v2385, 1.442695
  %v2398 = vpow.pop %v2397
  %v2399 = vmul.f32 %v2386, 1.442695
  %v2400 = vpow.pop %v2399
  %v2401 = vmul.f32 %v2387, 1.442695
  %v2402 = vpow.pop %v2401
  %v2403 = vmul.f32 %v2388, 1.442695
  %v2404 = vpow.pop %v2403
  %v2405 = vadd.f32 %v2390, 1.0
  %v2406 = vlog2.pop %v2405
  %v2407 = vmul.f32 %v2406, 0.6931472
  %v2408 = vmul.f32 -0.5, %v2390
  %v2409 = vadd.f32 %v2408, 1.0
  %v2410 = vmul.f32 %v2409, %v2390
  %v2411 = vand.u32 2147483647, %v2390
  %vm2412 = vcmp.lt.f32.partialorder %v2411, 0.0004427343
  %v2413 = vsel %vm2412, %v2410, %v2407
  %v2414 = vadd.f32 %v2392, 1.0
  %v2415 = vlog2.pop %v2414
  %v2416 = vmul.f32 %v2415, 0.6931472
  %v2417 = vmul.f32 -0.5, %v2392
  %v2418 = vadd.f32 %v2417, 1.0
  %v2419 = vmul.f32 %v2418, %v2392
  %v2420 = vand.u32 2147483647, %v2392
  %vm2421 = vcmp.lt.f32.partialorder %v2420, 0.0004427343
  %v2422 = vsel %vm2421, %v2419, %v2416
  %v2423 = vadd.f32 %v2394, 1.0
  %v2424 = vlog2.pop %v2423
  %v2425 = vmul.f32 %v2424, 0.6931472
  %v2426 = vmul.f32 -0.5, %v2394
  %v2427 = vadd.f32 %v2426, 1.0
  %v2428 = vmul.f32 %v2427, %v2394
  %v2429 = vand.u32 2147483647, %v2394
  %vm2430 = vcmp.lt.f32.partialorder %v2429, 0.0004427343
  %v2431 = vsel %vm2430, %v2428, %v2425
  %v2432 = vadd.f32 %v2396, 1.0
  %v2433 = vlog2.pop %v2432
  %v2434 = vmul.f32 %v2433, 0.6931472
  %v2435 = vmul.f32 -0.5, %v2396
  %v2436 = vadd.f32 %v2435, 1.0
  %v2437 = vmul.f32 %v2436, %v2396
  %v2438 = vand.u32 2147483647, %v2396
  %vm2439 = vcmp.lt.f32.partialorder %v2438, 0.0004427343
  %v2440 = vsel %vm2439, %v2437, %v2434
  %v2441 = vadd.f32 %v2398, 1.0
  %v2442 = vlog2.pop %v2441
  %v2443 = vmul.f32 %v2442, 0.6931472
  %v2444 = vmul.f32 -0.5, %v2398
  %v2445 = vadd.f32 %v2444, 1.0
  %v2446 = vmul.f32 %v2445, %v2398
  %v2447 = vand.u32 2147483647, %v2398
  %vm2448 = vcmp.lt.f32.partialorder %v2447, 0.0004427343
  %v2449 = vsel %vm2448, %v2446, %v2443
  %v2450 = vadd.f32 %v2400, 1.0
  %v2451 = vlog2.pop %v2450
  %v2452 = vmul.f32 %v2451, 0.6931472
  %v2453 = vmul.f32 -0.5, %v2400
  %v2454 = vadd.f32 %v2453, 1.0
  %v2455 = vmul.f32 %v2454, %v2400
  %v2456 = vand.u32 2147483647, %v2400
  %vm2457 = vcmp.lt.f32.partialorder %v2456, 0.0004427343
  %v2458 = vsel %vm2457, %v2455, %v2452
  %v2459 = vadd.f32 %v2402, 1.0
  %v2460 = vlog2.pop %v2459
  %v2461 = vmul.f32 %v2460, 0.6931472
  %v2462 = vmul.f32 -0.5, %v2402
  %v2463 = vadd.f32 %v2462, 1.0
  %v2464 = vmul.f32 %v2463, %v2402
  %v2465 = vand.u32 2147483647, %v2402
  %vm2466 = vcmp.lt.f32.partialorder %v2465, 0.0004427343
  %v2467 = vsel %vm2466, %v2464, %v2461
  %v2468 = vadd.f32 %v2404, 1.0
  %v2469 = vlog2.pop %v2468
  %v2470 = vmul.f32 %v2469, 0.6931472
  %v2471 = vmul.f32 -0.5, %v2404
  %v2472 = vadd.f32 %v2471, 1.0
  %v2473 = vmul.f32 %v2472, %v2404
  %v2474 = vand.u32 2147483647, %v2404
  %vm2475 = vcmp.lt.f32.partialorder %v2474, 0.0004427343
  %v2476 = vsel %vm2475, %v2473, %v2470
  %v2477 = vadd.f32 %v2365, %v2413
  %v2478 = vadd.f32 %v2366, %v2422
  %v2479 = vadd.f32 %v2367, %v2431
  %v2480 = vadd.f32 %v2368, %v2440
  %v2481 = vadd.f32 %v2369, %v2449
  %v2482 = vadd.f32 %v2370, %v2458
  %v2483 = vadd.f32 %v2371, %v2467
  %v2484 = vadd.f32 %v2372, %v2476
  %v2485 = vld [vmem:[%s4 + $0x150] sm:$0xff]
  %v2486 = vld [vmem:[%s4 + $0x158] sm:$0xff]
  %v2487 = vld [vmem:[%s4 + $0x160] sm:$0xff]
  %v2488 = vld [vmem:[%s4 + $0x168] sm:$0xff]
  %v2489 = vld [vmem:[%s4 + $0x170] sm:$0xff]
  %v2490 = vld [vmem:[%s4 + $0x178] sm:$0x1]
  %v2491 = vperm.slane %v2490, 0
  %v2493 = vsel %vm1123, %v2477, 0
  %v2496 = vsel %vm1123, %v2478, 0
  %v2499 = vsel %vm1123, %v2479, 0
  %v2502 = vsel %vm1123, %v2480, 0
  %v2505 = vsel %vm1123, %v2481, 0
  %v2508 = vsel %vm1123, %v2482, 0
  %v2511 = vsel %vm1123, %v2483, 0
  %v2514 = vsel %vm1123, %v2484, 0
  %2516 = vmatpush.msra.mxu0 0.0
  %2517 = vmatpush.msra.mxu0 0.0
  %2518 = vmatpush.msra.mxu0 0.0
  %2519 = vmatpush.msra.mxu0 0.0
  %2520 = vmatpush.msra.mxu0 0.0
  %2521 = vmatpush.msra.mxu0 0.0
  %2522 = vmatpush.msra.mxu0 0.0
  %2523 = vmatpush.msra.mxu0 0.0
  %2524 = vmatpush.msra.mxu0 0.0
  %2525 = vmatpush.msra.mxu0 0.0
  %2526 = vmatpush.msra.mxu0 0.0
  %2527 = vmatpush.msra.mxu0 %v2489
  %2528 = vmatpush.msra.mxu0 %v2488
  %2529 = vmatpush.msra.mxu0 %v2487
  %2530 = vmatpush.msra.mxu0 %v2486
  %2531 = vmatpush.msra.mxu0 %v2485
  %2532 = vmatmul.f32.gmra.mxu0 %v2493
  %v2533 = vpop.f32.mrf.mxu0
  %v2534 = vadd.f32 %v2491, %v2533
  %2535 = vmatmul.f32.gmra.mxu0 %v2496
  %v2536 = vpop.f32.mrf.mxu0
  %v2537 = vadd.f32 %v2491, %v2536
  %2538 = vmatmul.f32.gmra.mxu0 %v2499
  %v2539 = vpop.f32.mrf.mxu0
  %v2540 = vadd.f32 %v2491, %v2539
  %2541 = vmatmul.f32.gmra.mxu0 %v2502
  %v2542 = vpop.f32.mrf.mxu0
  %v2543 = vadd.f32 %v2491, %v2542
  %2544 = vmatmul.f32.gmra.mxu0 %v2505
  %v2545 = vpop.f32.mrf.mxu0
  %v2546 = vadd.f32 %v2491, %v2545
  %2547 = vmatmul.f32.gmra.mxu0 %v2508
  %v2548 = vpop.f32.mrf.mxu0
  %v2549 = vadd.f32 %v2491, %v2548
  %2550 = vmatmul.f32.gmra.mxu0 %v2511
  %v2551 = vpop.f32.mrf.mxu0
  %v2552 = vadd.f32 %v2491, %v2551
  %2553 = vmatmul.f32.gmra.mxu0 %v2514
  %v2554 = vpop.f32.mrf.mxu0
  %v2555 = vadd.f32 %v2491, %v2554
  %2556 = vdwg.mxu0
  %v2557 = vmax.f32 %v2534, 0.0
  %v2558 = vmax.f32 %v2537, 0.0
  %v2559 = vmax.f32 %v2540, 0.0
  %v2560 = vmax.f32 %v2543, 0.0
  %v2561 = vmax.f32 %v2546, 0.0
  %v2562 = vmax.f32 %v2549, 0.0
  %v2563 = vmax.f32 %v2552, 0.0
  %v2564 = vmax.f32 %v2555, 0.0
  %v2565 = vand.u32 2147483647, %v2534
  %v2566 = vand.u32 2147483647, %v2537
  %v2567 = vand.u32 2147483647, %v2540
  %v2568 = vand.u32 2147483647, %v2543
  %v2569 = vand.u32 2147483647, %v2546
  %v2570 = vand.u32 2147483647, %v2549
  %v2571 = vand.u32 2147483647, %v2552
  %v2572 = vand.u32 2147483647, %v2555
  %v2573 = vsub.f32 0.0, %v2565
  %v2574 = vsub.f32 0.0, %v2566
  %v2575 = vsub.f32 0.0, %v2567
  %v2576 = vsub.f32 0.0, %v2568
  %v2577 = vsub.f32 0.0, %v2569
  %v2578 = vsub.f32 0.0, %v2570
  %v2579 = vsub.f32 0.0, %v2571
  %v2580 = vsub.f32 0.0, %v2572
  %v2581 = vmul.f32 %v2573, 1.442695
  %v2582 = vpow.pop %v2581
  %v2583 = vmul.f32 %v2574, 1.442695
  %v2584 = vpow.pop %v2583
  %v2585 = vmul.f32 %v2575, 1.442695
  %v2586 = vpow.pop %v2585
  %v2587 = vmul.f32 %v2576, 1.442695
  %v2588 = vpow.pop %v2587
  %v2589 = vmul.f32 %v2577, 1.442695
  %v2590 = vpow.pop %v2589
  %v2591 = vmul.f32 %v2578, 1.442695
  %v2592 = vpow.pop %v2591
  %v2593 = vmul.f32 %v2579, 1.442695
  %v2594 = vpow.pop %v2593
  %v2595 = vmul.f32 %v2580, 1.442695
  %v2596 = vpow.pop %v2595
  %v2597 = vadd.f32 %v2582, 1.0
  %v2598 = vlog2.pop %v2597
  %v2599 = vmul.f32 %v2598, 0.6931472
  %v2600 = vmul.f32 -0.5, %v2582
  %v2601 = vadd.f32 %v2600, 1.0
  %v2602 = vmul.f32 %v2601, %v2582
  %v2603 = vand.u32 2147483647, %v2582
  %vm2604 = vcmp.lt.f32.partialorder %v2603, 0.0004427343
  %v2605 = vsel %vm2604, %v2602, %v2599
  %v2606 = vadd.f32 %v2584, 1.0
  %v2607 = vlog2.pop %v2606
  %v2608 = vmul.f32 %v2607, 0.6931472
  %v2609 = vmul.f32 -0.5, %v2584
  %v2610 = vadd.f32 %v2609, 1.0
  %v2611 = vmul.f32 %v2610, %v2584
  %v2612 = vand.u32 2147483647, %v2584
  %vm2613 = vcmp.lt.f32.partialorder %v2612, 0.0004427343
  %v2614 = vsel %vm2613, %v2611, %v2608
  %v2615 = vadd.f32 %v2586, 1.0
  %v2616 = vlog2.pop %v2615
  %v2617 = vmul.f32 %v2616, 0.6931472
  %v2618 = vmul.f32 -0.5, %v2586
  %v2619 = vadd.f32 %v2618, 1.0
  %v2620 = vmul.f32 %v2619, %v2586
  %v2621 = vand.u32 2147483647, %v2586
  %vm2622 = vcmp.lt.f32.partialorder %v2621, 0.0004427343
  %v2623 = vsel %vm2622, %v2620, %v2617
  %v2624 = vadd.f32 %v2588, 1.0
  %v2625 = vlog2.pop %v2624
  %v2626 = vmul.f32 %v2625, 0.6931472
  %v2627 = vmul.f32 -0.5, %v2588
  %v2628 = vadd.f32 %v2627, 1.0
  %v2629 = vmul.f32 %v2628, %v2588
  %v2630 = vand.u32 2147483647, %v2588
  %vm2631 = vcmp.lt.f32.partialorder %v2630, 0.0004427343
  %v2632 = vsel %vm2631, %v2629, %v2626
  %v2633 = vadd.f32 %v2590, 1.0
  %v2634 = vlog2.pop %v2633
  %v2635 = vmul.f32 %v2634, 0.6931472
  %v2636 = vmul.f32 -0.5, %v2590
  %v2637 = vadd.f32 %v2636, 1.0
  %v2638 = vmul.f32 %v2637, %v2590
  %v2639 = vand.u32 2147483647, %v2590
  %vm2640 = vcmp.lt.f32.partialorder %v2639, 0.0004427343
  %v2641 = vsel %vm2640, %v2638, %v2635
  %v2642 = vadd.f32 %v2592, 1.0
  %v2643 = vlog2.pop %v2642
  %v2644 = vmul.f32 %v2643, 0.6931472
  %v2645 = vmul.f32 -0.5, %v2592
  %v2646 = vadd.f32 %v2645, 1.0
  %v2647 = vmul.f32 %v2646, %v2592
  %v2648 = vand.u32 2147483647, %v2592
  %vm2649 = vcmp.lt.f32.partialorder %v2648, 0.0004427343
  %v2650 = vsel %vm2649, %v2647, %v2644
  %v2651 = vadd.f32 %v2594, 1.0
  %v2652 = vlog2.pop %v2651
  %v2653 = vmul.f32 %v2652, 0.6931472
  %v2654 = vmul.f32 -0.5, %v2594
  %v2655 = vadd.f32 %v2654, 1.0
  %v2656 = vmul.f32 %v2655, %v2594
  %v2657 = vand.u32 2147483647, %v2594
  %vm2658 = vcmp.lt.f32.partialorder %v2657, 0.0004427343
  %v2659 = vsel %vm2658, %v2656, %v2653
  %v2660 = vadd.f32 %v2596, 1.0
  %v2661 = vlog2.pop %v2660
  %v2662 = vmul.f32 %v2661, 0.6931472
  %v2663 = vmul.f32 -0.5, %v2596
  %v2664 = vadd.f32 %v2663, 1.0
  %v2665 = vmul.f32 %v2664, %v2596
  %v2666 = vand.u32 2147483647, %v2596
  %vm2667 = vcmp.lt.f32.partialorder %v2666, 0.0004427343
  %v2668 = vsel %vm2667, %v2665, %v2662
  %v2669 = vadd.f32 %v2557, %v2605
  %v2670 = vadd.f32 %v2558, %v2614
  %v2671 = vadd.f32 %v2559, %v2623
  %v2672 = vadd.f32 %v2560, %v2632
  %v2673 = vadd.f32 %v2561, %v2641
  %v2674 = vadd.f32 %v2562, %v2650
  %v2675 = vadd.f32 %v2563, %v2659
  %v2676 = vadd.f32 %v2564, %v2668
  %v2677 = vld [vmem:[%s4 + $0x180] sm:$0xff]
  %v2678 = vld [vmem:[%s4 + $0x188] sm:$0xff]
  %v2679 = vld [vmem:[%s4 + $0x190] sm:$0xff]
  %v2680 = vld [vmem:[%s4 + $0x198] sm:$0xff]
  %v2681 = vld [vmem:[%s4 + $0x1a0] sm:$0xff]
  %v2682 = vld [vmem:[%s4 + $0x1a8] sm:$0x1]
  %v2683 = vperm.slane %v2682, 0
  %v2685 = vsel %vm1123, %v2669, 0
  %v2688 = vsel %vm1123, %v2670, 0
  %v2691 = vsel %vm1123, %v2671, 0
  %v2694 = vsel %vm1123, %v2672, 0
  %v2697 = vsel %vm1123, %v2673, 0
  %v2700 = vsel %vm1123, %v2674, 0
  %v2703 = vsel %vm1123, %v2675, 0
  %v2706 = vsel %vm1123, %v2676, 0
  %2708 = vmatpush.msra.mxu0 0.0
  %2709 = vmatpush.msra.mxu0 0.0
  %2710 = vmatpush.msra.mxu0 0.0
  %2711 = vmatpush.msra.mxu0 0.0
  %2712 = vmatpush.msra.mxu0 0.0
  %2713 = vmatpush.msra.mxu0 0.0
  %2714 = vmatpush.msra.mxu0 0.0
  %2715 = vmatpush.msra.mxu0 0.0
  %2716 = vmatpush.msra.mxu0 0.0
  %2717 = vmatpush.msra.mxu0 0.0
  %2718 = vmatpush.msra.mxu0 0.0
  %2719 = vmatpush.msra.mxu0 %v2681
  %2720 = vmatpush.msra.mxu0 %v2680
  %2721 = vmatpush.msra.mxu0 %v2679
  %2722 = vmatpush.msra.mxu0 %v2678
  %2723 = vmatpush.msra.mxu0 %v2677
  %2724 = vmatmul.f32.gmra.mxu0 %v2685
  %v2725 = vpop.f32.mrf.mxu0
  %v2726 = vadd.f32 %v2683, %v2725
  %2727 = vmatmul.f32.gmra.mxu0 %v2688
  %v2728 = vpop.f32.mrf.mxu0
  %v2729 = vadd.f32 %v2683, %v2728
  %2730 = vmatmul.f32.gmra.mxu0 %v2691
  %v2731 = vpop.f32.mrf.mxu0
  %v2732 = vadd.f32 %v2683, %v2731
  %2733 = vmatmul.f32.gmra.mxu0 %v2694
  %v2734 = vpop.f32.mrf.mxu0
  %v2735 = vadd.f32 %v2683, %v2734
  %2736 = vmatmul.f32.gmra.mxu0 %v2697
  %v2737 = vpop.f32.mrf.mxu0
  %v2738 = vadd.f32 %v2683, %v2737
  %2739 = vmatmul.f32.gmra.mxu0 %v2700
  %v2740 = vpop.f32.mrf.mxu0
  %v2741 = vadd.f32 %v2683, %v2740
  %2742 = vmatmul.f32.gmra.mxu0 %v2703
  %v2743 = vpop.f32.mrf.mxu0
  %v2744 = vadd.f32 %v2683, %v2743
  %2745 = vmatmul.f32.gmra.mxu0 %v2706
  %v2746 = vpop.f32.mrf.mxu0
  %v2747 = vadd.f32 %v2683, %v2746
  %2748 = vdwg.mxu0
  %v2749 = vadd.f32 %v2357, %v2726
  %v2750 = vadd.f32 %v2358, %v2729
  %v2751 = vadd.f32 %v2359, %v2732
  %v2752 = vadd.f32 %v2360, %v2735
  %v2753 = vadd.f32 %v2361, %v2738
  %v2754 = vadd.f32 %v2362, %v2741
  %v2755 = vadd.f32 %v2363, %v2744
  %v2756 = vadd.f32 %v2364, %v2747
  %v2757 = vmax.f32 %v2749, 0.0
  %v2758 = vmax.f32 %v2750, 0.0
  %v2759 = vmax.f32 %v2751, 0.0
  %v2760 = vmax.f32 %v2752, 0.0
  %v2761 = vmax.f32 %v2753, 0.0
  %v2762 = vmax.f32 %v2754, 0.0
  %v2763 = vmax.f32 %v2755, 0.0
  %v2764 = vmax.f32 %v2756, 0.0
  %v2765 = vand.u32 2147483647, %v2749
  %v2766 = vand.u32 2147483647, %v2750
  %v2767 = vand.u32 2147483647, %v2751
  %v2768 = vand.u32 2147483647, %v2752
  %v2769 = vand.u32 2147483647, %v2753
  %v2770 = vand.u32 2147483647, %v2754
  %v2771 = vand.u32 2147483647, %v2755
  %v2772 = vand.u32 2147483647, %v2756
  %v2773 = vsub.f32 0.0, %v2765
  %v2774 = vsub.f32 0.0, %v2766
  %v2775 = vsub.f32 0.0, %v2767
  %v2776 = vsub.f32 0.0, %v2768
  %v2777 = vsub.f32 0.0, %v2769
  %v2778 = vsub.f32 0.0, %v2770
  %v2779 = vsub.f32 0.0, %v2771
  %v2780 = vsub.f32 0.0, %v2772
  %v2781 = vmul.f32 %v2773, 1.442695
  %v2782 = vpow.pop %v2781
  %v2783 = vmul.f32 %v2774, 1.442695
  %v2784 = vpow.pop %v2783
  %v2785 = vmul.f32 %v2775, 1.442695
  %v2786 = vpow.pop %v2785
  %v2787 = vmul.f32 %v2776, 1.442695
  %v2788 = vpow.pop %v2787
  %v2789 = vmul.f32 %v2777, 1.442695
  %v2790 = vpow.pop %v2789
  %v2791 = vmul.f32 %v2778, 1.442695
  %v2792 = vpow.pop %v2791
  %v2793 = vmul.f32 %v2779, 1.442695
  %v2794 = vpow.pop %v2793
  %v2795 = vmul.f32 %v2780, 1.442695
  %v2796 = vpow.pop %v2795
  %v2797 = vadd.f32 %v2782, 1.0
  %v2798 = vlog2.pop %v2797
  %v2799 = vmul.f32 %v2798, 0.6931472
  %v2800 = vmul.f32 -0.5, %v2782
  %v2801 = vadd.f32 %v2800, 1.0
  %v2802 = vmul.f32 %v2801, %v2782
  %v2803 = vand.u32 2147483647, %v2782
  %vm2804 = vcmp.lt.f32.partialorder %v2803, 0.0004427343
  %v2805 = vsel %vm2804, %v2802, %v2799
  %v2806 = vadd.f32 %v2784, 1.0
  %v2807 = vlog2.pop %v2806
  %v2808 = vmul.f32 %v2807, 0.6931472
  %v2809 = vmul.f32 -0.5, %v2784
  %v2810 = vadd.f32 %v2809, 1.0
  %v2811 = vmul.f32 %v2810, %v2784
  %v2812 = vand.u32 2147483647, %v2784
  %vm2813 = vcmp.lt.f32.partialorder %v2812, 0.0004427343
  %v2814 = vsel %vm2813, %v2811, %v2808
  %v2815 = vadd.f32 %v2786, 1.0
  %v2816 = vlog2.pop %v2815
  %v2817 = vmul.f32 %v2816, 0.6931472
  %v2818 = vmul.f32 -0.5, %v2786
  %v2819 = vadd.f32 %v2818, 1.0
  %v2820 = vmul.f32 %v2819, %v2786
  %v2821 = vand.u32 2147483647, %v2786
  %vm2822 = vcmp.lt.f32.partialorder %v2821, 0.0004427343
  %v2823 = vsel %vm2822, %v2820, %v2817
  %v2824 = vadd.f32 %v2788, 1.0
  %v2825 = vlog2.pop %v2824
  %v2826 = vmul.f32 %v2825, 0.6931472
  %v2827 = vmul.f32 -0.5, %v2788
  %v2828 = vadd.f32 %v2827, 1.0
  %v2829 = vmul.f32 %v2828, %v2788
  %v2830 = vand.u32 2147483647, %v2788
  %vm2831 = vcmp.lt.f32.partialorder %v2830, 0.0004427343
  %v2832 = vsel %vm2831, %v2829, %v2826
  %v2833 = vadd.f32 %v2790, 1.0
  %v2834 = vlog2.pop %v2833
  %v2835 = vmul.f32 %v2834, 0.6931472
  %v2836 = vmul.f32 -0.5, %v2790
  %v2837 = vadd.f32 %v2836, 1.0
  %v2838 = vmul.f32 %v2837, %v2790
  %v2839 = vand.u32 2147483647, %v2790
  %vm2840 = vcmp.lt.f32.partialorder %v2839, 0.0004427343
  %v2841 = vsel %vm2840, %v2838, %v2835
  %v2842 = vadd.f32 %v2792, 1.0
  %v2843 = vlog2.pop %v2842
  %v2844 = vmul.f32 %v2843, 0.6931472
  %v2845 = vmul.f32 -0.5, %v2792
  %v2846 = vadd.f32 %v2845, 1.0
  %v2847 = vmul.f32 %v2846, %v2792
  %v2848 = vand.u32 2147483647, %v2792
  %vm2849 = vcmp.lt.f32.partialorder %v2848, 0.0004427343
  %v2850 = vsel %vm2849, %v2847, %v2844
  %v2851 = vadd.f32 %v2794, 1.0
  %v2852 = vlog2.pop %v2851
  %v2853 = vmul.f32 %v2852, 0.6931472
  %v2854 = vmul.f32 -0.5, %v2794
  %v2855 = vadd.f32 %v2854, 1.0
  %v2856 = vmul.f32 %v2855, %v2794
  %v2857 = vand.u32 2147483647, %v2794
  %vm2858 = vcmp.lt.f32.partialorder %v2857, 0.0004427343
  %v2859 = vsel %vm2858, %v2856, %v2853
  %v2860 = vadd.f32 %v2796, 1.0
  %v2861 = vlog2.pop %v2860
  %v2862 = vmul.f32 %v2861, 0.6931472
  %v2863 = vmul.f32 -0.5, %v2796
  %v2864 = vadd.f32 %v2863, 1.0
  %v2865 = vmul.f32 %v2864, %v2796
  %v2866 = vand.u32 2147483647, %v2796
  %vm2867 = vcmp.lt.f32.partialorder %v2866, 0.0004427343
  %v2868 = vsel %vm2867, %v2865, %v2862
  %v2869 = vadd.f32 %v2757, %v2805
  %v2870 = vadd.f32 %v2758, %v2814
  %v2871 = vadd.f32 %v2759, %v2823
  %v2872 = vadd.f32 %v2760, %v2832
  %v2873 = vadd.f32 %v2761, %v2841
  %v2874 = vadd.f32 %v2762, %v2850
  %v2875 = vadd.f32 %v2763, %v2859
  %v2876 = vadd.f32 %v2764, %v2868
  %v2877 = vld [vmem:[%s4 + $0x1b0] sm:$0xff]
  %v2878 = vld [vmem:[%s4 + $0x1b8] sm:$0xff]
  %v2879 = vld [vmem:[%s4 + $0x1c0] sm:$0xff]
  %v2880 = vld [vmem:[%s4 + $0x1c8] sm:$0xff]
  %v2881 = vld [vmem:[%s4 + $0x1d0] sm:$0xff]
  %v2882 = vld [vmem:[%s4 + $0x1d8] sm:$0x1]
  %v2883 = vperm.slane %v2882, 0
  %v2885 = vsel %vm1123, %v2869, 0
  %v2888 = vsel %vm1123, %v2870, 0
  %v2891 = vsel %vm1123, %v2871, 0
  %v2894 = vsel %vm1123, %v2872, 0
  %v2897 = vsel %vm1123, %v2873, 0
  %v2900 = vsel %vm1123, %v2874, 0
  %v2903 = vsel %vm1123, %v2875, 0
  %v2906 = vsel %vm1123, %v2876, 0
  %2908 = vmatpush.msra.mxu0 0.0
  %2909 = vmatpush.msra.mxu0 0.0
  %2910 = vmatpush.msra.mxu0 0.0
  %2911 = vmatpush.msra.mxu0 0.0
  %2912 = vmatpush.msra.mxu0 0.0
  %2913 = vmatpush.msra.mxu0 0.0
  %2914 = vmatpush.msra.mxu0 0.0
  %2915 = vmatpush.msra.mxu0 0.0
  %2916 = vmatpush.msra.mxu0 0.0
  %2917 = vmatpush.msra.mxu0 0.0
  %2918 = vmatpush.msra.mxu0 0.0
  %2919 = vmatpush.msra.mxu0 %v2881
  %2920 = vmatpush.msra.mxu0 %v2880
  %2921 = vmatpush.msra.mxu0 %v2879
  %2922 = vmatpush.msra.mxu0 %v2878
  %2923 = vmatpush.msra.mxu0 %v2877
  %2924 = vmatmul.f32.gmra.mxu0 %v2885
  %v2925 = vpop.f32.mrf.mxu0
  %v2926 = vadd.f32 %v2883, %v2925
  %2927 = vmatmul.f32.gmra.mxu0 %v2888
  %v2928 = vpop.f32.mrf.mxu0
  %v2929 = vadd.f32 %v2883, %v2928
  %2930 = vmatmul.f32.gmra.mxu0 %v2891
  %v2931 = vpop.f32.mrf.mxu0
  %v2932 = vadd.f32 %v2883, %v2931
  %2933 = vmatmul.f32.gmra.mxu0 %v2894
  %v2934 = vpop.f32.mrf.mxu0
  %v2935 = vadd.f32 %v2883, %v2934
  %2936 = vmatmul.f32.gmra.mxu0 %v2897
  %v2937 = vpop.f32.mrf.mxu0
  %v2938 = vadd.f32 %v2883, %v2937
  %2939 = vmatmul.f32.gmra.mxu0 %v2900
  %v2940 = vpop.f32.mrf.mxu0
  %v2941 = vadd.f32 %v2883, %v2940
  %2942 = vmatmul.f32.gmra.mxu0 %v2903
  %v2943 = vpop.f32.mrf.mxu0
  %v2944 = vadd.f32 %v2883, %v2943
  %2945 = vmatmul.f32.gmra.mxu0 %v2906
  %v2946 = vpop.f32.mrf.mxu0
  %v2947 = vadd.f32 %v2883, %v2946
  %2948 = vdwg.mxu0
  %v2949 = vmax.f32 %v2926, 0.0
  %v2950 = vmax.f32 %v2929, 0.0
  %v2951 = vmax.f32 %v2932, 0.0
  %v2952 = vmax.f32 %v2935, 0.0
  %v2953 = vmax.f32 %v2938, 0.0
  %v2954 = vmax.f32 %v2941, 0.0
  %v2955 = vmax.f32 %v2944, 0.0
  %v2956 = vmax.f32 %v2947, 0.0
  %v2957 = vand.u32 2147483647, %v2926
  %v2958 = vand.u32 2147483647, %v2929
  %v2959 = vand.u32 2147483647, %v2932
  %v2960 = vand.u32 2147483647, %v2935
  %v2961 = vand.u32 2147483647, %v2938
  %v2962 = vand.u32 2147483647, %v2941
  %v2963 = vand.u32 2147483647, %v2944
  %v2964 = vand.u32 2147483647, %v2947
  %v2965 = vsub.f32 0.0, %v2957
  %v2966 = vsub.f32 0.0, %v2958
  %v2967 = vsub.f32 0.0, %v2959
  %v2968 = vsub.f32 0.0, %v2960
  %v2969 = vsub.f32 0.0, %v2961
  %v2970 = vsub.f32 0.0, %v2962
  %v2971 = vsub.f32 0.0, %v2963
  %v2972 = vsub.f32 0.0, %v2964
  %v2973 = vmul.f32 %v2965, 1.442695
  %v2974 = vpow.pop %v2973
  %v2975 = vmul.f32 %v2966, 1.442695
  %v2976 = vpow.pop %v2975
  %v2977 = vmul.f32 %v2967, 1.442695
  %v2978 = vpow.pop %v2977
  %v2979 = vmul.f32 %v2968, 1.442695
  %v2980 = vpow.pop %v2979
  %v2981 = vmul.f32 %v2969, 1.442695
  %v2982 = vpow.pop %v2981
  %v2983 = vmul.f32 %v2970, 1.442695
  %v2984 = vpow.pop %v2983
  %v2985 = vmul.f32 %v2971, 1.442695
  %v2986 = vpow.pop %v2985
  %v2987 = vmul.f32 %v2972, 1.442695
  %v2988 = vpow.pop %v2987
  %v2989 = vadd.f32 %v2974, 1.0
  %v2990 = vlog2.pop %v2989
  %v2991 = vmul.f32 %v2990, 0.6931472
  %v2992 = vmul.f32 -0.5, %v2974
  %v2993 = vadd.f32 %v2992, 1.0
  %v2994 = vmul.f32 %v2993, %v2974
  %v2995 = vand.u32 2147483647, %v2974
  %vm2996 = vcmp.lt.f32.partialorder %v2995, 0.0004427343
  %v2997 = vsel %vm2996, %v2994, %v2991
  %v2998 = vadd.f32 %v2976, 1.0
  %v2999 = vlog2.pop %v2998
  %v3000 = vmul.f32 %v2999, 0.6931472
  %v3001 = vmul.f32 -0.5, %v2976
  %v3002 = vadd.f32 %v3001, 1.0
  %v3003 = vmul.f32 %v3002, %v2976
  %v3004 = vand.u32 2147483647, %v2976
  %vm3005 = vcmp.lt.f32.partialorder %v3004, 0.0004427343
  %v3006 = vsel %vm3005, %v3003, %v3000
  %v3007 = vadd.f32 %v2978, 1.0
  %v3008 = vlog2.pop %v3007
  %v3009 = vmul.f32 %v3008, 0.6931472
  %v3010 = vmul.f32 -0.5, %v2978
  %v3011 = vadd.f32 %v3010, 1.0
  %v3012 = vmul.f32 %v3011, %v2978
  %v3013 = vand.u32 2147483647, %v2978
  %vm3014 = vcmp.lt.f32.partialorder %v3013, 0.0004427343
  %v3015 = vsel %vm3014, %v3012, %v3009
  %v3016 = vadd.f32 %v2980, 1.0
  %v3017 = vlog2.pop %v3016
  %v3018 = vmul.f32 %v3017, 0.6931472
  %v3019 = vmul.f32 -0.5, %v2980
  %v3020 = vadd.f32 %v3019, 1.0
  %v3021 = vmul.f32 %v3020, %v2980
  %v3022 = vand.u32 2147483647, %v2980
  %vm3023 = vcmp.lt.f32.partialorder %v3022, 0.0004427343
  %v3024 = vsel %vm3023, %v3021, %v3018
  %v3025 = vadd.f32 %v2982, 1.0
  %v3026 = vlog2.pop %v3025
  %v3027 = vmul.f32 %v3026, 0.6931472
  %v3028 = vmul.f32 -0.5, %v2982
  %v3029 = vadd.f32 %v3028, 1.0
  %v3030 = vmul.f32 %v3029, %v2982
  %v3031 = vand.u32 2147483647, %v2982
  %vm3032 = vcmp.lt.f32.partialorder %v3031, 0.0004427343
  %v3033 = vsel %vm3032, %v3030, %v3027
  %v3034 = vadd.f32 %v2984, 1.0
  %v3035 = vlog2.pop %v3034
  %v3036 = vmul.f32 %v3035, 0.6931472
  %v3037 = vmul.f32 -0.5, %v2984
  %v3038 = vadd.f32 %v3037, 1.0
  %v3039 = vmul.f32 %v3038, %v2984
  %v3040 = vand.u32 2147483647, %v2984
  %vm3041 = vcmp.lt.f32.partialorder %v3040, 0.0004427343
  %v3042 = vsel %vm3041, %v3039, %v3036
  %v3043 = vadd.f32 %v2986, 1.0
  %v3044 = vlog2.pop %v3043
  %v3045 = vmul.f32 %v3044, 0.6931472
  %v3046 = vmul.f32 -0.5, %v2986
  %v3047 = vadd.f32 %v3046, 1.0
  %v3048 = vmul.f32 %v3047, %v2986
  %v3049 = vand.u32 2147483647, %v2986
  %vm3050 = vcmp.lt.f32.partialorder %v3049, 0.0004427343
  %v3051 = vsel %vm3050, %v3048, %v3045
  %v3052 = vadd.f32 %v2988, 1.0
  %v3053 = vlog2.pop %v3052
  %v3054 = vmul.f32 %v3053, 0.6931472
  %v3055 = vmul.f32 -0.5, %v2988
  %v3056 = vadd.f32 %v3055, 1.0
  %v3057 = vmul.f32 %v3056, %v2988
  %v3058 = vand.u32 2147483647, %v2988
  %vm3059 = vcmp.lt.f32.partialorder %v3058, 0.0004427343
  %v3060 = vsel %vm3059, %v3057, %v3054
  %v3061 = vadd.f32 %v2949, %v2997
  %v3062 = vadd.f32 %v2950, %v3006
  %v3063 = vadd.f32 %v2951, %v3015
  %v3064 = vadd.f32 %v2952, %v3024
  %v3065 = vadd.f32 %v2953, %v3033
  %v3066 = vadd.f32 %v2954, %v3042
  %v3067 = vadd.f32 %v2955, %v3051
  %v3068 = vadd.f32 %v2956, %v3060
  %v3069 = vld [vmem:[%s4 + $0x1e0] sm:$0xff]
  %v3070 = vld [vmem:[%s4 + $0x1e8] sm:$0xff]
  %v3071 = vld [vmem:[%s4 + $0x1f0] sm:$0xff]
  %v3072 = vld [vmem:[%s4 + $0x1f8] sm:$0xff]
  %v3073 = vld [vmem:[%s4 + $0x200] sm:$0xff]
  %v3074 = vld [vmem:[%s4 + $0x208] sm:$0x1]
  %v3075 = vperm.slane %v3074, 0
  %v3077 = vsel %vm1123, %v3061, 0
  %v3080 = vsel %vm1123, %v3062, 0
  %v3083 = vsel %vm1123, %v3063, 0
  %v3086 = vsel %vm1123, %v3064, 0
  %v3089 = vsel %vm1123, %v3065, 0
  %v3092 = vsel %vm1123, %v3066, 0
  %v3095 = vsel %vm1123, %v3067, 0
  %v3098 = vsel %vm1123, %v3068, 0
  %3100 = vmatpush.msra.mxu0 0.0
  %3101 = vmatpush.msra.mxu0 0.0
  %3102 = vmatpush.msra.mxu0 0.0
  %3103 = vmatpush.msra.mxu0 0.0
  %3104 = vmatpush.msra.mxu0 0.0
  %3105 = vmatpush.msra.mxu0 0.0
  %3106 = vmatpush.msra.mxu0 0.0
  %3107 = vmatpush.msra.mxu0 0.0
  %3108 = vmatpush.msra.mxu0 0.0
  %3109 = vmatpush.msra.mxu0 0.0
  %3110 = vmatpush.msra.mxu0 0.0
  %3111 = vmatpush.msra.mxu0 %v3073
  %3112 = vmatpush.msra.mxu0 %v3072
  %3113 = vmatpush.msra.mxu0 %v3071
  %3114 = vmatpush.msra.mxu0 %v3070
  %3115 = vmatpush.msra.mxu0 %v3069
  %3116 = vmatmul.f32.gmra.mxu0 %v3077
  %v3117 = vpop.f32.mrf.mxu0
  %v3118 = vadd.f32 %v3075, %v3117
  %3119 = vmatmul.f32.gmra.mxu0 %v3080
  %v3120 = vpop.f32.mrf.mxu0
  %v3121 = vadd.f32 %v3075, %v3120
  %3122 = vmatmul.f32.gmra.mxu0 %v3083
  %v3123 = vpop.f32.mrf.mxu0
  %v3124 = vadd.f32 %v3075, %v3123
  %3125 = vmatmul.f32.gmra.mxu0 %v3086
  %v3126 = vpop.f32.mrf.mxu0
  %v3127 = vadd.f32 %v3075, %v3126
  %3128 = vmatmul.f32.gmra.mxu0 %v3089
  %v3129 = vpop.f32.mrf.mxu0
  %v3130 = vadd.f32 %v3075, %v3129
  %3131 = vmatmul.f32.gmra.mxu0 %v3092
  %v3132 = vpop.f32.mrf.mxu0
  %v3133 = vadd.f32 %v3075, %v3132
  %3134 = vmatmul.f32.gmra.mxu0 %v3095
  %v3135 = vpop.f32.mrf.mxu0
  %v3136 = vadd.f32 %v3075, %v3135
  %3137 = vmatmul.f32.gmra.mxu0 %v3098
  %v3138 = vpop.f32.mrf.mxu0
  %v3139 = vadd.f32 %v3075, %v3138
  %3140 = vdwg.mxu0
  %v3141 = vadd.f32 %v2749, %v3118
  %v3142 = vadd.f32 %v2750, %v3121
  %v3143 = vadd.f32 %v2751, %v3124
  %v3144 = vadd.f32 %v2752, %v3127
  %v3145 = vadd.f32 %v2753, %v3130
  %v3146 = vadd.f32 %v2754, %v3133
  %v3147 = vadd.f32 %v2755, %v3136
  %v3148 = vadd.f32 %v2756, %v3139
  %v3149 = vmax.f32 %v3141, 0.0
  %v3150 = vmax.f32 %v3142, 0.0
  %v3151 = vmax.f32 %v3143, 0.0
  %v3152 = vmax.f32 %v3144, 0.0
  %v3153 = vmax.f32 %v3145, 0.0
  %v3154 = vmax.f32 %v3146, 0.0
  %v3155 = vmax.f32 %v3147, 0.0
  %v3156 = vmax.f32 %v3148, 0.0
  %v3157 = vand.u32 2147483647, %v3141
  %v3158 = vand.u32 2147483647, %v3142
  %v3159 = vand.u32 2147483647, %v3143
  %v3160 = vand.u32 2147483647, %v3144
  %v3161 = vand.u32 2147483647, %v3145
  %v3162 = vand.u32 2147483647, %v3146
  %v3163 = vand.u32 2147483647, %v3147
  %v3164 = vand.u32 2147483647, %v3148
  %v3165 = vsub.f32 0.0, %v3157
  %v3166 = vsub.f32 0.0, %v3158
  %v3167 = vsub.f32 0.0, %v3159
  %v3168 = vsub.f32 0.0, %v3160
  %v3169 = vsub.f32 0.0, %v3161
  %v3170 = vsub.f32 0.0, %v3162
  %v3171 = vsub.f32 0.0, %v3163
  %v3172 = vsub.f32 0.0, %v3164
  %v3173 = vmul.f32 %v3165, 1.442695
  %v3174 = vpow.pop %v3173
  %v3175 = vmul.f32 %v3166, 1.442695
  %v3176 = vpow.pop %v3175
  %v3177 = vmul.f32 %v3167, 1.442695
  %v3178 = vpow.pop %v3177
  %v3179 = vmul.f32 %v3168, 1.442695
  %v3180 = vpow.pop %v3179
  %v3181 = vmul.f32 %v3169, 1.442695
  %v3182 = vpow.pop %v3181
  %v3183 = vmul.f32 %v3170, 1.442695
  %v3184 = vpow.pop %v3183
  %v3185 = vmul.f32 %v3171, 1.442695
  %v3186 = vpow.pop %v3185
  %v3187 = vmul.f32 %v3172, 1.442695
  %v3188 = vpow.pop %v3187
  %v3189 = vadd.f32 %v3174, 1.0
  %v3190 = vlog2.pop %v3189
  %v3191 = vmul.f32 %v3190, 0.6931472
  %v3192 = vmul.f32 -0.5, %v3174
  %v3193 = vadd.f32 %v3192, 1.0
  %v3194 = vmul.f32 %v3193, %v3174
  %v3195 = vand.u32 2147483647, %v3174
  %vm3196 = vcmp.lt.f32.partialorder %v3195, 0.0004427343
  %v3197 = vsel %vm3196, %v3194, %v3191
  %v3198 = vadd.f32 %v3176, 1.0
  %v3199 = vlog2.pop %v3198
  %v3200 = vmul.f32 %v3199, 0.6931472
  %v3201 = vmul.f32 -0.5, %v3176
  %v3202 = vadd.f32 %v3201, 1.0
  %v3203 = vmul.f32 %v3202, %v3176
  %v3204 = vand.u32 2147483647, %v3176
  %vm3205 = vcmp.lt.f32.partialorder %v3204, 0.0004427343
  %v3206 = vsel %vm3205, %v3203, %v3200
  %v3207 = vadd.f32 %v3178, 1.0
  %v3208 = vlog2.pop %v3207
  %v3209 = vmul.f32 %v3208, 0.6931472
  %v3210 = vmul.f32 -0.5, %v3178
  %v3211 = vadd.f32 %v3210, 1.0
  %v3212 = vmul.f32 %v3211, %v3178
  %v3213 = vand.u32 2147483647, %v3178
  %vm3214 = vcmp.lt.f32.partialorder %v3213, 0.0004427343
  %v3215 = vsel %vm3214, %v3212, %v3209
  %v3216 = vadd.f32 %v3180, 1.0
  %v3217 = vlog2.pop %v3216
  %v3218 = vmul.f32 %v3217, 0.6931472
  %v3219 = vmul.f32 -0.5, %v3180
  %v3220 = vadd.f32 %v3219, 1.0
  %v3221 = vmul.f32 %v3220, %v3180
  %v3222 = vand.u32 2147483647, %v3180
  %vm3223 = vcmp.lt.f32.partialorder %v3222, 0.0004427343
  %v3224 = vsel %vm3223, %v3221, %v3218
  %v3225 = vadd.f32 %v3182, 1.0
  %v3226 = vlog2.pop %v3225
  %v3227 = vmul.f32 %v3226, 0.6931472
  %v3228 = vmul.f32 -0.5, %v3182
  %v3229 = vadd.f32 %v3228, 1.0
  %v3230 = vmul.f32 %v3229, %v3182
  %v3231 = vand.u32 2147483647, %v3182
  %vm3232 = vcmp.lt.f32.partialorder %v3231, 0.0004427343
  %v3233 = vsel %vm3232, %v3230, %v3227
  %v3234 = vadd.f32 %v3184, 1.0
  %v3235 = vlog2.pop %v3234
  %v3236 = vmul.f32 %v3235, 0.6931472
  %v3237 = vmul.f32 -0.5, %v3184
  %v3238 = vadd.f32 %v3237, 1.0
  %v3239 = vmul.f32 %v3238, %v3184
  %v3240 = vand.u32 2147483647, %v3184
  %vm3241 = vcmp.lt.f32.partialorder %v3240, 0.0004427343
  %v3242 = vsel %vm3241, %v3239, %v3236
  %v3243 = vadd.f32 %v3186, 1.0
  %v3244 = vlog2.pop %v3243
  %v3245 = vmul.f32 %v3244, 0.6931472
  %v3246 = vmul.f32 -0.5, %v3186
  %v3247 = vadd.f32 %v3246, 1.0
  %v3248 = vmul.f32 %v3247, %v3186
  %v3249 = vand.u32 2147483647, %v3186
  %vm3250 = vcmp.lt.f32.partialorder %v3249, 0.0004427343
  %v3251 = vsel %vm3250, %v3248, %v3245
  %v3252 = vadd.f32 %v3188, 1.0
  %v3253 = vlog2.pop %v3252
  %v3254 = vmul.f32 %v3253, 0.6931472
  %v3255 = vmul.f32 -0.5, %v3188
  %v3256 = vadd.f32 %v3255, 1.0
  %v3257 = vmul.f32 %v3256, %v3188
  %v3258 = vand.u32 2147483647, %v3188
  %vm3259 = vcmp.lt.f32.partialorder %v3258, 0.0004427343
  %v3260 = vsel %vm3259, %v3257, %v3254
  %v3261 = vadd.f32 %v3149, %v3197
  %v3262 = vadd.f32 %v3150, %v3206
  %v3263 = vadd.f32 %v3151, %v3215
  %v3264 = vadd.f32 %v3152, %v3224
  %v3265 = vadd.f32 %v3153, %v3233
  %v3266 = vadd.f32 %v3154, %v3242
  %v3267 = vadd.f32 %v3155, %v3251
  %v3268 = vadd.f32 %v3156, %v3260
  %v3269 = vld [vmem:[%s4 + $0x210] sm:$0xff]
  %v3270 = vld [vmem:[%s4 + $0x218] sm:$0xff]
  %v3271 = vld [vmem:[%s4 + $0x220] sm:$0xff]
  %v3272 = vld [vmem:[%s4 + $0x228] sm:$0xff]
  %v3273 = vld [vmem:[%s4 + $0x230] sm:$0xff]
  %v3274 = vld [vmem:[%s4 + $0x238] sm:$0x1]
  %v3275 = vperm.slane %v3274, 0
  %v3277 = vsel %vm1123, %v3261, 0
  %v3280 = vsel %vm1123, %v3262, 0
  %v3283 = vsel %vm1123, %v3263, 0
  %v3286 = vsel %vm1123, %v3264, 0
  %v3289 = vsel %vm1123, %v3265, 0
  %v3292 = vsel %vm1123, %v3266, 0
  %v3295 = vsel %vm1123, %v3267, 0
  %v3298 = vsel %vm1123, %v3268, 0
  %3300 = vmatpush.msra.mxu0 0.0
  %3301 = vmatpush.msra.mxu0 0.0
  %3302 = vmatpush.msra.mxu0 0.0
  %3303 = vmatpush.msra.mxu0 0.0
  %3304 = vmatpush.msra.mxu0 0.0
  %3305 = vmatpush.msra.mxu0 0.0
  %3306 = vmatpush.msra.mxu0 0.0
  %3307 = vmatpush.msra.mxu0 0.0
  %3308 = vmatpush.msra.mxu0 0.0
  %3309 = vmatpush.msra.mxu0 0.0
  %3310 = vmatpush.msra.mxu0 0.0
  %3311 = vmatpush.msra.mxu0 %v3273
  %3312 = vmatpush.msra.mxu0 %v3272
  %3313 = vmatpush.msra.mxu0 %v3271
  %3314 = vmatpush.msra.mxu0 %v3270
  %3315 = vmatpush.msra.mxu0 %v3269
  %3316 = vmatmul.f32.gmra.mxu0 %v3277
  %v3317 = vpop.f32.mrf.mxu0
  %v3318 = vadd.f32 %v3275, %v3317
  %3319 = vmatmul.f32.gmra.mxu0 %v3280
  %v3320 = vpop.f32.mrf.mxu0
  %v3321 = vadd.f32 %v3275, %v3320
  %3322 = vmatmul.f32.gmra.mxu0 %v3283
  %v3323 = vpop.f32.mrf.mxu0
  %v3324 = vadd.f32 %v3275, %v3323
  %3325 = vmatmul.f32.gmra.mxu0 %v3286
  %v3326 = vpop.f32.mrf.mxu0
  %v3327 = vadd.f32 %v3275, %v3326
  %3328 = vmatmul.f32.gmra.mxu0 %v3289
  %v3329 = vpop.f32.mrf.mxu0
  %v3330 = vadd.f32 %v3275, %v3329
  %3331 = vmatmul.f32.gmra.mxu0 %v3292
  %v3332 = vpop.f32.mrf.mxu0
  %v3333 = vadd.f32 %v3275, %v3332
  %3334 = vmatmul.f32.gmra.mxu0 %v3295
  %v3335 = vpop.f32.mrf.mxu0
  %v3336 = vadd.f32 %v3275, %v3335
  %3337 = vmatmul.f32.gmra.mxu0 %v3298
  %v3338 = vpop.f32.mrf.mxu0
  %v3339 = vadd.f32 %v3275, %v3338
  %3340 = vdwg.mxu0
  %v3341 = vmax.f32 %v3318, 0.0
  %v3342 = vmax.f32 %v3321, 0.0
  %v3343 = vmax.f32 %v3324, 0.0
  %v3344 = vmax.f32 %v3327, 0.0
  %v3345 = vmax.f32 %v3330, 0.0
  %v3346 = vmax.f32 %v3333, 0.0
  %v3347 = vmax.f32 %v3336, 0.0
  %v3348 = vmax.f32 %v3339, 0.0
  %v3349 = vand.u32 2147483647, %v3318
  %v3350 = vand.u32 2147483647, %v3321
  %v3351 = vand.u32 2147483647, %v3324
  %v3352 = vand.u32 2147483647, %v3327
  %v3353 = vand.u32 2147483647, %v3330
  %v3354 = vand.u32 2147483647, %v3333
  %v3355 = vand.u32 2147483647, %v3336
  %v3356 = vand.u32 2147483647, %v3339
  %v3357 = vsub.f32 0.0, %v3349
  %v3358 = vsub.f32 0.0, %v3350
  %v3359 = vsub.f32 0.0, %v3351
  %v3360 = vsub.f32 0.0, %v3352
  %v3361 = vsub.f32 0.0, %v3353
  %v3362 = vsub.f32 0.0, %v3354
  %v3363 = vsub.f32 0.0, %v3355
  %v3364 = vsub.f32 0.0, %v3356
  %v3365 = vmul.f32 %v3357, 1.442695
  %v3366 = vpow.pop %v3365
  %v3367 = vmul.f32 %v3358, 1.442695
  %v3368 = vpow.pop %v3367
  %v3369 = vmul.f32 %v3359, 1.442695
  %v3370 = vpow.pop %v3369
  %v3371 = vmul.f32 %v3360, 1.442695
  %v3372 = vpow.pop %v3371
  %v3373 = vmul.f32 %v3361, 1.442695
  %v3374 = vpow.pop %v3373
  %v3375 = vmul.f32 %v3362, 1.442695
  %v3376 = vpow.pop %v3375
  %v3377 = vmul.f32 %v3363, 1.442695
  %v3378 = vpow.pop %v3377
  %v3379 = vmul.f32 %v3364, 1.442695
  %v3380 = vpow.pop %v3379
  %v3381 = vadd.f32 %v3366, 1.0
  %v3382 = vlog2.pop %v3381
  %v3383 = vmul.f32 %v3382, 0.6931472
  %v3384 = vmul.f32 -0.5, %v3366
  %v3385 = vadd.f32 %v3384, 1.0
  %v3386 = vmul.f32 %v3385, %v3366
  %v3387 = vand.u32 2147483647, %v3366
  %vm3388 = vcmp.lt.f32.partialorder %v3387, 0.0004427343
  %v3389 = vsel %vm3388, %v3386, %v3383
  %v3390 = vadd.f32 %v3368, 1.0
  %v3391 = vlog2.pop %v3390
  %v3392 = vmul.f32 %v3391, 0.6931472
  %v3393 = vmul.f32 -0.5, %v3368
  %v3394 = vadd.f32 %v3393, 1.0
  %v3395 = vmul.f32 %v3394, %v3368
  %v3396 = vand.u32 2147483647, %v3368
  %vm3397 = vcmp.lt.f32.partialorder %v3396, 0.0004427343
  %v3398 = vsel %vm3397, %v3395, %v3392
  %v3399 = vadd.f32 %v3370, 1.0
  %v3400 = vlog2.pop %v3399
  %v3401 = vmul.f32 %v3400, 0.6931472
  %v3402 = vmul.f32 -0.5, %v3370
  %v3403 = vadd.f32 %v3402, 1.0
  %v3404 = vmul.f32 %v3403, %v3370
  %v3405 = vand.u32 2147483647, %v3370
  %vm3406 = vcmp.lt.f32.partialorder %v3405, 0.0004427343
  %v3407 = vsel %vm3406, %v3404, %v3401
  %v3408 = vadd.f32 %v3372, 1.0
  %v3409 = vlog2.pop %v3408
  %v3410 = vmul.f32 %v3409, 0.6931472
  %v3411 = vmul.f32 -0.5, %v3372
  %v3412 = vadd.f32 %v3411, 1.0
  %v3413 = vmul.f32 %v3412, %v3372
  %v3414 = vand.u32 2147483647, %v3372
  %vm3415 = vcmp.lt.f32.partialorder %v3414, 0.0004427343
  %v3416 = vsel %vm3415, %v3413, %v3410
  %v3417 = vadd.f32 %v3374, 1.0
  %v3418 = vlog2.pop %v3417
  %v3419 = vmul.f32 %v3418, 0.6931472
  %v3420 = vmul.f32 -0.5, %v3374
  %v3421 = vadd.f32 %v3420, 1.0
  %v3422 = vmul.f32 %v3421, %v3374
  %v3423 = vand.u32 2147483647, %v3374
  %vm3424 = vcmp.lt.f32.partialorder %v3423, 0.0004427343
  %v3425 = vsel %vm3424, %v3422, %v3419
  %v3426 = vadd.f32 %v3376, 1.0
  %v3427 = vlog2.pop %v3426
  %v3428 = vmul.f32 %v3427, 0.6931472
  %v3429 = vmul.f32 -0.5, %v3376
  %v3430 = vadd.f32 %v3429, 1.0
  %v3431 = vmul.f32 %v3430, %v3376
  %v3432 = vand.u32 2147483647, %v3376
  %vm3433 = vcmp.lt.f32.partialorder %v3432, 0.0004427343
  %v3434 = vsel %vm3433, %v3431, %v3428
  %v3435 = vadd.f32 %v3378, 1.0
  %v3436 = vlog2.pop %v3435
  %v3437 = vmul.f32 %v3436, 0.6931472
  %v3438 = vmul.f32 -0.5, %v3378
  %v3439 = vadd.f32 %v3438, 1.0
  %v3440 = vmul.f32 %v3439, %v3378
  %v3441 = vand.u32 2147483647, %v3378
  %vm3442 = vcmp.lt.f32.partialorder %v3441, 0.0004427343
  %v3443 = vsel %vm3442, %v3440, %v3437
  %v3444 = vadd.f32 %v3380, 1.0
  %v3445 = vlog2.pop %v3444
  %v3446 = vmul.f32 %v3445, 0.6931472
  %v3447 = vmul.f32 -0.5, %v3380
  %v3448 = vadd.f32 %v3447, 1.0
  %v3449 = vmul.f32 %v3448, %v3380
  %v3450 = vand.u32 2147483647, %v3380
  %vm3451 = vcmp.lt.f32.partialorder %v3450, 0.0004427343
  %v3452 = vsel %vm3451, %v3449, %v3446
  %v3453 = vadd.f32 %v3341, %v3389
  %v3454 = vadd.f32 %v3342, %v3398
  %v3455 = vadd.f32 %v3343, %v3407
  %v3456 = vadd.f32 %v3344, %v3416
  %v3457 = vadd.f32 %v3345, %v3425
  %v3458 = vadd.f32 %v3346, %v3434
  %v3459 = vadd.f32 %v3347, %v3443
  %v3460 = vadd.f32 %v3348, %v3452
  %v3461 = vadd.f32 %v3453, 0.001
  %v3462 = vadd.f32 %v3454, 0.001
  %v3463 = vadd.f32 %v3455, 0.001
  %v3464 = vadd.f32 %v3456, 0.001
  %v3465 = vadd.f32 %v3457, 0.001
  %v3466 = vadd.f32 %v3458, 0.001
  %v3467 = vadd.f32 %v3459, 0.001
  %v3468 = vadd.f32 %v3460, 0.001
  %3469 = vrot.lane.b32.xlu0 %v1108, 40
  %v3470 = vpop.permute.xlu0 %3469
  %3471 = vrot.lane.b32.xlu0 %v1109, 40
  %v3472 = vpop.permute.xlu0 %3471
  %3473 = vrot.lane.b32.xlu0 %v1110, 40
  %v3474 = vpop.permute.xlu0 %3473
  %3475 = vrot.lane.b32.xlu0 %v1111, 40
  %v3476 = vpop.permute.xlu0 %3475
  %3477 = vrot.lane.b32.xlu0 %v1112, 40
  %v3478 = vpop.permute.xlu0 %3477
  %3479 = vrot.lane.b32.xlu0 %v1113, 40
  %v3480 = vpop.permute.xlu0 %3479
  %3481 = vrot.lane.b32.xlu0 %v1114, 40
  %v3482 = vpop.permute.xlu0 %3481
  %3483 = vrot.lane.b32.xlu0 %v1115, 40
  %v3484 = vpop.permute.xlu0 %3483
  %v3493 = vmul.f32 %v3461, %v3470
  %v3494 = vmul.f32 %v3462, %v3472
  %v3495 = vmul.f32 %v3463, %v3474
  %v3496 = vmul.f32 %v3464, %v3476
  %v3497 = vmul.f32 %v3465, %v3478
  %v3498 = vmul.f32 %v3466, %v3480
  %v3499 = vmul.f32 %v3467, %v3482
  %v3500 = vmul.f32 %v3468, %v3484
  %3509 = vrot.lane.b32.xlu0 %v3318, 40
  %v3510 = vpop.permute.xlu0 %3509
  %3511 = vrot.lane.b32.xlu0 %v3321, 40
  %v3512 = vpop.permute.xlu0 %3511
  %3513 = vrot.lane.b32.xlu0 %v3324, 40
  %v3514 = vpop.permute.xlu0 %3513
  %3515 = vrot.lane.b32.xlu0 %v3327, 40
  %v3516 = vpop.permute.xlu0 %3515
  %3517 = vrot.lane.b32.xlu0 %v3330, 40
  %v3518 = vpop.permute.xlu0 %3517
  %3519 = vrot.lane.b32.xlu0 %v3333, 40
  %v3520 = vpop.permute.xlu0 %3519
  %3521 = vrot.lane.b32.xlu0 %v3336, 40
  %v3522 = vpop.permute.xlu0 %3521
  %3523 = vrot.lane.b32.xlu0 %v3339, 40
  %v3524 = vpop.permute.xlu0 %3523
  %v3533 = vadd.f32 %v3493, %v3510
  %v3534 = vadd.f32 %v3494, %v3512
  %v3535 = vadd.f32 %v3495, %v3514
  %v3536 = vadd.f32 %v3496, %v3516
  %v3537 = vadd.f32 %v3497, %v3518
  %v3538 = vadd.f32 %v3498, %v3520
  %v3539 = vadd.f32 %v3499, %v3522
  %v3540 = vadd.f32 %v3500, %v3524
  %v3541 = vlog2.pop %v3461
  %v3542 = vmul.f32 %v3541, 0.6931472
  %v3543 = vlog2.pop %v3462
  %v3544 = vmul.f32 %v3543, 0.6931472
  %v3545 = vlog2.pop %v3463
  %v3546 = vmul.f32 %v3545, 0.6931472
  %v3547 = vlog2.pop %v3464
  %v3548 = vmul.f32 %v3547, 0.6931472
  %v3549 = vlog2.pop %v3465
  %v3550 = vmul.f32 %v3549, 0.6931472
  %v3551 = vlog2.pop %v3466
  %v3552 = vmul.f32 %v3551, 0.6931472
  %v3553 = vlog2.pop %v3467
  %v3554 = vmul.f32 %v3553, 0.6931472
  %v3555 = vlog2.pop %v3468
  %v3556 = vmul.f32 %v3555, 0.6931472
  %v3557 = vadd.f32 %v3542, 0.0
  %v3558 = vadd.f32 %v3544, 0.0
  %v3559 = vadd.f32 %v3546, 0.0
  %v3560 = vadd.f32 %v3548, 0.0
  %v3561 = vadd.f32 %v3550, 0.0
  %v3562 = vadd.f32 %v3552, 0.0
  %v3563 = vadd.f32 %v3554, 0.0
  %v3564 = vadd.f32 %v3556, 0.0
  %v3565 = vld [vmem:[%s4 + $0x240] sm:$0xff]
  %v3566 = vld [vmem:[%s4 + $0x248] sm:$0xff]
  %v3567 = vld [vmem:[%s4 + $0x250] sm:$0xff]
  %v3568 = vld [vmem:[%s4 + $0x258] sm:$0xff]
  %v3569 = vld [vmem:[%s4 + $0x260] sm:$0xff]
  %v3570 = vld [vmem:[%s4 + $0x268] sm:$0x1]
  %v3571 = vperm.slane %v3570, 0
  %3580 = vrot.lane.b32.xlu0 %v3533, 88
  %v3581 = vpop.permute.xlu0 %3580
  %3582 = vrot.lane.b32.xlu0 %v3534, 88
  %v3583 = vpop.permute.xlu0 %3582
  %3584 = vrot.lane.b32.xlu0 %v3535, 88
  %v3585 = vpop.permute.xlu0 %3584
  %3586 = vrot.lane.b32.xlu0 %v3536, 88
  %v3587 = vpop.permute.xlu0 %3586
  %3588 = vrot.lane.b32.xlu0 %v3537, 88
  %v3589 = vpop.permute.xlu0 %3588
  %3590 = vrot.lane.b32.xlu0 %v3538, 88
  %v3591 = vpop.permute.xlu0 %3590
  %3592 = vrot.lane.b32.xlu0 %v3539, 88
  %v3593 = vpop.permute.xlu0 %3592
  %3594 = vrot.lane.b32.xlu0 %v3540, 88
  %v3595 = vpop.permute.xlu0 %3594
  %v3596 = vsel %vm1123, %v3581, 0
  %v3598 = vsel %vm1123, %v3583, 0
  %v3600 = vsel %vm1123, %v3585, 0
  %v3602 = vsel %vm1123, %v3587, 0
  %v3604 = vsel %vm1123, %v3589, 0
  %v3606 = vsel %vm1123, %v3591, 0
  %v3608 = vsel %vm1123, %v3593, 0
  %v3610 = vsel %vm1123, %v3595, 0
  %3612 = vmatpush.msra.mxu0 0.0
  %3613 = vmatpush.msra.mxu0 0.0
  %3614 = vmatpush.msra.mxu0 0.0
  %3615 = vmatpush.msra.mxu0 0.0
  %3616 = vmatpush.msra.mxu0 0.0
  %3617 = vmatpush.msra.mxu0 0.0
  %3618 = vmatpush.msra.mxu0 0.0
  %3619 = vmatpush.msra.mxu0 0.0
  %3620 = vmatpush.msra.mxu0 0.0
  %3621 = vmatpush.msra.mxu0 0.0
  %3622 = vmatpush.msra.mxu0 0.0
  %3623 = vmatpush.msra.mxu0 %v3569
  %3624 = vmatpush.msra.mxu0 %v3568
  %3625 = vmatpush.msra.mxu0 %v3567
  %3626 = vmatpush.msra.mxu0 %v3566
  %3627 = vmatpush.msra.mxu0 %v3565
  %3628 = vmatmul.f32.gmra.mxu0 %v3596
  %v3629 = vpop.f32.mrf.mxu0
  %v3630 = vadd.f32 %v3571, %v3629
  %3631 = vmatmul.f32.gmra.mxu0 %v3598
  %v3632 = vpop.f32.mrf.mxu0
  %v3633 = vadd.f32 %v3571, %v3632
  %3634 = vmatmul.f32.gmra.mxu0 %v3600
  %v3635 = vpop.f32.mrf.mxu0
  %v3636 = vadd.f32 %v3571, %v3635
  %3637 = vmatmul.f32.gmra.mxu0 %v3602
  %v3638 = vpop.f32.mrf.mxu0
  %v3639 = vadd.f32 %v3571, %v3638
  %3640 = vmatmul.f32.gmra.mxu0 %v3604
  %v3641 = vpop.f32.mrf.mxu0
  %v3642 = vadd.f32 %v3571, %v3641
  %3643 = vmatmul.f32.gmra.mxu0 %v3606
  %v3644 = vpop.f32.mrf.mxu0
  %v3645 = vadd.f32 %v3571, %v3644
  %3646 = vmatmul.f32.gmra.mxu0 %v3608
  %v3647 = vpop.f32.mrf.mxu0
  %v3648 = vadd.f32 %v3571, %v3647
  %3649 = vmatmul.f32.gmra.mxu0 %v3610
  %v3650 = vpop.f32.mrf.mxu0
  %v3651 = vadd.f32 %v3571, %v3650
  %3652 = vdwg.mxu0
  %v3653 = vmax.f32 %v3630, 0.0
  %v3654 = vmax.f32 %v3633, 0.0
  %v3655 = vmax.f32 %v3636, 0.0
  %v3656 = vmax.f32 %v3639, 0.0
  %v3657 = vmax.f32 %v3642, 0.0
  %v3658 = vmax.f32 %v3645, 0.0
  %v3659 = vmax.f32 %v3648, 0.0
  %v3660 = vmax.f32 %v3651, 0.0
  %v3661 = vand.u32 2147483647, %v3630
  %v3662 = vand.u32 2147483647, %v3633
  %v3663 = vand.u32 2147483647, %v3636
  %v3664 = vand.u32 2147483647, %v3639
  %v3665 = vand.u32 2147483647, %v3642
  %v3666 = vand.u32 2147483647, %v3645
  %v3667 = vand.u32 2147483647, %v3648
  %v3668 = vand.u32 2147483647, %v3651
  %v3669 = vsub.f32 0.0, %v3661
  %v3670 = vsub.f32 0.0, %v3662
  %v3671 = vsub.f32 0.0, %v3663
  %v3672 = vsub.f32 0.0, %v3664
  %v3673 = vsub.f32 0.0, %v3665
  %v3674 = vsub.f32 0.0, %v3666
  %v3675 = vsub.f32 0.0, %v3667
  %v3676 = vsub.f32 0.0, %v3668
  %v3677 = vmul.f32 %v3669, 1.442695
  %v3678 = vpow.pop %v3677
  %v3679 = vmul.f32 %v3670, 1.442695
  %v3680 = vpow.pop %v3679
  %v3681 = vmul.f32 %v3671, 1.442695
  %v3682 = vpow.pop %v3681
  %v3683 = vmul.f32 %v3672, 1.442695
  %v3684 = vpow.pop %v3683
  %v3685 = vmul.f32 %v3673, 1.442695
  %v3686 = vpow.pop %v3685
  %v3687 = vmul.f32 %v3674, 1.442695
  %v3688 = vpow.pop %v3687
  %v3689 = vmul.f32 %v3675, 1.442695
  %v3690 = vpow.pop %v3689
  %v3691 = vmul.f32 %v3676, 1.442695
  %v3692 = vpow.pop %v3691
  %v3693 = vadd.f32 %v3678, 1.0
  %v3694 = vlog2.pop %v3693
  %v3695 = vmul.f32 %v3694, 0.6931472
  %v3696 = vmul.f32 -0.5, %v3678
  %v3697 = vadd.f32 %v3696, 1.0
  %v3698 = vmul.f32 %v3697, %v3678
  %v3699 = vand.u32 2147483647, %v3678
  %vm3700 = vcmp.lt.f32.partialorder %v3699, 0.0004427343
  %v3701 = vsel %vm3700, %v3698, %v3695
  %v3702 = vadd.f32 %v3680, 1.0
  %v3703 = vlog2.pop %v3702
  %v3704 = vmul.f32 %v3703, 0.6931472
  %v3705 = vmul.f32 -0.5, %v3680
  %v3706 = vadd.f32 %v3705, 1.0
  %v3707 = vmul.f32 %v3706, %v3680
  %v3708 = vand.u32 2147483647, %v3680
  %vm3709 = vcmp.lt.f32.partialorder %v3708, 0.0004427343
  %v3710 = vsel %vm3709, %v3707, %v3704
  %v3711 = vadd.f32 %v3682, 1.0
  %v3712 = vlog2.pop %v3711
  %v3713 = vmul.f32 %v3712, 0.6931472
  %v3714 = vmul.f32 -0.5, %v3682
  %v3715 = vadd.f32 %v3714, 1.0
  %v3716 = vmul.f32 %v3715, %v3682
  %v3717 = vand.u32 2147483647, %v3682
  %vm3718 = vcmp.lt.f32.partialorder %v3717, 0.0004427343
  %v3719 = vsel %vm3718, %v3716, %v3713
  %v3720 = vadd.f32 %v3684, 1.0
  %v3721 = vlog2.pop %v3720
  %v3722 = vmul.f32 %v3721, 0.6931472
  %v3723 = vmul.f32 -0.5, %v3684
  %v3724 = vadd.f32 %v3723, 1.0
  %v3725 = vmul.f32 %v3724, %v3684
  %v3726 = vand.u32 2147483647, %v3684
  %vm3727 = vcmp.lt.f32.partialorder %v3726, 0.0004427343
  %v3728 = vsel %vm3727, %v3725, %v3722
  %v3729 = vadd.f32 %v3686, 1.0
  %v3730 = vlog2.pop %v3729
  %v3731 = vmul.f32 %v3730, 0.6931472
  %v3732 = vmul.f32 -0.5, %v3686
  %v3733 = vadd.f32 %v3732, 1.0
  %v3734 = vmul.f32 %v3733, %v3686
  %v3735 = vand.u32 2147483647, %v3686
  %vm3736 = vcmp.lt.f32.partialorder %v3735, 0.0004427343
  %v3737 = vsel %vm3736, %v3734, %v3731
  %v3738 = vadd.f32 %v3688, 1.0
  %v3739 = vlog2.pop %v3738
  %v3740 = vmul.f32 %v3739, 0.6931472
  %v3741 = vmul.f32 -0.5, %v3688
  %v3742 = vadd.f32 %v3741, 1.0
  %v3743 = vmul.f32 %v3742, %v3688
  %v3744 = vand.u32 2147483647, %v3688
  %vm3745 = vcmp.lt.f32.partialorder %v3744, 0.0004427343
  %v3746 = vsel %vm3745, %v3743, %v3740
  %v3747 = vadd.f32 %v3690, 1.0
  %v3748 = vlog2.pop %v3747
  %v3749 = vmul.f32 %v3748, 0.6931472
  %v3750 = vmul.f32 -0.5, %v3690
  %v3751 = vadd.f32 %v3750, 1.0
  %v3752 = vmul.f32 %v3751, %v3690
  %v3753 = vand.u32 2147483647, %v3690
  %vm3754 = vcmp.lt.f32.partialorder %v3753, 0.0004427343
  %v3755 = vsel %vm3754, %v3752, %v3749
  %v3756 = vadd.f32 %v3692, 1.0
  %v3757 = vlog2.pop %v3756
  %v3758 = vmul.f32 %v3757, 0.6931472
  %v3759 = vmul.f32 -0.5, %v3692
  %v3760 = vadd.f32 %v3759, 1.0
  %v3761 = vmul.f32 %v3760, %v3692
  %v3762 = vand.u32 2147483647, %v3692
  %vm3763 = vcmp.lt.f32.partialorder %v3762, 0.0004427343
  %v3764 = vsel %vm3763, %v3761, %v3758
  %v3765 = vadd.f32 %v3653, %v3701
  %v3766 = vadd.f32 %v3654, %v3710
  %v3767 = vadd.f32 %v3655, %v3719
  %v3768 = vadd.f32 %v3656, %v3728
  %v3769 = vadd.f32 %v3657, %v3737
  %v3770 = vadd.f32 %v3658, %v3746
  %v3771 = vadd.f32 %v3659, %v3755
  %v3772 = vadd.f32 %v3660, %v3764
  %v3773 = vld [vmem:[%s4 + $0x270] sm:$0xff]
  %v3774 = vld [vmem:[%s4 + $0x278] sm:$0xff]
  %v3775 = vld [vmem:[%s4 + $0x280] sm:$0xff]
  %v3776 = vld [vmem:[%s4 + $0x288] sm:$0xff]
  %v3777 = vld [vmem:[%s4 + $0x290] sm:$0xff]
  %v3778 = vld [vmem:[%s4 + $0x298] sm:$0x1]
  %v3779 = vperm.slane %v3778, 0
  %v3781 = vsel %vm1123, %v3765, 0
  %v3784 = vsel %vm1123, %v3766, 0
  %v3787 = vsel %vm1123, %v3767, 0
  %v3790 = vsel %vm1123, %v3768, 0
  %v3793 = vsel %vm1123, %v3769, 0
  %v3796 = vsel %vm1123, %v3770, 0
  %v3799 = vsel %vm1123, %v3771, 0
  %v3802 = vsel %vm1123, %v3772, 0
  %3804 = vmatpush.msra.mxu0 0.0
  %3805 = vmatpush.msra.mxu0 0.0
  %3806 = vmatpush.msra.mxu0 0.0
  %3807 = vmatpush.msra.mxu0 0.0
  %3808 = vmatpush.msra.mxu0 0.0
  %3809 = vmatpush.msra.mxu0 0.0
  %3810 = vmatpush.msra.mxu0 0.0
  %3811 = vmatpush.msra.mxu0 0.0
  %3812 = vmatpush.msra.mxu0 0.0
  %3813 = vmatpush.msra.mxu0 0.0
  %3814 = vmatpush.msra.mxu0 0.0
  %3815 = vmatpush.msra.mxu0 %v3777
  %3816 = vmatpush.msra.mxu0 %v3776
  %3817 = vmatpush.msra.mxu0 %v3775
  %3818 = vmatpush.msra.mxu0 %v3774
  %3819 = vmatpush.msra.mxu0 %v3773
  %3820 = vmatmul.f32.gmra.mxu0 %v3781
  %v3821 = vpop.f32.mrf.mxu0
  %v3822 = vadd.f32 %v3779, %v3821
  %3823 = vmatmul.f32.gmra.mxu0 %v3784
  %v3824 = vpop.f32.mrf.mxu0
  %v3825 = vadd.f32 %v3779, %v3824
  %3826 = vmatmul.f32.gmra.mxu0 %v3787
  %v3827 = vpop.f32.mrf.mxu0
  %v3828 = vadd.f32 %v3779, %v3827
  %3829 = vmatmul.f32.gmra.mxu0 %v3790
  %v3830 = vpop.f32.mrf.mxu0
  %v3831 = vadd.f32 %v3779, %v3830
  %3832 = vmatmul.f32.gmra.mxu0 %v3793
  %v3833 = vpop.f32.mrf.mxu0
  %v3834 = vadd.f32 %v3779, %v3833
  %3835 = vmatmul.f32.gmra.mxu0 %v3796
  %v3836 = vpop.f32.mrf.mxu0
  %v3837 = vadd.f32 %v3779, %v3836
  %3838 = vmatmul.f32.gmra.mxu0 %v3799
  %v3839 = vpop.f32.mrf.mxu0
  %v3840 = vadd.f32 %v3779, %v3839
  %3841 = vmatmul.f32.gmra.mxu0 %v3802
  %v3842 = vpop.f32.mrf.mxu0
  %v3843 = vadd.f32 %v3779, %v3842
  %3844 = vdwg.mxu0
  %v3845 = vmax.f32 %v3822, 0.0
  %v3846 = vmax.f32 %v3825, 0.0
  %v3847 = vmax.f32 %v3828, 0.0
  %v3848 = vmax.f32 %v3831, 0.0
  %v3849 = vmax.f32 %v3834, 0.0
  %v3850 = vmax.f32 %v3837, 0.0
  %v3851 = vmax.f32 %v3840, 0.0
  %v3852 = vmax.f32 %v3843, 0.0
  %v3853 = vand.u32 2147483647, %v3822
  %v3854 = vand.u32 2147483647, %v3825
  %v3855 = vand.u32 2147483647, %v3828
  %v3856 = vand.u32 2147483647, %v3831
  %v3857 = vand.u32 2147483647, %v3834
  %v3858 = vand.u32 2147483647, %v3837
  %v3859 = vand.u32 2147483647, %v3840
  %v3860 = vand.u32 2147483647, %v3843
  %v3861 = vsub.f32 0.0, %v3853
  %v3862 = vsub.f32 0.0, %v3854
  %v3863 = vsub.f32 0.0, %v3855
  %v3864 = vsub.f32 0.0, %v3856
  %v3865 = vsub.f32 0.0, %v3857
  %v3866 = vsub.f32 0.0, %v3858
  %v3867 = vsub.f32 0.0, %v3859
  %v3868 = vsub.f32 0.0, %v3860
  %v3869 = vmul.f32 %v3861, 1.442695
  %v3870 = vpow.pop %v3869
  %v3871 = vmul.f32 %v3862, 1.442695
  %v3872 = vpow.pop %v3871
  %v3873 = vmul.f32 %v3863, 1.442695
  %v3874 = vpow.pop %v3873
  %v3875 = vmul.f32 %v3864, 1.442695
  %v3876 = vpow.pop %v3875
  %v3877 = vmul.f32 %v3865, 1.442695
  %v3878 = vpow.pop %v3877
  %v3879 = vmul.f32 %v3866, 1.442695
  %v3880 = vpow.pop %v3879
  %v3881 = vmul.f32 %v3867, 1.442695
  %v3882 = vpow.pop %v3881
  %v3883 = vmul.f32 %v3868, 1.442695
  %v3884 = vpow.pop %v3883
  %v3885 = vadd.f32 %v3870, 1.0
  %v3886 = vlog2.pop %v3885
  %v3887 = vmul.f32 %v3886, 0.6931472
  %v3888 = vmul.f32 -0.5, %v3870
  %v3889 = vadd.f32 %v3888, 1.0
  %v3890 = vmul.f32 %v3889, %v3870
  %v3891 = vand.u32 2147483647, %v3870
  %vm3892 = vcmp.lt.f32.partialorder %v3891, 0.0004427343
  %v3893 = vsel %vm3892, %v3890, %v3887
  %v3894 = vadd.f32 %v3872, 1.0
  %v3895 = vlog2.pop %v3894
  %v3896 = vmul.f32 %v3895, 0.6931472
  %v3897 = vmul.f32 -0.5, %v3872
  %v3898 = vadd.f32 %v3897, 1.0
  %v3899 = vmul.f32 %v3898, %v3872
  %v3900 = vand.u32 2147483647, %v3872
  %vm3901 = vcmp.lt.f32.partialorder %v3900, 0.0004427343
  %v3902 = vsel %vm3901, %v3899, %v3896
  %v3903 = vadd.f32 %v3874, 1.0
  %v3904 = vlog2.pop %v3903
  %v3905 = vmul.f32 %v3904, 0.6931472
  %v3906 = vmul.f32 -0.5, %v3874
  %v3907 = vadd.f32 %v3906, 1.0
  %v3908 = vmul.f32 %v3907, %v3874
  %v3909 = vand.u32 2147483647, %v3874
  %vm3910 = vcmp.lt.f32.partialorder %v3909, 0.0004427343
  %v3911 = vsel %vm3910, %v3908, %v3905
  %v3912 = vadd.f32 %v3876, 1.0
  %v3913 = vlog2.pop %v3912
  %v3914 = vmul.f32 %v3913, 0.6931472
  %v3915 = vmul.f32 -0.5, %v3876
  %v3916 = vadd.f32 %v3915, 1.0
  %v3917 = vmul.f32 %v3916, %v3876
  %v3918 = vand.u32 2147483647, %v3876
  %vm3919 = vcmp.lt.f32.partialorder %v3918, 0.0004427343
  %v3920 = vsel %vm3919, %v3917, %v3914
  %v3921 = vadd.f32 %v3878, 1.0
  %v3922 = vlog2.pop %v3921
  %v3923 = vmul.f32 %v3922, 0.6931472
  %v3924 = vmul.f32 -0.5, %v3878
  %v3925 = vadd.f32 %v3924, 1.0
  %v3926 = vmul.f32 %v3925, %v3878
  %v3927 = vand.u32 2147483647, %v3878
  %vm3928 = vcmp.lt.f32.partialorder %v3927, 0.0004427343
  %v3929 = vsel %vm3928, %v3926, %v3923
  %v3930 = vadd.f32 %v3880, 1.0
  %v3931 = vlog2.pop %v3930
  %v3932 = vmul.f32 %v3931, 0.6931472
  %v3933 = vmul.f32 -0.5, %v3880
  %v3934 = vadd.f32 %v3933, 1.0
  %v3935 = vmul.f32 %v3934, %v3880
  %v3936 = vand.u32 2147483647, %v3880
  %vm3937 = vcmp.lt.f32.partialorder %v3936, 0.0004427343
  %v3938 = vsel %vm3937, %v3935, %v3932
  %v3939 = vadd.f32 %v3882, 1.0
  %v3940 = vlog2.pop %v3939
  %v3941 = vmul.f32 %v3940, 0.6931472
  %v3942 = vmul.f32 -0.5, %v3882
  %v3943 = vadd.f32 %v3942, 1.0
  %v3944 = vmul.f32 %v3943, %v3882
  %v3945 = vand.u32 2147483647, %v3882
  %vm3946 = vcmp.lt.f32.partialorder %v3945, 0.0004427343
  %v3947 = vsel %vm3946, %v3944, %v3941
  %v3948 = vadd.f32 %v3884, 1.0
  %v3949 = vlog2.pop %v3948
  %v3950 = vmul.f32 %v3949, 0.6931472
  %v3951 = vmul.f32 -0.5, %v3884
  %v3952 = vadd.f32 %v3951, 1.0
  %v3953 = vmul.f32 %v3952, %v3884
  %v3954 = vand.u32 2147483647, %v3884
  %vm3955 = vcmp.lt.f32.partialorder %v3954, 0.0004427343
  %v3956 = vsel %vm3955, %v3953, %v3950
  %v3957 = vadd.f32 %v3845, %v3893
  %v3958 = vadd.f32 %v3846, %v3902
  %v3959 = vadd.f32 %v3847, %v3911
  %v3960 = vadd.f32 %v3848, %v3920
  %v3961 = vadd.f32 %v3849, %v3929
  %v3962 = vadd.f32 %v3850, %v3938
  %v3963 = vadd.f32 %v3851, %v3947
  %v3964 = vadd.f32 %v3852, %v3956
  %v3965 = vld [vmem:[%s4 + $0x2a0] sm:$0xff]
  %v3966 = vld [vmem:[%s4 + $0x2a8] sm:$0xff]
  %v3967 = vld [vmem:[%s4 + $0x2b0] sm:$0xff]
  %v3968 = vld [vmem:[%s4 + $0x2b8] sm:$0xff]
  %v3969 = vld [vmem:[%s4 + $0x2c0] sm:$0xff]
  %v3970 = vld [vmem:[%s4 + $0x2c8] sm:$0x1]
  %v3971 = vperm.slane %v3970, 0
  %v3973 = vsel %vm1123, %v3957, 0
  %v3976 = vsel %vm1123, %v3958, 0
  %v3979 = vsel %vm1123, %v3959, 0
  %v3982 = vsel %vm1123, %v3960, 0
  %v3985 = vsel %vm1123, %v3961, 0
  %v3988 = vsel %vm1123, %v3962, 0
  %v3991 = vsel %vm1123, %v3963, 0
  %v3994 = vsel %vm1123, %v3964, 0
  %3996 = vmatpush.msra.mxu0 0.0
  %3997 = vmatpush.msra.mxu0 0.0
  %3998 = vmatpush.msra.mxu0 0.0
  %3999 = vmatpush.msra.mxu0 0.0
  %4000 = vmatpush.msra.mxu0 0.0
  %4001 = vmatpush.msra.mxu0 0.0
  %4002 = vmatpush.msra.mxu0 0.0
  %4003 = vmatpush.msra.mxu0 0.0
  %4004 = vmatpush.msra.mxu0 0.0
  %4005 = vmatpush.msra.mxu0 0.0
  %4006 = vmatpush.msra.mxu0 0.0
  %4007 = vmatpush.msra.mxu0 %v3969
  %4008 = vmatpush.msra.mxu0 %v3968
  %4009 = vmatpush.msra.mxu0 %v3967
  %4010 = vmatpush.msra.mxu0 %v3966
  %4011 = vmatpush.msra.mxu0 %v3965
  %4012 = vmatmul.f32.gmra.mxu0 %v3973
  %v4013 = vpop.f32.mrf.mxu0
  %v4014 = vadd.f32 %v3971, %v4013
  %4015 = vmatmul.f32.gmra.mxu0 %v3976
  %v4016 = vpop.f32.mrf.mxu0
  %v4017 = vadd.f32 %v3971, %v4016
  %4018 = vmatmul.f32.gmra.mxu0 %v3979
  %v4019 = vpop.f32.mrf.mxu0
  %v4020 = vadd.f32 %v3971, %v4019
  %4021 = vmatmul.f32.gmra.mxu0 %v3982
  %v4022 = vpop.f32.mrf.mxu0
  %v4023 = vadd.f32 %v3971, %v4022
  %4024 = vmatmul.f32.gmra.mxu0 %v3985
  %v4025 = vpop.f32.mrf.mxu0
  %v4026 = vadd.f32 %v3971, %v4025
  %4027 = vmatmul.f32.gmra.mxu0 %v3988
  %v4028 = vpop.f32.mrf.mxu0
  %v4029 = vadd.f32 %v3971, %v4028
  %4030 = vmatmul.f32.gmra.mxu0 %v3991
  %v4031 = vpop.f32.mrf.mxu0
  %v4032 = vadd.f32 %v3971, %v4031
  %4033 = vmatmul.f32.gmra.mxu0 %v3994
  %v4034 = vpop.f32.mrf.mxu0
  %v4035 = vadd.f32 %v3971, %v4034
  %4036 = vdwg.mxu0
  %v4037 = vadd.f32 %v3630, %v4014
  %v4038 = vadd.f32 %v3633, %v4017
  %v4039 = vadd.f32 %v3636, %v4020
  %v4040 = vadd.f32 %v3639, %v4023
  %v4041 = vadd.f32 %v3642, %v4026
  %v4042 = vadd.f32 %v3645, %v4029
  %v4043 = vadd.f32 %v3648, %v4032
  %v4044 = vadd.f32 %v3651, %v4035
  %v4045 = vmax.f32 %v4037, 0.0
  %v4046 = vmax.f32 %v4038, 0.0
  %v4047 = vmax.f32 %v4039, 0.0
  %v4048 = vmax.f32 %v4040, 0.0
  %v4049 = vmax.f32 %v4041, 0.0
  %v4050 = vmax.f32 %v4042, 0.0
  %v4051 = vmax.f32 %v4043, 0.0
  %v4052 = vmax.f32 %v4044, 0.0
  %v4053 = vand.u32 2147483647, %v4037
  %v4054 = vand.u32 2147483647, %v4038
  %v4055 = vand.u32 2147483647, %v4039
  %v4056 = vand.u32 2147483647, %v4040
  %v4057 = vand.u32 2147483647, %v4041
  %v4058 = vand.u32 2147483647, %v4042
  %v4059 = vand.u32 2147483647, %v4043
  %v4060 = vand.u32 2147483647, %v4044
  %v4061 = vsub.f32 0.0, %v4053
  %v4062 = vsub.f32 0.0, %v4054
  %v4063 = vsub.f32 0.0, %v4055
  %v4064 = vsub.f32 0.0, %v4056
  %v4065 = vsub.f32 0.0, %v4057
  %v4066 = vsub.f32 0.0, %v4058
  %v4067 = vsub.f32 0.0, %v4059
  %v4068 = vsub.f32 0.0, %v4060
  %v4069 = vmul.f32 %v4061, 1.442695
  %v4070 = vpow.pop %v4069
  %v4071 = vmul.f32 %v4062, 1.442695
  %v4072 = vpow.pop %v4071
  %v4073 = vmul.f32 %v4063, 1.442695
  %v4074 = vpow.pop %v4073
  %v4075 = vmul.f32 %v4064, 1.442695
  %v4076 = vpow.pop %v4075
  %v4077 = vmul.f32 %v4065, 1.442695
  %v4078 = vpow.pop %v4077
  %v4079 = vmul.f32 %v4066, 1.442695
  %v4080 = vpow.pop %v4079
  %v4081 = vmul.f32 %v4067, 1.442695
  %v4082 = vpow.pop %v4081
  %v4083 = vmul.f32 %v4068, 1.442695
  %v4084 = vpow.pop %v4083
  %v4085 = vadd.f32 %v4070, 1.0
  %v4086 = vlog2.pop %v4085
  %v4087 = vmul.f32 %v4086, 0.6931472
  %v4088 = vmul.f32 -0.5, %v4070
  %v4089 = vadd.f32 %v4088, 1.0
  %v4090 = vmul.f32 %v4089, %v4070
  %v4091 = vand.u32 2147483647, %v4070
  %vm4092 = vcmp.lt.f32.partialorder %v4091, 0.0004427343
  %v4093 = vsel %vm4092, %v4090, %v4087
  %v4094 = vadd.f32 %v4072, 1.0
  %v4095 = vlog2.pop %v4094
  %v4096 = vmul.f32 %v4095, 0.6931472
  %v4097 = vmul.f32 -0.5, %v4072
  %v4098 = vadd.f32 %v4097, 1.0
  %v4099 = vmul.f32 %v4098, %v4072
  %v4100 = vand.u32 2147483647, %v4072
  %vm4101 = vcmp.lt.f32.partialorder %v4100, 0.0004427343
  %v4102 = vsel %vm4101, %v4099, %v4096
  %v4103 = vadd.f32 %v4074, 1.0
  %v4104 = vlog2.pop %v4103
  %v4105 = vmul.f32 %v4104, 0.6931472
  %v4106 = vmul.f32 -0.5, %v4074
  %v4107 = vadd.f32 %v4106, 1.0
  %v4108 = vmul.f32 %v4107, %v4074
  %v4109 = vand.u32 2147483647, %v4074
  %vm4110 = vcmp.lt.f32.partialorder %v4109, 0.0004427343
  %v4111 = vsel %vm4110, %v4108, %v4105
  %v4112 = vadd.f32 %v4076, 1.0
  %v4113 = vlog2.pop %v4112
  %v4114 = vmul.f32 %v4113, 0.6931472
  %v4115 = vmul.f32 -0.5, %v4076
  %v4116 = vadd.f32 %v4115, 1.0
  %v4117 = vmul.f32 %v4116, %v4076
  %v4118 = vand.u32 2147483647, %v4076
  %vm4119 = vcmp.lt.f32.partialorder %v4118, 0.0004427343
  %v4120 = vsel %vm4119, %v4117, %v4114
  %v4121 = vadd.f32 %v4078, 1.0
  %v4122 = vlog2.pop %v4121
  %v4123 = vmul.f32 %v4122, 0.6931472
  %v4124 = vmul.f32 -0.5, %v4078
  %v4125 = vadd.f32 %v4124, 1.0
  %v4126 = vmul.f32 %v4125, %v4078
  %v4127 = vand.u32 2147483647, %v4078
  %vm4128 = vcmp.lt.f32.partialorder %v4127, 0.0004427343
  %v4129 = vsel %vm4128, %v4126, %v4123
  %v4130 = vadd.f32 %v4080, 1.0
  %v4131 = vlog2.pop %v4130
  %v4132 = vmul.f32 %v4131, 0.6931472
  %v4133 = vmul.f32 -0.5, %v4080
  %v4134 = vadd.f32 %v4133, 1.0
  %v4135 = vmul.f32 %v4134, %v4080
  %v4136 = vand.u32 2147483647, %v4080
  %vm4137 = vcmp.lt.f32.partialorder %v4136, 0.0004427343
  %v4138 = vsel %vm4137, %v4135, %v4132
  %v4139 = vadd.f32 %v4082, 1.0
  %v4140 = vlog2.pop %v4139
  %v4141 = vmul.f32 %v4140, 0.6931472
  %v4142 = vmul.f32 -0.5, %v4082
  %v4143 = vadd.f32 %v4142, 1.0
  %v4144 = vmul.f32 %v4143, %v4082
  %v4145 = vand.u32 2147483647, %v4082
  %vm4146 = vcmp.lt.f32.partialorder %v4145, 0.0004427343
  %v4147 = vsel %vm4146, %v4144, %v4141
  %v4148 = vadd.f32 %v4084, 1.0
  %v4149 = vlog2.pop %v4148
  %v4150 = vmul.f32 %v4149, 0.6931472
  %v4151 = vmul.f32 -0.5, %v4084
  %v4152 = vadd.f32 %v4151, 1.0
  %v4153 = vmul.f32 %v4152, %v4084
  %v4154 = vand.u32 2147483647, %v4084
  %vm4155 = vcmp.lt.f32.partialorder %v4154, 0.0004427343
  %v4156 = vsel %vm4155, %v4153, %v4150
  %v4157 = vadd.f32 %v4045, %v4093
  %v4158 = vadd.f32 %v4046, %v4102
  %v4159 = vadd.f32 %v4047, %v4111
  %v4160 = vadd.f32 %v4048, %v4120
  %v4161 = vadd.f32 %v4049, %v4129
  %v4162 = vadd.f32 %v4050, %v4138
  %v4163 = vadd.f32 %v4051, %v4147
  %v4164 = vadd.f32 %v4052, %v4156
  %v4165 = vld [vmem:[%s4 + $0x2d0] sm:$0xff]
  %v4166 = vld [vmem:[%s4 + $0x2d8] sm:$0xff]
  %v4167 = vld [vmem:[%s4 + $0x2e0] sm:$0xff]
  %v4168 = vld [vmem:[%s4 + $0x2e8] sm:$0xff]
  %v4169 = vld [vmem:[%s4 + $0x2f0] sm:$0xff]
  %v4170 = vld [vmem:[%s4 + $0x2f8] sm:$0x1]
  %v4171 = vperm.slane %v4170, 0
  %v4173 = vsel %vm1123, %v4157, 0
  %v4176 = vsel %vm1123, %v4158, 0
  %v4179 = vsel %vm1123, %v4159, 0
  %v4182 = vsel %vm1123, %v4160, 0
  %v4185 = vsel %vm1123, %v4161, 0
  %v4188 = vsel %vm1123, %v4162, 0
  %v4191 = vsel %vm1123, %v4163, 0
  %v4194 = vsel %vm1123, %v4164, 0
  %4196 = vmatpush.msra.mxu0 0.0
  %4197 = vmatpush.msra.mxu0 0.0
  %4198 = vmatpush.msra.mxu0 0.0
  %4199 = vmatpush.msra.mxu0 0.0
  %4200 = vmatpush.msra.mxu0 0.0
  %4201 = vmatpush.msra.mxu0 0.0
  %4202 = vmatpush.msra.mxu0 0.0
  %4203 = vmatpush.msra.mxu0 0.0
  %4204 = vmatpush.msra.mxu0 0.0
  %4205 = vmatpush.msra.mxu0 0.0
  %4206 = vmatpush.msra.mxu0 0.0
  %4207 = vmatpush.msra.mxu0 %v4169
  %4208 = vmatpush.msra.mxu0 %v4168
  %4209 = vmatpush.msra.mxu0 %v4167
  %4210 = vmatpush.msra.mxu0 %v4166
  %4211 = vmatpush.msra.mxu0 %v4165
  %4212 = vmatmul.f32.gmra.mxu0 %v4173
  %v4213 = vpop.f32.mrf.mxu0
  %v4214 = vadd.f32 %v4171, %v4213
  %4215 = vmatmul.f32.gmra.mxu0 %v4176
  %v4216 = vpop.f32.mrf.mxu0
  %v4217 = vadd.f32 %v4171, %v4216
  %4218 = vmatmul.f32.gmra.mxu0 %v4179
  %v4219 = vpop.f32.mrf.mxu0
  %v4220 = vadd.f32 %v4171, %v4219
  %4221 = vmatmul.f32.gmra.mxu0 %v4182
  %v4222 = vpop.f32.mrf.mxu0
  %v4223 = vadd.f32 %v4171, %v4222
  %4224 = vmatmul.f32.gmra.mxu0 %v4185
  %v4225 = vpop.f32.mrf.mxu0
  %v4226 = vadd.f32 %v4171, %v4225
  %4227 = vmatmul.f32.gmra.mxu0 %v4188
  %v4228 = vpop.f32.mrf.mxu0
  %v4229 = vadd.f32 %v4171, %v4228
  %4230 = vmatmul.f32.gmra.mxu0 %v4191
  %v4231 = vpop.f32.mrf.mxu0
  %v4232 = vadd.f32 %v4171, %v4231
  %4233 = vmatmul.f32.gmra.mxu0 %v4194
  %v4234 = vpop.f32.mrf.mxu0
  %v4235 = vadd.f32 %v4171, %v4234
  %4236 = vdwg.mxu0
  %v4237 = vmax.f32 %v4214, 0.0
  %v4238 = vmax.f32 %v4217, 0.0
  %v4239 = vmax.f32 %v4220, 0.0
  %v4240 = vmax.f32 %v4223, 0.0
  %v4241 = vmax.f32 %v4226, 0.0
  %v4242 = vmax.f32 %v4229, 0.0
  %v4243 = vmax.f32 %v4232, 0.0
  %v4244 = vmax.f32 %v4235, 0.0
  %v4245 = vand.u32 2147483647, %v4214
  %v4246 = vand.u32 2147483647, %v4217
  %v4247 = vand.u32 2147483647, %v4220
  %v4248 = vand.u32 2147483647, %v4223
  %v4249 = vand.u32 2147483647, %v4226
  %v4250 = vand.u32 2147483647, %v4229
  %v4251 = vand.u32 2147483647, %v4232
  %v4252 = vand.u32 2147483647, %v4235
  %v4253 = vsub.f32 0.0, %v4245
  %v4254 = vsub.f32 0.0, %v4246
  %v4255 = vsub.f32 0.0, %v4247
  %v4256 = vsub.f32 0.0, %v4248
  %v4257 = vsub.f32 0.0, %v4249
  %v4258 = vsub.f32 0.0, %v4250
  %v4259 = vsub.f32 0.0, %v4251
  %v4260 = vsub.f32 0.0, %v4252
  %v4261 = vmul.f32 %v4253, 1.442695
  %v4262 = vpow.pop %v4261
  %v4263 = vmul.f32 %v4254, 1.442695
  %v4264 = vpow.pop %v4263
  %v4265 = vmul.f32 %v4255, 1.442695
  %v4266 = vpow.pop %v4265
  %v4267 = vmul.f32 %v4256, 1.442695
  %v4268 = vpow.pop %v4267
  %v4269 = vmul.f32 %v4257, 1.442695
  %v4270 = vpow.pop %v4269
  %v4271 = vmul.f32 %v4258, 1.442695
  %v4272 = vpow.pop %v4271
  %v4273 = vmul.f32 %v4259, 1.442695
  %v4274 = vpow.pop %v4273
  %v4275 = vmul.f32 %v4260, 1.442695
  %v4276 = vpow.pop %v4275
  %v4277 = vadd.f32 %v4262, 1.0
  %v4278 = vlog2.pop %v4277
  %v4279 = vmul.f32 %v4278, 0.6931472
  %v4280 = vmul.f32 -0.5, %v4262
  %v4281 = vadd.f32 %v4280, 1.0
  %v4282 = vmul.f32 %v4281, %v4262
  %v4283 = vand.u32 2147483647, %v4262
  %vm4284 = vcmp.lt.f32.partialorder %v4283, 0.0004427343
  %v4285 = vsel %vm4284, %v4282, %v4279
  %v4286 = vadd.f32 %v4264, 1.0
  %v4287 = vlog2.pop %v4286
  %v4288 = vmul.f32 %v4287, 0.6931472
  %v4289 = vmul.f32 -0.5, %v4264
  %v4290 = vadd.f32 %v4289, 1.0
  %v4291 = vmul.f32 %v4290, %v4264
  %v4292 = vand.u32 2147483647, %v4264
  %vm4293 = vcmp.lt.f32.partialorder %v4292, 0.0004427343
  %v4294 = vsel %vm4293, %v4291, %v4288
  %v4295 = vadd.f32 %v4266, 1.0
  %v4296 = vlog2.pop %v4295
  %v4297 = vmul.f32 %v4296, 0.6931472
  %v4298 = vmul.f32 -0.5, %v4266
  %v4299 = vadd.f32 %v4298, 1.0
  %v4300 = vmul.f32 %v4299, %v4266
  %v4301 = vand.u32 2147483647, %v4266
  %vm4302 = vcmp.lt.f32.partialorder %v4301, 0.0004427343
  %v4303 = vsel %vm4302, %v4300, %v4297
  %v4304 = vadd.f32 %v4268, 1.0
  %v4305 = vlog2.pop %v4304
  %v4306 = vmul.f32 %v4305, 0.6931472
  %v4307 = vmul.f32 -0.5, %v4268
  %v4308 = vadd.f32 %v4307, 1.0
  %v4309 = vmul.f32 %v4308, %v4268
  %v4310 = vand.u32 2147483647, %v4268
  %vm4311 = vcmp.lt.f32.partialorder %v4310, 0.0004427343
  %v4312 = vsel %vm4311, %v4309, %v4306
  %v4313 = vadd.f32 %v4270, 1.0
  %v4314 = vlog2.pop %v4313
  %v4315 = vmul.f32 %v4314, 0.6931472
  %v4316 = vmul.f32 -0.5, %v4270
  %v4317 = vadd.f32 %v4316, 1.0
  %v4318 = vmul.f32 %v4317, %v4270
  %v4319 = vand.u32 2147483647, %v4270
  %vm4320 = vcmp.lt.f32.partialorder %v4319, 0.0004427343
  %v4321 = vsel %vm4320, %v4318, %v4315
  %v4322 = vadd.f32 %v4272, 1.0
  %v4323 = vlog2.pop %v4322
  %v4324 = vmul.f32 %v4323, 0.6931472
  %v4325 = vmul.f32 -0.5, %v4272
  %v4326 = vadd.f32 %v4325, 1.0
  %v4327 = vmul.f32 %v4326, %v4272
  %v4328 = vand.u32 2147483647, %v4272
  %vm4329 = vcmp.lt.f32.partialorder %v4328, 0.0004427343
  %v4330 = vsel %vm4329, %v4327, %v4324
  %v4331 = vadd.f32 %v4274, 1.0
  %v4332 = vlog2.pop %v4331
  %v4333 = vmul.f32 %v4332, 0.6931472
  %v4334 = vmul.f32 -0.5, %v4274
  %v4335 = vadd.f32 %v4334, 1.0
  %v4336 = vmul.f32 %v4335, %v4274
  %v4337 = vand.u32 2147483647, %v4274
  %vm4338 = vcmp.lt.f32.partialorder %v4337, 0.0004427343
  %v4339 = vsel %vm4338, %v4336, %v4333
  %v4340 = vadd.f32 %v4276, 1.0
  %v4341 = vlog2.pop %v4340
  %v4342 = vmul.f32 %v4341, 0.6931472
  %v4343 = vmul.f32 -0.5, %v4276
  %v4344 = vadd.f32 %v4343, 1.0
  %v4345 = vmul.f32 %v4344, %v4276
  %v4346 = vand.u32 2147483647, %v4276
  %vm4347 = vcmp.lt.f32.partialorder %v4346, 0.0004427343
  %v4348 = vsel %vm4347, %v4345, %v4342
  %v4349 = vadd.f32 %v4237, %v4285
  %v4350 = vadd.f32 %v4238, %v4294
  %v4351 = vadd.f32 %v4239, %v4303
  %v4352 = vadd.f32 %v4240, %v4312
  %v4353 = vadd.f32 %v4241, %v4321
  %v4354 = vadd.f32 %v4242, %v4330
  %v4355 = vadd.f32 %v4243, %v4339
  %v4356 = vadd.f32 %v4244, %v4348
  %v4357 = vld [vmem:[%s4 + $0x300] sm:$0xff]
  %v4358 = vld [vmem:[%s4 + $0x308] sm:$0xff]
  %v4359 = vld [vmem:[%s4 + $0x310] sm:$0xff]
  %v4360 = vld [vmem:[%s4 + $0x318] sm:$0xff]
  %v4361 = vld [vmem:[%s4 + $0x320] sm:$0xff]
  %v4362 = vld [vmem:[%s4 + $0x328] sm:$0x1]
  %v4363 = vperm.slane %v4362, 0
  %v4365 = vsel %vm1123, %v4349, 0
  %v4368 = vsel %vm1123, %v4350, 0
  %v4371 = vsel %vm1123, %v4351, 0
  %v4374 = vsel %vm1123, %v4352, 0
  %v4377 = vsel %vm1123, %v4353, 0
  %v4380 = vsel %vm1123, %v4354, 0
  %v4383 = vsel %vm1123, %v4355, 0
  %v4386 = vsel %vm1123, %v4356, 0
  %4388 = vmatpush.msra.mxu0 0.0
  %4389 = vmatpush.msra.mxu0 0.0
  %4390 = vmatpush.msra.mxu0 0.0
  %4391 = vmatpush.msra.mxu0 0.0
  %4392 = vmatpush.msra.mxu0 0.0
  %4393 = vmatpush.msra.mxu0 0.0
  %4394 = vmatpush.msra.mxu0 0.0
  %4395 = vmatpush.msra.mxu0 0.0
  %4396 = vmatpush.msra.mxu0 0.0
  %4397 = vmatpush.msra.mxu0 0.0
  %4398 = vmatpush.msra.mxu0 0.0
  %4399 = vmatpush.msra.mxu0 %v4361
  %4400 = vmatpush.msra.mxu0 %v4360
  %4401 = vmatpush.msra.mxu0 %v4359
  %4402 = vmatpush.msra.mxu0 %v4358
  %4403 = vmatpush.msra.mxu0 %v4357
  %4404 = vmatmul.f32.gmra.mxu0 %v4365
  %v4405 = vpop.f32.mrf.mxu0
  %v4406 = vadd.f32 %v4363, %v4405
  %4407 = vmatmul.f32.gmra.mxu0 %v4368
  %v4408 = vpop.f32.mrf.mxu0
  %v4409 = vadd.f32 %v4363, %v4408
  %4410 = vmatmul.f32.gmra.mxu0 %v4371
  %v4411 = vpop.f32.mrf.mxu0
  %v4412 = vadd.f32 %v4363, %v4411
  %4413 = vmatmul.f32.gmra.mxu0 %v4374
  %v4414 = vpop.f32.mrf.mxu0
  %v4415 = vadd.f32 %v4363, %v4414
  %4416 = vmatmul.f32.gmra.mxu0 %v4377
  %v4417 = vpop.f32.mrf.mxu0
  %v4418 = vadd.f32 %v4363, %v4417
  %4419 = vmatmul.f32.gmra.mxu0 %v4380
  %v4420 = vpop.f32.mrf.mxu0
  %v4421 = vadd.f32 %v4363, %v4420
  %4422 = vmatmul.f32.gmra.mxu0 %v4383
  %v4423 = vpop.f32.mrf.mxu0
  %v4424 = vadd.f32 %v4363, %v4423
  %4425 = vmatmul.f32.gmra.mxu0 %v4386
  %v4426 = vpop.f32.mrf.mxu0
  %v4427 = vadd.f32 %v4363, %v4426
  %4428 = vdwg.mxu0
  %v4429 = vadd.f32 %v4037, %v4406
  %v4430 = vadd.f32 %v4038, %v4409
  %v4431 = vadd.f32 %v4039, %v4412
  %v4432 = vadd.f32 %v4040, %v4415
  %v4433 = vadd.f32 %v4041, %v4418
  %v4434 = vadd.f32 %v4042, %v4421
  %v4435 = vadd.f32 %v4043, %v4424
  %v4436 = vadd.f32 %v4044, %v4427
  %v4437 = vmax.f32 %v4429, 0.0
  %v4438 = vmax.f32 %v4430, 0.0
  %v4439 = vmax.f32 %v4431, 0.0
  %v4440 = vmax.f32 %v4432, 0.0
  %v4441 = vmax.f32 %v4433, 0.0
  %v4442 = vmax.f32 %v4434, 0.0
  %v4443 = vmax.f32 %v4435, 0.0
  %v4444 = vmax.f32 %v4436, 0.0
  %v4445 = vand.u32 2147483647, %v4429
  %v4446 = vand.u32 2147483647, %v4430
  %v4447 = vand.u32 2147483647, %v4431
  %v4448 = vand.u32 2147483647, %v4432
  %v4449 = vand.u32 2147483647, %v4433
  %v4450 = vand.u32 2147483647, %v4434
  %v4451 = vand.u32 2147483647, %v4435
  %v4452 = vand.u32 2147483647, %v4436
  %v4453 = vsub.f32 0.0, %v4445
  %v4454 = vsub.f32 0.0, %v4446
  %v4455 = vsub.f32 0.0, %v4447
  %v4456 = vsub.f32 0.0, %v4448
  %v4457 = vsub.f32 0.0, %v4449
  %v4458 = vsub.f32 0.0, %v4450
  %v4459 = vsub.f32 0.0, %v4451
  %v4460 = vsub.f32 0.0, %v4452
  %v4461 = vmul.f32 %v4453, 1.442695
  %v4462 = vpow.pop %v4461
  %v4463 = vmul.f32 %v4454, 1.442695
  %v4464 = vpow.pop %v4463
  %v4465 = vmul.f32 %v4455, 1.442695
  %v4466 = vpow.pop %v4465
  %v4467 = vmul.f32 %v4456, 1.442695
  %v4468 = vpow.pop %v4467
  %v4469 = vmul.f32 %v4457, 1.442695
  %v4470 = vpow.pop %v4469
  %v4471 = vmul.f32 %v4458, 1.442695
  %v4472 = vpow.pop %v4471
  %v4473 = vmul.f32 %v4459, 1.442695
  %v4474 = vpow.pop %v4473
  %v4475 = vmul.f32 %v4460, 1.442695
  %v4476 = vpow.pop %v4475
  %v4477 = vadd.f32 %v4462, 1.0
  %v4478 = vlog2.pop %v4477
  %v4479 = vmul.f32 %v4478, 0.6931472
  %v4480 = vmul.f32 -0.5, %v4462
  %v4481 = vadd.f32 %v4480, 1.0
  %v4482 = vmul.f32 %v4481, %v4462
  %v4483 = vand.u32 2147483647, %v4462
  %vm4484 = vcmp.lt.f32.partialorder %v4483, 0.0004427343
  %v4485 = vsel %vm4484, %v4482, %v4479
  %v4486 = vadd.f32 %v4464, 1.0
  %v4487 = vlog2.pop %v4486
  %v4488 = vmul.f32 %v4487, 0.6931472
  %v4489 = vmul.f32 -0.5, %v4464
  %v4490 = vadd.f32 %v4489, 1.0
  %v4491 = vmul.f32 %v4490, %v4464
  %v4492 = vand.u32 2147483647, %v4464
  %vm4493 = vcmp.lt.f32.partialorder %v4492, 0.0004427343
  %v4494 = vsel %vm4493, %v4491, %v4488
  %v4495 = vadd.f32 %v4466, 1.0
  %v4496 = vlog2.pop %v4495
  %v4497 = vmul.f32 %v4496, 0.6931472
  %v4498 = vmul.f32 -0.5, %v4466
  %v4499 = vadd.f32 %v4498, 1.0
  %v4500 = vmul.f32 %v4499, %v4466
  %v4501 = vand.u32 2147483647, %v4466
  %vm4502 = vcmp.lt.f32.partialorder %v4501, 0.0004427343
  %v4503 = vsel %vm4502, %v4500, %v4497
  %v4504 = vadd.f32 %v4468, 1.0
  %v4505 = vlog2.pop %v4504
  %v4506 = vmul.f32 %v4505, 0.6931472
  %v4507 = vmul.f32 -0.5, %v4468
  %v4508 = vadd.f32 %v4507, 1.0
  %v4509 = vmul.f32 %v4508, %v4468
  %v4510 = vand.u32 2147483647, %v4468
  %vm4511 = vcmp.lt.f32.partialorder %v4510, 0.0004427343
  %v4512 = vsel %vm4511, %v4509, %v4506
  %v4513 = vadd.f32 %v4470, 1.0
  %v4514 = vlog2.pop %v4513
  %v4515 = vmul.f32 %v4514, 0.6931472
  %v4516 = vmul.f32 -0.5, %v4470
  %v4517 = vadd.f32 %v4516, 1.0
  %v4518 = vmul.f32 %v4517, %v4470
  %v4519 = vand.u32 2147483647, %v4470
  %vm4520 = vcmp.lt.f32.partialorder %v4519, 0.0004427343
  %v4521 = vsel %vm4520, %v4518, %v4515
  %v4522 = vadd.f32 %v4472, 1.0
  %v4523 = vlog2.pop %v4522
  %v4524 = vmul.f32 %v4523, 0.6931472
  %v4525 = vmul.f32 -0.5, %v4472
  %v4526 = vadd.f32 %v4525, 1.0
  %v4527 = vmul.f32 %v4526, %v4472
  %v4528 = vand.u32 2147483647, %v4472
  %vm4529 = vcmp.lt.f32.partialorder %v4528, 0.0004427343
  %v4530 = vsel %vm4529, %v4527, %v4524
  %v4531 = vadd.f32 %v4474, 1.0
  %v4532 = vlog2.pop %v4531
  %v4533 = vmul.f32 %v4532, 0.6931472
  %v4534 = vmul.f32 -0.5, %v4474
  %v4535 = vadd.f32 %v4534, 1.0
  %v4536 = vmul.f32 %v4535, %v4474
  %v4537 = vand.u32 2147483647, %v4474
  %vm4538 = vcmp.lt.f32.partialorder %v4537, 0.0004427343
  %v4539 = vsel %vm4538, %v4536, %v4533
  %v4540 = vadd.f32 %v4476, 1.0
  %v4541 = vlog2.pop %v4540
  %v4542 = vmul.f32 %v4541, 0.6931472
  %v4543 = vmul.f32 -0.5, %v4476
  %v4544 = vadd.f32 %v4543, 1.0
  %v4545 = vmul.f32 %v4544, %v4476
  %v4546 = vand.u32 2147483647, %v4476
  %vm4547 = vcmp.lt.f32.partialorder %v4546, 0.0004427343
  %v4548 = vsel %vm4547, %v4545, %v4542
  %v4549 = vadd.f32 %v4437, %v4485
  %v4550 = vadd.f32 %v4438, %v4494
  %v4551 = vadd.f32 %v4439, %v4503
  %v4552 = vadd.f32 %v4440, %v4512
  %v4553 = vadd.f32 %v4441, %v4521
  %v4554 = vadd.f32 %v4442, %v4530
  %v4555 = vadd.f32 %v4443, %v4539
  %v4556 = vadd.f32 %v4444, %v4548
  %v4557 = vld [vmem:[%s4 + $0x330] sm:$0xff]
  %v4558 = vld [vmem:[%s4 + $0x338] sm:$0xff]
  %v4559 = vld [vmem:[%s4 + $0x340] sm:$0xff]
  %v4560 = vld [vmem:[%s4 + $0x348] sm:$0xff]
  %v4561 = vld [vmem:[%s4 + $0x350] sm:$0xff]
  %v4562 = vld [vmem:[%s4 + $0x358] sm:$0x1]
  %v4563 = vperm.slane %v4562, 0
  %v4565 = vsel %vm1123, %v4549, 0
  %v4568 = vsel %vm1123, %v4550, 0
  %v4571 = vsel %vm1123, %v4551, 0
  %v4574 = vsel %vm1123, %v4552, 0
  %v4577 = vsel %vm1123, %v4553, 0
  %v4580 = vsel %vm1123, %v4554, 0
  %v4583 = vsel %vm1123, %v4555, 0
  %v4586 = vsel %vm1123, %v4556, 0
  %4588 = vmatpush.msra.mxu0 0.0
  %4589 = vmatpush.msra.mxu0 0.0
  %4590 = vmatpush.msra.mxu0 0.0
  %4591 = vmatpush.msra.mxu0 0.0
  %4592 = vmatpush.msra.mxu0 0.0
  %4593 = vmatpush.msra.mxu0 0.0
  %4594 = vmatpush.msra.mxu0 0.0
  %4595 = vmatpush.msra.mxu0 0.0
  %4596 = vmatpush.msra.mxu0 0.0
  %4597 = vmatpush.msra.mxu0 0.0
  %4598 = vmatpush.msra.mxu0 0.0
  %4599 = vmatpush.msra.mxu0 %v4561
  %4600 = vmatpush.msra.mxu0 %v4560
  %4601 = vmatpush.msra.mxu0 %v4559
  %4602 = vmatpush.msra.mxu0 %v4558
  %4603 = vmatpush.msra.mxu0 %v4557
  %4604 = vmatmul.f32.gmra.mxu0 %v4565
  %v4605 = vpop.f32.mrf.mxu0
  %v4606 = vadd.f32 %v4563, %v4605
  %4607 = vmatmul.f32.gmra.mxu0 %v4568
  %v4608 = vpop.f32.mrf.mxu0
  %v4609 = vadd.f32 %v4563, %v4608
  %4610 = vmatmul.f32.gmra.mxu0 %v4571
  %v4611 = vpop.f32.mrf.mxu0
  %v4612 = vadd.f32 %v4563, %v4611
  %4613 = vmatmul.f32.gmra.mxu0 %v4574
  %v4614 = vpop.f32.mrf.mxu0
  %v4615 = vadd.f32 %v4563, %v4614
  %4616 = vmatmul.f32.gmra.mxu0 %v4577
  %v4617 = vpop.f32.mrf.mxu0
  %v4618 = vadd.f32 %v4563, %v4617
  %4619 = vmatmul.f32.gmra.mxu0 %v4580
  %v4620 = vpop.f32.mrf.mxu0
  %v4621 = vadd.f32 %v4563, %v4620
  %4622 = vmatmul.f32.gmra.mxu0 %v4583
  %v4623 = vpop.f32.mrf.mxu0
  %v4624 = vadd.f32 %v4563, %v4623
  %4625 = vmatmul.f32.gmra.mxu0 %v4586
  %v4626 = vpop.f32.mrf.mxu0
  %v4627 = vadd.f32 %v4563, %v4626
  %4628 = vdwg.mxu0
  %v4629 = vmax.f32 %v4606, 0.0
  %v4630 = vmax.f32 %v4609, 0.0
  %v4631 = vmax.f32 %v4612, 0.0
  %v4632 = vmax.f32 %v4615, 0.0
  %v4633 = vmax.f32 %v4618, 0.0
  %v4634 = vmax.f32 %v4621, 0.0
  %v4635 = vmax.f32 %v4624, 0.0
  %v4636 = vmax.f32 %v4627, 0.0
  %v4637 = vand.u32 2147483647, %v4606
  %v4638 = vand.u32 2147483647, %v4609
  %v4639 = vand.u32 2147483647, %v4612
  %v4640 = vand.u32 2147483647, %v4615
  %v4641 = vand.u32 2147483647, %v4618
  %v4642 = vand.u32 2147483647, %v4621
  %v4643 = vand.u32 2147483647, %v4624
  %v4644 = vand.u32 2147483647, %v4627
  %v4645 = vsub.f32 0.0, %v4637
  %v4646 = vsub.f32 0.0, %v4638
  %v4647 = vsub.f32 0.0, %v4639
  %v4648 = vsub.f32 0.0, %v4640
  %v4649 = vsub.f32 0.0, %v4641
  %v4650 = vsub.f32 0.0, %v4642
  %v4651 = vsub.f32 0.0, %v4643
  %v4652 = vsub.f32 0.0, %v4644
  %v4653 = vmul.f32 %v4645, 1.442695
  %v4654 = vpow.pop %v4653
  %v4655 = vmul.f32 %v4646, 1.442695
  %v4656 = vpow.pop %v4655
  %v4657 = vmul.f32 %v4647, 1.442695
  %v4658 = vpow.pop %v4657
  %v4659 = vmul.f32 %v4648, 1.442695
  %v4660 = vpow.pop %v4659
  %v4661 = vmul.f32 %v4649, 1.442695
  %v4662 = vpow.pop %v4661
  %v4663 = vmul.f32 %v4650, 1.442695
  %v4664 = vpow.pop %v4663
  %v4665 = vmul.f32 %v4651, 1.442695
  %v4666 = vpow.pop %v4665
  %v4667 = vmul.f32 %v4652, 1.442695
  %v4668 = vpow.pop %v4667
  %v4669 = vadd.f32 %v4654, 1.0
  %v4670 = vlog2.pop %v4669
  %v4671 = vmul.f32 %v4670, 0.6931472
  %v4672 = vmul.f32 -0.5, %v4654
  %v4673 = vadd.f32 %v4672, 1.0
  %v4674 = vmul.f32 %v4673, %v4654
  %v4675 = vand.u32 2147483647, %v4654
  %vm4676 = vcmp.lt.f32.partialorder %v4675, 0.0004427343
  %v4677 = vsel %vm4676, %v4674, %v4671
  %v4678 = vadd.f32 %v4656, 1.0
  %v4679 = vlog2.pop %v4678
  %v4680 = vmul.f32 %v4679, 0.6931472
  %v4681 = vmul.f32 -0.5, %v4656
  %v4682 = vadd.f32 %v4681, 1.0
  %v4683 = vmul.f32 %v4682, %v4656
  %v4684 = vand.u32 2147483647, %v4656
  %vm4685 = vcmp.lt.f32.partialorder %v4684, 0.0004427343
  %v4686 = vsel %vm4685, %v4683, %v4680
  %v4687 = vadd.f32 %v4658, 1.0
  %v4688 = vlog2.pop %v4687
  %v4689 = vmul.f32 %v4688, 0.6931472
  %v4690 = vmul.f32 -0.5, %v4658
  %v4691 = vadd.f32 %v4690, 1.0
  %v4692 = vmul.f32 %v4691, %v4658
  %v4693 = vand.u32 2147483647, %v4658
  %vm4694 = vcmp.lt.f32.partialorder %v4693, 0.0004427343
  %v4695 = vsel %vm4694, %v4692, %v4689
  %v4696 = vadd.f32 %v4660, 1.0
  %v4697 = vlog2.pop %v4696
  %v4698 = vmul.f32 %v4697, 0.6931472
  %v4699 = vmul.f32 -0.5, %v4660
  %v4700 = vadd.f32 %v4699, 1.0
  %v4701 = vmul.f32 %v4700, %v4660
  %v4702 = vand.u32 2147483647, %v4660
  %vm4703 = vcmp.lt.f32.partialorder %v4702, 0.0004427343
  %v4704 = vsel %vm4703, %v4701, %v4698
  %v4705 = vadd.f32 %v4662, 1.0
  %v4706 = vlog2.pop %v4705
  %v4707 = vmul.f32 %v4706, 0.6931472
  %v4708 = vmul.f32 -0.5, %v4662
  %v4709 = vadd.f32 %v4708, 1.0
  %v4710 = vmul.f32 %v4709, %v4662
  %v4711 = vand.u32 2147483647, %v4662
  %vm4712 = vcmp.lt.f32.partialorder %v4711, 0.0004427343
  %v4713 = vsel %vm4712, %v4710, %v4707
  %v4714 = vadd.f32 %v4664, 1.0
  %v4715 = vlog2.pop %v4714
  %v4716 = vmul.f32 %v4715, 0.6931472
  %v4717 = vmul.f32 -0.5, %v4664
  %v4718 = vadd.f32 %v4717, 1.0
  %v4719 = vmul.f32 %v4718, %v4664
  %v4720 = vand.u32 2147483647, %v4664
  %vm4721 = vcmp.lt.f32.partialorder %v4720, 0.0004427343
  %v4722 = vsel %vm4721, %v4719, %v4716
  %v4723 = vadd.f32 %v4666, 1.0
  %v4724 = vlog2.pop %v4723
  %v4725 = vmul.f32 %v4724, 0.6931472
  %v4726 = vmul.f32 -0.5, %v4666
  %v4727 = vadd.f32 %v4726, 1.0
  %v4728 = vmul.f32 %v4727, %v4666
  %v4729 = vand.u32 2147483647, %v4666
  %vm4730 = vcmp.lt.f32.partialorder %v4729, 0.0004427343
  %v4731 = vsel %vm4730, %v4728, %v4725
  %v4732 = vadd.f32 %v4668, 1.0
  %v4733 = vlog2.pop %v4732
  %v4734 = vmul.f32 %v4733, 0.6931472
  %v4735 = vmul.f32 -0.5, %v4668
  %v4736 = vadd.f32 %v4735, 1.0
  %v4737 = vmul.f32 %v4736, %v4668
  %v4738 = vand.u32 2147483647, %v4668
  %vm4739 = vcmp.lt.f32.partialorder %v4738, 0.0004427343
  %v4740 = vsel %vm4739, %v4737, %v4734
  %v4741 = vadd.f32 %v4629, %v4677
  %v4742 = vadd.f32 %v4630, %v4686
  %v4743 = vadd.f32 %v4631, %v4695
  %v4744 = vadd.f32 %v4632, %v4704
  %v4745 = vadd.f32 %v4633, %v4713
  %v4746 = vadd.f32 %v4634, %v4722
  %v4747 = vadd.f32 %v4635, %v4731
  %v4748 = vadd.f32 %v4636, %v4740
  %v4749 = vld [vmem:[%s4 + $0x360] sm:$0xff]
  %v4750 = vld [vmem:[%s4 + $0x368] sm:$0xff]
  %v4751 = vld [vmem:[%s4 + $0x370] sm:$0xff]
  %v4752 = vld [vmem:[%s4 + $0x378] sm:$0xff]
  %v4753 = vld [vmem:[%s4 + $0x380] sm:$0xff]
  %v4754 = vld [vmem:[%s4 + $0x388] sm:$0x1]
  %v4755 = vperm.slane %v4754, 0
  %v4757 = vsel %vm1123, %v4741, 0
  %v4760 = vsel %vm1123, %v4742, 0
  %v4763 = vsel %vm1123, %v4743, 0
  %v4766 = vsel %vm1123, %v4744, 0
  %v4769 = vsel %vm1123, %v4745, 0
  %v4772 = vsel %vm1123, %v4746, 0
  %v4775 = vsel %vm1123, %v4747, 0
  %v4778 = vsel %vm1123, %v4748, 0
  %4780 = vmatpush.msra.mxu0 0.0
  %4781 = vmatpush.msra.mxu0 0.0
  %4782 = vmatpush.msra.mxu0 0.0
  %4783 = vmatpush.msra.mxu0 0.0
  %4784 = vmatpush.msra.mxu0 0.0
  %4785 = vmatpush.msra.mxu0 0.0
  %4786 = vmatpush.msra.mxu0 0.0
  %4787 = vmatpush.msra.mxu0 0.0
  %4788 = vmatpush.msra.mxu0 0.0
  %4789 = vmatpush.msra.mxu0 0.0
  %4790 = vmatpush.msra.mxu0 0.0
  %4791 = vmatpush.msra.mxu0 %v4753
  %4792 = vmatpush.msra.mxu0 %v4752
  %4793 = vmatpush.msra.mxu0 %v4751
  %4794 = vmatpush.msra.mxu0 %v4750
  %4795 = vmatpush.msra.mxu0 %v4749
  %4796 = vmatmul.f32.gmra.mxu0 %v4757
  %v4797 = vpop.f32.mrf.mxu0
  %v4798 = vadd.f32 %v4755, %v4797
  %4799 = vmatmul.f32.gmra.mxu0 %v4760
  %v4800 = vpop.f32.mrf.mxu0
  %v4801 = vadd.f32 %v4755, %v4800
  %4802 = vmatmul.f32.gmra.mxu0 %v4763
  %v4803 = vpop.f32.mrf.mxu0
  %v4804 = vadd.f32 %v4755, %v4803
  %4805 = vmatmul.f32.gmra.mxu0 %v4766
  %v4806 = vpop.f32.mrf.mxu0
  %v4807 = vadd.f32 %v4755, %v4806
  %4808 = vmatmul.f32.gmra.mxu0 %v4769
  %v4809 = vpop.f32.mrf.mxu0
  %v4810 = vadd.f32 %v4755, %v4809
  %4811 = vmatmul.f32.gmra.mxu0 %v4772
  %v4812 = vpop.f32.mrf.mxu0
  %v4813 = vadd.f32 %v4755, %v4812
  %4814 = vmatmul.f32.gmra.mxu0 %v4775
  %v4815 = vpop.f32.mrf.mxu0
  %v4816 = vadd.f32 %v4755, %v4815
  %4817 = vmatmul.f32.gmra.mxu0 %v4778
  %v4818 = vpop.f32.mrf.mxu0
  %v4819 = vadd.f32 %v4755, %v4818
  %4820 = vdwg.mxu0
  %v4821 = vadd.f32 %v4429, %v4798
  %v4822 = vadd.f32 %v4430, %v4801
  %v4823 = vadd.f32 %v4431, %v4804
  %v4824 = vadd.f32 %v4432, %v4807
  %v4825 = vadd.f32 %v4433, %v4810
  %v4826 = vadd.f32 %v4434, %v4813
  %v4827 = vadd.f32 %v4435, %v4816
  %v4828 = vadd.f32 %v4436, %v4819
  %v4829 = vmax.f32 %v4821, 0.0
  %v4830 = vmax.f32 %v4822, 0.0
  %v4831 = vmax.f32 %v4823, 0.0
  %v4832 = vmax.f32 %v4824, 0.0
  %v4833 = vmax.f32 %v4825, 0.0
  %v4834 = vmax.f32 %v4826, 0.0
  %v4835 = vmax.f32 %v4827, 0.0
  %v4836 = vmax.f32 %v4828, 0.0
  %v4837 = vand.u32 2147483647, %v4821
  %v4838 = vand.u32 2147483647, %v4822
  %v4839 = vand.u32 2147483647, %v4823
  %v4840 = vand.u32 2147483647, %v4824
  %v4841 = vand.u32 2147483647, %v4825
  %v4842 = vand.u32 2147483647, %v4826
  %v4843 = vand.u32 2147483647, %v4827
  %v4844 = vand.u32 2147483647, %v4828
  %v4845 = vsub.f32 0.0, %v4837
  %v4846 = vsub.f32 0.0, %v4838
  %v4847 = vsub.f32 0.0, %v4839
  %v4848 = vsub.f32 0.0, %v4840
  %v4849 = vsub.f32 0.0, %v4841
  %v4850 = vsub.f32 0.0, %v4842
  %v4851 = vsub.f32 0.0, %v4843
  %v4852 = vsub.f32 0.0, %v4844
  %v4853 = vmul.f32 %v4845, 1.442695
  %v4854 = vpow.pop %v4853
  %v4855 = vmul.f32 %v4846, 1.442695
  %v4856 = vpow.pop %v4855
  %v4857 = vmul.f32 %v4847, 1.442695
  %v4858 = vpow.pop %v4857
  %v4859 = vmul.f32 %v4848, 1.442695
  %v4860 = vpow.pop %v4859
  %v4861 = vmul.f32 %v4849, 1.442695
  %v4862 = vpow.pop %v4861
  %v4863 = vmul.f32 %v4850, 1.442695
  %v4864 = vpow.pop %v4863
  %v4865 = vmul.f32 %v4851, 1.442695
  %v4866 = vpow.pop %v4865
  %v4867 = vmul.f32 %v4852, 1.442695
  %v4868 = vpow.pop %v4867
  %v4869 = vadd.f32 %v4854, 1.0
  %v4870 = vlog2.pop %v4869
  %v4871 = vmul.f32 %v4870, 0.6931472
  %v4872 = vmul.f32 -0.5, %v4854
  %v4873 = vadd.f32 %v4872, 1.0
  %v4874 = vmul.f32 %v4873, %v4854
  %v4875 = vand.u32 2147483647, %v4854
  %vm4876 = vcmp.lt.f32.partialorder %v4875, 0.0004427343
  %v4877 = vsel %vm4876, %v4874, %v4871
  %v4878 = vadd.f32 %v4856, 1.0
  %v4879 = vlog2.pop %v4878
  %v4880 = vmul.f32 %v4879, 0.6931472
  %v4881 = vmul.f32 -0.5, %v4856
  %v4882 = vadd.f32 %v4881, 1.0
  %v4883 = vmul.f32 %v4882, %v4856
  %v4884 = vand.u32 2147483647, %v4856
  %vm4885 = vcmp.lt.f32.partialorder %v4884, 0.0004427343
  %v4886 = vsel %vm4885, %v4883, %v4880
  %v4887 = vadd.f32 %v4858, 1.0
  %v4888 = vlog2.pop %v4887
  %v4889 = vmul.f32 %v4888, 0.6931472
  %v4890 = vmul.f32 -0.5, %v4858
  %v4891 = vadd.f32 %v4890, 1.0
  %v4892 = vmul.f32 %v4891, %v4858
  %v4893 = vand.u32 2147483647, %v4858
  %vm4894 = vcmp.lt.f32.partialorder %v4893, 0.0004427343
  %v4895 = vsel %vm4894, %v4892, %v4889
  %v4896 = vadd.f32 %v4860, 1.0
  %v4897 = vlog2.pop %v4896
  %v4898 = vmul.f32 %v4897, 0.6931472
  %v4899 = vmul.f32 -0.5, %v4860
  %v4900 = vadd.f32 %v4899, 1.0
  %v4901 = vmul.f32 %v4900, %v4860
  %v4902 = vand.u32 2147483647, %v4860
  %vm4903 = vcmp.lt.f32.partialorder %v4902, 0.0004427343
  %v4904 = vsel %vm4903, %v4901, %v4898
  %v4905 = vadd.f32 %v4862, 1.0
  %v4906 = vlog2.pop %v4905
  %v4907 = vmul.f32 %v4906, 0.6931472
  %v4908 = vmul.f32 -0.5, %v4862
  %v4909 = vadd.f32 %v4908, 1.0
  %v4910 = vmul.f32 %v4909, %v4862
  %v4911 = vand.u32 2147483647, %v4862
  %vm4912 = vcmp.lt.f32.partialorder %v4911, 0.0004427343
  %v4913 = vsel %vm4912, %v4910, %v4907
  %v4914 = vadd.f32 %v4864, 1.0
  %v4915 = vlog2.pop %v4914
  %v4916 = vmul.f32 %v4915, 0.6931472
  %v4917 = vmul.f32 -0.5, %v4864
  %v4918 = vadd.f32 %v4917, 1.0
  %v4919 = vmul.f32 %v4918, %v4864
  %v4920 = vand.u32 2147483647, %v4864
  %vm4921 = vcmp.lt.f32.partialorder %v4920, 0.0004427343
  %v4922 = vsel %vm4921, %v4919, %v4916
  %v4923 = vadd.f32 %v4866, 1.0
  %v4924 = vlog2.pop %v4923
  %v4925 = vmul.f32 %v4924, 0.6931472
  %v4926 = vmul.f32 -0.5, %v4866
  %v4927 = vadd.f32 %v4926, 1.0
  %v4928 = vmul.f32 %v4927, %v4866
  %v4929 = vand.u32 2147483647, %v4866
  %vm4930 = vcmp.lt.f32.partialorder %v4929, 0.0004427343
  %v4931 = vsel %vm4930, %v4928, %v4925
  %v4932 = vadd.f32 %v4868, 1.0
  %v4933 = vlog2.pop %v4932
  %v4934 = vmul.f32 %v4933, 0.6931472
  %v4935 = vmul.f32 -0.5, %v4868
  %v4936 = vadd.f32 %v4935, 1.0
  %v4937 = vmul.f32 %v4936, %v4868
  %v4938 = vand.u32 2147483647, %v4868
  %vm4939 = vcmp.lt.f32.partialorder %v4938, 0.0004427343
  %v4940 = vsel %vm4939, %v4937, %v4934
  %v4941 = vadd.f32 %v4829, %v4877
  %v4942 = vadd.f32 %v4830, %v4886
  %v4943 = vadd.f32 %v4831, %v4895
  %v4944 = vadd.f32 %v4832, %v4904
  %v4945 = vadd.f32 %v4833, %v4913
  %v4946 = vadd.f32 %v4834, %v4922
  %v4947 = vadd.f32 %v4835, %v4931
  %v4948 = vadd.f32 %v4836, %v4940
  %v4949 = vld [vmem:[%s4 + $0x390] sm:$0xff]
  %v4950 = vld [vmem:[%s4 + $0x398] sm:$0xff]
  %v4951 = vld [vmem:[%s4 + $0x3a0] sm:$0xff]
  %v4952 = vld [vmem:[%s4 + $0x3a8] sm:$0xff]
  %v4953 = vld [vmem:[%s4 + $0x3b0] sm:$0xff]
  %v4954 = vld [vmem:[%s4 + $0x3b8] sm:$0x1]
  %v4955 = vperm.slane %v4954, 0
  %v4957 = vsel %vm1123, %v4941, 0
  %v4960 = vsel %vm1123, %v4942, 0
  %v4963 = vsel %vm1123, %v4943, 0
  %v4966 = vsel %vm1123, %v4944, 0
  %v4969 = vsel %vm1123, %v4945, 0
  %v4972 = vsel %vm1123, %v4946, 0
  %v4975 = vsel %vm1123, %v4947, 0
  %v4978 = vsel %vm1123, %v4948, 0
  %4980 = vmatpush.msra.mxu0 0.0
  %4981 = vmatpush.msra.mxu0 0.0
  %4982 = vmatpush.msra.mxu0 0.0
  %4983 = vmatpush.msra.mxu0 0.0
  %4984 = vmatpush.msra.mxu0 0.0
  %4985 = vmatpush.msra.mxu0 0.0
  %4986 = vmatpush.msra.mxu0 0.0
  %4987 = vmatpush.msra.mxu0 0.0
  %4988 = vmatpush.msra.mxu0 0.0
  %4989 = vmatpush.msra.mxu0 0.0
  %4990 = vmatpush.msra.mxu0 0.0
  %4991 = vmatpush.msra.mxu0 %v4953
  %4992 = vmatpush.msra.mxu0 %v4952
  %4993 = vmatpush.msra.mxu0 %v4951
  %4994 = vmatpush.msra.mxu0 %v4950
  %4995 = vmatpush.msra.mxu0 %v4949
  %4996 = vmatmul.f32.gmra.mxu0 %v4957
  %v4997 = vpop.f32.mrf.mxu0
  %v4998 = vadd.f32 %v4955, %v4997
  %4999 = vmatmul.f32.gmra.mxu0 %v4960
  %v5000 = vpop.f32.mrf.mxu0
  %v5001 = vadd.f32 %v4955, %v5000
  %5002 = vmatmul.f32.gmra.mxu0 %v4963
  %v5003 = vpop.f32.mrf.mxu0
  %v5004 = vadd.f32 %v4955, %v5003
  %5005 = vmatmul.f32.gmra.mxu0 %v4966
  %v5006 = vpop.f32.mrf.mxu0
  %v5007 = vadd.f32 %v4955, %v5006
  %5008 = vmatmul.f32.gmra.mxu0 %v4969
  %v5009 = vpop.f32.mrf.mxu0
  %v5010 = vadd.f32 %v4955, %v5009
  %5011 = vmatmul.f32.gmra.mxu0 %v4972
  %v5012 = vpop.f32.mrf.mxu0
  %v5013 = vadd.f32 %v4955, %v5012
  %5014 = vmatmul.f32.gmra.mxu0 %v4975
  %v5015 = vpop.f32.mrf.mxu0
  %v5016 = vadd.f32 %v4955, %v5015
  %5017 = vmatmul.f32.gmra.mxu0 %v4978
  %v5018 = vpop.f32.mrf.mxu0
  %v5019 = vadd.f32 %v4955, %v5018
  %5020 = vdwg.mxu0
  %v5021 = vmax.f32 %v4998, 0.0
  %v5022 = vmax.f32 %v5001, 0.0
  %v5023 = vmax.f32 %v5004, 0.0
  %v5024 = vmax.f32 %v5007, 0.0
  %v5025 = vmax.f32 %v5010, 0.0
  %v5026 = vmax.f32 %v5013, 0.0
  %v5027 = vmax.f32 %v5016, 0.0
  %v5028 = vmax.f32 %v5019, 0.0
  %v5029 = vand.u32 2147483647, %v4998
  %v5030 = vand.u32 2147483647, %v5001
  %v5031 = vand.u32 2147483647, %v5004
  %v5032 = vand.u32 2147483647, %v5007
  %v5033 = vand.u32 2147483647, %v5010
  %v5034 = vand.u32 2147483647, %v5013
  %v5035 = vand.u32 2147483647, %v5016
  %v5036 = vand.u32 2147483647, %v5019
  %v5037 = vsub.f32 0.0, %v5029
  %v5038 = vsub.f32 0.0, %v5030
  %v5039 = vsub.f32 0.0, %v5031
  %v5040 = vsub.f32 0.0, %v5032
  %v5041 = vsub.f32 0.0, %v5033
  %v5042 = vsub.f32 0.0, %v5034
  %v5043 = vsub.f32 0.0, %v5035
  %v5044 = vsub.f32 0.0, %v5036
  %v5045 = vmul.f32 %v5037, 1.442695
  %v5046 = vpow.pop %v5045
  %v5047 = vmul.f32 %v5038, 1.442695
  %v5048 = vpow.pop %v5047
  %v5049 = vmul.f32 %v5039, 1.442695
  %v5050 = vpow.pop %v5049
  %v5051 = vmul.f32 %v5040, 1.442695
  %v5052 = vpow.pop %v5051
  %v5053 = vmul.f32 %v5041, 1.442695
  %v5054 = vpow.pop %v5053
  %v5055 = vmul.f32 %v5042, 1.442695
  %v5056 = vpow.pop %v5055
  %v5057 = vmul.f32 %v5043, 1.442695
  %v5058 = vpow.pop %v5057
  %v5059 = vmul.f32 %v5044, 1.442695
  %v5060 = vpow.pop %v5059
  %v5061 = vadd.f32 %v5046, 1.0
  %v5062 = vlog2.pop %v5061
  %v5063 = vmul.f32 %v5062, 0.6931472
  %v5064 = vmul.f32 -0.5, %v5046
  %v5065 = vadd.f32 %v5064, 1.0
  %v5066 = vmul.f32 %v5065, %v5046
  %v5067 = vand.u32 2147483647, %v5046
  %vm5068 = vcmp.lt.f32.partialorder %v5067, 0.0004427343
  %v5069 = vsel %vm5068, %v5066, %v5063
  %v5070 = vadd.f32 %v5048, 1.0
  %v5071 = vlog2.pop %v5070
  %v5072 = vmul.f32 %v5071, 0.6931472
  %v5073 = vmul.f32 -0.5, %v5048
  %v5074 = vadd.f32 %v5073, 1.0
  %v5075 = vmul.f32 %v5074, %v5048
  %v5076 = vand.u32 2147483647, %v5048
  %vm5077 = vcmp.lt.f32.partialorder %v5076, 0.0004427343
  %v5078 = vsel %vm5077, %v5075, %v5072
  %v5079 = vadd.f32 %v5050, 1.0
  %v5080 = vlog2.pop %v5079
  %v5081 = vmul.f32 %v5080, 0.6931472
  %v5082 = vmul.f32 -0.5, %v5050
  %v5083 = vadd.f32 %v5082, 1.0
  %v5084 = vmul.f32 %v5083, %v5050
  %v5085 = vand.u32 2147483647, %v5050
  %vm5086 = vcmp.lt.f32.partialorder %v5085, 0.0004427343
  %v5087 = vsel %vm5086, %v5084, %v5081
  %v5088 = vadd.f32 %v5052, 1.0
  %v5089 = vlog2.pop %v5088
  %v5090 = vmul.f32 %v5089, 0.6931472
  %v5091 = vmul.f32 -0.5, %v5052
  %v5092 = vadd.f32 %v5091, 1.0
  %v5093 = vmul.f32 %v5092, %v5052
  %v5094 = vand.u32 2147483647, %v5052
  %vm5095 = vcmp.lt.f32.partialorder %v5094, 0.0004427343
  %v5096 = vsel %vm5095, %v5093, %v5090
  %v5097 = vadd.f32 %v5054, 1.0
  %v5098 = vlog2.pop %v5097
  %v5099 = vmul.f32 %v5098, 0.6931472
  %v5100 = vmul.f32 -0.5, %v5054
  %v5101 = vadd.f32 %v5100, 1.0
  %v5102 = vmul.f32 %v5101, %v5054
  %v5103 = vand.u32 2147483647, %v5054
  %vm5104 = vcmp.lt.f32.partialorder %v5103, 0.0004427343
  %v5105 = vsel %vm5104, %v5102, %v5099
  %v5106 = vadd.f32 %v5056, 1.0
  %v5107 = vlog2.pop %v5106
  %v5108 = vmul.f32 %v5107, 0.6931472
  %v5109 = vmul.f32 -0.5, %v5056
  %v5110 = vadd.f32 %v5109, 1.0
  %v5111 = vmul.f32 %v5110, %v5056
  %v5112 = vand.u32 2147483647, %v5056
  %vm5113 = vcmp.lt.f32.partialorder %v5112, 0.0004427343
  %v5114 = vsel %vm5113, %v5111, %v5108
  %v5115 = vadd.f32 %v5058, 1.0
  %v5116 = vlog2.pop %v5115
  %v5117 = vmul.f32 %v5116, 0.6931472
  %v5118 = vmul.f32 -0.5, %v5058
  %v5119 = vadd.f32 %v5118, 1.0
  %v5120 = vmul.f32 %v5119, %v5058
  %v5121 = vand.u32 2147483647, %v5058
  %vm5122 = vcmp.lt.f32.partialorder %v5121, 0.0004427343
  %v5123 = vsel %vm5122, %v5120, %v5117
  %v5124 = vadd.f32 %v5060, 1.0
  %v5125 = vlog2.pop %v5124
  %v5126 = vmul.f32 %v5125, 0.6931472
  %v5127 = vmul.f32 -0.5, %v5060
  %v5128 = vadd.f32 %v5127, 1.0
  %v5129 = vmul.f32 %v5128, %v5060
  %v5130 = vand.u32 2147483647, %v5060
  %vm5131 = vcmp.lt.f32.partialorder %v5130, 0.0004427343
  %v5132 = vsel %vm5131, %v5129, %v5126
  %v5133 = vadd.f32 %v5021, %v5069
  %v5134 = vadd.f32 %v5022, %v5078
  %v5135 = vadd.f32 %v5023, %v5087
  %v5136 = vadd.f32 %v5024, %v5096
  %v5137 = vadd.f32 %v5025, %v5105
  %v5138 = vadd.f32 %v5026, %v5114
  %v5139 = vadd.f32 %v5027, %v5123
  %v5140 = vadd.f32 %v5028, %v5132
  %v5141 = vld [vmem:[%s4 + $0x3c0] sm:$0xff]
  %v5142 = vld [vmem:[%s4 + $0x3c8] sm:$0xff]
  %v5143 = vld [vmem:[%s4 + $0x3d0] sm:$0xff]
  %v5144 = vld [vmem:[%s4 + $0x3d8] sm:$0xff]
  %v5145 = vld [vmem:[%s4 + $0x3e0] sm:$0xff]
  %v5146 = vld [vmem:[%s4 + $0x3e8] sm:$0x1]
  %v5147 = vperm.slane %v5146, 0
  %v5149 = vsel %vm1123, %v5133, 0
  %v5152 = vsel %vm1123, %v5134, 0
  %v5155 = vsel %vm1123, %v5135, 0
  %v5158 = vsel %vm1123, %v5136, 0
  %v5161 = vsel %vm1123, %v5137, 0
  %v5164 = vsel %vm1123, %v5138, 0
  %v5167 = vsel %vm1123, %v5139, 0
  %v5170 = vsel %vm1123, %v5140, 0
  %5172 = vmatpush.msra.mxu0 0.0
  %5173 = vmatpush.msra.mxu0 0.0
  %5174 = vmatpush.msra.mxu0 0.0
  %5175 = vmatpush.msra.mxu0 0.0
  %5176 = vmatpush.msra.mxu0 0.0
  %5177 = vmatpush.msra.mxu0 0.0
  %5178 = vmatpush.msra.mxu0 0.0
  %5179 = vmatpush.msra.mxu0 0.0
  %5180 = vmatpush.msra.mxu0 0.0
  %5181 = vmatpush.msra.mxu0 0.0
  %5182 = vmatpush.msra.mxu0 0.0
  %5183 = vmatpush.msra.mxu0 %v5145
  %5184 = vmatpush.msra.mxu0 %v5144
  %5185 = vmatpush.msra.mxu0 %v5143
  %5186 = vmatpush.msra.mxu0 %v5142
  %5187 = vmatpush.msra.mxu0 %v5141
  %5188 = vmatmul.f32.gmra.mxu0 %v5149
  %v5189 = vpop.f32.mrf.mxu0
  %v5190 = vadd.f32 %v5147, %v5189
  %5191 = vmatmul.f32.gmra.mxu0 %v5152
  %v5192 = vpop.f32.mrf.mxu0
  %v5193 = vadd.f32 %v5147, %v5192
  %5194 = vmatmul.f32.gmra.mxu0 %v5155
  %v5195 = vpop.f32.mrf.mxu0
  %v5196 = vadd.f32 %v5147, %v5195
  %5197 = vmatmul.f32.gmra.mxu0 %v5158
  %v5198 = vpop.f32.mrf.mxu0
  %v5199 = vadd.f32 %v5147, %v5198
  %5200 = vmatmul.f32.gmra.mxu0 %v5161
  %v5201 = vpop.f32.mrf.mxu0
  %v5202 = vadd.f32 %v5147, %v5201
  %5203 = vmatmul.f32.gmra.mxu0 %v5164
  %v5204 = vpop.f32.mrf.mxu0
  %v5205 = vadd.f32 %v5147, %v5204
  %5206 = vmatmul.f32.gmra.mxu0 %v5167
  %v5207 = vpop.f32.mrf.mxu0
  %v5208 = vadd.f32 %v5147, %v5207
  %5209 = vmatmul.f32.gmra.mxu0 %v5170
  %v5210 = vpop.f32.mrf.mxu0
  %v5211 = vadd.f32 %v5147, %v5210
  %5212 = vdwg.mxu0
  %v5213 = vadd.f32 %v4821, %v5190
  %v5214 = vadd.f32 %v4822, %v5193
  %v5215 = vadd.f32 %v4823, %v5196
  %v5216 = vadd.f32 %v4824, %v5199
  %v5217 = vadd.f32 %v4825, %v5202
  %v5218 = vadd.f32 %v4826, %v5205
  %v5219 = vadd.f32 %v4827, %v5208
  %v5220 = vadd.f32 %v4828, %v5211
  %v5221 = vmax.f32 %v5213, 0.0
  %v5222 = vmax.f32 %v5214, 0.0
  %v5223 = vmax.f32 %v5215, 0.0
  %v5224 = vmax.f32 %v5216, 0.0
  %v5225 = vmax.f32 %v5217, 0.0
  %v5226 = vmax.f32 %v5218, 0.0
  %v5227 = vmax.f32 %v5219, 0.0
  %v5228 = vmax.f32 %v5220, 0.0
  %v5229 = vand.u32 2147483647, %v5213
  %v5230 = vand.u32 2147483647, %v5214
  %v5231 = vand.u32 2147483647, %v5215
  %v5232 = vand.u32 2147483647, %v5216
  %v5233 = vand.u32 2147483647, %v5217
  %v5234 = vand.u32 2147483647, %v5218
  %v5235 = vand.u32 2147483647, %v5219
  %v5236 = vand.u32 2147483647, %v5220
  %v5237 = vsub.f32 0.0, %v5229
  %v5238 = vsub.f32 0.0, %v5230
  %v5239 = vsub.f32 0.0, %v5231
  %v5240 = vsub.f32 0.0, %v5232
  %v5241 = vsub.f32 0.0, %v5233
  %v5242 = vsub.f32 0.0, %v5234
  %v5243 = vsub.f32 0.0, %v5235
  %v5244 = vsub.f32 0.0, %v5236
  %v5245 = vmul.f32 %v5237, 1.442695
  %v5246 = vpow.pop %v5245
  %v5247 = vmul.f32 %v5238, 1.442695
  %v5248 = vpow.pop %v5247
  %v5249 = vmul.f32 %v5239, 1.442695
  %v5250 = vpow.pop %v5249
  %v5251 = vmul.f32 %v5240, 1.442695
  %v5252 = vpow.pop %v5251
  %v5253 = vmul.f32 %v5241, 1.442695
  %v5254 = vpow.pop %v5253
  %v5255 = vmul.f32 %v5242, 1.442695
  %v5256 = vpow.pop %v5255
  %v5257 = vmul.f32 %v5243, 1.442695
  %v5258 = vpow.pop %v5257
  %v5259 = vmul.f32 %v5244, 1.442695
  %v5260 = vpow.pop %v5259
  %v5261 = vadd.f32 %v5246, 1.0
  %v5262 = vlog2.pop %v5261
  %v5263 = vmul.f32 %v5262, 0.6931472
  %v5264 = vmul.f32 -0.5, %v5246
  %v5265 = vadd.f32 %v5264, 1.0
  %v5266 = vmul.f32 %v5265, %v5246
  %v5267 = vand.u32 2147483647, %v5246
  %vm5268 = vcmp.lt.f32.partialorder %v5267, 0.0004427343
  %v5269 = vsel %vm5268, %v5266, %v5263
  %v5270 = vadd.f32 %v5248, 1.0
  %v5271 = vlog2.pop %v5270
  %v5272 = vmul.f32 %v5271, 0.6931472
  %v5273 = vmul.f32 -0.5, %v5248
  %v5274 = vadd.f32 %v5273, 1.0
  %v5275 = vmul.f32 %v5274, %v5248
  %v5276 = vand.u32 2147483647, %v5248
  %vm5277 = vcmp.lt.f32.partialorder %v5276, 0.0004427343
  %v5278 = vsel %vm5277, %v5275, %v5272
  %v5279 = vadd.f32 %v5250, 1.0
  %v5280 = vlog2.pop %v5279
  %v5281 = vmul.f32 %v5280, 0.6931472
  %v5282 = vmul.f32 -0.5, %v5250
  %v5283 = vadd.f32 %v5282, 1.0
  %v5284 = vmul.f32 %v5283, %v5250
  %v5285 = vand.u32 2147483647, %v5250
  %vm5286 = vcmp.lt.f32.partialorder %v5285, 0.0004427343
  %v5287 = vsel %vm5286, %v5284, %v5281
  %v5288 = vadd.f32 %v5252, 1.0
  %v5289 = vlog2.pop %v5288
  %v5290 = vmul.f32 %v5289, 0.6931472
  %v5291 = vmul.f32 -0.5, %v5252
  %v5292 = vadd.f32 %v5291, 1.0
  %v5293 = vmul.f32 %v5292, %v5252
  %v5294 = vand.u32 2147483647, %v5252
  %vm5295 = vcmp.lt.f32.partialorder %v5294, 0.0004427343
  %v5296 = vsel %vm5295, %v5293, %v5290
  %v5297 = vadd.f32 %v5254, 1.0
  %v5298 = vlog2.pop %v5297
  %v5299 = vmul.f32 %v5298, 0.6931472
  %v5300 = vmul.f32 -0.5, %v5254
  %v5301 = vadd.f32 %v5300, 1.0
  %v5302 = vmul.f32 %v5301, %v5254
  %v5303 = vand.u32 2147483647, %v5254
  %vm5304 = vcmp.lt.f32.partialorder %v5303, 0.0004427343
  %v5305 = vsel %vm5304, %v5302, %v5299
  %v5306 = vadd.f32 %v5256, 1.0
  %v5307 = vlog2.pop %v5306
  %v5308 = vmul.f32 %v5307, 0.6931472
  %v5309 = vmul.f32 -0.5, %v5256
  %v5310 = vadd.f32 %v5309, 1.0
  %v5311 = vmul.f32 %v5310, %v5256
  %v5312 = vand.u32 2147483647, %v5256
  %vm5313 = vcmp.lt.f32.partialorder %v5312, 0.0004427343
  %v5314 = vsel %vm5313, %v5311, %v5308
  %v5315 = vadd.f32 %v5258, 1.0
  %v5316 = vlog2.pop %v5315
  %v5317 = vmul.f32 %v5316, 0.6931472
  %v5318 = vmul.f32 -0.5, %v5258
  %v5319 = vadd.f32 %v5318, 1.0
  %v5320 = vmul.f32 %v5319, %v5258
  %v5321 = vand.u32 2147483647, %v5258
  %vm5322 = vcmp.lt.f32.partialorder %v5321, 0.0004427343
  %v5323 = vsel %vm5322, %v5320, %v5317
  %v5324 = vadd.f32 %v5260, 1.0
  %v5325 = vlog2.pop %v5324
  %v5326 = vmul.f32 %v5325, 0.6931472
  %v5327 = vmul.f32 -0.5, %v5260
  %v5328 = vadd.f32 %v5327, 1.0
  %v5329 = vmul.f32 %v5328, %v5260
  %v5330 = vand.u32 2147483647, %v5260
  %vm5331 = vcmp.lt.f32.partialorder %v5330, 0.0004427343
  %v5332 = vsel %vm5331, %v5329, %v5326
  %v5333 = vadd.f32 %v5221, %v5269
  %v5334 = vadd.f32 %v5222, %v5278
  %v5335 = vadd.f32 %v5223, %v5287
  %v5336 = vadd.f32 %v5224, %v5296
  %v5337 = vadd.f32 %v5225, %v5305
  %v5338 = vadd.f32 %v5226, %v5314
  %v5339 = vadd.f32 %v5227, %v5323
  %v5340 = vadd.f32 %v5228, %v5332
  %v5341 = vld [vmem:[%s4 + $0x3f0] sm:$0xff]
  %v5342 = vld [vmem:[%s4 + $0x3f8] sm:$0xff]
  %v5343 = vld [vmem:[%s4 + $0x400] sm:$0xff]
  %v5344 = vld [vmem:[%s4 + $0x408] sm:$0xff]
  %v5345 = vld [vmem:[%s4 + $0x410] sm:$0xff]
  %v5346 = vld [vmem:[%s4 + $0x418] sm:$0x1]
  %v5347 = vperm.slane %v5346, 0
  %v5349 = vsel %vm1123, %v5333, 0
  %v5352 = vsel %vm1123, %v5334, 0
  %v5355 = vsel %vm1123, %v5335, 0
  %v5358 = vsel %vm1123, %v5336, 0
  %v5361 = vsel %vm1123, %v5337, 0
  %v5364 = vsel %vm1123, %v5338, 0
  %v5367 = vsel %vm1123, %v5339, 0
  %v5370 = vsel %vm1123, %v5340, 0
  %5372 = vmatpush.msra.mxu0 0.0
  %5373 = vmatpush.msra.mxu0 0.0
  %5374 = vmatpush.msra.mxu0 0.0
  %5375 = vmatpush.msra.mxu0 0.0
  %5376 = vmatpush.msra.mxu0 0.0
  %5377 = vmatpush.msra.mxu0 0.0
  %5378 = vmatpush.msra.mxu0 0.0
  %5379 = vmatpush.msra.mxu0 0.0
  %5380 = vmatpush.msra.mxu0 0.0
  %5381 = vmatpush.msra.mxu0 0.0
  %5382 = vmatpush.msra.mxu0 0.0
  %5383 = vmatpush.msra.mxu0 %v5345
  %5384 = vmatpush.msra.mxu0 %v5344
  %5385 = vmatpush.msra.mxu0 %v5343
  %5386 = vmatpush.msra.mxu0 %v5342
  %5387 = vmatpush.msra.mxu0 %v5341
  %5388 = vmatmul.f32.gmra.mxu0 %v5349
  %v5389 = vpop.f32.mrf.mxu0
  %v5390 = vadd.f32 %v5347, %v5389
  %5391 = vmatmul.f32.gmra.mxu0 %v5352
  %v5392 = vpop.f32.mrf.mxu0
  %v5393 = vadd.f32 %v5347, %v5392
  %5394 = vmatmul.f32.gmra.mxu0 %v5355
  %v5395 = vpop.f32.mrf.mxu0
  %v5396 = vadd.f32 %v5347, %v5395
  %5397 = vmatmul.f32.gmra.mxu0 %v5358
  %v5398 = vpop.f32.mrf.mxu0
  %v5399 = vadd.f32 %v5347, %v5398
  %5400 = vmatmul.f32.gmra.mxu0 %v5361
  %v5401 = vpop.f32.mrf.mxu0
  %v5402 = vadd.f32 %v5347, %v5401
  %5403 = vmatmul.f32.gmra.mxu0 %v5364
  %v5404 = vpop.f32.mrf.mxu0
  %v5405 = vadd.f32 %v5347, %v5404
  %5406 = vmatmul.f32.gmra.mxu0 %v5367
  %v5407 = vpop.f32.mrf.mxu0
  %v5408 = vadd.f32 %v5347, %v5407
  %5409 = vmatmul.f32.gmra.mxu0 %v5370
  %v5410 = vpop.f32.mrf.mxu0
  %v5411 = vadd.f32 %v5347, %v5410
  %5412 = vdwg.mxu0
  %v5413 = vmax.f32 %v5390, 0.0
  %v5414 = vmax.f32 %v5393, 0.0
  %v5415 = vmax.f32 %v5396, 0.0
  %v5416 = vmax.f32 %v5399, 0.0
  %v5417 = vmax.f32 %v5402, 0.0
  %v5418 = vmax.f32 %v5405, 0.0
  %v5419 = vmax.f32 %v5408, 0.0
  %v5420 = vmax.f32 %v5411, 0.0
  %v5421 = vand.u32 2147483647, %v5390
  %v5422 = vand.u32 2147483647, %v5393
  %v5423 = vand.u32 2147483647, %v5396
  %v5424 = vand.u32 2147483647, %v5399
  %v5425 = vand.u32 2147483647, %v5402
  %v5426 = vand.u32 2147483647, %v5405
  %v5427 = vand.u32 2147483647, %v5408
  %v5428 = vand.u32 2147483647, %v5411
  %v5429 = vsub.f32 0.0, %v5421
  %v5430 = vsub.f32 0.0, %v5422
  %v5431 = vsub.f32 0.0, %v5423
  %v5432 = vsub.f32 0.0, %v5424
  %v5433 = vsub.f32 0.0, %v5425
  %v5434 = vsub.f32 0.0, %v5426
  %v5435 = vsub.f32 0.0, %v5427
  %v5436 = vsub.f32 0.0, %v5428
  %v5437 = vmul.f32 %v5429, 1.442695
  %v5438 = vpow.pop %v5437
  %v5439 = vmul.f32 %v5430, 1.442695
  %v5440 = vpow.pop %v5439
  %v5441 = vmul.f32 %v5431, 1.442695
  %v5442 = vpow.pop %v5441
  %v5443 = vmul.f32 %v5432, 1.442695
  %v5444 = vpow.pop %v5443
  %v5445 = vmul.f32 %v5433, 1.442695
  %v5446 = vpow.pop %v5445
  %v5447 = vmul.f32 %v5434, 1.442695
  %v5448 = vpow.pop %v5447
  %v5449 = vmul.f32 %v5435, 1.442695
  %v5450 = vpow.pop %v5449
  %v5451 = vmul.f32 %v5436, 1.442695
  %v5452 = vpow.pop %v5451
  %v5453 = vadd.f32 %v5438, 1.0
  %v5454 = vlog2.pop %v5453
  %v5455 = vmul.f32 %v5454, 0.6931472
  %v5456 = vmul.f32 -0.5, %v5438
  %v5457 = vadd.f32 %v5456, 1.0
  %v5458 = vmul.f32 %v5457, %v5438
  %v5459 = vand.u32 2147483647, %v5438
  %vm5460 = vcmp.lt.f32.partialorder %v5459, 0.0004427343
  %v5461 = vsel %vm5460, %v5458, %v5455
  %v5462 = vadd.f32 %v5440, 1.0
  %v5463 = vlog2.pop %v5462
  %v5464 = vmul.f32 %v5463, 0.6931472
  %v5465 = vmul.f32 -0.5, %v5440
  %v5466 = vadd.f32 %v5465, 1.0
  %v5467 = vmul.f32 %v5466, %v5440
  %v5468 = vand.u32 2147483647, %v5440
  %vm5469 = vcmp.lt.f32.partialorder %v5468, 0.0004427343
  %v5470 = vsel %vm5469, %v5467, %v5464
  %v5471 = vadd.f32 %v5442, 1.0
  %v5472 = vlog2.pop %v5471
  %v5473 = vmul.f32 %v5472, 0.6931472
  %v5474 = vmul.f32 -0.5, %v5442
  %v5475 = vadd.f32 %v5474, 1.0
  %v5476 = vmul.f32 %v5475, %v5442
  %v5477 = vand.u32 2147483647, %v5442
  %vm5478 = vcmp.lt.f32.partialorder %v5477, 0.0004427343
  %v5479 = vsel %vm5478, %v5476, %v5473
  %v5480 = vadd.f32 %v5444, 1.0
  %v5481 = vlog2.pop %v5480
  %v5482 = vmul.f32 %v5481, 0.6931472
  %v5483 = vmul.f32 -0.5, %v5444
  %v5484 = vadd.f32 %v5483, 1.0
  %v5485 = vmul.f32 %v5484, %v5444
  %v5486 = vand.u32 2147483647, %v5444
  %vm5487 = vcmp.lt.f32.partialorder %v5486, 0.0004427343
  %v5488 = vsel %vm5487, %v5485, %v5482
  %v5489 = vadd.f32 %v5446, 1.0
  %v5490 = vlog2.pop %v5489
  %v5491 = vmul.f32 %v5490, 0.6931472
  %v5492 = vmul.f32 -0.5, %v5446
  %v5493 = vadd.f32 %v5492, 1.0
  %v5494 = vmul.f32 %v5493, %v5446
  %v5495 = vand.u32 2147483647, %v5446
  %vm5496 = vcmp.lt.f32.partialorder %v5495, 0.0004427343
  %v5497 = vsel %vm5496, %v5494, %v5491
  %v5498 = vadd.f32 %v5448, 1.0
  %v5499 = vlog2.pop %v5498
  %v5500 = vmul.f32 %v5499, 0.6931472
  %v5501 = vmul.f32 -0.5, %v5448
  %v5502 = vadd.f32 %v5501, 1.0
  %v5503 = vmul.f32 %v5502, %v5448
  %v5504 = vand.u32 2147483647, %v5448
  %vm5505 = vcmp.lt.f32.partialorder %v5504, 0.0004427343
  %v5506 = vsel %vm5505, %v5503, %v5500
  %v5507 = vadd.f32 %v5450, 1.0
  %v5508 = vlog2.pop %v5507
  %v5509 = vmul.f32 %v5508, 0.6931472
  %v5510 = vmul.f32 -0.5, %v5450
  %v5511 = vadd.f32 %v5510, 1.0
  %v5512 = vmul.f32 %v5511, %v5450
  %v5513 = vand.u32 2147483647, %v5450
  %vm5514 = vcmp.lt.f32.partialorder %v5513, 0.0004427343
  %v5515 = vsel %vm5514, %v5512, %v5509
  %v5516 = vadd.f32 %v5452, 1.0
  %v5517 = vlog2.pop %v5516
  %v5518 = vmul.f32 %v5517, 0.6931472
  %v5519 = vmul.f32 -0.5, %v5452
  %v5520 = vadd.f32 %v5519, 1.0
  %v5521 = vmul.f32 %v5520, %v5452
  %v5522 = vand.u32 2147483647, %v5452
  %vm5523 = vcmp.lt.f32.partialorder %v5522, 0.0004427343
  %v5524 = vsel %vm5523, %v5521, %v5518
  %v5525 = vadd.f32 %v5413, %v5461
  %v5526 = vadd.f32 %v5414, %v5470
  %v5527 = vadd.f32 %v5415, %v5479
  %v5528 = vadd.f32 %v5416, %v5488
  %v5529 = vadd.f32 %v5417, %v5497
  %v5530 = vadd.f32 %v5418, %v5506
  %v5531 = vadd.f32 %v5419, %v5515
  %v5532 = vadd.f32 %v5420, %v5524
  %v5533 = vld [vmem:[%s4 + $0x420] sm:$0xff]
  %v5534 = vld [vmem:[%s4 + $0x428] sm:$0xff]
  %v5535 = vld [vmem:[%s4 + $0x430] sm:$0xff]
  %v5536 = vld [vmem:[%s4 + $0x438] sm:$0xff]
  %v5537 = vld [vmem:[%s4 + $0x440] sm:$0xff]
  %v5538 = vld [vmem:[%s4 + $0x448] sm:$0x1]
  %v5539 = vperm.slane %v5538, 0
  %v5541 = vsel %vm1123, %v5525, 0
  %v5544 = vsel %vm1123, %v5526, 0
  %v5547 = vsel %vm1123, %v5527, 0
  %v5550 = vsel %vm1123, %v5528, 0
  %v5553 = vsel %vm1123, %v5529, 0
  %v5556 = vsel %vm1123, %v5530, 0
  %v5559 = vsel %vm1123, %v5531, 0
  %v5562 = vsel %vm1123, %v5532, 0
  %5564 = vmatpush.msra.mxu0 0.0
  %5565 = vmatpush.msra.mxu0 0.0
  %5566 = vmatpush.msra.mxu0 0.0
  %5567 = vmatpush.msra.mxu0 0.0
  %5568 = vmatpush.msra.mxu0 0.0
  %5569 = vmatpush.msra.mxu0 0.0
  %5570 = vmatpush.msra.mxu0 0.0
  %5571 = vmatpush.msra.mxu0 0.0
  %5572 = vmatpush.msra.mxu0 0.0
  %5573 = vmatpush.msra.mxu0 0.0
  %5574 = vmatpush.msra.mxu0 0.0
  %5575 = vmatpush.msra.mxu0 %v5537
  %5576 = vmatpush.msra.mxu0 %v5536
  %5577 = vmatpush.msra.mxu0 %v5535
  %5578 = vmatpush.msra.mxu0 %v5534
  %5579 = vmatpush.msra.mxu0 %v5533
  %5580 = vmatmul.f32.gmra.mxu0 %v5541
  %v5581 = vpop.f32.mrf.mxu0
  %v5582 = vadd.f32 %v5539, %v5581
  %5583 = vmatmul.f32.gmra.mxu0 %v5544
  %v5584 = vpop.f32.mrf.mxu0
  %v5585 = vadd.f32 %v5539, %v5584
  %5586 = vmatmul.f32.gmra.mxu0 %v5547
  %v5587 = vpop.f32.mrf.mxu0
  %v5588 = vadd.f32 %v5539, %v5587
  %5589 = vmatmul.f32.gmra.mxu0 %v5550
  %v5590 = vpop.f32.mrf.mxu0
  %v5591 = vadd.f32 %v5539, %v5590
  %5592 = vmatmul.f32.gmra.mxu0 %v5553
  %v5593 = vpop.f32.mrf.mxu0
  %v5594 = vadd.f32 %v5539, %v5593
  %5595 = vmatmul.f32.gmra.mxu0 %v5556
  %v5596 = vpop.f32.mrf.mxu0
  %v5597 = vadd.f32 %v5539, %v5596
  %5598 = vmatmul.f32.gmra.mxu0 %v5559
  %v5599 = vpop.f32.mrf.mxu0
  %v5600 = vadd.f32 %v5539, %v5599
  %5601 = vmatmul.f32.gmra.mxu0 %v5562
  %v5602 = vpop.f32.mrf.mxu0
  %v5603 = vadd.f32 %v5539, %v5602
  %5604 = vdwg.mxu0
  %v5605 = vadd.f32 %v5213, %v5582
  %v5606 = vadd.f32 %v5214, %v5585
  %v5607 = vadd.f32 %v5215, %v5588
  %v5608 = vadd.f32 %v5216, %v5591
  %v5609 = vadd.f32 %v5217, %v5594
  %v5610 = vadd.f32 %v5218, %v5597
  %v5611 = vadd.f32 %v5219, %v5600
  %v5612 = vadd.f32 %v5220, %v5603
  %v5613 = vmax.f32 %v5605, 0.0
  %v5614 = vmax.f32 %v5606, 0.0
  %v5615 = vmax.f32 %v5607, 0.0
  %v5616 = vmax.f32 %v5608, 0.0
  %v5617 = vmax.f32 %v5609, 0.0
  %v5618 = vmax.f32 %v5610, 0.0
  %v5619 = vmax.f32 %v5611, 0.0
  %v5620 = vmax.f32 %v5612, 0.0
  %v5621 = vand.u32 2147483647, %v5605
  %v5622 = vand.u32 2147483647, %v5606
  %v5623 = vand.u32 2147483647, %v5607
  %v5624 = vand.u32 2147483647, %v5608
  %v5625 = vand.u32 2147483647, %v5609
  %v5626 = vand.u32 2147483647, %v5610
  %v5627 = vand.u32 2147483647, %v5611
  %v5628 = vand.u32 2147483647, %v5612
  %v5629 = vsub.f32 0.0, %v5621
  %v5630 = vsub.f32 0.0, %v5622
  %v5631 = vsub.f32 0.0, %v5623
  %v5632 = vsub.f32 0.0, %v5624
  %v5633 = vsub.f32 0.0, %v5625
  %v5634 = vsub.f32 0.0, %v5626
  %v5635 = vsub.f32 0.0, %v5627
  %v5636 = vsub.f32 0.0, %v5628
  %v5637 = vmul.f32 %v5629, 1.442695
  %v5638 = vpow.pop %v5637
  %v5639 = vmul.f32 %v5630, 1.442695
  %v5640 = vpow.pop %v5639
  %v5641 = vmul.f32 %v5631, 1.442695
  %v5642 = vpow.pop %v5641
  %v5643 = vmul.f32 %v5632, 1.442695
  %v5644 = vpow.pop %v5643
  %v5645 = vmul.f32 %v5633, 1.442695
  %v5646 = vpow.pop %v5645
  %v5647 = vmul.f32 %v5634, 1.442695
  %v5648 = vpow.pop %v5647
  %v5649 = vmul.f32 %v5635, 1.442695
  %v5650 = vpow.pop %v5649
  %v5651 = vmul.f32 %v5636, 1.442695
  %v5652 = vpow.pop %v5651
  %v5653 = vadd.f32 %v5638, 1.0
  %v5654 = vlog2.pop %v5653
  %v5655 = vmul.f32 %v5654, 0.6931472
  %v5656 = vmul.f32 -0.5, %v5638
  %v5657 = vadd.f32 %v5656, 1.0
  %v5658 = vmul.f32 %v5657, %v5638
  %v5659 = vand.u32 2147483647, %v5638
  %vm5660 = vcmp.lt.f32.partialorder %v5659, 0.0004427343
  %v5661 = vsel %vm5660, %v5658, %v5655
  %v5662 = vadd.f32 %v5640, 1.0
  %v5663 = vlog2.pop %v5662
  %v5664 = vmul.f32 %v5663, 0.6931472
  %v5665 = vmul.f32 -0.5, %v5640
  %v5666 = vadd.f32 %v5665, 1.0
  %v5667 = vmul.f32 %v5666, %v5640
  %v5668 = vand.u32 2147483647, %v5640
  %vm5669 = vcmp.lt.f32.partialorder %v5668, 0.0004427343
  %v5670 = vsel %vm5669, %v5667, %v5664
  %v5671 = vadd.f32 %v5642, 1.0
  %v5672 = vlog2.pop %v5671
  %v5673 = vmul.f32 %v5672, 0.6931472
  %v5674 = vmul.f32 -0.5, %v5642
  %v5675 = vadd.f32 %v5674, 1.0
  %v5676 = vmul.f32 %v5675, %v5642
  %v5677 = vand.u32 2147483647, %v5642
  %vm5678 = vcmp.lt.f32.partialorder %v5677, 0.0004427343
  %v5679 = vsel %vm5678, %v5676, %v5673
  %v5680 = vadd.f32 %v5644, 1.0
  %v5681 = vlog2.pop %v5680
  %v5682 = vmul.f32 %v5681, 0.6931472
  %v5683 = vmul.f32 -0.5, %v5644
  %v5684 = vadd.f32 %v5683, 1.0
  %v5685 = vmul.f32 %v5684, %v5644
  %v5686 = vand.u32 2147483647, %v5644
  %vm5687 = vcmp.lt.f32.partialorder %v5686, 0.0004427343
  %v5688 = vsel %vm5687, %v5685, %v5682
  %v5689 = vadd.f32 %v5646, 1.0
  %v5690 = vlog2.pop %v5689
  %v5691 = vmul.f32 %v5690, 0.6931472
  %v5692 = vmul.f32 -0.5, %v5646
  %v5693 = vadd.f32 %v5692, 1.0
  %v5694 = vmul.f32 %v5693, %v5646
  %v5695 = vand.u32 2147483647, %v5646
  %vm5696 = vcmp.lt.f32.partialorder %v5695, 0.0004427343
  %v5697 = vsel %vm5696, %v5694, %v5691
  %v5698 = vadd.f32 %v5648, 1.0
  %v5699 = vlog2.pop %v5698
  %v5700 = vmul.f32 %v5699, 0.6931472
  %v5701 = vmul.f32 -0.5, %v5648
  %v5702 = vadd.f32 %v5701, 1.0
  %v5703 = vmul.f32 %v5702, %v5648
  %v5704 = vand.u32 2147483647, %v5648
  %vm5705 = vcmp.lt.f32.partialorder %v5704, 0.0004427343
  %v5706 = vsel %vm5705, %v5703, %v5700
  %v5707 = vadd.f32 %v5650, 1.0
  %v5708 = vlog2.pop %v5707
  %v5709 = vmul.f32 %v5708, 0.6931472
  %v5710 = vmul.f32 -0.5, %v5650
  %v5711 = vadd.f32 %v5710, 1.0
  %v5712 = vmul.f32 %v5711, %v5650
  %v5713 = vand.u32 2147483647, %v5650
  %vm5714 = vcmp.lt.f32.partialorder %v5713, 0.0004427343
  %v5715 = vsel %vm5714, %v5712, %v5709
  %v5716 = vadd.f32 %v5652, 1.0
  %v5717 = vlog2.pop %v5716
  %v5718 = vmul.f32 %v5717, 0.6931472
  %v5719 = vmul.f32 -0.5, %v5652
  %v5720 = vadd.f32 %v5719, 1.0
  %v5721 = vmul.f32 %v5720, %v5652
  %v5722 = vand.u32 2147483647, %v5652
  %vm5723 = vcmp.lt.f32.partialorder %v5722, 0.0004427343
  %v5724 = vsel %vm5723, %v5721, %v5718
  %v5725 = vadd.f32 %v5613, %v5661
  %v5726 = vadd.f32 %v5614, %v5670
  %v5727 = vadd.f32 %v5615, %v5679
  %v5728 = vadd.f32 %v5616, %v5688
  %v5729 = vadd.f32 %v5617, %v5697
  %v5730 = vadd.f32 %v5618, %v5706
  %v5731 = vadd.f32 %v5619, %v5715
  %v5732 = vadd.f32 %v5620, %v5724
  %v5733 = vld [vmem:[%s4 + $0x450] sm:$0xff]
  %v5734 = vld [vmem:[%s4 + $0x458] sm:$0xff]
  %v5735 = vld [vmem:[%s4 + $0x460] sm:$0xff]
  %v5736 = vld [vmem:[%s4 + $0x468] sm:$0xff]
  %v5737 = vld [vmem:[%s4 + $0x470] sm:$0xff]
  %v5738 = vld [vmem:[%s4 + $0x478] sm:$0x1]
  %v5739 = vperm.slane %v5738, 0
  %v5741 = vsel %vm1123, %v5725, 0
  %v5744 = vsel %vm1123, %v5726, 0
  %v5747 = vsel %vm1123, %v5727, 0
  %v5750 = vsel %vm1123, %v5728, 0
  %v5753 = vsel %vm1123, %v5729, 0
  %v5756 = vsel %vm1123, %v5730, 0
  %v5759 = vsel %vm1123, %v5731, 0
  %v5762 = vsel %vm1123, %v5732, 0
  %5764 = vmatpush.msra.mxu0 0.0
  %5765 = vmatpush.msra.mxu0 0.0
  %5766 = vmatpush.msra.mxu0 0.0
  %5767 = vmatpush.msra.mxu0 0.0
  %5768 = vmatpush.msra.mxu0 0.0
  %5769 = vmatpush.msra.mxu0 0.0
  %5770 = vmatpush.msra.mxu0 0.0
  %5771 = vmatpush.msra.mxu0 0.0
  %5772 = vmatpush.msra.mxu0 0.0
  %5773 = vmatpush.msra.mxu0 0.0
  %5774 = vmatpush.msra.mxu0 0.0
  %5775 = vmatpush.msra.mxu0 %v5737
  %5776 = vmatpush.msra.mxu0 %v5736
  %5777 = vmatpush.msra.mxu0 %v5735
  %5778 = vmatpush.msra.mxu0 %v5734
  %5779 = vmatpush.msra.mxu0 %v5733
  %5780 = vmatmul.f32.gmra.mxu0 %v5741
  %v5781 = vpop.f32.mrf.mxu0
  %v5782 = vadd.f32 %v5739, %v5781
  %5783 = vmatmul.f32.gmra.mxu0 %v5744
  %v5784 = vpop.f32.mrf.mxu0
  %v5785 = vadd.f32 %v5739, %v5784
  %5786 = vmatmul.f32.gmra.mxu0 %v5747
  %v5787 = vpop.f32.mrf.mxu0
  %v5788 = vadd.f32 %v5739, %v5787
  %5789 = vmatmul.f32.gmra.mxu0 %v5750
  %v5790 = vpop.f32.mrf.mxu0
  %v5791 = vadd.f32 %v5739, %v5790
  %5792 = vmatmul.f32.gmra.mxu0 %v5753
  %v5793 = vpop.f32.mrf.mxu0
  %v5794 = vadd.f32 %v5739, %v5793
  %5795 = vmatmul.f32.gmra.mxu0 %v5756
  %v5796 = vpop.f32.mrf.mxu0
  %v5797 = vadd.f32 %v5739, %v5796
  %5798 = vmatmul.f32.gmra.mxu0 %v5759
  %v5799 = vpop.f32.mrf.mxu0
  %v5800 = vadd.f32 %v5739, %v5799
  %5801 = vmatmul.f32.gmra.mxu0 %v5762
  %v5802 = vpop.f32.mrf.mxu0
  %v5803 = vadd.f32 %v5739, %v5802
  %5804 = vdwg.mxu0
  %v5805 = vmax.f32 %v5782, 0.0
  %v5806 = vmax.f32 %v5785, 0.0
  %v5807 = vmax.f32 %v5788, 0.0
  %v5808 = vmax.f32 %v5791, 0.0
  %v5809 = vmax.f32 %v5794, 0.0
  %v5810 = vmax.f32 %v5797, 0.0
  %v5811 = vmax.f32 %v5800, 0.0
  %v5812 = vmax.f32 %v5803, 0.0
  %v5813 = vand.u32 2147483647, %v5782
  %v5814 = vand.u32 2147483647, %v5785
  %v5815 = vand.u32 2147483647, %v5788
  %v5816 = vand.u32 2147483647, %v5791
  %v5817 = vand.u32 2147483647, %v5794
  %v5818 = vand.u32 2147483647, %v5797
  %v5819 = vand.u32 2147483647, %v5800
  %v5820 = vand.u32 2147483647, %v5803
  %v5821 = vsub.f32 0.0, %v5813
  %v5822 = vsub.f32 0.0, %v5814
  %v5823 = vsub.f32 0.0, %v5815
  %v5824 = vsub.f32 0.0, %v5816
  %v5825 = vsub.f32 0.0, %v5817
  %v5826 = vsub.f32 0.0, %v5818
  %v5827 = vsub.f32 0.0, %v5819
  %v5828 = vsub.f32 0.0, %v5820
  %v5829 = vmul.f32 %v5821, 1.442695
  %v5830 = vpow.pop %v5829
  %v5831 = vmul.f32 %v5822, 1.442695
  %v5832 = vpow.pop %v5831
  %v5833 = vmul.f32 %v5823, 1.442695
  %v5834 = vpow.pop %v5833
  %v5835 = vmul.f32 %v5824, 1.442695
  %v5836 = vpow.pop %v5835
  %v5837 = vmul.f32 %v5825, 1.442695
  %v5838 = vpow.pop %v5837
  %v5839 = vmul.f32 %v5826, 1.442695
  %v5840 = vpow.pop %v5839
  %v5841 = vmul.f32 %v5827, 1.442695
  %v5842 = vpow.pop %v5841
  %v5843 = vmul.f32 %v5828, 1.442695
  %v5844 = vpow.pop %v5843
  %v5845 = vadd.f32 %v5830, 1.0
  %v5846 = vlog2.pop %v5845
  %v5847 = vmul.f32 %v5846, 0.6931472
  %v5848 = vmul.f32 -0.5, %v5830
  %v5849 = vadd.f32 %v5848, 1.0
  %v5850 = vmul.f32 %v5849, %v5830
  %v5851 = vand.u32 2147483647, %v5830
  %vm5852 = vcmp.lt.f32.partialorder %v5851, 0.0004427343
  %v5853 = vsel %vm5852, %v5850, %v5847
  %v5854 = vadd.f32 %v5832, 1.0
  %v5855 = vlog2.pop %v5854
  %v5856 = vmul.f32 %v5855, 0.6931472
  %v5857 = vmul.f32 -0.5, %v5832
  %v5858 = vadd.f32 %v5857, 1.0
  %v5859 = vmul.f32 %v5858, %v5832
  %v5860 = vand.u32 2147483647, %v5832
  %vm5861 = vcmp.lt.f32.partialorder %v5860, 0.0004427343
  %v5862 = vsel %vm5861, %v5859, %v5856
  %v5863 = vadd.f32 %v5834, 1.0
  %v5864 = vlog2.pop %v5863
  %v5865 = vmul.f32 %v5864, 0.6931472
  %v5866 = vmul.f32 -0.5, %v5834
  %v5867 = vadd.f32 %v5866, 1.0
  %v5868 = vmul.f32 %v5867, %v5834
  %v5869 = vand.u32 2147483647, %v5834
  %vm5870 = vcmp.lt.f32.partialorder %v5869, 0.0004427343
  %v5871 = vsel %vm5870, %v5868, %v5865
  %v5872 = vadd.f32 %v5836, 1.0
  %v5873 = vlog2.pop %v5872
  %v5874 = vmul.f32 %v5873, 0.6931472
  %v5875 = vmul.f32 -0.5, %v5836
  %v5876 = vadd.f32 %v5875, 1.0
  %v5877 = vmul.f32 %v5876, %v5836
  %v5878 = vand.u32 2147483647, %v5836
  %vm5879 = vcmp.lt.f32.partialorder %v5878, 0.0004427343
  %v5880 = vsel %vm5879, %v5877, %v5874
  %v5881 = vadd.f32 %v5838, 1.0
  %v5882 = vlog2.pop %v5881
  %v5883 = vmul.f32 %v5882, 0.6931472
  %v5884 = vmul.f32 -0.5, %v5838
  %v5885 = vadd.f32 %v5884, 1.0
  %v5886 = vmul.f32 %v5885, %v5838
  %v5887 = vand.u32 2147483647, %v5838
  %vm5888 = vcmp.lt.f32.partialorder %v5887, 0.0004427343
  %v5889 = vsel %vm5888, %v5886, %v5883
  %v5890 = vadd.f32 %v5840, 1.0
  %v5891 = vlog2.pop %v5890
  %v5892 = vmul.f32 %v5891, 0.6931472
  %v5893 = vmul.f32 -0.5, %v5840
  %v5894 = vadd.f32 %v5893, 1.0
  %v5895 = vmul.f32 %v5894, %v5840
  %v5896 = vand.u32 2147483647, %v5840
  %vm5897 = vcmp.lt.f32.partialorder %v5896, 0.0004427343
  %v5898 = vsel %vm5897, %v5895, %v5892
  %v5899 = vadd.f32 %v5842, 1.0
  %v5900 = vlog2.pop %v5899
  %v5901 = vmul.f32 %v5900, 0.6931472
  %v5902 = vmul.f32 -0.5, %v5842
  %v5903 = vadd.f32 %v5902, 1.0
  %v5904 = vmul.f32 %v5903, %v5842
  %v5905 = vand.u32 2147483647, %v5842
  %vm5906 = vcmp.lt.f32.partialorder %v5905, 0.0004427343
  %v5907 = vsel %vm5906, %v5904, %v5901
  %v5908 = vadd.f32 %v5844, 1.0
  %v5909 = vlog2.pop %v5908
  %v5910 = vmul.f32 %v5909, 0.6931472
  %v5911 = vmul.f32 -0.5, %v5844
  %v5912 = vadd.f32 %v5911, 1.0
  %v5913 = vmul.f32 %v5912, %v5844
  %v5914 = vand.u32 2147483647, %v5844
  %vm5915 = vcmp.lt.f32.partialorder %v5914, 0.0004427343
  %v5916 = vsel %vm5915, %v5913, %v5910
  %v5917 = vadd.f32 %v5805, %v5853
  %v5918 = vadd.f32 %v5806, %v5862
  %v5919 = vadd.f32 %v5807, %v5871
  %v5920 = vadd.f32 %v5808, %v5880
  %v5921 = vadd.f32 %v5809, %v5889
  %v5922 = vadd.f32 %v5810, %v5898
  %v5923 = vadd.f32 %v5811, %v5907
  %v5924 = vadd.f32 %v5812, %v5916
  %v5925 = vadd.f32 %v5917, 0.001
  %v5926 = vadd.f32 %v5918, 0.001
  %v5927 = vadd.f32 %v5919, 0.001
  %v5928 = vadd.f32 %v5920, 0.001
  %v5929 = vadd.f32 %v5921, 0.001
  %v5930 = vadd.f32 %v5922, 0.001
  %v5931 = vadd.f32 %v5923, 0.001
  %v5932 = vadd.f32 %v5924, 0.001
  %v5933 = vmul.f32 %v5925, %v3533
  %v5934 = vmul.f32 %v5926, %v3534
  %v5935 = vmul.f32 %v5927, %v3535
  %v5936 = vmul.f32 %v5928, %v3536
  %v5937 = vmul.f32 %v5929, %v3537
  %v5938 = vmul.f32 %v5930, %v3538
  %v5939 = vmul.f32 %v5931, %v3539
  %v5940 = vmul.f32 %v5932, %v3540
  %5949 = vrot.lane.b32.xlu0 %v5782, 40
  %v5950 = vpop.permute.xlu0 %5949
  %5951 = vrot.lane.b32.xlu0 %v5785, 40
  %v5952 = vpop.permute.xlu0 %5951
  %5953 = vrot.lane.b32.xlu0 %v5788, 40
  %v5954 = vpop.permute.xlu0 %5953
  %5955 = vrot.lane.b32.xlu0 %v5791, 40
  %v5956 = vpop.permute.xlu0 %5955
  %5957 = vrot.lane.b32.xlu0 %v5794, 40
  %v5958 = vpop.permute.xlu0 %5957
  %5959 = vrot.lane.b32.xlu0 %v5797, 40
  %v5960 = vpop.permute.xlu0 %5959
  %5961 = vrot.lane.b32.xlu0 %v5800, 40
  %v5962 = vpop.permute.xlu0 %5961
  %5963 = vrot.lane.b32.xlu0 %v5803, 40
  %v5964 = vpop.permute.xlu0 %5963
  %v5973 = vadd.f32 %v5933, %v5950
  %v5974 = vadd.f32 %v5934, %v5952
  %v5975 = vadd.f32 %v5935, %v5954
  %v5976 = vadd.f32 %v5936, %v5956
  %v5977 = vadd.f32 %v5937, %v5958
  %v5978 = vadd.f32 %v5938, %v5960
  %v5979 = vadd.f32 %v5939, %v5962
  %v5980 = vadd.f32 %v5940, %v5964
  %v5981 = vlog2.pop %v5925
  %v5982 = vmul.f32 %v5981, 0.6931472
  %v5983 = vlog2.pop %v5926
  %v5984 = vmul.f32 %v5983, 0.6931472
  %v5985 = vlog2.pop %v5927
  %v5986 = vmul.f32 %v5985, 0.6931472
  %v5987 = vlog2.pop %v5928
  %v5988 = vmul.f32 %v5987, 0.6931472
  %v5989 = vlog2.pop %v5929
  %v5990 = vmul.f32 %v5989, 0.6931472
  %v5991 = vlog2.pop %v5930
  %v5992 = vmul.f32 %v5991, 0.6931472
  %v5993 = vlog2.pop %v5931
  %v5994 = vmul.f32 %v5993, 0.6931472
  %v5995 = vlog2.pop %v5932
  %v5996 = vmul.f32 %v5995, 0.6931472
  %v5997 = vadd.f32 %v3557, %v5982
  %v5998 = vadd.f32 %v3558, %v5984
  %v5999 = vadd.f32 %v3559, %v5986
  %v6000 = vadd.f32 %v3560, %v5988
  %v6001 = vadd.f32 %v3561, %v5990
  %v6002 = vadd.f32 %v3562, %v5992
  %v6003 = vadd.f32 %v3563, %v5994
  %v6004 = vadd.f32 %v3564, %v5996
  %v6005 = vld [vmem:[%s4 + $0x480] sm:$0xff]
  %v6006 = vld [vmem:[%s4 + $0x488] sm:$0xff]
  %v6007 = vld [vmem:[%s4 + $0x490] sm:$0xff]
  %v6008 = vld [vmem:[%s4 + $0x498] sm:$0xff]
  %v6009 = vld [vmem:[%s4 + $0x4a0] sm:$0xff]
  %v6010 = vld [vmem:[%s4 + $0x4a8] sm:$0x1]
  %v6011 = vperm.slane %v6010, 0
  %6020 = vrot.lane.b32.xlu0 %v5973, 88
  %v6021 = vpop.permute.xlu0 %6020
  %6022 = vrot.lane.b32.xlu0 %v5974, 88
  %v6023 = vpop.permute.xlu0 %6022
  %6024 = vrot.lane.b32.xlu0 %v5975, 88
  %v6025 = vpop.permute.xlu0 %6024
  %6026 = vrot.lane.b32.xlu0 %v5976, 88
  %v6027 = vpop.permute.xlu0 %6026
  %6028 = vrot.lane.b32.xlu0 %v5977, 88
  %v6029 = vpop.permute.xlu0 %6028
  %6030 = vrot.lane.b32.xlu0 %v5978, 88
  %v6031 = vpop.permute.xlu0 %6030
  %6032 = vrot.lane.b32.xlu0 %v5979, 88
  %v6033 = vpop.permute.xlu0 %6032
  %6034 = vrot.lane.b32.xlu0 %v5980, 88
  %v6035 = vpop.permute.xlu0 %6034
  %v6036 = vsel %vm1123, %v6021, 0
  %v6038 = vsel %vm1123, %v6023, 0
  %v6040 = vsel %vm1123, %v6025, 0
  %v6042 = vsel %vm1123, %v6027, 0
  %v6044 = vsel %vm1123, %v6029, 0
  %v6046 = vsel %vm1123, %v6031, 0
  %v6048 = vsel %vm1123, %v6033, 0
  %v6050 = vsel %vm1123, %v6035, 0
  %6052 = vmatpush.msra.mxu0 0.0
  %6053 = vmatpush.msra.mxu0 0.0
  %6054 = vmatpush.msra.mxu0 0.0
  %6055 = vmatpush.msra.mxu0 0.0
  %6056 = vmatpush.msra.mxu0 0.0
  %6057 = vmatpush.msra.mxu0 0.0
  %6058 = vmatpush.msra.mxu0 0.0
  %6059 = vmatpush.msra.mxu0 0.0
  %6060 = vmatpush.msra.mxu0 0.0
  %6061 = vmatpush.msra.mxu0 0.0
  %6062 = vmatpush.msra.mxu0 0.0
  %6063 = vmatpush.msra.mxu0 %v6009
  %6064 = vmatpush.msra.mxu0 %v6008
  %6065 = vmatpush.msra.mxu0 %v6007
  %6066 = vmatpush.msra.mxu0 %v6006
  %6067 = vmatpush.msra.mxu0 %v6005
  %6068 = vmatmul.f32.gmra.mxu0 %v6036
  %v6069 = vpop.f32.mrf.mxu0
  %v6070 = vadd.f32 %v6011, %v6069
  %6071 = vmatmul.f32.gmra.mxu0 %v6038
  %v6072 = vpop.f32.mrf.mxu0
  %v6073 = vadd.f32 %v6011, %v6072
  %6074 = vmatmul.f32.gmra.mxu0 %v6040
  %v6075 = vpop.f32.mrf.mxu0
  %v6076 = vadd.f32 %v6011, %v6075
  %6077 = vmatmul.f32.gmra.mxu0 %v6042
  %v6078 = vpop.f32.mrf.mxu0
  %v6079 = vadd.f32 %v6011, %v6078
  %6080 = vmatmul.f32.gmra.mxu0 %v6044
  %v6081 = vpop.f32.mrf.mxu0
  %v6082 = vadd.f32 %v6011, %v6081
  %6083 = vmatmul.f32.gmra.mxu0 %v6046
  %v6084 = vpop.f32.mrf.mxu0
  %v6085 = vadd.f32 %v6011, %v6084
  %6086 = vmatmul.f32.gmra.mxu0 %v6048
  %v6087 = vpop.f32.mrf.mxu0
  %v6088 = vadd.f32 %v6011, %v6087
  %6089 = vmatmul.f32.gmra.mxu0 %v6050
  %v6090 = vpop.f32.mrf.mxu0
  %v6091 = vadd.f32 %v6011, %v6090
  %6092 = vdwg.mxu0
  %v6093 = vmax.f32 %v6070, 0.0
  %v6094 = vmax.f32 %v6073, 0.0
  %v6095 = vmax.f32 %v6076, 0.0
  %v6096 = vmax.f32 %v6079, 0.0
  %v6097 = vmax.f32 %v6082, 0.0
  %v6098 = vmax.f32 %v6085, 0.0
  %v6099 = vmax.f32 %v6088, 0.0
  %v6100 = vmax.f32 %v6091, 0.0
  %v6101 = vand.u32 2147483647, %v6070
  %v6102 = vand.u32 2147483647, %v6073
  %v6103 = vand.u32 2147483647, %v6076
  %v6104 = vand.u32 2147483647, %v6079
  %v6105 = vand.u32 2147483647, %v6082
  %v6106 = vand.u32 2147483647, %v6085
  %v6107 = vand.u32 2147483647, %v6088
  %v6108 = vand.u32 2147483647, %v6091
  %v6109 = vsub.f32 0.0, %v6101
  %v6110 = vsub.f32 0.0, %v6102
  %v6111 = vsub.f32 0.0, %v6103
  %v6112 = vsub.f32 0.0, %v6104
  %v6113 = vsub.f32 0.0, %v6105
  %v6114 = vsub.f32 0.0, %v6106
  %v6115 = vsub.f32 0.0, %v6107
  %v6116 = vsub.f32 0.0, %v6108
  %v6117 = vmul.f32 %v6109, 1.442695
  %v6118 = vpow.pop %v6117
  %v6119 = vmul.f32 %v6110, 1.442695
  %v6120 = vpow.pop %v6119
  %v6121 = vmul.f32 %v6111, 1.442695
  %v6122 = vpow.pop %v6121
  %v6123 = vmul.f32 %v6112, 1.442695
  %v6124 = vpow.pop %v6123
  %v6125 = vmul.f32 %v6113, 1.442695
  %v6126 = vpow.pop %v6125
  %v6127 = vmul.f32 %v6114, 1.442695
  %v6128 = vpow.pop %v6127
  %v6129 = vmul.f32 %v6115, 1.442695
  %v6130 = vpow.pop %v6129
  %v6131 = vmul.f32 %v6116, 1.442695
  %v6132 = vpow.pop %v6131
  %v6133 = vadd.f32 %v6118, 1.0
  %v6134 = vlog2.pop %v6133
  %v6135 = vmul.f32 %v6134, 0.6931472
  %v6136 = vmul.f32 -0.5, %v6118
  %v6137 = vadd.f32 %v6136, 1.0
  %v6138 = vmul.f32 %v6137, %v6118
  %v6139 = vand.u32 2147483647, %v6118
  %vm6140 = vcmp.lt.f32.partialorder %v6139, 0.0004427343
  %v6141 = vsel %vm6140, %v6138, %v6135
  %v6142 = vadd.f32 %v6120, 1.0
  %v6143 = vlog2.pop %v6142
  %v6144 = vmul.f32 %v6143, 0.6931472
  %v6145 = vmul.f32 -0.5, %v6120
  %v6146 = vadd.f32 %v6145, 1.0
  %v6147 = vmul.f32 %v6146, %v6120
  %v6148 = vand.u32 2147483647, %v6120
  %vm6149 = vcmp.lt.f32.partialorder %v6148, 0.0004427343
  %v6150 = vsel %vm6149, %v6147, %v6144
  %v6151 = vadd.f32 %v6122, 1.0
  %v6152 = vlog2.pop %v6151
  %v6153 = vmul.f32 %v6152, 0.6931472
  %v6154 = vmul.f32 -0.5, %v6122
  %v6155 = vadd.f32 %v6154, 1.0
  %v6156 = vmul.f32 %v6155, %v6122
  %v6157 = vand.u32 2147483647, %v6122
  %vm6158 = vcmp.lt.f32.partialorder %v6157, 0.0004427343
  %v6159 = vsel %vm6158, %v6156, %v6153
  %v6160 = vadd.f32 %v6124, 1.0
  %v6161 = vlog2.pop %v6160
  %v6162 = vmul.f32 %v6161, 0.6931472
  %v6163 = vmul.f32 -0.5, %v6124
  %v6164 = vadd.f32 %v6163, 1.0
  %v6165 = vmul.f32 %v6164, %v6124
  %v6166 = vand.u32 2147483647, %v6124
  %vm6167 = vcmp.lt.f32.partialorder %v6166, 0.0004427343
  %v6168 = vsel %vm6167, %v6165, %v6162
  %v6169 = vadd.f32 %v6126, 1.0
  %v6170 = vlog2.pop %v6169
  %v6171 = vmul.f32 %v6170, 0.6931472
  %v6172 = vmul.f32 -0.5, %v6126
  %v6173 = vadd.f32 %v6172, 1.0
  %v6174 = vmul.f32 %v6173, %v6126
  %v6175 = vand.u32 2147483647, %v6126
  %vm6176 = vcmp.lt.f32.partialorder %v6175, 0.0004427343
  %v6177 = vsel %vm6176, %v6174, %v6171
  %v6178 = vadd.f32 %v6128, 1.0
  %v6179 = vlog2.pop %v6178
  %v6180 = vmul.f32 %v6179, 0.6931472
  %v6181 = vmul.f32 -0.5, %v6128
  %v6182 = vadd.f32 %v6181, 1.0
  %v6183 = vmul.f32 %v6182, %v6128
  %v6184 = vand.u32 2147483647, %v6128
  %vm6185 = vcmp.lt.f32.partialorder %v6184, 0.0004427343
  %v6186 = vsel %vm6185, %v6183, %v6180
  %v6187 = vadd.f32 %v6130, 1.0
  %v6188 = vlog2.pop %v6187
  %v6189 = vmul.f32 %v6188, 0.6931472
  %v6190 = vmul.f32 -0.5, %v6130
  %v6191 = vadd.f32 %v6190, 1.0
  %v6192 = vmul.f32 %v6191, %v6130
  %v6193 = vand.u32 2147483647, %v6130
  %vm6194 = vcmp.lt.f32.partialorder %v6193, 0.0004427343
  %v6195 = vsel %vm6194, %v6192, %v6189
  %v6196 = vadd.f32 %v6132, 1.0
  %v6197 = vlog2.pop %v6196
  %v6198 = vmul.f32 %v6197, 0.6931472
  %v6199 = vmul.f32 -0.5, %v6132
  %v6200 = vadd.f32 %v6199, 1.0
  %v6201 = vmul.f32 %v6200, %v6132
  %v6202 = vand.u32 2147483647, %v6132
  %vm6203 = vcmp.lt.f32.partialorder %v6202, 0.0004427343
  %v6204 = vsel %vm6203, %v6201, %v6198
  %v6205 = vadd.f32 %v6093, %v6141
  %v6206 = vadd.f32 %v6094, %v6150
  %v6207 = vadd.f32 %v6095, %v6159
  %v6208 = vadd.f32 %v6096, %v6168
  %v6209 = vadd.f32 %v6097, %v6177
  %v6210 = vadd.f32 %v6098, %v6186
  %v6211 = vadd.f32 %v6099, %v6195
  %v6212 = vadd.f32 %v6100, %v6204
  %v6213 = vld [vmem:[%s4 + $0x4b0] sm:$0xff]
  %v6214 = vld [vmem:[%s4 + $0x4b8] sm:$0xff]
  %v6215 = vld [vmem:[%s4 + $0x4c0] sm:$0xff]
  %v6216 = vld [vmem:[%s4 + $0x4c8] sm:$0xff]
  %v6217 = vld [vmem:[%s4 + $0x4d0] sm:$0xff]
  %v6218 = vld [vmem:[%s4 + $0x4d8] sm:$0x1]
  %v6219 = vperm.slane %v6218, 0
  %v6221 = vsel %vm1123, %v6205, 0
  %v6224 = vsel %vm1123, %v6206, 0
  %v6227 = vsel %vm1123, %v6207, 0
  %v6230 = vsel %vm1123, %v6208, 0
  %v6233 = vsel %vm1123, %v6209, 0
  %v6236 = vsel %vm1123, %v6210, 0
  %v6239 = vsel %vm1123, %v6211, 0
  %v6242 = vsel %vm1123, %v6212, 0
  %6244 = vmatpush.msra.mxu0 0.0
  %6245 = vmatpush.msra.mxu0 0.0
  %6246 = vmatpush.msra.mxu0 0.0
  %6247 = vmatpush.msra.mxu0 0.0
  %6248 = vmatpush.msra.mxu0 0.0
  %6249 = vmatpush.msra.mxu0 0.0
  %6250 = vmatpush.msra.mxu0 0.0
  %6251 = vmatpush.msra.mxu0 0.0
  %6252 = vmatpush.msra.mxu0 0.0
  %6253 = vmatpush.msra.mxu0 0.0
  %6254 = vmatpush.msra.mxu0 0.0
  %6255 = vmatpush.msra.mxu0 %v6217
  %6256 = vmatpush.msra.mxu0 %v6216
  %6257 = vmatpush.msra.mxu0 %v6215
  %6258 = vmatpush.msra.mxu0 %v6214
  %6259 = vmatpush.msra.mxu0 %v6213
  %6260 = vmatmul.f32.gmra.mxu0 %v6221
  %v6261 = vpop.f32.mrf.mxu0
  %v6262 = vadd.f32 %v6219, %v6261
  %6263 = vmatmul.f32.gmra.mxu0 %v6224
  %v6264 = vpop.f32.mrf.mxu0
  %v6265 = vadd.f32 %v6219, %v6264
  %6266 = vmatmul.f32.gmra.mxu0 %v6227
  %v6267 = vpop.f32.mrf.mxu0
  %v6268 = vadd.f32 %v6219, %v6267
  %6269 = vmatmul.f32.gmra.mxu0 %v6230
  %v6270 = vpop.f32.mrf.mxu0
  %v6271 = vadd.f32 %v6219, %v6270
  %6272 = vmatmul.f32.gmra.mxu0 %v6233
  %v6273 = vpop.f32.mrf.mxu0
  %v6274 = vadd.f32 %v6219, %v6273
  %6275 = vmatmul.f32.gmra.mxu0 %v6236
  %v6276 = vpop.f32.mrf.mxu0
  %v6277 = vadd.f32 %v6219, %v6276
  %6278 = vmatmul.f32.gmra.mxu0 %v6239
  %v6279 = vpop.f32.mrf.mxu0
  %v6280 = vadd.f32 %v6219, %v6279
  %6281 = vmatmul.f32.gmra.mxu0 %v6242
  %v6282 = vpop.f32.mrf.mxu0
  %v6283 = vadd.f32 %v6219, %v6282
  %6284 = vdwg.mxu0
  %v6285 = vmax.f32 %v6262, 0.0
  %v6286 = vmax.f32 %v6265, 0.0
  %v6287 = vmax.f32 %v6268, 0.0
  %v6288 = vmax.f32 %v6271, 0.0
  %v6289 = vmax.f32 %v6274, 0.0
  %v6290 = vmax.f32 %v6277, 0.0
  %v6291 = vmax.f32 %v6280, 0.0
  %v6292 = vmax.f32 %v6283, 0.0
  %v6293 = vand.u32 2147483647, %v6262
  %v6294 = vand.u32 2147483647, %v6265
  %v6295 = vand.u32 2147483647, %v6268
  %v6296 = vand.u32 2147483647, %v6271
  %v6297 = vand.u32 2147483647, %v6274
  %v6298 = vand.u32 2147483647, %v6277
  %v6299 = vand.u32 2147483647, %v6280
  %v6300 = vand.u32 2147483647, %v6283
  %v6301 = vsub.f32 0.0, %v6293
  %v6302 = vsub.f32 0.0, %v6294
  %v6303 = vsub.f32 0.0, %v6295
  %v6304 = vsub.f32 0.0, %v6296
  %v6305 = vsub.f32 0.0, %v6297
  %v6306 = vsub.f32 0.0, %v6298
  %v6307 = vsub.f32 0.0, %v6299
  %v6308 = vsub.f32 0.0, %v6300
  %v6309 = vmul.f32 %v6301, 1.442695
  %v6310 = vpow.pop %v6309
  %v6311 = vmul.f32 %v6302, 1.442695
  %v6312 = vpow.pop %v6311
  %v6313 = vmul.f32 %v6303, 1.442695
  %v6314 = vpow.pop %v6313
  %v6315 = vmul.f32 %v6304, 1.442695
  %v6316 = vpow.pop %v6315
  %v6317 = vmul.f32 %v6305, 1.442695
  %v6318 = vpow.pop %v6317
  %v6319 = vmul.f32 %v6306, 1.442695
  %v6320 = vpow.pop %v6319
  %v6321 = vmul.f32 %v6307, 1.442695
  %v6322 = vpow.pop %v6321
  %v6323 = vmul.f32 %v6308, 1.442695
  %v6324 = vpow.pop %v6323
  %v6325 = vadd.f32 %v6310, 1.0
  %v6326 = vlog2.pop %v6325
  %v6327 = vmul.f32 %v6326, 0.6931472
  %v6328 = vmul.f32 -0.5, %v6310
  %v6329 = vadd.f32 %v6328, 1.0
  %v6330 = vmul.f32 %v6329, %v6310
  %v6331 = vand.u32 2147483647, %v6310
  %vm6332 = vcmp.lt.f32.partialorder %v6331, 0.0004427343
  %v6333 = vsel %vm6332, %v6330, %v6327
  %v6334 = vadd.f32 %v6312, 1.0
  %v6335 = vlog2.pop %v6334
  %v6336 = vmul.f32 %v6335, 0.6931472
  %v6337 = vmul.f32 -0.5, %v6312
  %v6338 = vadd.f32 %v6337, 1.0
  %v6339 = vmul.f32 %v6338, %v6312
  %v6340 = vand.u32 2147483647, %v6312
  %vm6341 = vcmp.lt.f32.partialorder %v6340, 0.0004427343
  %v6342 = vsel %vm6341, %v6339, %v6336
  %v6343 = vadd.f32 %v6314, 1.0
  %v6344 = vlog2.pop %v6343
  %v6345 = vmul.f32 %v6344, 0.6931472
  %v6346 = vmul.f32 -0.5, %v6314
  %v6347 = vadd.f32 %v6346, 1.0
  %v6348 = vmul.f32 %v6347, %v6314
  %v6349 = vand.u32 2147483647, %v6314
  %vm6350 = vcmp.lt.f32.partialorder %v6349, 0.0004427343
  %v6351 = vsel %vm6350, %v6348, %v6345
  %v6352 = vadd.f32 %v6316, 1.0
  %v6353 = vlog2.pop %v6352
  %v6354 = vmul.f32 %v6353, 0.6931472
  %v6355 = vmul.f32 -0.5, %v6316
  %v6356 = vadd.f32 %v6355, 1.0
  %v6357 = vmul.f32 %v6356, %v6316
  %v6358 = vand.u32 2147483647, %v6316
  %vm6359 = vcmp.lt.f32.partialorder %v6358, 0.0004427343
  %v6360 = vsel %vm6359, %v6357, %v6354
  %v6361 = vadd.f32 %v6318, 1.0
  %v6362 = vlog2.pop %v6361
  %v6363 = vmul.f32 %v6362, 0.6931472
  %v6364 = vmul.f32 -0.5, %v6318
  %v6365 = vadd.f32 %v6364, 1.0
  %v6366 = vmul.f32 %v6365, %v6318
  %v6367 = vand.u32 2147483647, %v6318
  %vm6368 = vcmp.lt.f32.partialorder %v6367, 0.0004427343
  %v6369 = vsel %vm6368, %v6366, %v6363
  %v6370 = vadd.f32 %v6320, 1.0
  %v6371 = vlog2.pop %v6370
  %v6372 = vmul.f32 %v6371, 0.6931472
  %v6373 = vmul.f32 -0.5, %v6320
  %v6374 = vadd.f32 %v6373, 1.0
  %v6375 = vmul.f32 %v6374, %v6320
  %v6376 = vand.u32 2147483647, %v6320
  %vm6377 = vcmp.lt.f32.partialorder %v6376, 0.0004427343
  %v6378 = vsel %vm6377, %v6375, %v6372
  %v6379 = vadd.f32 %v6322, 1.0
  %v6380 = vlog2.pop %v6379
  %v6381 = vmul.f32 %v6380, 0.6931472
  %v6382 = vmul.f32 -0.5, %v6322
  %v6383 = vadd.f32 %v6382, 1.0
  %v6384 = vmul.f32 %v6383, %v6322
  %v6385 = vand.u32 2147483647, %v6322
  %vm6386 = vcmp.lt.f32.partialorder %v6385, 0.0004427343
  %v6387 = vsel %vm6386, %v6384, %v6381
  %v6388 = vadd.f32 %v6324, 1.0
  %v6389 = vlog2.pop %v6388
  %v6390 = vmul.f32 %v6389, 0.6931472
  %v6391 = vmul.f32 -0.5, %v6324
  %v6392 = vadd.f32 %v6391, 1.0
  %v6393 = vmul.f32 %v6392, %v6324
  %v6394 = vand.u32 2147483647, %v6324
  %vm6395 = vcmp.lt.f32.partialorder %v6394, 0.0004427343
  %v6396 = vsel %vm6395, %v6393, %v6390
  %v6397 = vadd.f32 %v6285, %v6333
  %v6398 = vadd.f32 %v6286, %v6342
  %v6399 = vadd.f32 %v6287, %v6351
  %v6400 = vadd.f32 %v6288, %v6360
  %v6401 = vadd.f32 %v6289, %v6369
  %v6402 = vadd.f32 %v6290, %v6378
  %v6403 = vadd.f32 %v6291, %v6387
  %v6404 = vadd.f32 %v6292, %v6396
  %v6405 = vld [vmem:[%s4 + $0x4e0] sm:$0xff]
  %v6406 = vld [vmem:[%s4 + $0x4e8] sm:$0xff]
  %v6407 = vld [vmem:[%s4 + $0x4f0] sm:$0xff]
  %v6408 = vld [vmem:[%s4 + $0x4f8] sm:$0xff]
  %v6409 = vld [vmem:[%s4 + $0x500] sm:$0xff]
  %v6410 = vld [vmem:[%s4 + $0x508] sm:$0x1]
  %v6411 = vperm.slane %v6410, 0
  %v6413 = vsel %vm1123, %v6397, 0
  %v6416 = vsel %vm1123, %v6398, 0
  %v6419 = vsel %vm1123, %v6399, 0
  %v6422 = vsel %vm1123, %v6400, 0
  %v6425 = vsel %vm1123, %v6401, 0
  %v6428 = vsel %vm1123, %v6402, 0
  %v6431 = vsel %vm1123, %v6403, 0
  %v6434 = vsel %vm1123, %v6404, 0
  %6436 = vmatpush.msra.mxu0 0.0
  %6437 = vmatpush.msra.mxu0 0.0
  %6438 = vmatpush.msra.mxu0 0.0
  %6439 = vmatpush.msra.mxu0 0.0
  %6440 = vmatpush.msra.mxu0 0.0
  %6441 = vmatpush.msra.mxu0 0.0
  %6442 = vmatpush.msra.mxu0 0.0
  %6443 = vmatpush.msra.mxu0 0.0
  %6444 = vmatpush.msra.mxu0 0.0
  %6445 = vmatpush.msra.mxu0 0.0
  %6446 = vmatpush.msra.mxu0 0.0
  %6447 = vmatpush.msra.mxu0 %v6409
  %6448 = vmatpush.msra.mxu0 %v6408
  %6449 = vmatpush.msra.mxu0 %v6407
  %6450 = vmatpush.msra.mxu0 %v6406
  %6451 = vmatpush.msra.mxu0 %v6405
  %6452 = vmatmul.f32.gmra.mxu0 %v6413
  %v6453 = vpop.f32.mrf.mxu0
  %v6454 = vadd.f32 %v6411, %v6453
  %6455 = vmatmul.f32.gmra.mxu0 %v6416
  %v6456 = vpop.f32.mrf.mxu0
  %v6457 = vadd.f32 %v6411, %v6456
  %6458 = vmatmul.f32.gmra.mxu0 %v6419
  %v6459 = vpop.f32.mrf.mxu0
  %v6460 = vadd.f32 %v6411, %v6459
  %6461 = vmatmul.f32.gmra.mxu0 %v6422
  %v6462 = vpop.f32.mrf.mxu0
  %v6463 = vadd.f32 %v6411, %v6462
  %6464 = vmatmul.f32.gmra.mxu0 %v6425
  %v6465 = vpop.f32.mrf.mxu0
  %v6466 = vadd.f32 %v6411, %v6465
  %6467 = vmatmul.f32.gmra.mxu0 %v6428
  %v6468 = vpop.f32.mrf.mxu0
  %v6469 = vadd.f32 %v6411, %v6468
  %6470 = vmatmul.f32.gmra.mxu0 %v6431
  %v6471 = vpop.f32.mrf.mxu0
  %v6472 = vadd.f32 %v6411, %v6471
  %6473 = vmatmul.f32.gmra.mxu0 %v6434
  %v6474 = vpop.f32.mrf.mxu0
  %v6475 = vadd.f32 %v6411, %v6474
  %6476 = vdwg.mxu0
  %v6477 = vadd.f32 %v6070, %v6454
  %v6478 = vadd.f32 %v6073, %v6457
  %v6479 = vadd.f32 %v6076, %v6460
  %v6480 = vadd.f32 %v6079, %v6463
  %v6481 = vadd.f32 %v6082, %v6466
  %v6482 = vadd.f32 %v6085, %v6469
  %v6483 = vadd.f32 %v6088, %v6472
  %v6484 = vadd.f32 %v6091, %v6475
  %v6485 = vmax.f32 %v6477, 0.0
  %v6486 = vmax.f32 %v6478, 0.0
  %v6487 = vmax.f32 %v6479, 0.0
  %v6488 = vmax.f32 %v6480, 0.0
  %v6489 = vmax.f32 %v6481, 0.0
  %v6490 = vmax.f32 %v6482, 0.0
  %v6491 = vmax.f32 %v6483, 0.0
  %v6492 = vmax.f32 %v6484, 0.0
  %v6493 = vand.u32 2147483647, %v6477
  %v6494 = vand.u32 2147483647, %v6478
  %v6495 = vand.u32 2147483647, %v6479
  %v6496 = vand.u32 2147483647, %v6480
  %v6497 = vand.u32 2147483647, %v6481
  %v6498 = vand.u32 2147483647, %v6482
  %v6499 = vand.u32 2147483647, %v6483
  %v6500 = vand.u32 2147483647, %v6484
  %v6501 = vsub.f32 0.0, %v6493
  %v6502 = vsub.f32 0.0, %v6494
  %v6503 = vsub.f32 0.0, %v6495
  %v6504 = vsub.f32 0.0, %v6496
  %v6505 = vsub.f32 0.0, %v6497
  %v6506 = vsub.f32 0.0, %v6498
  %v6507 = vsub.f32 0.0, %v6499
  %v6508 = vsub.f32 0.0, %v6500
  %v6509 = vmul.f32 %v6501, 1.442695
  %v6510 = vpow.pop %v6509
  %v6511 = vmul.f32 %v6502, 1.442695
  %v6512 = vpow.pop %v6511
  %v6513 = vmul.f32 %v6503, 1.442695
  %v6514 = vpow.pop %v6513
  %v6515 = vmul.f32 %v6504, 1.442695
  %v6516 = vpow.pop %v6515
  %v6517 = vmul.f32 %v6505, 1.442695
  %v6518 = vpow.pop %v6517
  %v6519 = vmul.f32 %v6506, 1.442695
  %v6520 = vpow.pop %v6519
  %v6521 = vmul.f32 %v6507, 1.442695
  %v6522 = vpow.pop %v6521
  %v6523 = vmul.f32 %v6508, 1.442695
  %v6524 = vpow.pop %v6523
  %v6525 = vadd.f32 %v6510, 1.0
  %v6526 = vlog2.pop %v6525
  %v6527 = vmul.f32 %v6526, 0.6931472
  %v6528 = vmul.f32 -0.5, %v6510
  %v6529 = vadd.f32 %v6528, 1.0
  %v6530 = vmul.f32 %v6529, %v6510
  %v6531 = vand.u32 2147483647, %v6510
  %vm6532 = vcmp.lt.f32.partialorder %v6531, 0.0004427343
  %v6533 = vsel %vm6532, %v6530, %v6527
  %v6534 = vadd.f32 %v6512, 1.0
  %v6535 = vlog2.pop %v6534
  %v6536 = vmul.f32 %v6535, 0.6931472
  %v6537 = vmul.f32 -0.5, %v6512
  %v6538 = vadd.f32 %v6537, 1.0
  %v6539 = vmul.f32 %v6538, %v6512
  %v6540 = vand.u32 2147483647, %v6512
  %vm6541 = vcmp.lt.f32.partialorder %v6540, 0.0004427343
  %v6542 = vsel %vm6541, %v6539, %v6536
  %v6543 = vadd.f32 %v6514, 1.0
  %v6544 = vlog2.pop %v6543
  %v6545 = vmul.f32 %v6544, 0.6931472
  %v6546 = vmul.f32 -0.5, %v6514
  %v6547 = vadd.f32 %v6546, 1.0
  %v6548 = vmul.f32 %v6547, %v6514
  %v6549 = vand.u32 2147483647, %v6514
  %vm6550 = vcmp.lt.f32.partialorder %v6549, 0.0004427343
  %v6551 = vsel %vm6550, %v6548, %v6545
  %v6552 = vadd.f32 %v6516, 1.0
  %v6553 = vlog2.pop %v6552
  %v6554 = vmul.f32 %v6553, 0.6931472
  %v6555 = vmul.f32 -0.5, %v6516
  %v6556 = vadd.f32 %v6555, 1.0
  %v6557 = vmul.f32 %v6556, %v6516
  %v6558 = vand.u32 2147483647, %v6516
  %vm6559 = vcmp.lt.f32.partialorder %v6558, 0.0004427343
  %v6560 = vsel %vm6559, %v6557, %v6554
  %v6561 = vadd.f32 %v6518, 1.0
  %v6562 = vlog2.pop %v6561
  %v6563 = vmul.f32 %v6562, 0.6931472
  %v6564 = vmul.f32 -0.5, %v6518
  %v6565 = vadd.f32 %v6564, 1.0
  %v6566 = vmul.f32 %v6565, %v6518
  %v6567 = vand.u32 2147483647, %v6518
  %vm6568 = vcmp.lt.f32.partialorder %v6567, 0.0004427343
  %v6569 = vsel %vm6568, %v6566, %v6563
  %v6570 = vadd.f32 %v6520, 1.0
  %v6571 = vlog2.pop %v6570
  %v6572 = vmul.f32 %v6571, 0.6931472
  %v6573 = vmul.f32 -0.5, %v6520
  %v6574 = vadd.f32 %v6573, 1.0
  %v6575 = vmul.f32 %v6574, %v6520
  %v6576 = vand.u32 2147483647, %v6520
  %vm6577 = vcmp.lt.f32.partialorder %v6576, 0.0004427343
  %v6578 = vsel %vm6577, %v6575, %v6572
  %v6579 = vadd.f32 %v6522, 1.0
  %v6580 = vlog2.pop %v6579
  %v6581 = vmul.f32 %v6580, 0.6931472
  %v6582 = vmul.f32 -0.5, %v6522
  %v6583 = vadd.f32 %v6582, 1.0
  %v6584 = vmul.f32 %v6583, %v6522
  %v6585 = vand.u32 2147483647, %v6522
  %vm6586 = vcmp.lt.f32.partialorder %v6585, 0.0004427343
  %v6587 = vsel %vm6586, %v6584, %v6581
  %v6588 = vadd.f32 %v6524, 1.0
  %v6589 = vlog2.pop %v6588
  %v6590 = vmul.f32 %v6589, 0.6931472
  %v6591 = vmul.f32 -0.5, %v6524
  %v6592 = vadd.f32 %v6591, 1.0
  %v6593 = vmul.f32 %v6592, %v6524
  %v6594 = vand.u32 2147483647, %v6524
  %vm6595 = vcmp.lt.f32.partialorder %v6594, 0.0004427343
  %v6596 = vsel %vm6595, %v6593, %v6590
  %v6597 = vadd.f32 %v6485, %v6533
  %v6598 = vadd.f32 %v6486, %v6542
  %v6599 = vadd.f32 %v6487, %v6551
  %v6600 = vadd.f32 %v6488, %v6560
  %v6601 = vadd.f32 %v6489, %v6569
  %v6602 = vadd.f32 %v6490, %v6578
  %v6603 = vadd.f32 %v6491, %v6587
  %v6604 = vadd.f32 %v6492, %v6596
  %v6605 = vld [vmem:[%s4 + $0x510] sm:$0xff]
  %v6606 = vld [vmem:[%s4 + $0x518] sm:$0xff]
  %v6607 = vld [vmem:[%s4 + $0x520] sm:$0xff]
  %v6608 = vld [vmem:[%s4 + $0x528] sm:$0xff]
  %v6609 = vld [vmem:[%s4 + $0x530] sm:$0xff]
  %v6610 = vld [vmem:[%s4 + $0x538] sm:$0x1]
  %v6611 = vperm.slane %v6610, 0
  %v6613 = vsel %vm1123, %v6597, 0
  %v6616 = vsel %vm1123, %v6598, 0
  %v6619 = vsel %vm1123, %v6599, 0
  %v6622 = vsel %vm1123, %v6600, 0
  %v6625 = vsel %vm1123, %v6601, 0
  %v6628 = vsel %vm1123, %v6602, 0
  %v6631 = vsel %vm1123, %v6603, 0
  %v6634 = vsel %vm1123, %v6604, 0
  %6636 = vmatpush.msra.mxu0 0.0
  %6637 = vmatpush.msra.mxu0 0.0
  %6638 = vmatpush.msra.mxu0 0.0
  %6639 = vmatpush.msra.mxu0 0.0
  %6640 = vmatpush.msra.mxu0 0.0
  %6641 = vmatpush.msra.mxu0 0.0
  %6642 = vmatpush.msra.mxu0 0.0
  %6643 = vmatpush.msra.mxu0 0.0
  %6644 = vmatpush.msra.mxu0 0.0
  %6645 = vmatpush.msra.mxu0 0.0
  %6646 = vmatpush.msra.mxu0 0.0
  %6647 = vmatpush.msra.mxu0 %v6609
  %6648 = vmatpush.msra.mxu0 %v6608
  %6649 = vmatpush.msra.mxu0 %v6607
  %6650 = vmatpush.msra.mxu0 %v6606
  %6651 = vmatpush.msra.mxu0 %v6605
  %6652 = vmatmul.f32.gmra.mxu0 %v6613
  %v6653 = vpop.f32.mrf.mxu0
  %v6654 = vadd.f32 %v6611, %v6653
  %6655 = vmatmul.f32.gmra.mxu0 %v6616
  %v6656 = vpop.f32.mrf.mxu0
  %v6657 = vadd.f32 %v6611, %v6656
  %6658 = vmatmul.f32.gmra.mxu0 %v6619
  %v6659 = vpop.f32.mrf.mxu0
  %v6660 = vadd.f32 %v6611, %v6659
  %6661 = vmatmul.f32.gmra.mxu0 %v6622
  %v6662 = vpop.f32.mrf.mxu0
  %v6663 = vadd.f32 %v6611, %v6662
  %6664 = vmatmul.f32.gmra.mxu0 %v6625
  %v6665 = vpop.f32.mrf.mxu0
  %v6666 = vadd.f32 %v6611, %v6665
  %6667 = vmatmul.f32.gmra.mxu0 %v6628
  %v6668 = vpop.f32.mrf.mxu0
  %v6669 = vadd.f32 %v6611, %v6668
  %6670 = vmatmul.f32.gmra.mxu0 %v6631
  %v6671 = vpop.f32.mrf.mxu0
  %v6672 = vadd.f32 %v6611, %v6671
  %6673 = vmatmul.f32.gmra.mxu0 %v6634
  %v6674 = vpop.f32.mrf.mxu0
  %v6675 = vadd.f32 %v6611, %v6674
  %6676 = vdwg.mxu0
  %v6677 = vmax.f32 %v6654, 0.0
  %v6678 = vmax.f32 %v6657, 0.0
  %v6679 = vmax.f32 %v6660, 0.0
  %v6680 = vmax.f32 %v6663, 0.0
  %v6681 = vmax.f32 %v6666, 0.0
  %v6682 = vmax.f32 %v6669, 0.0
  %v6683 = vmax.f32 %v6672, 0.0
  %v6684 = vmax.f32 %v6675, 0.0
  %v6685 = vand.u32 2147483647, %v6654
  %v6686 = vand.u32 2147483647, %v6657
  %v6687 = vand.u32 2147483647, %v6660
  %v6688 = vand.u32 2147483647, %v6663
  %v6689 = vand.u32 2147483647, %v6666
  %v6690 = vand.u32 2147483647, %v6669
  %v6691 = vand.u32 2147483647, %v6672
  %v6692 = vand.u32 2147483647, %v6675
  %v6693 = vsub.f32 0.0, %v6685
  %v6694 = vsub.f32 0.0, %v6686
  %v6695 = vsub.f32 0.0, %v6687
  %v6696 = vsub.f32 0.0, %v6688
  %v6697 = vsub.f32 0.0, %v6689
  %v6698 = vsub.f32 0.0, %v6690
  %v6699 = vsub.f32 0.0, %v6691
  %v6700 = vsub.f32 0.0, %v6692
  %v6701 = vmul.f32 %v6693, 1.442695
  %v6702 = vpow.pop %v6701
  %v6703 = vmul.f32 %v6694, 1.442695
  %v6704 = vpow.pop %v6703
  %v6705 = vmul.f32 %v6695, 1.442695
  %v6706 = vpow.pop %v6705
  %v6707 = vmul.f32 %v6696, 1.442695
  %v6708 = vpow.pop %v6707
  %v6709 = vmul.f32 %v6697, 1.442695
  %v6710 = vpow.pop %v6709
  %v6711 = vmul.f32 %v6698, 1.442695
  %v6712 = vpow.pop %v6711
  %v6713 = vmul.f32 %v6699, 1.442695
  %v6714 = vpow.pop %v6713
  %v6715 = vmul.f32 %v6700, 1.442695
  %v6716 = vpow.pop %v6715
  %v6717 = vadd.f32 %v6702, 1.0
  %v6718 = vlog2.pop %v6717
  %v6719 = vmul.f32 %v6718, 0.6931472
  %v6720 = vmul.f32 -0.5, %v6702
  %v6721 = vadd.f32 %v6720, 1.0
  %v6722 = vmul.f32 %v6721, %v6702
  %v6723 = vand.u32 2147483647, %v6702
  %vm6724 = vcmp.lt.f32.partialorder %v6723, 0.0004427343
  %v6725 = vsel %vm6724, %v6722, %v6719
  %v6726 = vadd.f32 %v6704, 1.0
  %v6727 = vlog2.pop %v6726
  %v6728 = vmul.f32 %v6727, 0.6931472
  %v6729 = vmul.f32 -0.5, %v6704
  %v6730 = vadd.f32 %v6729, 1.0
  %v6731 = vmul.f32 %v6730, %v6704
  %v6732 = vand.u32 2147483647, %v6704
  %vm6733 = vcmp.lt.f32.partialorder %v6732, 0.0004427343
  %v6734 = vsel %vm6733, %v6731, %v6728
  %v6735 = vadd.f32 %v6706, 1.0
  %v6736 = vlog2.pop %v6735
  %v6737 = vmul.f32 %v6736, 0.6931472
  %v6738 = vmul.f32 -0.5, %v6706
  %v6739 = vadd.f32 %v6738, 1.0
  %v6740 = vmul.f32 %v6739, %v6706
  %v6741 = vand.u32 2147483647, %v6706
  %vm6742 = vcmp.lt.f32.partialorder %v6741, 0.0004427343
  %v6743 = vsel %vm6742, %v6740, %v6737
  %v6744 = vadd.f32 %v6708, 1.0
  %v6745 = vlog2.pop %v6744
  %v6746 = vmul.f32 %v6745, 0.6931472
  %v6747 = vmul.f32 -0.5, %v6708
  %v6748 = vadd.f32 %v6747, 1.0
  %v6749 = vmul.f32 %v6748, %v6708
  %v6750 = vand.u32 2147483647, %v6708
  %vm6751 = vcmp.lt.f32.partialorder %v6750, 0.0004427343
  %v6752 = vsel %vm6751, %v6749, %v6746
  %v6753 = vadd.f32 %v6710, 1.0
  %v6754 = vlog2.pop %v6753
  %v6755 = vmul.f32 %v6754, 0.6931472
  %v6756 = vmul.f32 -0.5, %v6710
  %v6757 = vadd.f32 %v6756, 1.0
  %v6758 = vmul.f32 %v6757, %v6710
  %v6759 = vand.u32 2147483647, %v6710
  %vm6760 = vcmp.lt.f32.partialorder %v6759, 0.0004427343
  %v6761 = vsel %vm6760, %v6758, %v6755
  %v6762 = vadd.f32 %v6712, 1.0
  %v6763 = vlog2.pop %v6762
  %v6764 = vmul.f32 %v6763, 0.6931472
  %v6765 = vmul.f32 -0.5, %v6712
  %v6766 = vadd.f32 %v6765, 1.0
  %v6767 = vmul.f32 %v6766, %v6712
  %v6768 = vand.u32 2147483647, %v6712
  %vm6769 = vcmp.lt.f32.partialorder %v6768, 0.0004427343
  %v6770 = vsel %vm6769, %v6767, %v6764
  %v6771 = vadd.f32 %v6714, 1.0
  %v6772 = vlog2.pop %v6771
  %v6773 = vmul.f32 %v6772, 0.6931472
  %v6774 = vmul.f32 -0.5, %v6714
  %v6775 = vadd.f32 %v6774, 1.0
  %v6776 = vmul.f32 %v6775, %v6714
  %v6777 = vand.u32 2147483647, %v6714
  %vm6778 = vcmp.lt.f32.partialorder %v6777, 0.0004427343
  %v6779 = vsel %vm6778, %v6776, %v6773
  %v6780 = vadd.f32 %v6716, 1.0
  %v6781 = vlog2.pop %v6780
  %v6782 = vmul.f32 %v6781, 0.6931472
  %v6783 = vmul.f32 -0.5, %v6716
  %v6784 = vadd.f32 %v6783, 1.0
  %v6785 = vmul.f32 %v6784, %v6716
  %v6786 = vand.u32 2147483647, %v6716
  %vm6787 = vcmp.lt.f32.partialorder %v6786, 0.0004427343
  %v6788 = vsel %vm6787, %v6785, %v6782
  %v6789 = vadd.f32 %v6677, %v6725
  %v6790 = vadd.f32 %v6678, %v6734
  %v6791 = vadd.f32 %v6679, %v6743
  %v6792 = vadd.f32 %v6680, %v6752
  %v6793 = vadd.f32 %v6681, %v6761
  %v6794 = vadd.f32 %v6682, %v6770
  %v6795 = vadd.f32 %v6683, %v6779
  %v6796 = vadd.f32 %v6684, %v6788
  %v6797 = vld [vmem:[%s4 + $0x540] sm:$0xff]
  %v6798 = vld [vmem:[%s4 + $0x548] sm:$0xff]
  %v6799 = vld [vmem:[%s4 + $0x550] sm:$0xff]
  %v6800 = vld [vmem:[%s4 + $0x558] sm:$0xff]
  %v6801 = vld [vmem:[%s4 + $0x560] sm:$0xff]
  %v6802 = vld [vmem:[%s4 + $0x568] sm:$0x1]
  %v6803 = vperm.slane %v6802, 0
  %v6805 = vsel %vm1123, %v6789, 0
  %v6808 = vsel %vm1123, %v6790, 0
  %v6811 = vsel %vm1123, %v6791, 0
  %v6814 = vsel %vm1123, %v6792, 0
  %v6817 = vsel %vm1123, %v6793, 0
  %v6820 = vsel %vm1123, %v6794, 0
  %v6823 = vsel %vm1123, %v6795, 0
  %v6826 = vsel %vm1123, %v6796, 0
  %6828 = vmatpush.msra.mxu0 0.0
  %6829 = vmatpush.msra.mxu0 0.0
  %6830 = vmatpush.msra.mxu0 0.0
  %6831 = vmatpush.msra.mxu0 0.0
  %6832 = vmatpush.msra.mxu0 0.0
  %6833 = vmatpush.msra.mxu0 0.0
  %6834 = vmatpush.msra.mxu0 0.0
  %6835 = vmatpush.msra.mxu0 0.0
  %6836 = vmatpush.msra.mxu0 0.0
  %6837 = vmatpush.msra.mxu0 0.0
  %6838 = vmatpush.msra.mxu0 0.0
  %6839 = vmatpush.msra.mxu0 %v6801
  %6840 = vmatpush.msra.mxu0 %v6800
  %6841 = vmatpush.msra.mxu0 %v6799
  %6842 = vmatpush.msra.mxu0 %v6798
  %6843 = vmatpush.msra.mxu0 %v6797
  %6844 = vmatmul.f32.gmra.mxu0 %v6805
  %v6845 = vpop.f32.mrf.mxu0
  %v6846 = vadd.f32 %v6803, %v6845
  %6847 = vmatmul.f32.gmra.mxu0 %v6808
  %v6848 = vpop.f32.mrf.mxu0
  %v6849 = vadd.f32 %v6803, %v6848
  %6850 = vmatmul.f32.gmra.mxu0 %v6811
  %v6851 = vpop.f32.mrf.mxu0
  %v6852 = vadd.f32 %v6803, %v6851
  %6853 = vmatmul.f32.gmra.mxu0 %v6814
  %v6854 = vpop.f32.mrf.mxu0
  %v6855 = vadd.f32 %v6803, %v6854
  %6856 = vmatmul.f32.gmra.mxu0 %v6817
  %v6857 = vpop.f32.mrf.mxu0
  %v6858 = vadd.f32 %v6803, %v6857
  %6859 = vmatmul.f32.gmra.mxu0 %v6820
  %v6860 = vpop.f32.mrf.mxu0
  %v6861 = vadd.f32 %v6803, %v6860
  %6862 = vmatmul.f32.gmra.mxu0 %v6823
  %v6863 = vpop.f32.mrf.mxu0
  %v6864 = vadd.f32 %v6803, %v6863
  %6865 = vmatmul.f32.gmra.mxu0 %v6826
  %v6866 = vpop.f32.mrf.mxu0
  %v6867 = vadd.f32 %v6803, %v6866
  %6868 = vdwg.mxu0
  %v6869 = vadd.f32 %v6477, %v6846
  %v6870 = vadd.f32 %v6478, %v6849
  %v6871 = vadd.f32 %v6479, %v6852
  %v6872 = vadd.f32 %v6480, %v6855
  %v6873 = vadd.f32 %v6481, %v6858
  %v6874 = vadd.f32 %v6482, %v6861
  %v6875 = vadd.f32 %v6483, %v6864
  %v6876 = vadd.f32 %v6484, %v6867
  %v6877 = vmax.f32 %v6869, 0.0
  %v6878 = vmax.f32 %v6870, 0.0
  %v6879 = vmax.f32 %v6871, 0.0
  %v6880 = vmax.f32 %v6872, 0.0
  %v6881 = vmax.f32 %v6873, 0.0
  %v6882 = vmax.f32 %v6874, 0.0
  %v6883 = vmax.f32 %v6875, 0.0
  %v6884 = vmax.f32 %v6876, 0.0
  %v6885 = vand.u32 2147483647, %v6869
  %v6886 = vand.u32 2147483647, %v6870
  %v6887 = vand.u32 2147483647, %v6871
  %v6888 = vand.u32 2147483647, %v6872
  %v6889 = vand.u32 2147483647, %v6873
  %v6890 = vand.u32 2147483647, %v6874
  %v6891 = vand.u32 2147483647, %v6875
  %v6892 = vand.u32 2147483647, %v6876
  %v6893 = vsub.f32 0.0, %v6885
  %v6894 = vsub.f32 0.0, %v6886
  %v6895 = vsub.f32 0.0, %v6887
  %v6896 = vsub.f32 0.0, %v6888
  %v6897 = vsub.f32 0.0, %v6889
  %v6898 = vsub.f32 0.0, %v6890
  %v6899 = vsub.f32 0.0, %v6891
  %v6900 = vsub.f32 0.0, %v6892
  %v6901 = vmul.f32 %v6893, 1.442695
  %v6902 = vpow.pop %v6901
  %v6903 = vmul.f32 %v6894, 1.442695
  %v6904 = vpow.pop %v6903
  %v6905 = vmul.f32 %v6895, 1.442695
  %v6906 = vpow.pop %v6905
  %v6907 = vmul.f32 %v6896, 1.442695
  %v6908 = vpow.pop %v6907
  %v6909 = vmul.f32 %v6897, 1.442695
  %v6910 = vpow.pop %v6909
  %v6911 = vmul.f32 %v6898, 1.442695
  %v6912 = vpow.pop %v6911
  %v6913 = vmul.f32 %v6899, 1.442695
  %v6914 = vpow.pop %v6913
  %v6915 = vmul.f32 %v6900, 1.442695
  %v6916 = vpow.pop %v6915
  %v6917 = vadd.f32 %v6902, 1.0
  %v6918 = vlog2.pop %v6917
  %v6919 = vmul.f32 %v6918, 0.6931472
  %v6920 = vmul.f32 -0.5, %v6902
  %v6921 = vadd.f32 %v6920, 1.0
  %v6922 = vmul.f32 %v6921, %v6902
  %v6923 = vand.u32 2147483647, %v6902
  %vm6924 = vcmp.lt.f32.partialorder %v6923, 0.0004427343
  %v6925 = vsel %vm6924, %v6922, %v6919
  %v6926 = vadd.f32 %v6904, 1.0
  %v6927 = vlog2.pop %v6926
  %v6928 = vmul.f32 %v6927, 0.6931472
  %v6929 = vmul.f32 -0.5, %v6904
  %v6930 = vadd.f32 %v6929, 1.0
  %v6931 = vmul.f32 %v6930, %v6904
  %v6932 = vand.u32 2147483647, %v6904
  %vm6933 = vcmp.lt.f32.partialorder %v6932, 0.0004427343
  %v6934 = vsel %vm6933, %v6931, %v6928
  %v6935 = vadd.f32 %v6906, 1.0
  %v6936 = vlog2.pop %v6935
  %v6937 = vmul.f32 %v6936, 0.6931472
  %v6938 = vmul.f32 -0.5, %v6906
  %v6939 = vadd.f32 %v6938, 1.0
  %v6940 = vmul.f32 %v6939, %v6906
  %v6941 = vand.u32 2147483647, %v6906
  %vm6942 = vcmp.lt.f32.partialorder %v6941, 0.0004427343
  %v6943 = vsel %vm6942, %v6940, %v6937
  %v6944 = vadd.f32 %v6908, 1.0
  %v6945 = vlog2.pop %v6944
  %v6946 = vmul.f32 %v6945, 0.6931472
  %v6947 = vmul.f32 -0.5, %v6908
  %v6948 = vadd.f32 %v6947, 1.0
  %v6949 = vmul.f32 %v6948, %v6908
  %v6950 = vand.u32 2147483647, %v6908
  %vm6951 = vcmp.lt.f32.partialorder %v6950, 0.0004427343
  %v6952 = vsel %vm6951, %v6949, %v6946
  %v6953 = vadd.f32 %v6910, 1.0
  %v6954 = vlog2.pop %v6953
  %v6955 = vmul.f32 %v6954, 0.6931472
  %v6956 = vmul.f32 -0.5, %v6910
  %v6957 = vadd.f32 %v6956, 1.0
  %v6958 = vmul.f32 %v6957, %v6910
  %v6959 = vand.u32 2147483647, %v6910
  %vm6960 = vcmp.lt.f32.partialorder %v6959, 0.0004427343
  %v6961 = vsel %vm6960, %v6958, %v6955
  %v6962 = vadd.f32 %v6912, 1.0
  %v6963 = vlog2.pop %v6962
  %v6964 = vmul.f32 %v6963, 0.6931472
  %v6965 = vmul.f32 -0.5, %v6912
  %v6966 = vadd.f32 %v6965, 1.0
  %v6967 = vmul.f32 %v6966, %v6912
  %v6968 = vand.u32 2147483647, %v6912
  %vm6969 = vcmp.lt.f32.partialorder %v6968, 0.0004427343
  %v6970 = vsel %vm6969, %v6967, %v6964
  %v6971 = vadd.f32 %v6914, 1.0
  %v6972 = vlog2.pop %v6971
  %v6973 = vmul.f32 %v6972, 0.6931472
  %v6974 = vmul.f32 -0.5, %v6914
  %v6975 = vadd.f32 %v6974, 1.0
  %v6976 = vmul.f32 %v6975, %v6914
  %v6977 = vand.u32 2147483647, %v6914
  %vm6978 = vcmp.lt.f32.partialorder %v6977, 0.0004427343
  %v6979 = vsel %vm6978, %v6976, %v6973
  %v6980 = vadd.f32 %v6916, 1.0
  %v6981 = vlog2.pop %v6980
  %v6982 = vmul.f32 %v6981, 0.6931472
  %v6983 = vmul.f32 -0.5, %v6916
  %v6984 = vadd.f32 %v6983, 1.0
  %v6985 = vmul.f32 %v6984, %v6916
  %v6986 = vand.u32 2147483647, %v6916
  %vm6987 = vcmp.lt.f32.partialorder %v6986, 0.0004427343
  %v6988 = vsel %vm6987, %v6985, %v6982
  %v6989 = vadd.f32 %v6877, %v6925
  %v6990 = vadd.f32 %v6878, %v6934
  %v6991 = vadd.f32 %v6879, %v6943
  %v6992 = vadd.f32 %v6880, %v6952
  %v6993 = vadd.f32 %v6881, %v6961
  %v6994 = vadd.f32 %v6882, %v6970
  %v6995 = vadd.f32 %v6883, %v6979
  %v6996 = vadd.f32 %v6884, %v6988
  %v6997 = vld [vmem:[%s4 + $0x570] sm:$0xff]
  %v6998 = vld [vmem:[%s4 + $0x578] sm:$0xff]
  %v6999 = vld [vmem:[%s4 + $0x580] sm:$0xff]
  %v7000 = vld [vmem:[%s4 + $0x588] sm:$0xff]
  %v7001 = vld [vmem:[%s4 + $0x590] sm:$0xff]
  %v7002 = vld [vmem:[%s4 + $0x598] sm:$0x1]
  %v7003 = vperm.slane %v7002, 0
  %v7005 = vsel %vm1123, %v6989, 0
  %v7008 = vsel %vm1123, %v6990, 0
  %v7011 = vsel %vm1123, %v6991, 0
  %v7014 = vsel %vm1123, %v6992, 0
  %v7017 = vsel %vm1123, %v6993, 0
  %v7020 = vsel %vm1123, %v6994, 0
  %v7023 = vsel %vm1123, %v6995, 0
  %v7026 = vsel %vm1123, %v6996, 0
  %7028 = vmatpush.msra.mxu0 0.0
  %7029 = vmatpush.msra.mxu0 0.0
  %7030 = vmatpush.msra.mxu0 0.0
  %7031 = vmatpush.msra.mxu0 0.0
  %7032 = vmatpush.msra.mxu0 0.0
  %7033 = vmatpush.msra.mxu0 0.0
  %7034 = vmatpush.msra.mxu0 0.0
  %7035 = vmatpush.msra.mxu0 0.0
  %7036 = vmatpush.msra.mxu0 0.0
  %7037 = vmatpush.msra.mxu0 0.0
  %7038 = vmatpush.msra.mxu0 0.0
  %7039 = vmatpush.msra.mxu0 %v7001
  %7040 = vmatpush.msra.mxu0 %v7000
  %7041 = vmatpush.msra.mxu0 %v6999
  %7042 = vmatpush.msra.mxu0 %v6998
  %7043 = vmatpush.msra.mxu0 %v6997
  %7044 = vmatmul.f32.gmra.mxu0 %v7005
  %v7045 = vpop.f32.mrf.mxu0
  %v7046 = vadd.f32 %v7003, %v7045
  %7047 = vmatmul.f32.gmra.mxu0 %v7008
  %v7048 = vpop.f32.mrf.mxu0
  %v7049 = vadd.f32 %v7003, %v7048
  %7050 = vmatmul.f32.gmra.mxu0 %v7011
  %v7051 = vpop.f32.mrf.mxu0
  %v7052 = vadd.f32 %v7003, %v7051
  %7053 = vmatmul.f32.gmra.mxu0 %v7014
  %v7054 = vpop.f32.mrf.mxu0
  %v7055 = vadd.f32 %v7003, %v7054
  %7056 = vmatmul.f32.gmra.mxu0 %v7017
  %v7057 = vpop.f32.mrf.mxu0
  %v7058 = vadd.f32 %v7003, %v7057
  %7059 = vmatmul.f32.gmra.mxu0 %v7020
  %v7060 = vpop.f32.mrf.mxu0
  %v7061 = vadd.f32 %v7003, %v7060
  %7062 = vmatmul.f32.gmra.mxu0 %v7023
  %v7063 = vpop.f32.mrf.mxu0
  %v7064 = vadd.f32 %v7003, %v7063
  %7065 = vmatmul.f32.gmra.mxu0 %v7026
  %v7066 = vpop.f32.mrf.mxu0
  %v7067 = vadd.f32 %v7003, %v7066
  %7068 = vdwg.mxu0
  %v7069 = vmax.f32 %v7046, 0.0
  %v7070 = vmax.f32 %v7049, 0.0
  %v7071 = vmax.f32 %v7052, 0.0
  %v7072 = vmax.f32 %v7055, 0.0
  %v7073 = vmax.f32 %v7058, 0.0
  %v7074 = vmax.f32 %v7061, 0.0
  %v7075 = vmax.f32 %v7064, 0.0
  %v7076 = vmax.f32 %v7067, 0.0
  %v7077 = vand.u32 2147483647, %v7046
  %v7078 = vand.u32 2147483647, %v7049
  %v7079 = vand.u32 2147483647, %v7052
  %v7080 = vand.u32 2147483647, %v7055
  %v7081 = vand.u32 2147483647, %v7058
  %v7082 = vand.u32 2147483647, %v7061
  %v7083 = vand.u32 2147483647, %v7064
  %v7084 = vand.u32 2147483647, %v7067
  %v7085 = vsub.f32 0.0, %v7077
  %v7086 = vsub.f32 0.0, %v7078
  %v7087 = vsub.f32 0.0, %v7079
  %v7088 = vsub.f32 0.0, %v7080
  %v7089 = vsub.f32 0.0, %v7081
  %v7090 = vsub.f32 0.0, %v7082
  %v7091 = vsub.f32 0.0, %v7083
  %v7092 = vsub.f32 0.0, %v7084
  %v7093 = vmul.f32 %v7085, 1.442695
  %v7094 = vpow.pop %v7093
  %v7095 = vmul.f32 %v7086, 1.442695
  %v7096 = vpow.pop %v7095
  %v7097 = vmul.f32 %v7087, 1.442695
  %v7098 = vpow.pop %v7097
  %v7099 = vmul.f32 %v7088, 1.442695
  %v7100 = vpow.pop %v7099
  %v7101 = vmul.f32 %v7089, 1.442695
  %v7102 = vpow.pop %v7101
  %v7103 = vmul.f32 %v7090, 1.442695
  %v7104 = vpow.pop %v7103
  %v7105 = vmul.f32 %v7091, 1.442695
  %v7106 = vpow.pop %v7105
  %v7107 = vmul.f32 %v7092, 1.442695
  %v7108 = vpow.pop %v7107
  %v7109 = vadd.f32 %v7094, 1.0
  %v7110 = vlog2.pop %v7109
  %v7111 = vmul.f32 %v7110, 0.6931472
  %v7112 = vmul.f32 -0.5, %v7094
  %v7113 = vadd.f32 %v7112, 1.0
  %v7114 = vmul.f32 %v7113, %v7094
  %v7115 = vand.u32 2147483647, %v7094
  %vm7116 = vcmp.lt.f32.partialorder %v7115, 0.0004427343
  %v7117 = vsel %vm7116, %v7114, %v7111
  %v7118 = vadd.f32 %v7096, 1.0
  %v7119 = vlog2.pop %v7118
  %v7120 = vmul.f32 %v7119, 0.6931472
  %v7121 = vmul.f32 -0.5, %v7096
  %v7122 = vadd.f32 %v7121, 1.0
  %v7123 = vmul.f32 %v7122, %v7096
  %v7124 = vand.u32 2147483647, %v7096
  %vm7125 = vcmp.lt.f32.partialorder %v7124, 0.0004427343
  %v7126 = vsel %vm7125, %v7123, %v7120
  %v7127 = vadd.f32 %v7098, 1.0
  %v7128 = vlog2.pop %v7127
  %v7129 = vmul.f32 %v7128, 0.6931472
  %v7130 = vmul.f32 -0.5, %v7098
  %v7131 = vadd.f32 %v7130, 1.0
  %v7132 = vmul.f32 %v7131, %v7098
  %v7133 = vand.u32 2147483647, %v7098
  %vm7134 = vcmp.lt.f32.partialorder %v7133, 0.0004427343
  %v7135 = vsel %vm7134, %v7132, %v7129
  %v7136 = vadd.f32 %v7100, 1.0
  %v7137 = vlog2.pop %v7136
  %v7138 = vmul.f32 %v7137, 0.6931472
  %v7139 = vmul.f32 -0.5, %v7100
  %v7140 = vadd.f32 %v7139, 1.0
  %v7141 = vmul.f32 %v7140, %v7100
  %v7142 = vand.u32 2147483647, %v7100
  %vm7143 = vcmp.lt.f32.partialorder %v7142, 0.0004427343
  %v7144 = vsel %vm7143, %v7141, %v7138
  %v7145 = vadd.f32 %v7102, 1.0
  %v7146 = vlog2.pop %v7145
  %v7147 = vmul.f32 %v7146, 0.6931472
  %v7148 = vmul.f32 -0.5, %v7102
  %v7149 = vadd.f32 %v7148, 1.0
  %v7150 = vmul.f32 %v7149, %v7102
  %v7151 = vand.u32 2147483647, %v7102
  %vm7152 = vcmp.lt.f32.partialorder %v7151, 0.0004427343
  %v7153 = vsel %vm7152, %v7150, %v7147
  %v7154 = vadd.f32 %v7104, 1.0
  %v7155 = vlog2.pop %v7154
  %v7156 = vmul.f32 %v7155, 0.6931472
  %v7157 = vmul.f32 -0.5, %v7104
  %v7158 = vadd.f32 %v7157, 1.0
  %v7159 = vmul.f32 %v7158, %v7104
  %v7160 = vand.u32 2147483647, %v7104
  %vm7161 = vcmp.lt.f32.partialorder %v7160, 0.0004427343
  %v7162 = vsel %vm7161, %v7159, %v7156
  %v7163 = vadd.f32 %v7106, 1.0
  %v7164 = vlog2.pop %v7163
  %v7165 = vmul.f32 %v7164, 0.6931472
  %v7166 = vmul.f32 -0.5, %v7106
  %v7167 = vadd.f32 %v7166, 1.0
  %v7168 = vmul.f32 %v7167, %v7106
  %v7169 = vand.u32 2147483647, %v7106
  %vm7170 = vcmp.lt.f32.partialorder %v7169, 0.0004427343
  %v7171 = vsel %vm7170, %v7168, %v7165
  %v7172 = vadd.f32 %v7108, 1.0
  %v7173 = vlog2.pop %v7172
  %v7174 = vmul.f32 %v7173, 0.6931472
  %v7175 = vmul.f32 -0.5, %v7108
  %v7176 = vadd.f32 %v7175, 1.0
  %v7177 = vmul.f32 %v7176, %v7108
  %v7178 = vand.u32 2147483647, %v7108
  %vm7179 = vcmp.lt.f32.partialorder %v7178, 0.0004427343
  %v7180 = vsel %vm7179, %v7177, %v7174
  %v7181 = vadd.f32 %v7069, %v7117
  %v7182 = vadd.f32 %v7070, %v7126
  %v7183 = vadd.f32 %v7071, %v7135
  %v7184 = vadd.f32 %v7072, %v7144
  %v7185 = vadd.f32 %v7073, %v7153
  %v7186 = vadd.f32 %v7074, %v7162
  %v7187 = vadd.f32 %v7075, %v7171
  %v7188 = vadd.f32 %v7076, %v7180
  %v7189 = vld [vmem:[%s4 + $0x5a0] sm:$0xff]
  %v7190 = vld [vmem:[%s4 + $0x5a8] sm:$0xff]
  %v7191 = vld [vmem:[%s4 + $0x5b0] sm:$0xff]
  %v7192 = vld [vmem:[%s4 + $0x5b8] sm:$0xff]
  %v7193 = vld [vmem:[%s4 + $0x5c0] sm:$0xff]
  %v7194 = vld [vmem:[%s4 + $0x5c8] sm:$0x1]
  %v7195 = vperm.slane %v7194, 0
  %v7197 = vsel %vm1123, %v7181, 0
  %v7200 = vsel %vm1123, %v7182, 0
  %v7203 = vsel %vm1123, %v7183, 0
  %v7206 = vsel %vm1123, %v7184, 0
  %v7209 = vsel %vm1123, %v7185, 0
  %v7212 = vsel %vm1123, %v7186, 0
  %v7215 = vsel %vm1123, %v7187, 0
  %v7218 = vsel %vm1123, %v7188, 0
  %7220 = vmatpush.msra.mxu0 0.0
  %7221 = vmatpush.msra.mxu0 0.0
  %7222 = vmatpush.msra.mxu0 0.0
  %7223 = vmatpush.msra.mxu0 0.0
  %7224 = vmatpush.msra.mxu0 0.0
  %7225 = vmatpush.msra.mxu0 0.0
  %7226 = vmatpush.msra.mxu0 0.0
  %7227 = vmatpush.msra.mxu0 0.0
  %7228 = vmatpush.msra.mxu0 0.0
  %7229 = vmatpush.msra.mxu0 0.0
  %7230 = vmatpush.msra.mxu0 0.0
  %7231 = vmatpush.msra.mxu0 %v7193
  %7232 = vmatpush.msra.mxu0 %v7192
  %7233 = vmatpush.msra.mxu0 %v7191
  %7234 = vmatpush.msra.mxu0 %v7190
  %7235 = vmatpush.msra.mxu0 %v7189
  %7236 = vmatmul.f32.gmra.mxu0 %v7197
  %v7237 = vpop.f32.mrf.mxu0
  %v7238 = vadd.f32 %v7195, %v7237
  %7239 = vmatmul.f32.gmra.mxu0 %v7200
  %v7240 = vpop.f32.mrf.mxu0
  %v7241 = vadd.f32 %v7195, %v7240
  %7242 = vmatmul.f32.gmra.mxu0 %v7203
  %v7243 = vpop.f32.mrf.mxu0
  %v7244 = vadd.f32 %v7195, %v7243
  %7245 = vmatmul.f32.gmra.mxu0 %v7206
  %v7246 = vpop.f32.mrf.mxu0
  %v7247 = vadd.f32 %v7195, %v7246
  %7248 = vmatmul.f32.gmra.mxu0 %v7209
  %v7249 = vpop.f32.mrf.mxu0
  %v7250 = vadd.f32 %v7195, %v7249
  %7251 = vmatmul.f32.gmra.mxu0 %v7212
  %v7252 = vpop.f32.mrf.mxu0
  %v7253 = vadd.f32 %v7195, %v7252
  %7254 = vmatmul.f32.gmra.mxu0 %v7215
  %v7255 = vpop.f32.mrf.mxu0
  %v7256 = vadd.f32 %v7195, %v7255
  %7257 = vmatmul.f32.gmra.mxu0 %v7218
  %v7258 = vpop.f32.mrf.mxu0
  %v7259 = vadd.f32 %v7195, %v7258
  %7260 = vdwg.mxu0
  %v7261 = vadd.f32 %v6869, %v7238
  %v7262 = vadd.f32 %v6870, %v7241
  %v7263 = vadd.f32 %v6871, %v7244
  %v7264 = vadd.f32 %v6872, %v7247
  %v7265 = vadd.f32 %v6873, %v7250
  %v7266 = vadd.f32 %v6874, %v7253
  %v7267 = vadd.f32 %v6875, %v7256
  %v7268 = vadd.f32 %v6876, %v7259
  %v7269 = vmax.f32 %v7261, 0.0
  %v7270 = vmax.f32 %v7262, 0.0
  %v7271 = vmax.f32 %v7263, 0.0
  %v7272 = vmax.f32 %v7264, 0.0
  %v7273 = vmax.f32 %v7265, 0.0
  %v7274 = vmax.f32 %v7266, 0.0
  %v7275 = vmax.f32 %v7267, 0.0
  %v7276 = vmax.f32 %v7268, 0.0
  %v7277 = vand.u32 2147483647, %v7261
  %v7278 = vand.u32 2147483647, %v7262
  %v7279 = vand.u32 2147483647, %v7263
  %v7280 = vand.u32 2147483647, %v7264
  %v7281 = vand.u32 2147483647, %v7265
  %v7282 = vand.u32 2147483647, %v7266
  %v7283 = vand.u32 2147483647, %v7267
  %v7284 = vand.u32 2147483647, %v7268
  %v7285 = vsub.f32 0.0, %v7277
  %v7286 = vsub.f32 0.0, %v7278
  %v7287 = vsub.f32 0.0, %v7279
  %v7288 = vsub.f32 0.0, %v7280
  %v7289 = vsub.f32 0.0, %v7281
  %v7290 = vsub.f32 0.0, %v7282
  %v7291 = vsub.f32 0.0, %v7283
  %v7292 = vsub.f32 0.0, %v7284
  %v7293 = vmul.f32 %v7285, 1.442695
  %v7294 = vpow.pop %v7293
  %v7295 = vmul.f32 %v7286, 1.442695
  %v7296 = vpow.pop %v7295
  %v7297 = vmul.f32 %v7287, 1.442695
  %v7298 = vpow.pop %v7297
  %v7299 = vmul.f32 %v7288, 1.442695
  %v7300 = vpow.pop %v7299
  %v7301 = vmul.f32 %v7289, 1.442695
  %v7302 = vpow.pop %v7301
  %v7303 = vmul.f32 %v7290, 1.442695
  %v7304 = vpow.pop %v7303
  %v7305 = vmul.f32 %v7291, 1.442695
  %v7306 = vpow.pop %v7305
  %v7307 = vmul.f32 %v7292, 1.442695
  %v7308 = vpow.pop %v7307
  %v7309 = vadd.f32 %v7294, 1.0
  %v7310 = vlog2.pop %v7309
  %v7311 = vmul.f32 %v7310, 0.6931472
  %v7312 = vmul.f32 -0.5, %v7294
  %v7313 = vadd.f32 %v7312, 1.0
  %v7314 = vmul.f32 %v7313, %v7294
  %v7315 = vand.u32 2147483647, %v7294
  %vm7316 = vcmp.lt.f32.partialorder %v7315, 0.0004427343
  %v7317 = vsel %vm7316, %v7314, %v7311
  %v7318 = vadd.f32 %v7296, 1.0
  %v7319 = vlog2.pop %v7318
  %v7320 = vmul.f32 %v7319, 0.6931472
  %v7321 = vmul.f32 -0.5, %v7296
  %v7322 = vadd.f32 %v7321, 1.0
  %v7323 = vmul.f32 %v7322, %v7296
  %v7324 = vand.u32 2147483647, %v7296
  %vm7325 = vcmp.lt.f32.partialorder %v7324, 0.0004427343
  %v7326 = vsel %vm7325, %v7323, %v7320
  %v7327 = vadd.f32 %v7298, 1.0
  %v7328 = vlog2.pop %v7327
  %v7329 = vmul.f32 %v7328, 0.6931472
  %v7330 = vmul.f32 -0.5, %v7298
  %v7331 = vadd.f32 %v7330, 1.0
  %v7332 = vmul.f32 %v7331, %v7298
  %v7333 = vand.u32 2147483647, %v7298
  %vm7334 = vcmp.lt.f32.partialorder %v7333, 0.0004427343
  %v7335 = vsel %vm7334, %v7332, %v7329
  %v7336 = vadd.f32 %v7300, 1.0
  %v7337 = vlog2.pop %v7336
  %v7338 = vmul.f32 %v7337, 0.6931472
  %v7339 = vmul.f32 -0.5, %v7300
  %v7340 = vadd.f32 %v7339, 1.0
  %v7341 = vmul.f32 %v7340, %v7300
  %v7342 = vand.u32 2147483647, %v7300
  %vm7343 = vcmp.lt.f32.partialorder %v7342, 0.0004427343
  %v7344 = vsel %vm7343, %v7341, %v7338
  %v7345 = vadd.f32 %v7302, 1.0
  %v7346 = vlog2.pop %v7345
  %v7347 = vmul.f32 %v7346, 0.6931472
  %v7348 = vmul.f32 -0.5, %v7302
  %v7349 = vadd.f32 %v7348, 1.0
  %v7350 = vmul.f32 %v7349, %v7302
  %v7351 = vand.u32 2147483647, %v7302
  %vm7352 = vcmp.lt.f32.partialorder %v7351, 0.0004427343
  %v7353 = vsel %vm7352, %v7350, %v7347
  %v7354 = vadd.f32 %v7304, 1.0
  %v7355 = vlog2.pop %v7354
  %v7356 = vmul.f32 %v7355, 0.6931472
  %v7357 = vmul.f32 -0.5, %v7304
  %v7358 = vadd.f32 %v7357, 1.0
  %v7359 = vmul.f32 %v7358, %v7304
  %v7360 = vand.u32 2147483647, %v7304
  %vm7361 = vcmp.lt.f32.partialorder %v7360, 0.0004427343
  %v7362 = vsel %vm7361, %v7359, %v7356
  %v7363 = vadd.f32 %v7306, 1.0
  %v7364 = vlog2.pop %v7363
  %v7365 = vmul.f32 %v7364, 0.6931472
  %v7366 = vmul.f32 -0.5, %v7306
  %v7367 = vadd.f32 %v7366, 1.0
  %v7368 = vmul.f32 %v7367, %v7306
  %v7369 = vand.u32 2147483647, %v7306
  %vm7370 = vcmp.lt.f32.partialorder %v7369, 0.0004427343
  %v7371 = vsel %vm7370, %v7368, %v7365
  %v7372 = vadd.f32 %v7308, 1.0
  %v7373 = vlog2.pop %v7372
  %v7374 = vmul.f32 %v7373, 0.6931472
  %v7375 = vmul.f32 -0.5, %v7308
  %v7376 = vadd.f32 %v7375, 1.0
  %v7377 = vmul.f32 %v7376, %v7308
  %v7378 = vand.u32 2147483647, %v7308
  %vm7379 = vcmp.lt.f32.partialorder %v7378, 0.0004427343
  %v7380 = vsel %vm7379, %v7377, %v7374
  %v7381 = vadd.f32 %v7269, %v7317
  %v7382 = vadd.f32 %v7270, %v7326
  %v7383 = vadd.f32 %v7271, %v7335
  %v7384 = vadd.f32 %v7272, %v7344
  %v7385 = vadd.f32 %v7273, %v7353
  %v7386 = vadd.f32 %v7274, %v7362
  %v7387 = vadd.f32 %v7275, %v7371
  %v7388 = vadd.f32 %v7276, %v7380
  %v7389 = vld [vmem:[%s4 + $0x5d0] sm:$0xff]
  %v7390 = vld [vmem:[%s4 + $0x5d8] sm:$0xff]
  %v7391 = vld [vmem:[%s4 + $0x5e0] sm:$0xff]
  %v7392 = vld [vmem:[%s4 + $0x5e8] sm:$0xff]
  %v7393 = vld [vmem:[%s4 + $0x5f0] sm:$0xff]
  %v7394 = vld [vmem:[%s4 + $0x5f8] sm:$0x1]
  %v7395 = vperm.slane %v7394, 0
  %v7397 = vsel %vm1123, %v7381, 0
  %v7400 = vsel %vm1123, %v7382, 0
  %v7403 = vsel %vm1123, %v7383, 0
  %v7406 = vsel %vm1123, %v7384, 0
  %v7409 = vsel %vm1123, %v7385, 0
  %v7412 = vsel %vm1123, %v7386, 0
  %v7415 = vsel %vm1123, %v7387, 0
  %v7418 = vsel %vm1123, %v7388, 0
  %7420 = vmatpush.msra.mxu0 0.0
  %7421 = vmatpush.msra.mxu0 0.0
  %7422 = vmatpush.msra.mxu0 0.0
  %7423 = vmatpush.msra.mxu0 0.0
  %7424 = vmatpush.msra.mxu0 0.0
  %7425 = vmatpush.msra.mxu0 0.0
  %7426 = vmatpush.msra.mxu0 0.0
  %7427 = vmatpush.msra.mxu0 0.0
  %7428 = vmatpush.msra.mxu0 0.0
  %7429 = vmatpush.msra.mxu0 0.0
  %7430 = vmatpush.msra.mxu0 0.0
  %7431 = vmatpush.msra.mxu0 %v7393
  %7432 = vmatpush.msra.mxu0 %v7392
  %7433 = vmatpush.msra.mxu0 %v7391
  %7434 = vmatpush.msra.mxu0 %v7390
  %7435 = vmatpush.msra.mxu0 %v7389
  %7436 = vmatmul.f32.gmra.mxu0 %v7397
  %v7437 = vpop.f32.mrf.mxu0
  %v7438 = vadd.f32 %v7395, %v7437
  %7439 = vmatmul.f32.gmra.mxu0 %v7400
  %v7440 = vpop.f32.mrf.mxu0
  %v7441 = vadd.f32 %v7395, %v7440
  %7442 = vmatmul.f32.gmra.mxu0 %v7403
  %v7443 = vpop.f32.mrf.mxu0
  %v7444 = vadd.f32 %v7395, %v7443
  %7445 = vmatmul.f32.gmra.mxu0 %v7406
  %v7446 = vpop.f32.mrf.mxu0
  %v7447 = vadd.f32 %v7395, %v7446
  %7448 = vmatmul.f32.gmra.mxu0 %v7409
  %v7449 = vpop.f32.mrf.mxu0
  %v7450 = vadd.f32 %v7395, %v7449
  %7451 = vmatmul.f32.gmra.mxu0 %v7412
  %v7452 = vpop.f32.mrf.mxu0
  %v7453 = vadd.f32 %v7395, %v7452
  %7454 = vmatmul.f32.gmra.mxu0 %v7415
  %v7455 = vpop.f32.mrf.mxu0
  %v7456 = vadd.f32 %v7395, %v7455
  %7457 = vmatmul.f32.gmra.mxu0 %v7418
  %v7458 = vpop.f32.mrf.mxu0
  %v7459 = vadd.f32 %v7395, %v7458
  %7460 = vdwg.mxu0
  %v7461 = vmax.f32 %v7438, 0.0
  %v7462 = vmax.f32 %v7441, 0.0
  %v7463 = vmax.f32 %v7444, 0.0
  %v7464 = vmax.f32 %v7447, 0.0
  %v7465 = vmax.f32 %v7450, 0.0
  %v7466 = vmax.f32 %v7453, 0.0
  %v7467 = vmax.f32 %v7456, 0.0
  %v7468 = vmax.f32 %v7459, 0.0
  %v7469 = vand.u32 2147483647, %v7438
  %v7470 = vand.u32 2147483647, %v7441
  %v7471 = vand.u32 2147483647, %v7444
  %v7472 = vand.u32 2147483647, %v7447
  %v7473 = vand.u32 2147483647, %v7450
  %v7474 = vand.u32 2147483647, %v7453
  %v7475 = vand.u32 2147483647, %v7456
  %v7476 = vand.u32 2147483647, %v7459
  %v7477 = vsub.f32 0.0, %v7469
  %v7478 = vsub.f32 0.0, %v7470
  %v7479 = vsub.f32 0.0, %v7471
  %v7480 = vsub.f32 0.0, %v7472
  %v7481 = vsub.f32 0.0, %v7473
  %v7482 = vsub.f32 0.0, %v7474
  %v7483 = vsub.f32 0.0, %v7475
  %v7484 = vsub.f32 0.0, %v7476
  %v7485 = vmul.f32 %v7477, 1.442695
  %v7486 = vpow.pop %v7485
  %v7487 = vmul.f32 %v7478, 1.442695
  %v7488 = vpow.pop %v7487
  %v7489 = vmul.f32 %v7479, 1.442695
  %v7490 = vpow.pop %v7489
  %v7491 = vmul.f32 %v7480, 1.442695
  %v7492 = vpow.pop %v7491
  %v7493 = vmul.f32 %v7481, 1.442695
  %v7494 = vpow.pop %v7493
  %v7495 = vmul.f32 %v7482, 1.442695
  %v7496 = vpow.pop %v7495
  %v7497 = vmul.f32 %v7483, 1.442695
  %v7498 = vpow.pop %v7497
  %v7499 = vmul.f32 %v7484, 1.442695
  %v7500 = vpow.pop %v7499
  %v7501 = vadd.f32 %v7486, 1.0
  %v7502 = vlog2.pop %v7501
  %v7503 = vmul.f32 %v7502, 0.6931472
  %v7504 = vmul.f32 -0.5, %v7486
  %v7505 = vadd.f32 %v7504, 1.0
  %v7506 = vmul.f32 %v7505, %v7486
  %v7507 = vand.u32 2147483647, %v7486
  %vm7508 = vcmp.lt.f32.partialorder %v7507, 0.0004427343
  %v7509 = vsel %vm7508, %v7506, %v7503
  %v7510 = vadd.f32 %v7488, 1.0
  %v7511 = vlog2.pop %v7510
  %v7512 = vmul.f32 %v7511, 0.6931472
  %v7513 = vmul.f32 -0.5, %v7488
  %v7514 = vadd.f32 %v7513, 1.0
  %v7515 = vmul.f32 %v7514, %v7488
  %v7516 = vand.u32 2147483647, %v7488
  %vm7517 = vcmp.lt.f32.partialorder %v7516, 0.0004427343
  %v7518 = vsel %vm7517, %v7515, %v7512
  %v7519 = vadd.f32 %v7490, 1.0
  %v7520 = vlog2.pop %v7519
  %v7521 = vmul.f32 %v7520, 0.6931472
  %v7522 = vmul.f32 -0.5, %v7490
  %v7523 = vadd.f32 %v7522, 1.0
  %v7524 = vmul.f32 %v7523, %v7490
  %v7525 = vand.u32 2147483647, %v7490
  %vm7526 = vcmp.lt.f32.partialorder %v7525, 0.0004427343
  %v7527 = vsel %vm7526, %v7524, %v7521
  %v7528 = vadd.f32 %v7492, 1.0
  %v7529 = vlog2.pop %v7528
  %v7530 = vmul.f32 %v7529, 0.6931472
  %v7531 = vmul.f32 -0.5, %v7492
  %v7532 = vadd.f32 %v7531, 1.0
  %v7533 = vmul.f32 %v7532, %v7492
  %v7534 = vand.u32 2147483647, %v7492
  %vm7535 = vcmp.lt.f32.partialorder %v7534, 0.0004427343
  %v7536 = vsel %vm7535, %v7533, %v7530
  %v7537 = vadd.f32 %v7494, 1.0
  %v7538 = vlog2.pop %v7537
  %v7539 = vmul.f32 %v7538, 0.6931472
  %v7540 = vmul.f32 -0.5, %v7494
  %v7541 = vadd.f32 %v7540, 1.0
  %v7542 = vmul.f32 %v7541, %v7494
  %v7543 = vand.u32 2147483647, %v7494
  %vm7544 = vcmp.lt.f32.partialorder %v7543, 0.0004427343
  %v7545 = vsel %vm7544, %v7542, %v7539
  %v7546 = vadd.f32 %v7496, 1.0
  %v7547 = vlog2.pop %v7546
  %v7548 = vmul.f32 %v7547, 0.6931472
  %v7549 = vmul.f32 -0.5, %v7496
  %v7550 = vadd.f32 %v7549, 1.0
  %v7551 = vmul.f32 %v7550, %v7496
  %v7552 = vand.u32 2147483647, %v7496
  %vm7553 = vcmp.lt.f32.partialorder %v7552, 0.0004427343
  %v7554 = vsel %vm7553, %v7551, %v7548
  %v7555 = vadd.f32 %v7498, 1.0
  %v7556 = vlog2.pop %v7555
  %v7557 = vmul.f32 %v7556, 0.6931472
  %v7558 = vmul.f32 -0.5, %v7498
  %v7559 = vadd.f32 %v7558, 1.0
  %v7560 = vmul.f32 %v7559, %v7498
  %v7561 = vand.u32 2147483647, %v7498
  %vm7562 = vcmp.lt.f32.partialorder %v7561, 0.0004427343
  %v7563 = vsel %vm7562, %v7560, %v7557
  %v7564 = vadd.f32 %v7500, 1.0
  %v7565 = vlog2.pop %v7564
  %v7566 = vmul.f32 %v7565, 0.6931472
  %v7567 = vmul.f32 -0.5, %v7500
  %v7568 = vadd.f32 %v7567, 1.0
  %v7569 = vmul.f32 %v7568, %v7500
  %v7570 = vand.u32 2147483647, %v7500
  %vm7571 = vcmp.lt.f32.partialorder %v7570, 0.0004427343
  %v7572 = vsel %vm7571, %v7569, %v7566
  %v7573 = vadd.f32 %v7461, %v7509
  %v7574 = vadd.f32 %v7462, %v7518
  %v7575 = vadd.f32 %v7463, %v7527
  %v7576 = vadd.f32 %v7464, %v7536
  %v7577 = vadd.f32 %v7465, %v7545
  %v7578 = vadd.f32 %v7466, %v7554
  %v7579 = vadd.f32 %v7467, %v7563
  %v7580 = vadd.f32 %v7468, %v7572
  %v7581 = vld [vmem:[%s4 + $0x600] sm:$0xff]
  %v7582 = vld [vmem:[%s4 + $0x608] sm:$0xff]
  %v7583 = vld [vmem:[%s4 + $0x610] sm:$0xff]
  %v7584 = vld [vmem:[%s4 + $0x618] sm:$0xff]
  %v7585 = vld [vmem:[%s4 + $0x620] sm:$0xff]
  %v7586 = vld [vmem:[%s4 + $0x628] sm:$0x1]
  %v7587 = vperm.slane %v7586, 0
  %v7589 = vsel %vm1123, %v7573, 0
  %v7592 = vsel %vm1123, %v7574, 0
  %v7595 = vsel %vm1123, %v7575, 0
  %v7598 = vsel %vm1123, %v7576, 0
  %v7601 = vsel %vm1123, %v7577, 0
  %v7604 = vsel %vm1123, %v7578, 0
  %v7607 = vsel %vm1123, %v7579, 0
  %v7610 = vsel %vm1123, %v7580, 0
  %7612 = vmatpush.msra.mxu0 0.0
  %7613 = vmatpush.msra.mxu0 0.0
  %7614 = vmatpush.msra.mxu0 0.0
  %7615 = vmatpush.msra.mxu0 0.0
  %7616 = vmatpush.msra.mxu0 0.0
  %7617 = vmatpush.msra.mxu0 0.0
  %7618 = vmatpush.msra.mxu0 0.0
  %7619 = vmatpush.msra.mxu0 0.0
  %7620 = vmatpush.msra.mxu0 0.0
  %7621 = vmatpush.msra.mxu0 0.0
  %7622 = vmatpush.msra.mxu0 0.0
  %7623 = vmatpush.msra.mxu0 %v7585
  %7624 = vmatpush.msra.mxu0 %v7584
  %7625 = vmatpush.msra.mxu0 %v7583
  %7626 = vmatpush.msra.mxu0 %v7582
  %7627 = vmatpush.msra.mxu0 %v7581
  %7628 = vmatmul.f32.gmra.mxu0 %v7589
  %v7629 = vpop.f32.mrf.mxu0
  %v7630 = vadd.f32 %v7587, %v7629
  %7631 = vmatmul.f32.gmra.mxu0 %v7592
  %v7632 = vpop.f32.mrf.mxu0
  %v7633 = vadd.f32 %v7587, %v7632
  %7634 = vmatmul.f32.gmra.mxu0 %v7595
  %v7635 = vpop.f32.mrf.mxu0
  %v7636 = vadd.f32 %v7587, %v7635
  %7637 = vmatmul.f32.gmra.mxu0 %v7598
  %v7638 = vpop.f32.mrf.mxu0
  %v7639 = vadd.f32 %v7587, %v7638
  %7640 = vmatmul.f32.gmra.mxu0 %v7601
  %v7641 = vpop.f32.mrf.mxu0
  %v7642 = vadd.f32 %v7587, %v7641
  %7643 = vmatmul.f32.gmra.mxu0 %v7604
  %v7644 = vpop.f32.mrf.mxu0
  %v7645 = vadd.f32 %v7587, %v7644
  %7646 = vmatmul.f32.gmra.mxu0 %v7607
  %v7647 = vpop.f32.mrf.mxu0
  %v7648 = vadd.f32 %v7587, %v7647
  %7649 = vmatmul.f32.gmra.mxu0 %v7610
  %v7650 = vpop.f32.mrf.mxu0
  %v7651 = vadd.f32 %v7587, %v7650
  %7652 = vdwg.mxu0
  %v7653 = vadd.f32 %v7261, %v7630
  %v7654 = vadd.f32 %v7262, %v7633
  %v7655 = vadd.f32 %v7263, %v7636
  %v7656 = vadd.f32 %v7264, %v7639
  %v7657 = vadd.f32 %v7265, %v7642
  %v7658 = vadd.f32 %v7266, %v7645
  %v7659 = vadd.f32 %v7267, %v7648
  %v7660 = vadd.f32 %v7268, %v7651
  %v7661 = vmax.f32 %v7653, 0.0
  %v7662 = vmax.f32 %v7654, 0.0
  %v7663 = vmax.f32 %v7655, 0.0
  %v7664 = vmax.f32 %v7656, 0.0
  %v7665 = vmax.f32 %v7657, 0.0
  %v7666 = vmax.f32 %v7658, 0.0
  %v7667 = vmax.f32 %v7659, 0.0
  %v7668 = vmax.f32 %v7660, 0.0
  %v7669 = vand.u32 2147483647, %v7653
  %v7670 = vand.u32 2147483647, %v7654
  %v7671 = vand.u32 2147483647, %v7655
  %v7672 = vand.u32 2147483647, %v7656
  %v7673 = vand.u32 2147483647, %v7657
  %v7674 = vand.u32 2147483647, %v7658
  %v7675 = vand.u32 2147483647, %v7659
  %v7676 = vand.u32 2147483647, %v7660
  %v7677 = vsub.f32 0.0, %v7669
  %v7678 = vsub.f32 0.0, %v7670
  %v7679 = vsub.f32 0.0, %v7671
  %v7680 = vsub.f32 0.0, %v7672
  %v7681 = vsub.f32 0.0, %v7673
  %v7682 = vsub.f32 0.0, %v7674
  %v7683 = vsub.f32 0.0, %v7675
  %v7684 = vsub.f32 0.0, %v7676
  %v7685 = vmul.f32 %v7677, 1.442695
  %v7686 = vpow.pop %v7685
  %v7687 = vmul.f32 %v7678, 1.442695
  %v7688 = vpow.pop %v7687
  %v7689 = vmul.f32 %v7679, 1.442695
  %v7690 = vpow.pop %v7689
  %v7691 = vmul.f32 %v7680, 1.442695
  %v7692 = vpow.pop %v7691
  %v7693 = vmul.f32 %v7681, 1.442695
  %v7694 = vpow.pop %v7693
  %v7695 = vmul.f32 %v7682, 1.442695
  %v7696 = vpow.pop %v7695
  %v7697 = vmul.f32 %v7683, 1.442695
  %v7698 = vpow.pop %v7697
  %v7699 = vmul.f32 %v7684, 1.442695
  %v7700 = vpow.pop %v7699
  %v7701 = vadd.f32 %v7686, 1.0
  %v7702 = vlog2.pop %v7701
  %v7703 = vmul.f32 %v7702, 0.6931472
  %v7704 = vmul.f32 -0.5, %v7686
  %v7705 = vadd.f32 %v7704, 1.0
  %v7706 = vmul.f32 %v7705, %v7686
  %v7707 = vand.u32 2147483647, %v7686
  %vm7708 = vcmp.lt.f32.partialorder %v7707, 0.0004427343
  %v7709 = vsel %vm7708, %v7706, %v7703
  %v7710 = vadd.f32 %v7688, 1.0
  %v7711 = vlog2.pop %v7710
  %v7712 = vmul.f32 %v7711, 0.6931472
  %v7713 = vmul.f32 -0.5, %v7688
  %v7714 = vadd.f32 %v7713, 1.0
  %v7715 = vmul.f32 %v7714, %v7688
  %v7716 = vand.u32 2147483647, %v7688
  %vm7717 = vcmp.lt.f32.partialorder %v7716, 0.0004427343
  %v7718 = vsel %vm7717, %v7715, %v7712
  %v7719 = vadd.f32 %v7690, 1.0
  %v7720 = vlog2.pop %v7719
  %v7721 = vmul.f32 %v7720, 0.6931472
  %v7722 = vmul.f32 -0.5, %v7690
  %v7723 = vadd.f32 %v7722, 1.0
  %v7724 = vmul.f32 %v7723, %v7690
  %v7725 = vand.u32 2147483647, %v7690
  %vm7726 = vcmp.lt.f32.partialorder %v7725, 0.0004427343
  %v7727 = vsel %vm7726, %v7724, %v7721
  %v7728 = vadd.f32 %v7692, 1.0
  %v7729 = vlog2.pop %v7728
  %v7730 = vmul.f32 %v7729, 0.6931472
  %v7731 = vmul.f32 -0.5, %v7692
  %v7732 = vadd.f32 %v7731, 1.0
  %v7733 = vmul.f32 %v7732, %v7692
  %v7734 = vand.u32 2147483647, %v7692
  %vm7735 = vcmp.lt.f32.partialorder %v7734, 0.0004427343
  %v7736 = vsel %vm7735, %v7733, %v7730
  %v7737 = vadd.f32 %v7694, 1.0
  %v7738 = vlog2.pop %v7737
  %v7739 = vmul.f32 %v7738, 0.6931472
  %v7740 = vmul.f32 -0.5, %v7694
  %v7741 = vadd.f32 %v7740, 1.0
  %v7742 = vmul.f32 %v7741, %v7694
  %v7743 = vand.u32 2147483647, %v7694
  %vm7744 = vcmp.lt.f32.partialorder %v7743, 0.0004427343
  %v7745 = vsel %vm7744, %v7742, %v7739
  %v7746 = vadd.f32 %v7696, 1.0
  %v7747 = vlog2.pop %v7746
  %v7748 = vmul.f32 %v7747, 0.6931472
  %v7749 = vmul.f32 -0.5, %v7696
  %v7750 = vadd.f32 %v7749, 1.0
  %v7751 = vmul.f32 %v7750, %v7696
  %v7752 = vand.u32 2147483647, %v7696
  %vm7753 = vcmp.lt.f32.partialorder %v7752, 0.0004427343
  %v7754 = vsel %vm7753, %v7751, %v7748
  %v7755 = vadd.f32 %v7698, 1.0
  %v7756 = vlog2.pop %v7755
  %v7757 = vmul.f32 %v7756, 0.6931472
  %v7758 = vmul.f32 -0.5, %v7698
  %v7759 = vadd.f32 %v7758, 1.0
  %v7760 = vmul.f32 %v7759, %v7698
  %v7761 = vand.u32 2147483647, %v7698
  %vm7762 = vcmp.lt.f32.partialorder %v7761, 0.0004427343
  %v7763 = vsel %vm7762, %v7760, %v7757
  %v7764 = vadd.f32 %v7700, 1.0
  %v7765 = vlog2.pop %v7764
  %v7766 = vmul.f32 %v7765, 0.6931472
  %v7767 = vmul.f32 -0.5, %v7700
  %v7768 = vadd.f32 %v7767, 1.0
  %v7769 = vmul.f32 %v7768, %v7700
  %v7770 = vand.u32 2147483647, %v7700
  %vm7771 = vcmp.lt.f32.partialorder %v7770, 0.0004427343
  %v7772 = vsel %vm7771, %v7769, %v7766
  %v7773 = vadd.f32 %v7661, %v7709
  %v7774 = vadd.f32 %v7662, %v7718
  %v7775 = vadd.f32 %v7663, %v7727
  %v7776 = vadd.f32 %v7664, %v7736
  %v7777 = vadd.f32 %v7665, %v7745
  %v7778 = vadd.f32 %v7666, %v7754
  %v7779 = vadd.f32 %v7667, %v7763
  %v7780 = vadd.f32 %v7668, %v7772
  %v7781 = vld [vmem:[%s4 + $0x630] sm:$0xff]
  %v7782 = vld [vmem:[%s4 + $0x638] sm:$0xff]
  %v7783 = vld [vmem:[%s4 + $0x640] sm:$0xff]
  %v7784 = vld [vmem:[%s4 + $0x648] sm:$0xff]
  %v7785 = vld [vmem:[%s4 + $0x650] sm:$0xff]
  %v7786 = vld [vmem:[%s4 + $0x658] sm:$0x1]
  %v7787 = vperm.slane %v7786, 0
  %v7789 = vsel %vm1123, %v7773, 0
  %v7792 = vsel %vm1123, %v7774, 0
  %v7795 = vsel %vm1123, %v7775, 0
  %v7798 = vsel %vm1123, %v7776, 0
  %v7801 = vsel %vm1123, %v7777, 0
  %v7804 = vsel %vm1123, %v7778, 0
  %v7807 = vsel %vm1123, %v7779, 0
  %v7810 = vsel %vm1123, %v7780, 0
  %7812 = vmatpush.msra.mxu0 0.0
  %7813 = vmatpush.msra.mxu0 0.0
  %7814 = vmatpush.msra.mxu0 0.0
  %7815 = vmatpush.msra.mxu0 0.0
  %7816 = vmatpush.msra.mxu0 0.0
  %7817 = vmatpush.msra.mxu0 0.0
  %7818 = vmatpush.msra.mxu0 0.0
  %7819 = vmatpush.msra.mxu0 0.0
  %7820 = vmatpush.msra.mxu0 0.0
  %7821 = vmatpush.msra.mxu0 0.0
  %7822 = vmatpush.msra.mxu0 0.0
  %7823 = vmatpush.msra.mxu0 %v7785
  %7824 = vmatpush.msra.mxu0 %v7784
  %7825 = vmatpush.msra.mxu0 %v7783
  %7826 = vmatpush.msra.mxu0 %v7782
  %7827 = vmatpush.msra.mxu0 %v7781
  %7828 = vmatmul.f32.gmra.mxu0 %v7789
  %v7829 = vpop.f32.mrf.mxu0
  %v7830 = vadd.f32 %v7787, %v7829
  %7831 = vmatmul.f32.gmra.mxu0 %v7792
  %v7832 = vpop.f32.mrf.mxu0
  %v7833 = vadd.f32 %v7787, %v7832
  %7834 = vmatmul.f32.gmra.mxu0 %v7795
  %v7835 = vpop.f32.mrf.mxu0
  %v7836 = vadd.f32 %v7787, %v7835
  %7837 = vmatmul.f32.gmra.mxu0 %v7798
  %v7838 = vpop.f32.mrf.mxu0
  %v7839 = vadd.f32 %v7787, %v7838
  %7840 = vmatmul.f32.gmra.mxu0 %v7801
  %v7841 = vpop.f32.mrf.mxu0
  %v7842 = vadd.f32 %v7787, %v7841
  %7843 = vmatmul.f32.gmra.mxu0 %v7804
  %v7844 = vpop.f32.mrf.mxu0
  %v7845 = vadd.f32 %v7787, %v7844
  %7846 = vmatmul.f32.gmra.mxu0 %v7807
  %v7847 = vpop.f32.mrf.mxu0
  %v7848 = vadd.f32 %v7787, %v7847
  %7849 = vmatmul.f32.gmra.mxu0 %v7810
  %v7850 = vpop.f32.mrf.mxu0
  %v7851 = vadd.f32 %v7787, %v7850
  %7852 = vdwg.mxu0
  %v7853 = vmax.f32 %v7830, 0.0
  %v7854 = vmax.f32 %v7833, 0.0
  %v7855 = vmax.f32 %v7836, 0.0
  %v7856 = vmax.f32 %v7839, 0.0
  %v7857 = vmax.f32 %v7842, 0.0
  %v7858 = vmax.f32 %v7845, 0.0
  %v7859 = vmax.f32 %v7848, 0.0
  %v7860 = vmax.f32 %v7851, 0.0
  %v7861 = vand.u32 2147483647, %v7830
  %v7862 = vand.u32 2147483647, %v7833
  %v7863 = vand.u32 2147483647, %v7836
  %v7864 = vand.u32 2147483647, %v7839
  %v7865 = vand.u32 2147483647, %v7842
  %v7866 = vand.u32 2147483647, %v7845
  %v7867 = vand.u32 2147483647, %v7848
  %v7868 = vand.u32 2147483647, %v7851
  %v7869 = vsub.f32 0.0, %v7861
  %v7870 = vsub.f32 0.0, %v7862
  %v7871 = vsub.f32 0.0, %v7863
  %v7872 = vsub.f32 0.0, %v7864
  %v7873 = vsub.f32 0.0, %v7865
  %v7874 = vsub.f32 0.0, %v7866
  %v7875 = vsub.f32 0.0, %v7867
  %v7876 = vsub.f32 0.0, %v7868
  %v7877 = vmul.f32 %v7869, 1.442695
  %v7878 = vpow.pop %v7877
  %v7879 = vmul.f32 %v7870, 1.442695
  %v7880 = vpow.pop %v7879
  %v7881 = vmul.f32 %v7871, 1.442695
  %v7882 = vpow.pop %v7881
  %v7883 = vmul.f32 %v7872, 1.442695
  %v7884 = vpow.pop %v7883
  %v7885 = vmul.f32 %v7873, 1.442695
  %v7886 = vpow.pop %v7885
  %v7887 = vmul.f32 %v7874, 1.442695
  %v7888 = vpow.pop %v7887
  %v7889 = vmul.f32 %v7875, 1.442695
  %v7890 = vpow.pop %v7889
  %v7891 = vmul.f32 %v7876, 1.442695
  %v7892 = vpow.pop %v7891
  %v7893 = vadd.f32 %v7878, 1.0
  %v7894 = vlog2.pop %v7893
  %v7895 = vmul.f32 %v7894, 0.6931472
  %v7896 = vmul.f32 -0.5, %v7878
  %v7897 = vadd.f32 %v7896, 1.0
  %v7898 = vmul.f32 %v7897, %v7878
  %v7899 = vand.u32 2147483647, %v7878
  %vm7900 = vcmp.lt.f32.partialorder %v7899, 0.0004427343
  %v7901 = vsel %vm7900, %v7898, %v7895
  %v7902 = vadd.f32 %v7880, 1.0
  %v7903 = vlog2.pop %v7902
  %v7904 = vmul.f32 %v7903, 0.6931472
  %v7905 = vmul.f32 -0.5, %v7880
  %v7906 = vadd.f32 %v7905, 1.0
  %v7907 = vmul.f32 %v7906, %v7880
  %v7908 = vand.u32 2147483647, %v7880
  %vm7909 = vcmp.lt.f32.partialorder %v7908, 0.0004427343
  %v7910 = vsel %vm7909, %v7907, %v7904
  %v7911 = vadd.f32 %v7882, 1.0
  %v7912 = vlog2.pop %v7911
  %v7913 = vmul.f32 %v7912, 0.6931472
  %v7914 = vmul.f32 -0.5, %v7882
  %v7915 = vadd.f32 %v7914, 1.0
  %v7916 = vmul.f32 %v7915, %v7882
  %v7917 = vand.u32 2147483647, %v7882
  %vm7918 = vcmp.lt.f32.partialorder %v7917, 0.0004427343
  %v7919 = vsel %vm7918, %v7916, %v7913
  %v7920 = vadd.f32 %v7884, 1.0
  %v7921 = vlog2.pop %v7920
  %v7922 = vmul.f32 %v7921, 0.6931472
  %v7923 = vmul.f32 -0.5, %v7884
  %v7924 = vadd.f32 %v7923, 1.0
  %v7925 = vmul.f32 %v7924, %v7884
  %v7926 = vand.u32 2147483647, %v7884
  %vm7927 = vcmp.lt.f32.partialorder %v7926, 0.0004427343
  %v7928 = vsel %vm7927, %v7925, %v7922
  %v7929 = vadd.f32 %v7886, 1.0
  %v7930 = vlog2.pop %v7929
  %v7931 = vmul.f32 %v7930, 0.6931472
  %v7932 = vmul.f32 -0.5, %v7886
  %v7933 = vadd.f32 %v7932, 1.0
  %v7934 = vmul.f32 %v7933, %v7886
  %v7935 = vand.u32 2147483647, %v7886
  %vm7936 = vcmp.lt.f32.partialorder %v7935, 0.0004427343
  %v7937 = vsel %vm7936, %v7934, %v7931
  %v7938 = vadd.f32 %v7888, 1.0
  %v7939 = vlog2.pop %v7938
  %v7940 = vmul.f32 %v7939, 0.6931472
  %v7941 = vmul.f32 -0.5, %v7888
  %v7942 = vadd.f32 %v7941, 1.0
  %v7943 = vmul.f32 %v7942, %v7888
  %v7944 = vand.u32 2147483647, %v7888
  %vm7945 = vcmp.lt.f32.partialorder %v7944, 0.0004427343
  %v7946 = vsel %vm7945, %v7943, %v7940
  %v7947 = vadd.f32 %v7890, 1.0
  %v7948 = vlog2.pop %v7947
  %v7949 = vmul.f32 %v7948, 0.6931472
  %v7950 = vmul.f32 -0.5, %v7890
  %v7951 = vadd.f32 %v7950, 1.0
  %v7952 = vmul.f32 %v7951, %v7890
  %v7953 = vand.u32 2147483647, %v7890
  %vm7954 = vcmp.lt.f32.partialorder %v7953, 0.0004427343
  %v7955 = vsel %vm7954, %v7952, %v7949
  %v7956 = vadd.f32 %v7892, 1.0
  %v7957 = vlog2.pop %v7956
  %v7958 = vmul.f32 %v7957, 0.6931472
  %v7959 = vmul.f32 -0.5, %v7892
  %v7960 = vadd.f32 %v7959, 1.0
  %v7961 = vmul.f32 %v7960, %v7892
  %v7962 = vand.u32 2147483647, %v7892
  %vm7963 = vcmp.lt.f32.partialorder %v7962, 0.0004427343
  %v7964 = vsel %vm7963, %v7961, %v7958
  %v7965 = vadd.f32 %v7853, %v7901
  %v7966 = vadd.f32 %v7854, %v7910
  %v7967 = vadd.f32 %v7855, %v7919
  %v7968 = vadd.f32 %v7856, %v7928
  %v7969 = vadd.f32 %v7857, %v7937
  %v7970 = vadd.f32 %v7858, %v7946
  %v7971 = vadd.f32 %v7859, %v7955
  %v7972 = vadd.f32 %v7860, %v7964
  %v7973 = vld [vmem:[%s4 + $0x660] sm:$0xff]
  %v7974 = vld [vmem:[%s4 + $0x668] sm:$0xff]
  %v7975 = vld [vmem:[%s4 + $0x670] sm:$0xff]
  %v7976 = vld [vmem:[%s4 + $0x678] sm:$0xff]
  %v7977 = vld [vmem:[%s4 + $0x680] sm:$0xff]
  %v7978 = vld [vmem:[%s4 + $0x688] sm:$0x1]
  %v7979 = vperm.slane %v7978, 0
  %v7981 = vsel %vm1123, %v7965, 0
  %v7984 = vsel %vm1123, %v7966, 0
  %v7987 = vsel %vm1123, %v7967, 0
  %v7990 = vsel %vm1123, %v7968, 0
  %v7993 = vsel %vm1123, %v7969, 0
  %v7996 = vsel %vm1123, %v7970, 0
  %v7999 = vsel %vm1123, %v7971, 0
  %v8002 = vsel %vm1123, %v7972, 0
  %8004 = vmatpush.msra.mxu0 0.0
  %8005 = vmatpush.msra.mxu0 0.0
  %8006 = vmatpush.msra.mxu0 0.0
  %8007 = vmatpush.msra.mxu0 0.0
  %8008 = vmatpush.msra.mxu0 0.0
  %8009 = vmatpush.msra.mxu0 0.0
  %8010 = vmatpush.msra.mxu0 0.0
  %8011 = vmatpush.msra.mxu0 0.0
  %8012 = vmatpush.msra.mxu0 0.0
  %8013 = vmatpush.msra.mxu0 0.0
  %8014 = vmatpush.msra.mxu0 0.0
  %8015 = vmatpush.msra.mxu0 %v7977
  %8016 = vmatpush.msra.mxu0 %v7976
  %8017 = vmatpush.msra.mxu0 %v7975
  %8018 = vmatpush.msra.mxu0 %v7974
  %8019 = vmatpush.msra.mxu0 %v7973
  %8020 = vmatmul.f32.gmra.mxu0 %v7981
  %v8021 = vpop.f32.mrf.mxu0
  %v8022 = vadd.f32 %v7979, %v8021
  %8023 = vmatmul.f32.gmra.mxu0 %v7984
  %v8024 = vpop.f32.mrf.mxu0
  %v8025 = vadd.f32 %v7979, %v8024
  %8026 = vmatmul.f32.gmra.mxu0 %v7987
  %v8027 = vpop.f32.mrf.mxu0
  %v8028 = vadd.f32 %v7979, %v8027
  %8029 = vmatmul.f32.gmra.mxu0 %v7990
  %v8030 = vpop.f32.mrf.mxu0
  %v8031 = vadd.f32 %v7979, %v8030
  %8032 = vmatmul.f32.gmra.mxu0 %v7993
  %v8033 = vpop.f32.mrf.mxu0
  %v8034 = vadd.f32 %v7979, %v8033
  %8035 = vmatmul.f32.gmra.mxu0 %v7996
  %v8036 = vpop.f32.mrf.mxu0
  %v8037 = vadd.f32 %v7979, %v8036
  %8038 = vmatmul.f32.gmra.mxu0 %v7999
  %v8039 = vpop.f32.mrf.mxu0
  %v8040 = vadd.f32 %v7979, %v8039
  %8041 = vmatmul.f32.gmra.mxu0 %v8002
  %v8042 = vpop.f32.mrf.mxu0
  %v8043 = vadd.f32 %v7979, %v8042
  %8044 = vdwg.mxu0
  %v8045 = vadd.f32 %v7653, %v8022
  %v8046 = vadd.f32 %v7654, %v8025
  %v8047 = vadd.f32 %v7655, %v8028
  %v8048 = vadd.f32 %v7656, %v8031
  %v8049 = vadd.f32 %v7657, %v8034
  %v8050 = vadd.f32 %v7658, %v8037
  %v8051 = vadd.f32 %v7659, %v8040
  %v8052 = vadd.f32 %v7660, %v8043
  %v8053 = vmax.f32 %v8045, 0.0
  %v8054 = vmax.f32 %v8046, 0.0
  %v8055 = vmax.f32 %v8047, 0.0
  %v8056 = vmax.f32 %v8048, 0.0
  %v8057 = vmax.f32 %v8049, 0.0
  %v8058 = vmax.f32 %v8050, 0.0
  %v8059 = vmax.f32 %v8051, 0.0
  %v8060 = vmax.f32 %v8052, 0.0
  %v8061 = vand.u32 2147483647, %v8045
  %v8062 = vand.u32 2147483647, %v8046
  %v8063 = vand.u32 2147483647, %v8047
  %v8064 = vand.u32 2147483647, %v8048
  %v8065 = vand.u32 2147483647, %v8049
  %v8066 = vand.u32 2147483647, %v8050
  %v8067 = vand.u32 2147483647, %v8051
  %v8068 = vand.u32 2147483647, %v8052
  %v8069 = vsub.f32 0.0, %v8061
  %v8070 = vsub.f32 0.0, %v8062
  %v8071 = vsub.f32 0.0, %v8063
  %v8072 = vsub.f32 0.0, %v8064
  %v8073 = vsub.f32 0.0, %v8065
  %v8074 = vsub.f32 0.0, %v8066
  %v8075 = vsub.f32 0.0, %v8067
  %v8076 = vsub.f32 0.0, %v8068
  %v8077 = vmul.f32 %v8069, 1.442695
  %v8078 = vpow.pop %v8077
  %v8079 = vmul.f32 %v8070, 1.442695
  %v8080 = vpow.pop %v8079
  %v8081 = vmul.f32 %v8071, 1.442695
  %v8082 = vpow.pop %v8081
  %v8083 = vmul.f32 %v8072, 1.442695
  %v8084 = vpow.pop %v8083
  %v8085 = vmul.f32 %v8073, 1.442695
  %v8086 = vpow.pop %v8085
  %v8087 = vmul.f32 %v8074, 1.442695
  %v8088 = vpow.pop %v8087
  %v8089 = vmul.f32 %v8075, 1.442695
  %v8090 = vpow.pop %v8089
  %v8091 = vmul.f32 %v8076, 1.442695
  %v8092 = vpow.pop %v8091
  %v8093 = vadd.f32 %v8078, 1.0
  %v8094 = vlog2.pop %v8093
  %v8095 = vmul.f32 %v8094, 0.6931472
  %v8096 = vmul.f32 -0.5, %v8078
  %v8097 = vadd.f32 %v8096, 1.0
  %v8098 = vmul.f32 %v8097, %v8078
  %v8099 = vand.u32 2147483647, %v8078
  %vm8100 = vcmp.lt.f32.partialorder %v8099, 0.0004427343
  %v8101 = vsel %vm8100, %v8098, %v8095
  %v8102 = vadd.f32 %v8080, 1.0
  %v8103 = vlog2.pop %v8102
  %v8104 = vmul.f32 %v8103, 0.6931472
  %v8105 = vmul.f32 -0.5, %v8080
  %v8106 = vadd.f32 %v8105, 1.0
  %v8107 = vmul.f32 %v8106, %v8080
  %v8108 = vand.u32 2147483647, %v8080
  %vm8109 = vcmp.lt.f32.partialorder %v8108, 0.0004427343
  %v8110 = vsel %vm8109, %v8107, %v8104
  %v8111 = vadd.f32 %v8082, 1.0
  %v8112 = vlog2.pop %v8111
  %v8113 = vmul.f32 %v8112, 0.6931472
  %v8114 = vmul.f32 -0.5, %v8082
  %v8115 = vadd.f32 %v8114, 1.0
  %v8116 = vmul.f32 %v8115, %v8082
  %v8117 = vand.u32 2147483647, %v8082
  %vm8118 = vcmp.lt.f32.partialorder %v8117, 0.0004427343
  %v8119 = vsel %vm8118, %v8116, %v8113
  %v8120 = vadd.f32 %v8084, 1.0
  %v8121 = vlog2.pop %v8120
  %v8122 = vmul.f32 %v8121, 0.6931472
  %v8123 = vmul.f32 -0.5, %v8084
  %v8124 = vadd.f32 %v8123, 1.0
  %v8125 = vmul.f32 %v8124, %v8084
  %v8126 = vand.u32 2147483647, %v8084
  %vm8127 = vcmp.lt.f32.partialorder %v8126, 0.0004427343
  %v8128 = vsel %vm8127, %v8125, %v8122
  %v8129 = vadd.f32 %v8086, 1.0
  %v8130 = vlog2.pop %v8129
  %v8131 = vmul.f32 %v8130, 0.6931472
  %v8132 = vmul.f32 -0.5, %v8086
  %v8133 = vadd.f32 %v8132, 1.0
  %v8134 = vmul.f32 %v8133, %v8086
  %v8135 = vand.u32 2147483647, %v8086
  %vm8136 = vcmp.lt.f32.partialorder %v8135, 0.0004427343
  %v8137 = vsel %vm8136, %v8134, %v8131
  %v8138 = vadd.f32 %v8088, 1.0
  %v8139 = vlog2.pop %v8138
  %v8140 = vmul.f32 %v8139, 0.6931472
  %v8141 = vmul.f32 -0.5, %v8088
  %v8142 = vadd.f32 %v8141, 1.0
  %v8143 = vmul.f32 %v8142, %v8088
  %v8144 = vand.u32 2147483647, %v8088
  %vm8145 = vcmp.lt.f32.partialorder %v8144, 0.0004427343
  %v8146 = vsel %vm8145, %v8143, %v8140
  %v8147 = vadd.f32 %v8090, 1.0
  %v8148 = vlog2.pop %v8147
  %v8149 = vmul.f32 %v8148, 0.6931472
  %v8150 = vmul.f32 -0.5, %v8090
  %v8151 = vadd.f32 %v8150, 1.0
  %v8152 = vmul.f32 %v8151, %v8090
  %v8153 = vand.u32 2147483647, %v8090
  %vm8154 = vcmp.lt.f32.partialorder %v8153, 0.0004427343
  %v8155 = vsel %vm8154, %v8152, %v8149
  %v8156 = vadd.f32 %v8092, 1.0
  %v8157 = vlog2.pop %v8156
  %v8158 = vmul.f32 %v8157, 0.6931472
  %v8159 = vmul.f32 -0.5, %v8092
  %v8160 = vadd.f32 %v8159, 1.0
  %v8161 = vmul.f32 %v8160, %v8092
  %v8162 = vand.u32 2147483647, %v8092
  %vm8163 = vcmp.lt.f32.partialorder %v8162, 0.0004427343
  %v8164 = vsel %vm8163, %v8161, %v8158
  %v8165 = vadd.f32 %v8053, %v8101
  %v8166 = vadd.f32 %v8054, %v8110
  %v8167 = vadd.f32 %v8055, %v8119
  %v8168 = vadd.f32 %v8056, %v8128
  %v8169 = vadd.f32 %v8057, %v8137
  %v8170 = vadd.f32 %v8058, %v8146
  %v8171 = vadd.f32 %v8059, %v8155
  %v8172 = vadd.f32 %v8060, %v8164
  %v8173 = vld [vmem:[%s4 + $0x690] sm:$0xff]
  %v8174 = vld [vmem:[%s4 + $0x698] sm:$0xff]
  %v8175 = vld [vmem:[%s4 + $0x6a0] sm:$0xff]
  %v8176 = vld [vmem:[%s4 + $0x6a8] sm:$0xff]
  %v8177 = vld [vmem:[%s4 + $0x6b0] sm:$0xff]
  %v8178 = vld [vmem:[%s4 + $0x6b8] sm:$0x1]
  %v8179 = vperm.slane %v8178, 0
  %v8181 = vsel %vm1123, %v8165, 0
  %v8184 = vsel %vm1123, %v8166, 0
  %v8187 = vsel %vm1123, %v8167, 0
  %v8190 = vsel %vm1123, %v8168, 0
  %v8193 = vsel %vm1123, %v8169, 0
  %v8196 = vsel %vm1123, %v8170, 0
  %v8199 = vsel %vm1123, %v8171, 0
  %v8202 = vsel %vm1123, %v8172, 0
  %8204 = vmatpush.msra.mxu0 0.0
  %8205 = vmatpush.msra.mxu0 0.0
  %8206 = vmatpush.msra.mxu0 0.0
  %8207 = vmatpush.msra.mxu0 0.0
  %8208 = vmatpush.msra.mxu0 0.0
  %8209 = vmatpush.msra.mxu0 0.0
  %8210 = vmatpush.msra.mxu0 0.0
  %8211 = vmatpush.msra.mxu0 0.0
  %8212 = vmatpush.msra.mxu0 0.0
  %8213 = vmatpush.msra.mxu0 0.0
  %8214 = vmatpush.msra.mxu0 0.0
  %8215 = vmatpush.msra.mxu0 %v8177
  %8216 = vmatpush.msra.mxu0 %v8176
  %8217 = vmatpush.msra.mxu0 %v8175
  %8218 = vmatpush.msra.mxu0 %v8174
  %8219 = vmatpush.msra.mxu0 %v8173
  %8220 = vmatmul.f32.gmra.mxu0 %v8181
  %v8221 = vpop.f32.mrf.mxu0
  %v8222 = vadd.f32 %v8179, %v8221
  %8223 = vmatmul.f32.gmra.mxu0 %v8184
  %v8224 = vpop.f32.mrf.mxu0
  %v8225 = vadd.f32 %v8179, %v8224
  %8226 = vmatmul.f32.gmra.mxu0 %v8187
  %v8227 = vpop.f32.mrf.mxu0
  %v8228 = vadd.f32 %v8179, %v8227
  %8229 = vmatmul.f32.gmra.mxu0 %v8190
  %v8230 = vpop.f32.mrf.mxu0
  %v8231 = vadd.f32 %v8179, %v8230
  %8232 = vmatmul.f32.gmra.mxu0 %v8193
  %v8233 = vpop.f32.mrf.mxu0
  %v8234 = vadd.f32 %v8179, %v8233
  %8235 = vmatmul.f32.gmra.mxu0 %v8196
  %v8236 = vpop.f32.mrf.mxu0
  %v8237 = vadd.f32 %v8179, %v8236
  %8238 = vmatmul.f32.gmra.mxu0 %v8199
  %v8239 = vpop.f32.mrf.mxu0
  %v8240 = vadd.f32 %v8179, %v8239
  %8241 = vmatmul.f32.gmra.mxu0 %v8202
  %v8242 = vpop.f32.mrf.mxu0
  %v8243 = vadd.f32 %v8179, %v8242
  %8244 = vdwg.mxu0
  %v8245 = vmax.f32 %v8222, 0.0
  %v8246 = vmax.f32 %v8225, 0.0
  %v8247 = vmax.f32 %v8228, 0.0
  %v8248 = vmax.f32 %v8231, 0.0
  %v8249 = vmax.f32 %v8234, 0.0
  %v8250 = vmax.f32 %v8237, 0.0
  %v8251 = vmax.f32 %v8240, 0.0
  %v8252 = vmax.f32 %v8243, 0.0
  %v8253 = vand.u32 2147483647, %v8222
  %v8254 = vand.u32 2147483647, %v8225
  %v8255 = vand.u32 2147483647, %v8228
  %v8256 = vand.u32 2147483647, %v8231
  %v8257 = vand.u32 2147483647, %v8234
  %v8258 = vand.u32 2147483647, %v8237
  %v8259 = vand.u32 2147483647, %v8240
  %v8260 = vand.u32 2147483647, %v8243
  %v8261 = vsub.f32 0.0, %v8253
  %v8262 = vsub.f32 0.0, %v8254
  %v8263 = vsub.f32 0.0, %v8255
  %v8264 = vsub.f32 0.0, %v8256
  %v8265 = vsub.f32 0.0, %v8257
  %v8266 = vsub.f32 0.0, %v8258
  %v8267 = vsub.f32 0.0, %v8259
  %v8268 = vsub.f32 0.0, %v8260
  %v8269 = vmul.f32 %v8261, 1.442695
  %v8270 = vpow.pop %v8269
  %v8271 = vmul.f32 %v8262, 1.442695
  %v8272 = vpow.pop %v8271
  %v8273 = vmul.f32 %v8263, 1.442695
  %v8274 = vpow.pop %v8273
  %v8275 = vmul.f32 %v8264, 1.442695
  %v8276 = vpow.pop %v8275
  %v8277 = vmul.f32 %v8265, 1.442695
  %v8278 = vpow.pop %v8277
  %v8279 = vmul.f32 %v8266, 1.442695
  %v8280 = vpow.pop %v8279
  %v8281 = vmul.f32 %v8267, 1.442695
  %v8282 = vpow.pop %v8281
  %v8283 = vmul.f32 %v8268, 1.442695
  %v8284 = vpow.pop %v8283
  %v8285 = vadd.f32 %v8270, 1.0
  %v8286 = vlog2.pop %v8285
  %v8287 = vmul.f32 %v8286, 0.6931472
  %v8288 = vmul.f32 -0.5, %v8270
  %v8289 = vadd.f32 %v8288, 1.0
  %v8290 = vmul.f32 %v8289, %v8270
  %v8291 = vand.u32 2147483647, %v8270
  %vm8292 = vcmp.lt.f32.partialorder %v8291, 0.0004427343
  %v8293 = vsel %vm8292, %v8290, %v8287
  %v8294 = vadd.f32 %v8272, 1.0
  %v8295 = vlog2.pop %v8294
  %v8296 = vmul.f32 %v8295, 0.6931472
  %v8297 = vmul.f32 -0.5, %v8272
  %v8298 = vadd.f32 %v8297, 1.0
  %v8299 = vmul.f32 %v8298, %v8272
  %v8300 = vand.u32 2147483647, %v8272
  %vm8301 = vcmp.lt.f32.partialorder %v8300, 0.0004427343
  %v8302 = vsel %vm8301, %v8299, %v8296
  %v8303 = vadd.f32 %v8274, 1.0
  %v8304 = vlog2.pop %v8303
  %v8305 = vmul.f32 %v8304, 0.6931472
  %v8306 = vmul.f32 -0.5, %v8274
  %v8307 = vadd.f32 %v8306, 1.0
  %v8308 = vmul.f32 %v8307, %v8274
  %v8309 = vand.u32 2147483647, %v8274
  %vm8310 = vcmp.lt.f32.partialorder %v8309, 0.0004427343
  %v8311 = vsel %vm8310, %v8308, %v8305
  %v8312 = vadd.f32 %v8276, 1.0
  %v8313 = vlog2.pop %v8312
  %v8314 = vmul.f32 %v8313, 0.6931472
  %v8315 = vmul.f32 -0.5, %v8276
  %v8316 = vadd.f32 %v8315, 1.0
  %v8317 = vmul.f32 %v8316, %v8276
  %v8318 = vand.u32 2147483647, %v8276
  %vm8319 = vcmp.lt.f32.partialorder %v8318, 0.0004427343
  %v8320 = vsel %vm8319, %v8317, %v8314
  %v8321 = vadd.f32 %v8278, 1.0
  %v8322 = vlog2.pop %v8321
  %v8323 = vmul.f32 %v8322, 0.6931472
  %v8324 = vmul.f32 -0.5, %v8278
  %v8325 = vadd.f32 %v8324, 1.0
  %v8326 = vmul.f32 %v8325, %v8278
  %v8327 = vand.u32 2147483647, %v8278
  %vm8328 = vcmp.lt.f32.partialorder %v8327, 0.0004427343
  %v8329 = vsel %vm8328, %v8326, %v8323
  %v8330 = vadd.f32 %v8280, 1.0
  %v8331 = vlog2.pop %v8330
  %v8332 = vmul.f32 %v8331, 0.6931472
  %v8333 = vmul.f32 -0.5, %v8280
  %v8334 = vadd.f32 %v8333, 1.0
  %v8335 = vmul.f32 %v8334, %v8280
  %v8336 = vand.u32 2147483647, %v8280
  %vm8337 = vcmp.lt.f32.partialorder %v8336, 0.0004427343
  %v8338 = vsel %vm8337, %v8335, %v8332
  %v8339 = vadd.f32 %v8282, 1.0
  %v8340 = vlog2.pop %v8339
  %v8341 = vmul.f32 %v8340, 0.6931472
  %v8342 = vmul.f32 -0.5, %v8282
  %v8343 = vadd.f32 %v8342, 1.0
  %v8344 = vmul.f32 %v8343, %v8282
  %v8345 = vand.u32 2147483647, %v8282
  %vm8346 = vcmp.lt.f32.partialorder %v8345, 0.0004427343
  %v8347 = vsel %vm8346, %v8344, %v8341
  %v8348 = vadd.f32 %v8284, 1.0
  %v8349 = vlog2.pop %v8348
  %v8350 = vmul.f32 %v8349, 0.6931472
  %v8351 = vmul.f32 -0.5, %v8284
  %v8352 = vadd.f32 %v8351, 1.0
  %v8353 = vmul.f32 %v8352, %v8284
  %v8354 = vand.u32 2147483647, %v8284
  %vm8355 = vcmp.lt.f32.partialorder %v8354, 0.0004427343
  %v8356 = vsel %vm8355, %v8353, %v8350
  %v8357 = vadd.f32 %v8245, %v8293
  %v8358 = vadd.f32 %v8246, %v8302
  %v8359 = vadd.f32 %v8247, %v8311
  %v8360 = vadd.f32 %v8248, %v8320
  %v8361 = vadd.f32 %v8249, %v8329
  %v8362 = vadd.f32 %v8250, %v8338
  %v8363 = vadd.f32 %v8251, %v8347
  %v8364 = vadd.f32 %v8252, %v8356
  %v8365 = vadd.f32 %v8357, 0.001
  %v8366 = vadd.f32 %v8358, 0.001
  %v8367 = vadd.f32 %v8359, 0.001
  %v8368 = vadd.f32 %v8360, 0.001
  %v8369 = vadd.f32 %v8361, 0.001
  %v8370 = vadd.f32 %v8362, 0.001
  %v8371 = vadd.f32 %v8363, 0.001
  %v8372 = vadd.f32 %v8364, 0.001
  %v8373 = vmul.f32 %v8365, %v5973
  %v8374 = vmul.f32 %v8366, %v5974
  %v8375 = vmul.f32 %v8367, %v5975
  %v8376 = vmul.f32 %v8368, %v5976
  %v8377 = vmul.f32 %v8369, %v5977
  %v8378 = vmul.f32 %v8370, %v5978
  %v8379 = vmul.f32 %v8371, %v5979
  %v8380 = vmul.f32 %v8372, %v5980
  %8389 = vrot.lane.b32.xlu0 %v8222, 40
  %v8390 = vpop.permute.xlu0 %8389
  %8391 = vrot.lane.b32.xlu0 %v8225, 40
  %v8392 = vpop.permute.xlu0 %8391
  %8393 = vrot.lane.b32.xlu0 %v8228, 40
  %v8394 = vpop.permute.xlu0 %8393
  %8395 = vrot.lane.b32.xlu0 %v8231, 40
  %v8396 = vpop.permute.xlu0 %8395
  %8397 = vrot.lane.b32.xlu0 %v8234, 40
  %v8398 = vpop.permute.xlu0 %8397
  %8399 = vrot.lane.b32.xlu0 %v8237, 40
  %v8400 = vpop.permute.xlu0 %8399
  %8401 = vrot.lane.b32.xlu0 %v8240, 40
  %v8402 = vpop.permute.xlu0 %8401
  %8403 = vrot.lane.b32.xlu0 %v8243, 40
  %v8404 = vpop.permute.xlu0 %8403
  %v8413 = vadd.f32 %v8373, %v8390
  %v8414 = vadd.f32 %v8374, %v8392
  %v8415 = vadd.f32 %v8375, %v8394
  %v8416 = vadd.f32 %v8376, %v8396
  %v8417 = vadd.f32 %v8377, %v8398
  %v8418 = vadd.f32 %v8378, %v8400
  %v8419 = vadd.f32 %v8379, %v8402
  %v8420 = vadd.f32 %v8380, %v8404
  %v8421 = vlog2.pop %v8365
  %v8422 = vmul.f32 %v8421, 0.6931472
  %v8423 = vlog2.pop %v8366
  %v8424 = vmul.f32 %v8423, 0.6931472
  %v8425 = vlog2.pop %v8367
  %v8426 = vmul.f32 %v8425, 0.6931472
  %v8427 = vlog2.pop %v8368
  %v8428 = vmul.f32 %v8427, 0.6931472
  %v8429 = vlog2.pop %v8369
  %v8430 = vmul.f32 %v8429, 0.6931472
  %v8431 = vlog2.pop %v8370
  %v8432 = vmul.f32 %v8431, 0.6931472
  %v8433 = vlog2.pop %v8371
  %v8434 = vmul.f32 %v8433, 0.6931472
  %v8435 = vlog2.pop %v8372
  %v8436 = vmul.f32 %v8435, 0.6931472
  %v8437 = vadd.f32 %v5997, %v8422
  %v8438 = vadd.f32 %v5998, %v8424
  %v8439 = vadd.f32 %v5999, %v8426
  %v8440 = vadd.f32 %v6000, %v8428
  %v8441 = vadd.f32 %v6001, %v8430
  %v8442 = vadd.f32 %v6002, %v8432
  %v8443 = vadd.f32 %v6003, %v8434
  %v8444 = vadd.f32 %v6004, %v8436
  %v8445 = vmul.f32 %v8413, %v8413
  %v8446 = vmul.f32 %v8414, %v8414
  %v8447 = vmul.f32 %v8415, %v8415
  %v8448 = vmul.f32 %v8416, %v8416
  %v8449 = vmul.f32 %v8417, %v8417
  %v8450 = vmul.f32 %v8418, %v8418
  %v8451 = vmul.f32 %v8419, %v8419
  %v8452 = vmul.f32 %v8420, %v8420
  %8454 = vrot.lane.b32.xlu0 %v8445, 88
  %v8455 = vpop.permute.xlu0 %8454
  %v8457 = vsel %vm89, %v8455, 0.0
  %8458 = vadd.xlane.f32.xlu0 %v8457
  %v8459 = vpop.xlane.xlu0 %8458
  %v8460 = vmul.f32 %v8459, -0.5
  %v8461 = vsub.f32 %v8460, 9.189385
  %8463 = vrot.lane.b32.xlu0 %v8437, 88
  %v8464 = vpop.permute.xlu0 %8463
  %v8466 = vsel %vm89, %v8464, 0.0
  %8467 = vadd.xlane.f32.xlu0 %v8466
  %v8468 = vpop.xlane.xlu0 %8467
  %v8469 = vadd.f32 %v8461, %v8468
  %8470 = vrot.lane.b32.xlu0 %v8445, 78
  %v8471 = vpop.permute.xlu0 %8470
  %v8473 = vsel %vm89, %v8471, 0.0
  %8474 = vadd.xlane.f32.xlu0 %v8473
  %v8475 = vpop.xlane.xlu0 %8474
  %v8476 = vmul.f32 %v8475, -0.5
  %v8477 = vsub.f32 %v8476, 9.189385
  %8478 = vrot.lane.b32.xlu0 %v8437, 78
  %v8479 = vpop.permute.xlu0 %8478
  %v8481 = vsel %vm89, %v8479, 0.0
  %8482 = vadd.xlane.f32.xlu0 %v8481
  %v8483 = vpop.xlane.xlu0 %8482
  %v8484 = vadd.f32 %v8477, %v8483
  %8492 = vrot.lane.b32.xlu0 %v8445, 68
  %v8493 = vpop.permute.xlu0 %8492
  %8494 = vrot.lane.b32.xlu0 %v8446, 68
  %v8495 = vpop.permute.xlu0 %8494
  %8496 = vrot.lane.b32.xlu0 %v8447, 68
  %v8497 = vpop.permute.xlu0 %8496
  %8498 = vrot.lane.b32.xlu0 %v8448, 68
  %v8499 = vpop.permute.xlu0 %8498
  %8500 = vrot.lane.b32.xlu0 %v8449, 68
  %v8501 = vpop.permute.xlu0 %8500
  %8502 = vrot.lane.b32.xlu0 %v8450, 68
  %v8503 = vpop.permute.xlu0 %8502
  %8504 = vrot.lane.b32.xlu0 %v8451, 68
  %v8505 = vpop.permute.xlu0 %8504
  %8506 = vrot.lane.b32.xlu0 %v8452, 68
  %v8507 = vpop.permute.xlu0 %8506
  %v8516 = vsel %vm89, %v8493, 0.0
  %8517 = vadd.xlane.f32.xlu0 %v8516
  %v8518 = vpop.xlane.xlu0 %8517
  %v8519 = vsel %vm89, %v8495, 0.0
  %8520 = vadd.xlane.f32.xlu0 %v8519
  %v8521 = vpop.xlane.xlu0 %8520
  %v8522 = vsel %vm89, %v8497, 0.0
  %8523 = vadd.xlane.f32.xlu0 %v8522
  %v8524 = vpop.xlane.xlu0 %8523
  %v8525 = vsel %vm89, %v8499, 0.0
  %8526 = vadd.xlane.f32.xlu0 %v8525
  %v8527 = vpop.xlane.xlu0 %8526
  %v8528 = vsel %vm89, %v8501, 0.0
  %8529 = vadd.xlane.f32.xlu0 %v8528
  %v8530 = vpop.xlane.xlu0 %8529
  %v8531 = vsel %vm89, %v8503, 0.0
  %8532 = vadd.xlane.f32.xlu0 %v8531
  %v8533 = vpop.xlane.xlu0 %8532
  %v8534 = vsel %vm89, %v8505, 0.0
  %8535 = vadd.xlane.f32.xlu0 %v8534
  %v8536 = vpop.xlane.xlu0 %8535
  %v8537 = vsel %vm89, %v8507, 0.0
  %8538 = vadd.xlane.f32.xlu0 %v8537
  %v8539 = vpop.xlane.xlu0 %8538
  %v8540 = vmul.f32 %v8518, -0.5
  %v8541 = vmul.f32 %v8521, -0.5
  %v8542 = vmul.f32 %v8524, -0.5
  %v8543 = vmul.f32 %v8527, -0.5
  %v8544 = vmul.f32 %v8530, -0.5
  %v8545 = vmul.f32 %v8533, -0.5
  %v8546 = vmul.f32 %v8536, -0.5
  %v8547 = vmul.f32 %v8539, -0.5
  %v8548 = vsub.f32 %v8540, 9.189385
  %v8549 = vsub.f32 %v8541, 9.189385
  %v8550 = vsub.f32 %v8542, 9.189385
  %v8551 = vsub.f32 %v8543, 9.189385
  %v8552 = vsub.f32 %v8544, 9.189385
  %v8553 = vsub.f32 %v8545, 9.189385
  %v8554 = vsub.f32 %v8546, 9.189385
  %v8555 = vsub.f32 %v8547, 9.189385
  %8563 = vrot.lane.b32.xlu0 %v8437, 68
  %v8564 = vpop.permute.xlu0 %8563
  %8565 = vrot.lane.b32.xlu0 %v8438, 68
  %v8566 = vpop.permute.xlu0 %8565
  %8567 = vrot.lane.b32.xlu0 %v8439, 68
  %v8568 = vpop.permute.xlu0 %8567
  %8569 = vrot.lane.b32.xlu0 %v8440, 68
  %v8570 = vpop.permute.xlu0 %8569
  %8571 = vrot.lane.b32.xlu0 %v8441, 68
  %v8572 = vpop.permute.xlu0 %8571
  %8573 = vrot.lane.b32.xlu0 %v8442, 68
  %v8574 = vpop.permute.xlu0 %8573
  %8575 = vrot.lane.b32.xlu0 %v8443, 68
  %v8576 = vpop.permute.xlu0 %8575
  %8577 = vrot.lane.b32.xlu0 %v8444, 68
  %v8578 = vpop.permute.xlu0 %8577
  %v8587 = vsel %vm89, %v8564, 0.0
  %8588 = vadd.xlane.f32.xlu0 %v8587
  %v8589 = vpop.xlane.xlu0 %8588
  %v8590 = vsel %vm89, %v8566, 0.0
  %8591 = vadd.xlane.f32.xlu0 %v8590
  %v8592 = vpop.xlane.xlu0 %8591
  %v8593 = vsel %vm89, %v8568, 0.0
  %8594 = vadd.xlane.f32.xlu0 %v8593
  %v8595 = vpop.xlane.xlu0 %8594
  %v8596 = vsel %vm89, %v8570, 0.0
  %8597 = vadd.xlane.f32.xlu0 %v8596
  %v8598 = vpop.xlane.xlu0 %8597
  %v8599 = vsel %vm89, %v8572, 0.0
  %8600 = vadd.xlane.f32.xlu0 %v8599
  %v8601 = vpop.xlane.xlu0 %8600
  %v8602 = vsel %vm89, %v8574, 0.0
  %8603 = vadd.xlane.f32.xlu0 %v8602
  %v8604 = vpop.xlane.xlu0 %8603
  %v8605 = vsel %vm89, %v8576, 0.0
  %8606 = vadd.xlane.f32.xlu0 %v8605
  %v8607 = vpop.xlane.xlu0 %8606
  %v8608 = vsel %vm89, %v8578, 0.0
  %8609 = vadd.xlane.f32.xlu0 %v8608
  %v8610 = vpop.xlane.xlu0 %8609
  %v8611 = vadd.f32 %v8548, %v8589
  %v8612 = vadd.f32 %v8549, %v8592
  %v8613 = vadd.f32 %v8550, %v8595
  %v8614 = vadd.f32 %v8551, %v8598
  %v8615 = vadd.f32 %v8552, %v8601
  %v8616 = vadd.f32 %v8553, %v8604
  %v8617 = vadd.f32 %v8554, %v8607
  %v8618 = vadd.f32 %v8555, %v8610
  %8619 = vrot.lane.b32.xlu0 %v8445, 58
  %v8620 = vpop.permute.xlu0 %8619
  %8621 = vrot.lane.b32.xlu0 %v8446, 58
  %v8622 = vpop.permute.xlu0 %8621
  %8623 = vrot.lane.b32.xlu0 %v8447, 58
  %v8624 = vpop.permute.xlu0 %8623
  %8625 = vrot.lane.b32.xlu0 %v8448, 58
  %v8626 = vpop.permute.xlu0 %8625
  %8627 = vrot.lane.b32.xlu0 %v8449, 58
  %v8628 = vpop.permute.xlu0 %8627
  %8629 = vrot.lane.b32.xlu0 %v8450, 58
  %v8630 = vpop.permute.xlu0 %8629
  %8631 = vrot.lane.b32.xlu0 %v8451, 58
  %v8632 = vpop.permute.xlu0 %8631
  %8633 = vrot.lane.b32.xlu0 %v8452, 58
  %v8634 = vpop.permute.xlu0 %8633
  %v8643 = vsel %vm89, %v8620, 0.0
  %8644 = vadd.xlane.f32.xlu0 %v8643
  %v8645 = vpop.xlane.xlu0 %8644
  %v8646 = vsel %vm89, %v8622, 0.0
  %8647 = vadd.xlane.f32.xlu0 %v8646
  %v8648 = vpop.xlane.xlu0 %8647
  %v8649 = vsel %vm89, %v8624, 0.0
  %8650 = vadd.xlane.f32.xlu0 %v8649
  %v8651 = vpop.xlane.xlu0 %8650
  %v8652 = vsel %vm89, %v8626, 0.0
  %8653 = vadd.xlane.f32.xlu0 %v8652
  %v8654 = vpop.xlane.xlu0 %8653
  %v8655 = vsel %vm89, %v8628, 0.0
  %8656 = vadd.xlane.f32.xlu0 %v8655
  %v8657 = vpop.xlane.xlu0 %8656
  %v8658 = vsel %vm89, %v8630, 0.0
  %8659 = vadd.xlane.f32.xlu0 %v8658
  %v8660 = vpop.xlane.xlu0 %8659
  %v8661 = vsel %vm89, %v8632, 0.0
  %8662 = vadd.xlane.f32.xlu0 %v8661
  %v8663 = vpop.xlane.xlu0 %8662
  %v8664 = vsel %vm89, %v8634, 0.0
  %8665 = vadd.xlane.f32.xlu0 %v8664
  %v8666 = vpop.xlane.xlu0 %8665
  %v8667 = vmul.f32 %v8645, -0.5
  %v8668 = vmul.f32 %v8648, -0.5
  %v8669 = vmul.f32 %v8651, -0.5
  %v8670 = vmul.f32 %v8654, -0.5
  %v8671 = vmul.f32 %v8657, -0.5
  %v8672 = vmul.f32 %v8660, -0.5
  %v8673 = vmul.f32 %v8663, -0.5
  %v8674 = vmul.f32 %v8666, -0.5
  %v8675 = vsub.f32 %v8667, 9.189385
  %v8676 = vsub.f32 %v8668, 9.189385
  %v8677 = vsub.f32 %v8669, 9.189385
  %v8678 = vsub.f32 %v8670, 9.189385
  %v8679 = vsub.f32 %v8671, 9.189385
  %v8680 = vsub.f32 %v8672, 9.189385
  %v8681 = vsub.f32 %v8673, 9.189385
  %v8682 = vsub.f32 %v8674, 9.189385
  %8683 = vrot.lane.b32.xlu0 %v8437, 58
  %v8684 = vpop.permute.xlu0 %8683
  %8685 = vrot.lane.b32.xlu0 %v8438, 58
  %v8686 = vpop.permute.xlu0 %8685
  %8687 = vrot.lane.b32.xlu0 %v8439, 58
  %v8688 = vpop.permute.xlu0 %8687
  %8689 = vrot.lane.b32.xlu0 %v8440, 58
  %v8690 = vpop.permute.xlu0 %8689
  %8691 = vrot.lane.b32.xlu0 %v8441, 58
  %v8692 = vpop.permute.xlu0 %8691
  %8693 = vrot.lane.b32.xlu0 %v8442, 58
  %v8694 = vpop.permute.xlu0 %8693
  %8695 = vrot.lane.b32.xlu0 %v8443, 58
  %v8696 = vpop.permute.xlu0 %8695
  %8697 = vrot.lane.b32.xlu0 %v8444, 58
  %v8698 = vpop.permute.xlu0 %8697
  %v8707 = vsel %vm89, %v8684, 0.0
  %8708 = vadd.xlane.f32.xlu0 %v8707
  %v8709 = vpop.xlane.xlu0 %8708
  %v8710 = vsel %vm89, %v8686, 0.0
  %8711 = vadd.xlane.f32.xlu0 %v8710
  %v8712 = vpop.xlane.xlu0 %8711
  %v8713 = vsel %vm89, %v8688, 0.0
  %8714 = vadd.xlane.f32.xlu0 %v8713
  %v8715 = vpop.xlane.xlu0 %8714
  %v8716 = vsel %vm89, %v8690, 0.0
  %8717 = vadd.xlane.f32.xlu0 %v8716
  %v8718 = vpop.xlane.xlu0 %8717
  %v8719 = vsel %vm89, %v8692, 0.0
  %8720 = vadd.xlane.f32.xlu0 %v8719
  %v8721 = vpop.xlane.xlu0 %8720
  %v8722 = vsel %vm89, %v8694, 0.0
  %8723 = vadd.xlane.f32.xlu0 %v8722
  %v8724 = vpop.xlane.xlu0 %8723
  %v8725 = vsel %vm89, %v8696, 0.0
  %8726 = vadd.xlane.f32.xlu0 %v8725
  %v8727 = vpop.xlane.xlu0 %8726
  %v8728 = vsel %vm89, %v8698, 0.0
  %8729 = vadd.xlane.f32.xlu0 %v8728
  %v8730 = vpop.xlane.xlu0 %8729
  %v8731 = vadd.f32 %v8675, %v8709
  %v8732 = vadd.f32 %v8676, %v8712
  %v8733 = vadd.f32 %v8677, %v8715
  %v8734 = vadd.f32 %v8678, %v8718
  %v8735 = vadd.f32 %v8679, %v8721
  %v8736 = vadd.f32 %v8680, %v8724
  %v8737 = vadd.f32 %v8681, %v8727
  %v8738 = vadd.f32 %v8682, %v8730
  %v8739 = vadd.f32 %v8469, 11.512925
  %v8740 = vadd.f32 %v8484, 11.512925
  %v8741 = vmax.f32 %v8739, %v8740
  %v8742 = vmax.f32 %v8741, 0.6931472
  %v8743 = vsub.f32 %v8739, %v8742
  %v8744 = vmul.f32 %v8743, 1.442695
  %v8745 = vpow.pop %v8744
  %v8746 = vsub.f32 %v8740, %v8742
  %v8747 = vmul.f32 %v8746, 1.442695
  %v8748 = vpow.pop %v8747
  %v8749 = vadd.f32 %v8745, %v8748
  %v8750 = vsub.f32 0.6931472, %v8742
  %v8751 = vmul.f32 %v8750, 1.442695
  %v8752 = vpow.pop %v8751
  %v8753 = vadd.f32 %v8749, %v8752
  %v8754 = vlog2.pop %v8753
  %v8755 = vmul.f32 %v8754, 0.6931472
  %v8756 = vadd.f32 %v8742, %v8755
  %v8757 = vmax.f32 %v8739, 0.0
  %v8758 = vand.u32 2147483647, %v8739
  %v8759 = vsub.f32 0.0, %v8758
  %v8760 = vmul.f32 %v8759, 1.442695
  %v8761 = vpow.pop %v8760
  %v8762 = vadd.f32 %v8761, 1.0
  %v8763 = vlog2.pop %v8762
  %v8764 = vmul.f32 %v8763, 0.6931472
  %v8765 = vmul.f32 -0.5, %v8761
  %v8766 = vadd.f32 %v8765, 1.0
  %v8767 = vmul.f32 %v8766, %v8761
  %v8768 = vand.u32 2147483647, %v8761
  %vm8769 = vcmp.lt.f32.partialorder %v8768, 0.0004427343
  %v8770 = vsel %vm8769, %v8767, %v8764
  %v8771 = vadd.f32 %v8757, %v8770
  %v8772 = vsub.f32 %v8771, %v8756
  %v8773 = vmul.f32 %v8772, 1.442695
  %v8774 = vpow.pop %v8773
  %v8775 = vadd.f32 %v8611, 11.512925
  %v8776 = vadd.f32 %v8612, 11.512925
  %v8777 = vadd.f32 %v8613, 11.512925
  %v8778 = vadd.f32 %v8614, 11.512925
  %v8779 = vadd.f32 %v8615, 11.512925
  %v8780 = vadd.f32 %v8616, 11.512925
  %v8781 = vadd.f32 %v8617, 11.512925
  %v8782 = vadd.f32 %v8618, 11.512925
  %v8783 = vadd.f32 %v8731, 11.512925
  %v8784 = vadd.f32 %v8732, 11.512925
  %v8785 = vadd.f32 %v8733, 11.512925
  %v8786 = vadd.f32 %v8734, 11.512925
  %v8787 = vadd.f32 %v8735, 11.512925
  %v8788 = vadd.f32 %v8736, 11.512925
  %v8789 = vadd.f32 %v8737, 11.512925
  %v8790 = vadd.f32 %v8738, 11.512925
  %v8791 = vmax.f32 %v8775, %v8783
  %v8792 = vmax.f32 %v8776, %v8784
  %v8793 = vmax.f32 %v8777, %v8785
  %v8794 = vmax.f32 %v8778, %v8786
  %v8795 = vmax.f32 %v8779, %v8787
  %v8796 = vmax.f32 %v8780, %v8788
  %v8797 = vmax.f32 %v8781, %v8789
  %v8798 = vmax.f32 %v8782, %v8790
  %v8799 = vmax.f32 %v8791, 0.6931472
  %v8800 = vmax.f32 %v8792, 0.6931472
  %v8801 = vmax.f32 %v8793, 0.6931472
  %v8802 = vmax.f32 %v8794, 0.6931472
  %v8803 = vmax.f32 %v8795, 0.6931472
  %v8804 = vmax.f32 %v8796, 0.6931472
  %v8805 = vmax.f32 %v8797, 0.6931472
  %v8806 = vmax.f32 %v8798, 0.6931472
  %v8807 = vsub.f32 %v8775, %v8799
  %v8808 = vsub.f32 %v8776, %v8800
  %v8809 = vsub.f32 %v8777, %v8801
  %v8810 = vsub.f32 %v8778, %v8802
  %v8811 = vsub.f32 %v8779, %v8803
  %v8812 = vsub.f32 %v8780, %v8804
  %v8813 = vsub.f32 %v8781, %v8805
  %v8814 = vsub.f32 %v8782, %v8806
  %v8815 = vmul.f32 %v8807, 1.442695
  %v8816 = vpow.pop %v8815
  %v8817 = vmul.f32 %v8808, 1.442695
  %v8818 = vpow.pop %v8817
  %v8819 = vmul.f32 %v8809, 1.442695
  %v8820 = vpow.pop %v8819
  %v8821 = vmul.f32 %v8810, 1.442695
  %v8822 = vpow.pop %v8821
  %v8823 = vmul.f32 %v8811, 1.442695
  %v8824 = vpow.pop %v8823
  %v8825 = vmul.f32 %v8812, 1.442695
  %v8826 = vpow.pop %v8825
  %v8827 = vmul.f32 %v8813, 1.442695
  %v8828 = vpow.pop %v8827
  %v8829 = vmul.f32 %v8814, 1.442695
  %v8830 = vpow.pop %v8829
  %v8831 = vsub.f32 %v8783, %v8799
  %v8832 = vsub.f32 %v8784, %v8800
  %v8833 = vsub.f32 %v8785, %v8801
  %v8834 = vsub.f32 %v8786, %v8802
  %v8835 = vsub.f32 %v8787, %v8803
  %v8836 = vsub.f32 %v8788, %v8804
  %v8837 = vsub.f32 %v8789, %v8805
  %v8838 = vsub.f32 %v8790, %v8806
  %v8839 = vmul.f32 %v8831, 1.442695
  %v8840 = vpow.pop %v8839
  %v8841 = vmul.f32 %v8832, 1.442695
  %v8842 = vpow.pop %v8841
  %v8843 = vmul.f32 %v8833, 1.442695
  %v8844 = vpow.pop %v8843
  %v8845 = vmul.f32 %v8834, 1.442695
  %v8846 = vpow.pop %v8845
  %v8847 = vmul.f32 %v8835, 1.442695
  %v8848 = vpow.pop %v8847
  %v8849 = vmul.f32 %v8836, 1.442695
  %v8850 = vpow.pop %v8849
  %v8851 = vmul.f32 %v8837, 1.442695
  %v8852 = vpow.pop %v8851
  %v8853 = vmul.f32 %v8838, 1.442695
  %v8854 = vpow.pop %v8853
  %v8855 = vadd.f32 %v8816, %v8840
  %v8856 = vadd.f32 %v8818, %v8842
  %v8857 = vadd.f32 %v8820, %v8844
  %v8858 = vadd.f32 %v8822, %v8846
  %v8859 = vadd.f32 %v8824, %v8848
  %v8860 = vadd.f32 %v8826, %v8850
  %v8861 = vadd.f32 %v8828, %v8852
  %v8862 = vadd.f32 %v8830, %v8854
  %v8863 = vsub.f32 0.6931472, %v8799
  %v8864 = vsub.f32 0.6931472, %v8800
  %v8865 = vsub.f32 0.6931472, %v8801
  %v8866 = vsub.f32 0.6931472, %v8802
  %v8867 = vsub.f32 0.6931472, %v8803
  %v8868 = vsub.f32 0.6931472, %v8804
  %v8869 = vsub.f32 0.6931472, %v8805
  %v8870 = vsub.f32 0.6931472, %v8806
  %v8871 = vmul.f32 %v8863, 1.442695
  %v8872 = vpow.pop %v8871
  %v8873 = vmul.f32 %v8864, 1.442695
  %v8874 = vpow.pop %v8873
  %v8875 = vmul.f32 %v8865, 1.442695
  %v8876 = vpow.pop %v8875
  %v8877 = vmul.f32 %v8866, 1.442695
  %v8878 = vpow.pop %v8877
  %v8879 = vmul.f32 %v8867, 1.442695
  %v8880 = vpow.pop %v8879
  %v8881 = vmul.f32 %v8868, 1.442695
  %v8882 = vpow.pop %v8881
  %v8883 = vmul.f32 %v8869, 1.442695
  %v8884 = vpow.pop %v8883
  %v8885 = vmul.f32 %v8870, 1.442695
  %v8886 = vpow.pop %v8885
  %v8887 = vadd.f32 %v8855, %v8872
  %v8888 = vadd.f32 %v8856, %v8874
  %v8889 = vadd.f32 %v8857, %v8876
  %v8890 = vadd.f32 %v8858, %v8878
  %v8891 = vadd.f32 %v8859, %v8880
  %v8892 = vadd.f32 %v8860, %v8882
  %v8893 = vadd.f32 %v8861, %v8884
  %v8894 = vadd.f32 %v8862, %v8886
  %v8895 = vlog2.pop %v8887
  %v8896 = vmul.f32 %v8895, 0.6931472
  %v8897 = vlog2.pop %v8888
  %v8898 = vmul.f32 %v8897, 0.6931472
  %v8899 = vlog2.pop %v8889
  %v8900 = vmul.f32 %v8899, 0.6931472
  %v8901 = vlog2.pop %v8890
  %v8902 = vmul.f32 %v8901, 0.6931472
  %v8903 = vlog2.pop %v8891
  %v8904 = vmul.f32 %v8903, 0.6931472
  %v8905 = vlog2.pop %v8892
  %v8906 = vmul.f32 %v8905, 0.6931472
  %v8907 = vlog2.pop %v8893
  %v8908 = vmul.f32 %v8907, 0.6931472
  %v8909 = vlog2.pop %v8894
  %v8910 = vmul.f32 %v8909, 0.6931472
  %v8911 = vadd.f32 %v8799, %v8896
  %v8912 = vadd.f32 %v8800, %v8898
  %v8913 = vadd.f32 %v8801, %v8900
  %v8914 = vadd.f32 %v8802, %v8902
  %v8915 = vadd.f32 %v8803, %v8904
  %v8916 = vadd.f32 %v8804, %v8906
  %v8917 = vadd.f32 %v8805, %v8908
  %v8918 = vadd.f32 %v8806, %v8910
  %v8919 = vmax.f32 %v8775, 0.0
  %v8920 = vmax.f32 %v8776, 0.0
  %v8921 = vmax.f32 %v8777, 0.0
  %v8922 = vmax.f32 %v8778, 0.0
  %v8923 = vmax.f32 %v8779, 0.0
  %v8924 = vmax.f32 %v8780, 0.0
  %v8925 = vmax.f32 %v8781, 0.0
  %v8926 = vmax.f32 %v8782, 0.0
  %v8927 = vand.u32 2147483647, %v8775
  %v8928 = vand.u32 2147483647, %v8776
  %v8929 = vand.u32 2147483647, %v8777
  %v8930 = vand.u32 2147483647, %v8778
  %v8931 = vand.u32 2147483647, %v8779
  %v8932 = vand.u32 2147483647, %v8780
  %v8933 = vand.u32 2147483647, %v8781
  %v8934 = vand.u32 2147483647, %v8782
  %v8935 = vsub.f32 0.0, %v8927
  %v8936 = vsub.f32 0.0, %v8928
  %v8937 = vsub.f32 0.0, %v8929
  %v8938 = vsub.f32 0.0, %v8930
  %v8939 = vsub.f32 0.0, %v8931
  %v8940 = vsub.f32 0.0, %v8932
  %v8941 = vsub.f32 0.0, %v8933
  %v8942 = vsub.f32 0.0, %v8934
  %v8943 = vmul.f32 %v8935, 1.442695
  %v8944 = vpow.pop %v8943
  %v8945 = vmul.f32 %v8936, 1.442695
  %v8946 = vpow.pop %v8945
  %v8947 = vmul.f32 %v8937, 1.442695
  %v8948 = vpow.pop %v8947
  %v8949 = vmul.f32 %v8938, 1.442695
  %v8950 = vpow.pop %v8949
  %v8951 = vmul.f32 %v8939, 1.442695
  %v8952 = vpow.pop %v8951
  %v8953 = vmul.f32 %v8940, 1.442695
  %v8954 = vpow.pop %v8953
  %v8955 = vmul.f32 %v8941, 1.442695
  %v8956 = vpow.pop %v8955
  %v8957 = vmul.f32 %v8942, 1.442695
  %v8958 = vpow.pop %v8957
  %v8959 = vadd.f32 %v8944, 1.0
  %v8960 = vlog2.pop %v8959
  %v8961 = vmul.f32 %v8960, 0.6931472
  %v8962 = vmul.f32 -0.5, %v8944
  %v8963 = vadd.f32 %v8962, 1.0
  %v8964 = vmul.f32 %v8963, %v8944
  %v8965 = vand.u32 2147483647, %v8944
  %vm8966 = vcmp.lt.f32.partialorder %v8965, 0.0004427343
  %v8967 = vsel %vm8966, %v8964, %v8961
  %v8968 = vadd.f32 %v8946, 1.0
  %v8969 = vlog2.pop %v8968
  %v8970 = vmul.f32 %v8969, 0.6931472
  %v8971 = vmul.f32 -0.5, %v8946
  %v8972 = vadd.f32 %v8971, 1.0
  %v8973 = vmul.f32 %v8972, %v8946
  %v8974 = vand.u32 2147483647, %v8946
  %vm8975 = vcmp.lt.f32.partialorder %v8974, 0.0004427343
  %v8976 = vsel %vm8975, %v8973, %v8970
  %v8977 = vadd.f32 %v8948, 1.0
  %v8978 = vlog2.pop %v8977
  %v8979 = vmul.f32 %v8978, 0.6931472
  %v8980 = vmul.f32 -0.5, %v8948
  %v8981 = vadd.f32 %v8980, 1.0
  %v8982 = vmul.f32 %v8981, %v8948
  %v8983 = vand.u32 2147483647, %v8948
  %vm8984 = vcmp.lt.f32.partialorder %v8983, 0.0004427343
  %v8985 = vsel %vm8984, %v8982, %v8979
  %v8986 = vadd.f32 %v8950, 1.0
  %v8987 = vlog2.pop %v8986
  %v8988 = vmul.f32 %v8987, 0.6931472
  %v8989 = vmul.f32 -0.5, %v8950
  %v8990 = vadd.f32 %v8989, 1.0
  %v8991 = vmul.f32 %v8990, %v8950
  %v8992 = vand.u32 2147483647, %v8950
  %vm8993 = vcmp.lt.f32.partialorder %v8992, 0.0004427343
  %v8994 = vsel %vm8993, %v8991, %v8988
  %v8995 = vadd.f32 %v8952, 1.0
  %v8996 = vlog2.pop %v8995
  %v8997 = vmul.f32 %v8996, 0.6931472
  %v8998 = vmul.f32 -0.5, %v8952
  %v8999 = vadd.f32 %v8998, 1.0
  %v9000 = vmul.f32 %v8999, %v8952
  %v9001 = vand.u32 2147483647, %v8952
  %vm9002 = vcmp.lt.f32.partialorder %v9001, 0.0004427343
  %v9003 = vsel %vm9002, %v9000, %v8997
  %v9004 = vadd.f32 %v8954, 1.0
  %v9005 = vlog2.pop %v9004
  %v9006 = vmul.f32 %v9005, 0.6931472
  %v9007 = vmul.f32 -0.5, %v8954
  %v9008 = vadd.f32 %v9007, 1.0
  %v9009 = vmul.f32 %v9008, %v8954
  %v9010 = vand.u32 2147483647, %v8954
  %vm9011 = vcmp.lt.f32.partialorder %v9010, 0.0004427343
  %v9012 = vsel %vm9011, %v9009, %v9006
  %v9013 = vadd.f32 %v8956, 1.0
  %v9014 = vlog2.pop %v9013
  %v9015 = vmul.f32 %v9014, 0.6931472
  %v9016 = vmul.f32 -0.5, %v8956
  %v9017 = vadd.f32 %v9016, 1.0
  %v9018 = vmul.f32 %v9017, %v8956
  %v9019 = vand.u32 2147483647, %v8956
  %vm9020 = vcmp.lt.f32.partialorder %v9019, 0.0004427343
  %v9021 = vsel %vm9020, %v9018, %v9015
  %v9022 = vadd.f32 %v8958, 1.0
  %v9023 = vlog2.pop %v9022
  %v9024 = vmul.f32 %v9023, 0.6931472
  %v9025 = vmul.f32 -0.5, %v8958
  %v9026 = vadd.f32 %v9025, 1.0
  %v9027 = vmul.f32 %v9026, %v8958
  %v9028 = vand.u32 2147483647, %v8958
  %vm9029 = vcmp.lt.f32.partialorder %v9028, 0.0004427343
  %v9030 = vsel %vm9029, %v9027, %v9024
  %v9031 = vadd.f32 %v8919, %v8967
  %v9032 = vadd.f32 %v8920, %v8976
  %v9033 = vadd.f32 %v8921, %v8985
  %v9034 = vadd.f32 %v8922, %v8994
  %v9035 = vadd.f32 %v8923, %v9003
  %v9036 = vadd.f32 %v8924, %v9012
  %v9037 = vadd.f32 %v8925, %v9021
  %v9038 = vadd.f32 %v8926, %v9030
  %v9039 = vsub.f32 %v9031, %v8911
  %v9040 = vsub.f32 %v9032, %v8912
  %v9041 = vsub.f32 %v9033, %v8913
  %v9042 = vsub.f32 %v9034, %v8914
  %v9043 = vsub.f32 %v9035, %v8915
  %v9044 = vsub.f32 %v9036, %v8916
  %v9045 = vsub.f32 %v9037, %v8917
  %v9046 = vsub.f32 %v9038, %v8918
  %v9047 = vmul.f32 %v9039, 1.442695
  %v9048 = vpow.pop %v9047
  %v9049 = vmul.f32 %v9040, 1.442695
  %v9050 = vpow.pop %v9049
  %v9051 = vmul.f32 %v9041, 1.442695
  %v9052 = vpow.pop %v9051
  %v9053 = vmul.f32 %v9042, 1.442695
  %v9054 = vpow.pop %v9053
  %v9055 = vmul.f32 %v9043, 1.442695
  %v9056 = vpow.pop %v9055
  %v9057 = vmul.f32 %v9044, 1.442695
  %v9058 = vpow.pop %v9057
  %v9059 = vmul.f32 %v9045, 1.442695
  %v9060 = vpow.pop %v9059
  %v9061 = vmul.f32 %v9046, 1.442695
  %v9062 = vpow.pop %v9061
  %v9063 = vmin.f32 %v8469, 77.0
  %v9064 = vmul.f32 %v9063, 1.442695
  %v9065 = vpow.pop %v9064
  %v9066 = vmul.f32 %v9065, 100000.0
  %v9067 = vadd.f32 %v9066, 1.0
  %v9068 = vmin.f32 %v8484, 77.0
  %v9069 = vmul.f32 %v9068, 1.442695
  %v9070 = vpow.pop %v9069
  %v9071 = vmul.f32 %v9070, 100000.0
  %v9072 = vadd.f32 %v9071, 1.0
  %v9073 = vsel %vm435, %v712, 0.0
  %v9074 = vsel %vm435, %v8774, 0.0
  %v9075 = vsel %vm435, %v9067, 0.0
  %v9076 = vsel %vm435, %v9072, 0.0
  %9078 = vrot.lane.b32.xlu0 %v9074, 9
  %v9079 = vpop.permute.xlu0 %9078
  %9080 = vrot.lane.b32.xlu0 0.0, 9
  %v9081 = vpop.permute.xlu0 %9080
  %9085 = vrot.lane.b32.xlu0 %v9075, 10
  %v9086 = vpop.permute.xlu0 %9085
  %9089 = vrot.lane.b32.xlu0 %v9076, 11
  %v9090 = vpop.permute.xlu0 %9089
  %9091 = vrot.lane.b32.xlu0 0.0, 11
  %v9092 = vpop.permute.xlu0 %9091
  %v9095 = vsel %vm398, %v409, %v9048
  %v9096 = vsel %vm398, %v9073, %v9050
  %v9097 = vsel %vm398, 0.0, %v9052
  %v9098 = vsel %vm398, 0.0, %v9054
  %vm9099 = vcmask 72704
  %v9100 = vsel %vm9099, %v9095, %v9079
  %v9101 = vsel %vm9099, %v9096, %v9081
  %v9102 = vsel %vm9099, %v9097, %v9081
  %v9103 = vsel %vm9099, %v9098, %v9081
  %v9104 = vsel %vm89, %v9100, %v9086
  %v9105 = vsel %vm89, %v9101, %v1037
  %v9106 = vsel %vm89, %v9102, %v1037
  %v9107 = vsel %vm89, %v9103, %v1037
  %vm9108 = vcmask 89088
  %v9109 = vsel %vm9108, %v9104, %v9090
  %v9110 = vsel %vm9108, %v9105, %v9092
  %v9111 = vsel %vm9108, %v9106, %v9092
  %v9112 = vsel %vm9108, %v9107, %v9092
  %vm9113 = vcmask 97280
  %v9114 = vsel %vm9113, %v9109, 0.0
  %v9115 = vsel %vm9113, %v9110, 0.0
  %v9116 = vsel %vm9113, %v9111, 0.0
  %v9117 = vsel %vm9113, %v9112, 0.0
  %9118 = vst [vmem:[%s5] sm:$0xff] %v9114
  %9119 = vst [vmem:[%s5 + $0x8] sm:$0xff] %v9115
  %9120 = vst [vmem:[%s5 + $0x10] sm:$0xff] %v9116
  %9121 = vst [vmem:[%s5 + $0x18] sm:$0xff] %v9117
  %v9123 = vrot.slane %v712, 4
  %v9125 = vsel %vm435, %v9123, 0.0
  %v9127 = vrot.slane %v8774, 4
  %v9129 = vsel %vm435, %v9127, 0.0
  %v9131 = vrot.slane %v9067, 4
  %v9133 = vsel %vm435, %v9131, 0.0
  %v9135 = vrot.slane %v9072, 4
  %v9137 = vsel %vm435, %v9135, 0.0
  %9139 = vrot.lane.b32.xlu0 %v9129, 9
  %v9140 = vpop.permute.xlu0 %9139
  %9143 = vrot.lane.b32.xlu0 %v9133, 10
  %v9144 = vpop.permute.xlu0 %9143
  %9147 = vrot.lane.b32.xlu0 %v9137, 11
  %v9148 = vpop.permute.xlu0 %9147
  %v9150 = vsel %vm398, %v429, %v9056
  %v9151 = vsel %vm398, %v9125, %v9058
  %v9152 = vsel %vm398, 0.0, %v9060
  %v9153 = vsel %vm398, 0.0, %v9062
  %v9154 = vsel %vm9099, %v9150, %v9140
  %v9155 = vsel %vm9099, %v9151, %v9081
  %v9156 = vsel %vm9099, %v9152, %v9081
  %v9157 = vsel %vm9099, %v9153, %v9081
  %v9158 = vsel %vm89, %v9154, %v9144
  %v9159 = vsel %vm89, %v9155, %v1037
  %v9160 = vsel %vm89, %v9156, %v1037
  %v9161 = vsel %vm89, %v9157, %v1037
  %v9162 = vsel %vm9108, %v9158, %v9148
  %v9163 = vsel %vm9108, %v9159, %v9092
  %v9164 = vsel %vm9108, %v9160, %v9092
  %v9165 = vsel %vm9108, %v9161, %v9092
  %v9166 = vsel %vm9113, %v9162, 0.0
  %v9167 = vsel %vm9113, %v9163, 0.0
  %v9168 = vsel %vm9113, %v9164, 0.0
  %v9169 = vsel %vm9113, %v9165, 0.0
  %s9170 = scalar_lea.vmem %s5, 32
  %9171 = vst [vmem:[%s9170] sm:$0xff] %v9166
  %9172 = vst [vmem:[%s9170 + $0x8] sm:$0xff] %v9167
  %9173 = vst [vmem:[%s9170 + $0x10] sm:$0xff] %v9168
  %9174 = vst [vmem:[%s9170 + $0x18] sm:$0xff] %v9169
  // Predicated region
  $region22: #{_lambda_.1} parent=0 // pred_check
    _
  $region23: #{_lambda_.1} parent=0 // pred_check_branch
    %9176 = sbr.rel (0) target = $region25
  $region24: #{_lambda_.1} parent=0 // pred_region
    _
  $region25: #{_lambda_.1} parent=0 // pred_fallthru
    _
  // Predicated region
  $region26: #{_lambda_.1} parent=0 // pred_check
    _
  $region27: #{_lambda_.1} parent=0 // pred_check_branch
    %9178 = sbr.rel (0) target = $region29
  $region28: #{_lambda_.1} parent=0 // pred_region
    _
  $region29: #{_lambda_.1} parent=0 // pred_fallthru
    _

</llo_original>
